<compile_context>
chip_gen: v7x
topology: tpu7x:2x2x1
jax: 0.10.0
libtpu: 0.0.40
codegen_flags: <defaults>
</compile_context>

<pallas_src>
import jax
import jax.numpy as jnp
from jax.experimental import pallas as pl
from jax.experimental.pallas import tpu as pltpu


def _round_up(x, m):
    return (x + m - 1) // m * m


# -----------------------------------------------------------------------------
# Pallas kernels
# -----------------------------------------------------------------------------
def conv_relu_pool_kernel(p_ref, w_ref, b_ref, o_ref):
    """Fused 3x3 conv (as GEMM) + 2x2 max-pool + bias + ReLU for one row tile.

    p_ref: (4, TM, K) bf16  4 = pool-window positions, TM pooled pixels, K=9*Cin
    w_ref: (K, Cout)  bf16  conv weight, rows ordered (kh, kw, cin)
    b_ref: (1, Cout)  f32
    o_ref: (TM, Cout) bf16  pooled activations, rows ordered (b, ph, pw)
    """
    # Raw conv results for the 4 positions of each pooling window; bias + ReLU
    # are hoisted after the max (both monotone, bias identical per window).
    m = jnp.dot(p_ref[0], w_ref[...], preferred_element_type=jnp.float32)
    for widx in range(1, 4):  # static unroll over the 2x2 pooling window
        m = jnp.maximum(
            m, jnp.dot(p_ref[widx], w_ref[...],
                       preferred_element_type=jnp.float32))
    o_ref[...] = jnp.maximum(m + b_ref[...], 0.0).astype(o_ref.dtype)


def fc_kernel(x_ref, w1_ref, b1_ref, w2_ref, b2_ref, o_ref):
    """Fused fc1 + ReLU + fc2 for one batch tile (weights VMEM-resident)."""
    h = jnp.dot(x_ref[...], w1_ref[...],
                preferred_element_type=jnp.float32) + b1_ref[...]
    h = jnp.maximum(h, 0.0).astype(jnp.bfloat16)
    o_ref[...] = (jnp.dot(h, w2_ref[...],
                          preferred_element_type=jnp.float32)
                  + b2_ref[...]).astype(o_ref.dtype)


# -----------------------------------------------------------------------------
# Wrapper glue (layout / im2col only; all FLOPs happen in the kernels above)
# -----------------------------------------------------------------------------
def _im2col_pool_windows(x_nhwc):
    """(B,H,W,Cin) -> (4, B*(H//2)*(W//2), 9*Cin) patches (3x3 conv, pad=1).

    Leading axis 4 = the (di, dj) position inside each 2x2 max-pool window so
    the kernel can pool with a cheap elementwise max.
    """
    B, H, W, Cin = x_nhwc.shape
    Hh, Wh = H // 2, W // 2
    xpad = jnp.pad(x_nhwc, ((0, 0), (1, 1), (1, 1), (0, 0)))
    shifts = [xpad[:, kh:kh + H, kw:kw + W, :]
              for kh in range(3) for kw in range(3)]
    cols = jnp.stack(shifts, axis=3)                     # (B,H,W,9,Cin)
    cols = cols.reshape(B, H, W, 9 * Cin)                # (kh,kw,cin) flatten
    cols = cols.reshape(B, Hh, 2, Wh, 2, 9 * Cin)
    cols = cols.transpose(2, 4, 0, 1, 3, 5)              # (di,dj,B,Hh,Wh,F)
    return cols.reshape(4, B * Hh * Wh, 9 * Cin)


def conv_relu_pool(x_nhwc, w_oihw, bias, *, tile_m=512):
    B, H, W, Cin = x_nhwc.shape
    Cout = w_oihw.shape[0]
    Hh, Wh = H // 2, W // 2
    M, K = B * Hh * Wh, 9 * Cin

    patches = _im2col_pool_windows(x_nhwc.astype(jnp.bfloat16))     # (4,M,K)

    tm = min(tile_m, _round_up(M, 128))          # row tile, multiple of 128
    m_pad = _round_up(M, tm)
    if m_pad != M:
        patches = jnp.pad(patches, ((0, 0), (0, m_pad - M), (0, 0)))

    w_mat = (jnp.transpose(w_oihw, (2, 3, 1, 0))                    # (kh,kw,ci,co)
             .reshape(K, Cout).astype(jnp.bfloat16))
    b_mat = bias.reshape(1, Cout).astype(jnp.float32)

    out = pl.pallas_call(
        conv_relu_pool_kernel,
        out_shape=jax.ShapeDtypeStruct((m_pad, Cout), jnp.bfloat16),
        grid=(m_pad // tm,),
        in_specs=[
            pl.BlockSpec((4, tm, K), lambda i: (0, i, 0)),   # streamed row tiles
            pl.BlockSpec((K, Cout), lambda i: (0, 0)),       # weights resident
            pl.BlockSpec((1, Cout), lambda i: (0, 0)),       # bias resident
        ],
        out_specs=pl.BlockSpec((tm, Cout), lambda i: (i, 0)),
        compiler_params=pltpu.CompilerParams(
            dimension_semantics=("parallel",)),
    )(patches, w_mat, b_mat)
    return out[:M].reshape(B, Hh, Wh, Cout)                         # NHWC bf16


def fc_head(feat, w1, b1, w2, b2, *, tile_b=256):
    B, F = feat.shape
    Hid = w1.shape[1]
    O = w2.shape[1]
    tb = min(tile_b, _round_up(B, 16))
    b_pad = _round_up(B, tb)
    if b_pad != B:
        feat = jnp.pad(feat, ((0, b_pad - B), (0, 0)))
    out = pl.pallas_call(
        fc_kernel,
        out_shape=jax.ShapeDtypeStruct((b_pad, O), jnp.float32),
        grid=(b_pad // tb,),
        in_specs=[
            pl.BlockSpec((tb, F), lambda i: (i, 0)),         # batch tiles
            pl.BlockSpec((F, Hid), lambda i: (0, 0)),        # fc1 weight resident
            pl.BlockSpec((1, Hid), lambda i: (0, 0)),
            pl.BlockSpec((Hid, O), lambda i: (0, 0)),        # fc2 weight resident
            pl.BlockSpec((1, O), lambda i: (0, 0)),
        ],
        out_specs=pl.BlockSpec((tb, O), lambda i: (i, 0)),
        compiler_params=pltpu.CompilerParams(
            dimension_semantics=("parallel",)),
    )(feat, w1, b1, w2, b2)
    return out[:B]


def cnn_regression_forward(x_nchw, params):
    B = x_nchw.shape[0]
    x = jnp.transpose(x_nchw, (0, 2, 3, 1))                          # NCHW->NHWC
    h1 = conv_relu_pool(x, params["conv1_w"], params["conv1_b"])     # (B,14,14,64)
    h2 = conv_relu_pool(h1, params["conv2_w"], params["conv2_b"])    # (B,7,7,64)

    # h2 is already flat in (h, w, c) order.  Instead of transposing the
    # activations to torch's (c, h, w) flatten order every forward, permute
    # fc1's weight rows once (tiny, weight-sized reshuffle outside the loop).
    Hh, Wh, C = h2.shape[1:]
    feat = h2.reshape(B, Hh * Wh * C)                                # bf16
    Hid = params["fc1_w"].shape[0]
    w1 = (params["fc1_w"].reshape(Hid, C, Hh, Wh)                    # (o,c,h,w)
          .transpose(2, 3, 1, 0)                                     # (h,w,c,o)
          .reshape(Hh * Wh * C, Hid)
          .astype(jnp.bfloat16))
    b1 = params["fc1_b"].reshape(1, -1).astype(jnp.float32)
    w2 = params["fc2_w"].T.astype(jnp.bfloat16)                      # (128,48)
    b2 = params["fc2_b"].reshape(1, -1).astype(jnp.float32)
    return fc_head(feat, w1, b1, w2, b2)


# -----------------------------------------------------------------------------
# Deterministic parameter init (shapes from CNNRegression.__init__)
# -----------------------------------------------------------------------------
def init_params(key):
    ks = jax.random.split(key, 8)

    def u(k, shape, fan_in):
        bound = (1.0 / fan_in) ** 0.5
        return jax.random.uniform(k, shape, jnp.float32, -bound, bound)

    return {
        "conv1_w": u(ks[0], (64, 1, 3, 3), 1 * 9),      # OIHW
        "conv1_b": u(ks[1], (64,), 1 * 9),
        "conv2_w": u(ks[2], (64, 64, 3, 3), 64 * 9),
        "conv2_b": u(ks[3], (64,), 64 * 9),
        "fc1_w":   u(ks[4], (128, 64 * 7 * 7), 64 * 7 * 7),  # (out, in) like torch
        "fc1_b":   u(ks[5], (128,), 64 * 7 * 7),
        "fc2_w":   u(ks[6], (2 * 12 + 2 * 12, 128), 128),
        "fc2_b":   u(ks[7], (2 * 12 + 2 * 12,), 128),
    }


# Pure-JAX f32 reference (for a correctness self-check).
def reference_forward(x, p):
    dn = ("NCHW", "OIHW", "NCHW")
    y = jax.lax.conv_general_dilated(x, p["conv1_w"], (1, 1), "SAME",
                                     dimension_numbers=dn)
    y = jax.nn.relu(y + p["conv1_b"].reshape(1, -1, 1, 1))
    y = jax.lax.reduce_window(y, -jnp.inf, jax.lax.max,
                              (1, 1, 2, 2), (1, 1, 2, 2), "VALID")
    y = jax.lax.conv_general_dilated(y, p["conv2_w"], (1, 1), "SAME",
                                     dimension_numbers=dn)
    y = jax.nn.relu(y + p["conv2_b"].reshape(1, -1, 1, 1))
    y = jax.lax.reduce_window(y, -jnp.inf, jax.lax.max,
                              (1, 1, 2, 2), (1, 1, 2, 2), "VALID")
    y = y.reshape(y.shape[0], -1)
    y = jax.nn.relu(y @ p["fc1_w"].T + p["fc1_b"])
    return y @ p["fc2_w"].T + p["fc2_b"]


if __name__ == "__main__":
    key = jax.random.PRNGKey(0)
    k_param, k_x = jax.random.split(key)
    params = init_params(k_param)

    # fc1 expects 64*7*7 features -> input spatial must be 28x28, 1 channel.
    x = jax.random.normal(k_x, (2, 1, 28, 28), dtype=jnp.float32)

    out = jax.block_until_ready(jax.jit(cnn_regression_forward)(x, params))
    assert out.shape == (2, 2 * 12 + 2 * 12)

    ref = jax.block_until_ready(reference_forward(x, params))
    max_err = float(jnp.max(jnp.abs(out - ref)))
    # bf16 GEMM inputs with f32 accumulation: allow a slightly loose tolerance.
    assert jnp.allclose(out, ref, rtol=2e-2, atol=2e-2), max_err

    print("KERNEL_OK")
</pallas_src>

<mosaic_0001>
module attributes {stable_mosaic.version = 11 : i64} {
  func.func @conv_relu_pool_kernel(%arg0: i32, %arg1: memref<4x512x9xbf16, #tpu.memory_space<vmem>>, %arg2: memref<9x64xbf16, #tpu.memory_space<vmem>>, %arg3: memref<1x64xf32, #tpu.memory_space<vmem>>, %arg4: memref<512x64xbf16, #tpu.memory_space<vmem>>) attributes {dimension_semantics = [#tpu.dimension_semantics<parallel>], iteration_bounds = array<i64: 1>, scalar_prefetch = 0 : i64, scratch_operands = 0 : i64, tpu.core_type = #tpu.core_type<tc>, window_params = [{transform_indices = @transform_0, window_bounds = array<i64: 4, 512, 9>}, {pipeline_mode = #tpu.pipeline_mode<synchronous>, transform_indices = @transform_1, window_bounds = array<i64: 9, 64>}, {pipeline_mode = #tpu.pipeline_mode<synchronous>, transform_indices = @transform_2, window_bounds = array<i64: 1, 64>}, {transform_indices = @transform_3, window_bounds = array<i64: 512, 64>}]} {
    %c0 = arith.constant 0 : index
    %c0_0 = arith.constant 0 : index
    %c0_1 = arith.constant 0 : index
    %0 = vector.load %arg1[%c0, %c0_0, %c0_1] : memref<4x512x9xbf16, #tpu.memory_space<vmem>>, vector<1x512x9xbf16>
    %1 = vector.shape_cast %0 : vector<1x512x9xbf16> to vector<512x9xbf16>
    %c0_2 = arith.constant 0 : index
    %c0_3 = arith.constant 0 : index
    %2 = vector.load %arg2[%c0_2, %c0_3] : memref<9x64xbf16, #tpu.memory_space<vmem>>, vector<9x64xbf16>
    %cst = arith.constant dense<0.000000e+00> : vector<512x64xf32>
    %3 = tpu.matmul %1, %2, %cst {dimension_numbers = #tpu.dot_dimension_numbers<[1], [0], [0], [1], [0, 0, 1, 1], [], []>} : vector<512x9xbf16>, vector<9x64xbf16>, vector<512x64xf32> -> vector<512x64xf32>
    %c1 = arith.constant 1 : index
    %c0_4 = arith.constant 0 : index
    %c0_5 = arith.constant 0 : index
    %4 = vector.load %arg1[%c1, %c0_4, %c0_5] : memref<4x512x9xbf16, #tpu.memory_space<vmem>>, vector<1x512x9xbf16>
    %5 = vector.shape_cast %4 : vector<1x512x9xbf16> to vector<512x9xbf16>
    %c0_6 = arith.constant 0 : index
    %c0_7 = arith.constant 0 : index
    %6 = vector.load %arg2[%c0_6, %c0_7] : memref<9x64xbf16, #tpu.memory_space<vmem>>, vector<9x64xbf16>
    %cst_8 = arith.constant dense<0.000000e+00> : vector<512x64xf32>
    %7 = tpu.matmul %5, %6, %cst_8 {dimension_numbers = #tpu.dot_dimension_numbers<[1], [0], [0], [1], [0, 0, 1, 1], [], []>} : vector<512x9xbf16>, vector<9x64xbf16>, vector<512x64xf32> -> vector<512x64xf32>
    %8 = arith.maximumf %3, %7 : vector<512x64xf32>
    %c2 = arith.constant 2 : index
    %c0_9 = arith.constant 0 : index
    %c0_10 = arith.constant 0 : index
    %9 = vector.load %arg1[%c2, %c0_9, %c0_10] : memref<4x512x9xbf16, #tpu.memory_space<vmem>>, vector<1x512x9xbf16>
    %10 = vector.shape_cast %9 : vector<1x512x9xbf16> to vector<512x9xbf16>
    %c0_11 = arith.constant 0 : index
    %c0_12 = arith.constant 0 : index
    %11 = vector.load %arg2[%c0_11, %c0_12] : memref<9x64xbf16, #tpu.memory_space<vmem>>, vector<9x64xbf16>
    %cst_13 = arith.constant dense<0.000000e+00> : vector<512x64xf32>
    %12 = tpu.matmul %10, %11, %cst_13 {dimension_numbers = #tpu.dot_dimension_numbers<[1], [0], [0], [1], [0, 0, 1, 1], [], []>} : vector<512x9xbf16>, vector<9x64xbf16>, vector<512x64xf32> -> vector<512x64xf32>
    %13 = arith.maximumf %8, %12 : vector<512x64xf32>
    %c3 = arith.constant 3 : index
    %c0_14 = arith.constant 0 : index
    %c0_15 = arith.constant 0 : index
    %14 = vector.load %arg1[%c3, %c0_14, %c0_15] : memref<4x512x9xbf16, #tpu.memory_space<vmem>>, vector<1x512x9xbf16>
    %15 = vector.shape_cast %14 : vector<1x512x9xbf16> to vector<512x9xbf16>
    %c0_16 = arith.constant 0 : index
    %c0_17 = arith.constant 0 : index
    %16 = vector.load %arg2[%c0_16, %c0_17] : memref<9x64xbf16, #tpu.memory_space<vmem>>, vector<9x64xbf16>
    %cst_18 = arith.constant dense<0.000000e+00> : vector<512x64xf32>
    %17 = tpu.matmul %15, %16, %cst_18 {dimension_numbers = #tpu.dot_dimension_numbers<[1], [0], [0], [1], [0, 0, 1, 1], [], []>} : vector<512x9xbf16>, vector<9x64xbf16>, vector<512x64xf32> -> vector<512x64xf32>
    %18 = arith.maximumf %13, %17 : vector<512x64xf32>
    %c0_19 = arith.constant 0 : index
    %c0_20 = arith.constant 0 : index
    %19 = vector.load %arg3[%c0_19, %c0_20] : memref<1x64xf32, #tpu.memory_space<vmem>>, vector<1x64xf32>
    %20 = vector.broadcast %19 : vector<1x64xf32> to vector<512x64xf32>
    %21 = arith.addf %18, %20 : vector<512x64xf32>
    %cst_21 = arith.constant 0.000000e+00 : f32
    %22 = vector.broadcast %cst_21 : f32 to vector<512x64xf32>
    %23 = arith.maximumf %21, %22 : vector<512x64xf32>
    %24 = arith.truncf %23 : vector<512x64xf32> to vector<512x64xbf16>
    %c0_22 = arith.constant 0 : index
    %c0_23 = arith.constant 0 : index
    %25 = vector.load %arg4[%c0_22, %c0_23] : memref<512x64xbf16, #tpu.memory_space<vmem>>, vector<512x64xbf16>
    tpu.vector_store %arg4[%c0_22, %c0_23], %24 {strides = array<i32>} : memref<512x64xbf16, #tpu.memory_space<vmem>>, vector<512x64xbf16>,
    return
  }
  func.func @transform_0(%arg0: i32) -> (i32, i32, i32) {
    %c0_i32 = arith.constant 0 : i32
    %c0_i32_0 = arith.constant 0 : i32
    %c0_i32_1 = arith.constant 0 : i32
    return %c0_i32, %arg0, %c0_i32_0 : i32, i32, i32
  }
  func.func @transform_1(%arg0: i32) -> (i32, i32) {
    %c0_i32 = arith.constant 0 : i32
    %c0_i32_0 = arith.constant 0 : i32
    %c0_i32_1 = arith.constant 0 : i32
    return %c0_i32, %c0_i32_0 : i32, i32
  }
  func.func @transform_2(%arg0: i32) -> (i32, i32) {
    %c0_i32 = arith.constant 0 : i32
    %c0_i32_0 = arith.constant 0 : i32
    %c0_i32_1 = arith.constant 0 : i32
    return %c0_i32, %c0_i32_0 : i32, i32
  }
  func.func @transform_3(%arg0: i32) -> (i32, i32) {
    %c0_i32 = arith.constant 0 : i32
    %c0_i32_0 = arith.constant 0 : i32
    return %arg0, %c0_i32 : i32, i32
  }
}

module attributes {stable_mosaic.version = 11 : i64} {
  func.func @conv_relu_pool_kernel(%arg0: i32, %arg1: memref<4x128x576xbf16, #tpu.memory_space<vmem>>, %arg2: memref<576x64xbf16, #tpu.memory_space<vmem>>, %arg3: memref<1x64xf32, #tpu.memory_space<vmem>>, %arg4: memref<128x64xbf16, #tpu.memory_space<vmem>>) attributes {dimension_semantics = [#tpu.dimension_semantics<parallel>], iteration_bounds = array<i64: 1>, scalar_prefetch = 0 : i64, scratch_operands = 0 : i64, tpu.core_type = #tpu.core_type<tc>, window_params = [{transform_indices = @transform_0, window_bounds = array<i64: 4, 128, 576>}, {pipeline_mode = #tpu.pipeline_mode<synchronous>, transform_indices = @transform_1, window_bounds = array<i64: 576, 64>}, {pipeline_mode = #tpu.pipeline_mode<synchronous>, transform_indices = @transform_2, window_bounds = array<i64: 1, 64>}, {transform_indices = @transform_3, window_bounds = array<i64: 128, 64>}]} {
    %c0 = arith.constant 0 : index
    %c0_0 = arith.constant 0 : index
    %c0_1 = arith.constant 0 : index
    %0 = vector.load %arg1[%c0, %c0_0, %c0_1] : memref<4x128x576xbf16, #tpu.memory_space<vmem>>, vector<1x128x576xbf16>
    %1 = vector.shape_cast %0 : vector<1x128x576xbf16> to vector<128x576xbf16>
    %c0_2 = arith.constant 0 : index
    %c0_3 = arith.constant 0 : index
    %2 = vector.load %arg2[%c0_2, %c0_3] : memref<576x64xbf16, #tpu.memory_space<vmem>>, vector<576x64xbf16>
    %cst = arith.constant dense<0.000000e+00> : vector<128x64xf32>
    %3 = tpu.matmul %1, %2, %cst {dimension_numbers = #tpu.dot_dimension_numbers<[1], [0], [0], [1], [0, 0, 1, 1], [], []>} : vector<128x576xbf16>, vector<576x64xbf16>, vector<128x64xf32> -> vector<128x64xf32>
    %c1 = arith.constant 1 : index
    %c0_4 = arith.constant 0 : index
    %c0_5 = arith.constant 0 : index
    %4 = vector.load %arg1[%c1, %c0_4, %c0_5] : memref<4x128x576xbf16, #tpu.memory_space<vmem>>, vector<1x128x576xbf16>
    %5 = vector.shape_cast %4 : vector<1x128x576xbf16> to vector<128x576xbf16>
    %c0_6 = arith.constant 0 : index
    %c0_7 = arith.constant 0 : index
    %6 = vector.load %arg2[%c0_6, %c0_7] : memref<576x64xbf16, #tpu.memory_space<vmem>>, vector<576x64xbf16>
    %cst_8 = arith.constant dense<0.000000e+00> : vector<128x64xf32>
    %7 = tpu.matmul %5, %6, %cst_8 {dimension_numbers = #tpu.dot_dimension_numbers<[1], [0], [0], [1], [0, 0, 1, 1], [], []>} : vector<128x576xbf16>, vector<576x64xbf16>, vector<128x64xf32> -> vector<128x64xf32>
    %8 = arith.maximumf %3, %7 : vector<128x64xf32>
    %c2 = arith.constant 2 : index
    %c0_9 = arith.constant 0 : index
    %c0_10 = arith.constant 0 : index
    %9 = vector.load %arg1[%c2, %c0_9, %c0_10] : memref<4x128x576xbf16, #tpu.memory_space<vmem>>, vector<1x128x576xbf16>
    %10 = vector.shape_cast %9 : vector<1x128x576xbf16> to vector<128x576xbf16>
    %c0_11 = arith.constant 0 : index
    %c0_12 = arith.constant 0 : index
    %11 = vector.load %arg2[%c0_11, %c0_12] : memref<576x64xbf16, #tpu.memory_space<vmem>>, vector<576x64xbf16>
    %cst_13 = arith.constant dense<0.000000e+00> : vector<128x64xf32>
    %12 = tpu.matmul %10, %11, %cst_13 {dimension_numbers = #tpu.dot_dimension_numbers<[1], [0], [0], [1], [0, 0, 1, 1], [], []>} : vector<128x576xbf16>, vector<576x64xbf16>, vector<128x64xf32> -> vector<128x64xf32>
    %13 = arith.maximumf %8, %12 : vector<128x64xf32>
    %c3 = arith.constant 3 : index
    %c0_14 = arith.constant 0 : index
    %c0_15 = arith.constant 0 : index
    %14 = vector.load %arg1[%c3, %c0_14, %c0_15] : memref<4x128x576xbf16, #tpu.memory_space<vmem>>, vector<1x128x576xbf16>
    %15 = vector.shape_cast %14 : vector<1x128x576xbf16> to vector<128x576xbf16>
    %c0_16 = arith.constant 0 : index
    %c0_17 = arith.constant 0 : index
    %16 = vector.load %arg2[%c0_16, %c0_17] : memref<576x64xbf16, #tpu.memory_space<vmem>>, vector<576x64xbf16>
    %cst_18 = arith.constant dense<0.000000e+00> : vector<128x64xf32>
    %17 = tpu.matmul %15, %16, %cst_18 {dimension_numbers = #tpu.dot_dimension_numbers<[1], [0], [0], [1], [0, 0, 1, 1], [], []>} : vector<128x576xbf16>, vector<576x64xbf16>, vector<128x64xf32> -> vector<128x64xf32>
    %18 = arith.maximumf %13, %17 : vector<128x64xf32>
    %c0_19 = arith.constant 0 : index
    %c0_20 = arith.constant 0 : index
    %19 = vector.load %arg3[%c0_19, %c0_20] : memref<1x64xf32, #tpu.memory_space<vmem>>, vector<1x64xf32>
    %20 = vector.broadcast %19 : vector<1x64xf32> to vector<128x64xf32>
    %21 = arith.addf %18, %20 : vector<128x64xf32>
    %cst_21 = arith.constant 0.000000e+00 : f32
    %22 = vector.broadcast %cst_21 : f32 to vector<128x64xf32>
    %23 = arith.maximumf %21, %22 : vector<128x64xf32>
    %24 = arith.truncf %23 : vector<128x64xf32> to vector<128x64xbf16>
    %c0_22 = arith.constant 0 : index
    %c0_23 = arith.constant 0 : index
    %25 = vector.load %arg4[%c0_22, %c0_23] : memref<128x64xbf16, #tpu.memory_space<vmem>>, vector<128x64xbf16>
    tpu.vector_store %arg4[%c0_22, %c0_23], %24 {strides = array<i32>} : memref<128x64xbf16, #tpu.memory_space<vmem>>, vector<128x64xbf16>,
    return
  }
  func.func @transform_0(%arg0: i32) -> (i32, i32, i32) {
    %c0_i32 = arith.constant 0 : i32
    %c0_i32_0 = arith.constant 0 : i32
    %c0_i32_1 = arith.constant 0 : i32
    return %c0_i32, %arg0, %c0_i32_0 : i32, i32, i32
  }
  func.func @transform_1(%arg0: i32) -> (i32, i32) {
    %c0_i32 = arith.constant 0 : i32
    %c0_i32_0 = arith.constant 0 : i32
    %c0_i32_1 = arith.constant 0 : i32
    return %c0_i32, %c0_i32_0 : i32, i32
  }
  func.func @transform_2(%arg0: i32) -> (i32, i32) {
    %c0_i32 = arith.constant 0 : i32
    %c0_i32_0 = arith.constant 0 : i32
    %c0_i32_1 = arith.constant 0 : i32
    return %c0_i32, %c0_i32_0 : i32, i32
  }
  func.func @transform_3(%arg0: i32) -> (i32, i32) {
    %c0_i32 = arith.constant 0 : i32
    %c0_i32_0 = arith.constant 0 : i32
    return %arg0, %c0_i32 : i32, i32
  }
}

module attributes {stable_mosaic.version = 11 : i64} {
  func.func @fc_kernel(%arg0: i32, %arg1: memref<16x3136xbf16, #tpu.memory_space<vmem>>, %arg2: memref<3136x128xbf16, #tpu.memory_space<vmem>>, %arg3: memref<1x128xf32, #tpu.memory_space<vmem>>, %arg4: memref<128x48xbf16, #tpu.memory_space<vmem>>, %arg5: memref<1x48xf32, #tpu.memory_space<vmem>>, %arg6: memref<16x48xf32, #tpu.memory_space<vmem>>) attributes {dimension_semantics = [#tpu.dimension_semantics<parallel>], iteration_bounds = array<i64: 1>, scalar_prefetch = 0 : i64, scratch_operands = 0 : i64, tpu.core_type = #tpu.core_type<tc>, window_params = [{transform_indices = @transform_0, window_bounds = array<i64: 16, 3136>}, {pipeline_mode = #tpu.pipeline_mode<synchronous>, transform_indices = @transform_1, window_bounds = array<i64: 3136, 128>}, {pipeline_mode = #tpu.pipeline_mode<synchronous>, transform_indices = @transform_2, window_bounds = array<i64: 1, 128>}, {pipeline_mode = #tpu.pipeline_mode<synchronous>, transform_indices = @transform_3, window_bounds = array<i64: 128, 48>}, {pipeline_mode = #tpu.pipeline_mode<synchronous>, transform_indices = @transform_4, window_bounds = array<i64: 1, 48>}, {transform_indices = @transform_5, window_bounds = array<i64: 16, 48>}]} {
    %c0 = arith.constant 0 : index
    %c0_0 = arith.constant 0 : index
    %0 = vector.load %arg1[%c0, %c0_0] : memref<16x3136xbf16, #tpu.memory_space<vmem>>, vector<16x3136xbf16>
    %c0_1 = arith.constant 0 : index
    %c0_2 = arith.constant 0 : index
    %1 = vector.load %arg2[%c0_1, %c0_2] : memref<3136x128xbf16, #tpu.memory_space<vmem>>, vector<3136x128xbf16>
    %cst = arith.constant dense<0.000000e+00> : vector<16x128xf32>
    %2 = tpu.matmul %0, %1, %cst {dimension_numbers = #tpu.dot_dimension_numbers<[1], [0], [0], [1], [0, 0, 1, 1], [], []>} : vector<16x3136xbf16>, vector<3136x128xbf16>, vector<16x128xf32> -> vector<16x128xf32>
    %c0_3 = arith.constant 0 : index
    %c0_4 = arith.constant 0 : index
    %3 = vector.load %arg3[%c0_3, %c0_4] : memref<1x128xf32, #tpu.memory_space<vmem>>, vector<1x128xf32>
    %4 = vector.broadcast %3 : vector<1x128xf32> to vector<16x128xf32>
    %5 = arith.addf %2, %4 : vector<16x128xf32>
    %cst_5 = arith.constant 0.000000e+00 : f32
    %6 = vector.broadcast %cst_5 : f32 to vector<16x128xf32>
    %7 = arith.maximumf %5, %6 : vector<16x128xf32>
    %8 = arith.truncf %7 : vector<16x128xf32> to vector<16x128xbf16>
    %c0_6 = arith.constant 0 : index
    %c0_7 = arith.constant 0 : index
    %9 = vector.load %arg4[%c0_6, %c0_7] : memref<128x48xbf16, #tpu.memory_space<vmem>>, vector<128x48xbf16>
    %cst_8 = arith.constant dense<0.000000e+00> : vector<16x48xf32>
    %10 = tpu.matmul %8, %9, %cst_8 {dimension_numbers = #tpu.dot_dimension_numbers<[1], [0], [0], [1], [0, 0, 1, 1], [], []>} : vector<16x128xbf16>, vector<128x48xbf16>, vector<16x48xf32> -> vector<16x48xf32>
    %c0_9 = arith.constant 0 : index
    %c0_10 = arith.constant 0 : index
    %11 = vector.load %arg5[%c0_9, %c0_10] : memref<1x48xf32, #tpu.memory_space<vmem>>, vector<1x48xf32>
    %12 = vector.broadcast %11 : vector<1x48xf32> to vector<16x48xf32>
    %13 = arith.addf %10, %12 : vector<16x48xf32>
    %c0_11 = arith.constant 0 : index
    %c0_12 = arith.constant 0 : index
    %14 = vector.load %arg6[%c0_11, %c0_12] : memref<16x48xf32, #tpu.memory_space<vmem>>, vector<16x48xf32>
    tpu.vector_store %arg6[%c0_11, %c0_12], %13 {strides = array<i32>} : memref<16x48xf32, #tpu.memory_space<vmem>>, vector<16x48xf32>,
    return
  }
  func.func @transform_0(%arg0: i32) -> (i32, i32) {
    %c0_i32 = arith.constant 0 : i32
    %c0_i32_0 = arith.constant 0 : i32
    return %arg0, %c0_i32 : i32, i32
  }
  func.func @transform_1(%arg0: i32) -> (i32, i32) {
    %c0_i32 = arith.constant 0 : i32
    %c0_i32_0 = arith.constant 0 : i32
    %c0_i32_1 = arith.constant 0 : i32
    return %c0_i32, %c0_i32_0 : i32, i32
  }
  func.func @transform_2(%arg0: i32) -> (i32, i32) {
    %c0_i32 = arith.constant 0 : i32
    %c0_i32_0 = arith.constant 0 : i32
    %c0_i32_1 = arith.constant 0 : i32
    return %c0_i32, %c0_i32_0 : i32, i32
  }
  func.func @transform_3(%arg0: i32) -> (i32, i32) {
    %c0_i32 = arith.constant 0 : i32
    %c0_i32_0 = arith.constant 0 : i32
    %c0_i32_1 = arith.constant 0 : i32
    return %c0_i32, %c0_i32_0 : i32, i32
  }
  func.func @transform_4(%arg0: i32) -> (i32, i32) {
    %c0_i32 = arith.constant 0 : i32
    %c0_i32_0 = arith.constant 0 : i32
    %c0_i32_1 = arith.constant 0 : i32
    return %c0_i32, %c0_i32_0 : i32, i32
  }
  func.func @transform_5(%arg0: i32) -> (i32, i32) {
    %c0_i32 = arith.constant 0 : i32
    %c0_i32_0 = arith.constant 0 : i32
    return %arg0, %c0_i32 : i32, i32
  }
}

</mosaic_0001>

<llo_original>
// kernel: cnn_regression_forward.3
$region0: #{cnn_regression_forward.3}
  #allocation0 [shape = 'u32[]', space=smem, size = 0x4, offset = 0x4, fixed_abs, tag = 'smem constant byte address 0x4 - core index']
  #allocation1 [shape = 'u32[144,128]{1,0:T(1,128)}', space=vmem, size = 0x12000, scoped, tag = 'internal scratch']
  %s0 = inlined_call_operand.vmem [shape: bf16[4,512,9], index: 0, kind: input, shape index: {}]
  %s1 = inlined_call_operand.vmem [shape: bf16[9,64], index: 1, kind: input, shape index: {}]
  %s2 = inlined_call_operand.vmem [shape: f32[1,64], index: 2, kind: input, shape index: {}]
  %s3 = inlined_call_operand.vmem [shape: bf16[512,64], index: 3, kind: output, shape index: {}]
  %s4 = sld [smem:[#allocation0]]
  $region22: #{cnn_regression_forward.3} parent=0
    _
  %s6 = ssub.s32 1, %s4
  %s7 = scalar_select 0, %s6, %s4
  // Predicated region
  $region2: #{cnn_regression_forward.3} parent=0 // pred_check
    _
  $region3: #{cnn_regression_forward.3} parent=0 // pred_check_branch
    %9 = sbr.rel (0) target = $region5
  $region4: #{cnn_regression_forward.3} parent=0 // pred_region
    _
  $region5: #{cnn_regression_forward.3} parent=0 // pred_fallthru
    _
  // Predicated region
  $region6: #{cnn_regression_forward.3} parent=0 // pred_check
    _
  $region7: #{cnn_regression_forward.3} parent=0 // pred_check_branch
    %11 = sbr.rel (0) target = $region9
  $region8: #{cnn_regression_forward.3} parent=0 // pred_region
    _
  $region9: #{cnn_regression_forward.3} parent=0 // pred_fallthru
    _
  // Predicated region
  $region10: #{cnn_regression_forward.3} parent=0 // pred_check
    _
  $region11: #{cnn_regression_forward.3} parent=0 // pred_check_branch
    %13 = sbr.rel (0) target = $region13
  $region12: #{cnn_regression_forward.3} parent=0 // pred_region
    _
  $region13: #{cnn_regression_forward.3} parent=0 // pred_fallthru
    _
  %v15 = vld [vmem:[%s0] sm:$0xf]
  %v16 = vld [vmem:[%s0 + $0x4] sm:$0xf]
  %v17 = vld [vmem:[%s0 + $0x8] sm:$0xf]
  %v18 = vld [vmem:[%s0 + $0xc] sm:$0xf]
  %v19 = vld [vmem:[%s0 + $0x10] sm:$0xf]
  %v20 = vld [vmem:[%s0 + $0x14] sm:$0xf]
  %v21 = vld [vmem:[%s0 + $0x18] sm:$0xf]
  %v22 = vld [vmem:[%s0 + $0x1c] sm:$0xf]
  %v23 = vld [vmem:[%s0 + $0x20] sm:$0xf]
  %v24 = vld [vmem:[%s0 + $0x24] sm:$0xf]
  %v25 = vld [vmem:[%s0 + $0x28] sm:$0xf]
  %v26 = vld [vmem:[%s0 + $0x2c] sm:$0xf]
  %v27 = vld [vmem:[%s0 + $0x30] sm:$0xf]
  %v28 = vld [vmem:[%s0 + $0x34] sm:$0xf]
  %v29 = vld [vmem:[%s0 + $0x38] sm:$0xf]
  %v30 = vld [vmem:[%s0 + $0x3c] sm:$0xf]
  %v31 = vld [vmem:[%s0 + $0x40] sm:$0xf]
  %v32 = vld [vmem:[%s0 + $0x44] sm:$0xf]
  %v33 = vld [vmem:[%s0 + $0x48] sm:$0xf]
  %v34 = vld [vmem:[%s0 + $0x4c] sm:$0xf]
  %v35 = vld [vmem:[%s0 + $0x50] sm:$0xf]
  %v36 = vld [vmem:[%s0 + $0x54] sm:$0xf]
  %v37 = vld [vmem:[%s0 + $0x58] sm:$0xf]
  %v38 = vld [vmem:[%s0 + $0x5c] sm:$0xf]
  %v39 = vld [vmem:[%s0 + $0x60] sm:$0xf]
  %v40 = vld [vmem:[%s0 + $0x64] sm:$0xf]
  %v41 = vld [vmem:[%s0 + $0x68] sm:$0xf]
  %v42 = vld [vmem:[%s0 + $0x6c] sm:$0xf]
  %v43 = vld [vmem:[%s0 + $0x70] sm:$0xf]
  %v44 = vld [vmem:[%s0 + $0x74] sm:$0xf]
  %v45 = vld [vmem:[%s0 + $0x78] sm:$0xf]
  %v46 = vld [vmem:[%s0 + $0x7c] sm:$0xf]
  %v47 = vld [vmem:[%s0 + $0x80] sm:$0xf]
  %v48 = vld [vmem:[%s0 + $0x84] sm:$0xf]
  %v49 = vld [vmem:[%s0 + $0x88] sm:$0xf]
  %v50 = vld [vmem:[%s0 + $0x8c] sm:$0xf]
  %v51 = vld [vmem:[%s0 + $0x90] sm:$0xf]
  %v52 = vld [vmem:[%s0 + $0x94] sm:$0xf]
  %v53 = vld [vmem:[%s0 + $0x98] sm:$0xf]
  %v54 = vld [vmem:[%s0 + $0x9c] sm:$0xf]
  %v55 = vld [vmem:[%s0 + $0xa0] sm:$0xf]
  %v56 = vld [vmem:[%s0 + $0xa4] sm:$0xf]
  %v57 = vld [vmem:[%s0 + $0xa8] sm:$0xf]
  %v58 = vld [vmem:[%s0 + $0xac] sm:$0xf]
  %v59 = vld [vmem:[%s0 + $0xb0] sm:$0xf]
  %v60 = vld [vmem:[%s0 + $0xb4] sm:$0xf]
  %v61 = vld [vmem:[%s0 + $0xb8] sm:$0xf]
  %v62 = vld [vmem:[%s0 + $0xbc] sm:$0xf]
  %v63 = vld [vmem:[%s0 + $0xc0] sm:$0xf]
  %v64 = vld [vmem:[%s0 + $0xc4] sm:$0xf]
  %v65 = vld [vmem:[%s0 + $0xc8] sm:$0xf]
  %v66 = vld [vmem:[%s0 + $0xcc] sm:$0xf]
  %v67 = vld [vmem:[%s0 + $0xd0] sm:$0xf]
  %v68 = vld [vmem:[%s0 + $0xd4] sm:$0xf]
  %v69 = vld [vmem:[%s0 + $0xd8] sm:$0xf]
  %v70 = vld [vmem:[%s0 + $0xdc] sm:$0xf]
  %v71 = vld [vmem:[%s0 + $0xe0] sm:$0xf]
  %v72 = vld [vmem:[%s0 + $0xe4] sm:$0xf]
  %v73 = vld [vmem:[%s0 + $0xe8] sm:$0xf]
  %v74 = vld [vmem:[%s0 + $0xec] sm:$0xf]
  %v75 = vld [vmem:[%s0 + $0xf0] sm:$0xf]
  %v76 = vld [vmem:[%s0 + $0xf4] sm:$0xf]
  %v77 = vld [vmem:[%s0 + $0xf8] sm:$0xf]
  %v78 = vld [vmem:[%s0 + $0xfc] sm:$0xf]
  %v79 = vld [vmem:[%s1] sm:$0xf]
  %v80 = vld [vmem:[%s1 + $0x4] sm:$0x1]
  %v145 = vunpack.c.l.b16 %v15
  %v146 = vunpack.c.l.b16 %v16
  %v147 = vunpack.c.l.b16 %v17
  %v148 = vunpack.c.l.b16 %v18
  %v149 = vunpack.c.l.b16 %v19
  %v150 = vunpack.c.l.b16 %v20
  %v151 = vunpack.c.l.b16 %v21
  %v152 = vunpack.c.l.b16 %v22
  %v153 = vunpack.c.l.b16 %v23
  %v154 = vunpack.c.l.b16 %v24
  %v155 = vunpack.c.l.b16 %v25
  %v156 = vunpack.c.l.b16 %v26
  %v157 = vunpack.c.l.b16 %v27
  %v158 = vunpack.c.l.b16 %v28
  %v159 = vunpack.c.l.b16 %v29
  %v160 = vunpack.c.l.b16 %v30
  %v161 = vunpack.c.l.b16 %v31
  %v162 = vunpack.c.l.b16 %v32
  %v163 = vunpack.c.l.b16 %v33
  %v164 = vunpack.c.l.b16 %v34
  %v165 = vunpack.c.l.b16 %v35
  %v166 = vunpack.c.l.b16 %v36
  %v167 = vunpack.c.l.b16 %v37
  %v168 = vunpack.c.l.b16 %v38
  %v169 = vunpack.c.l.b16 %v39
  %v170 = vunpack.c.l.b16 %v40
  %v171 = vunpack.c.l.b16 %v41
  %v172 = vunpack.c.l.b16 %v42
  %v173 = vunpack.c.l.b16 %v43
  %v174 = vunpack.c.l.b16 %v44
  %v175 = vunpack.c.l.b16 %v45
  %v176 = vunpack.c.l.b16 %v46
  %v177 = vunpack.c.l.b16 %v47
  %v178 = vunpack.c.l.b16 %v48
  %v179 = vunpack.c.l.b16 %v49
  %v180 = vunpack.c.l.b16 %v50
  %v181 = vunpack.c.l.b16 %v51
  %v182 = vunpack.c.l.b16 %v52
  %v183 = vunpack.c.l.b16 %v53
  %v184 = vunpack.c.l.b16 %v54
  %v185 = vunpack.c.l.b16 %v55
  %v186 = vunpack.c.l.b16 %v56
  %v187 = vunpack.c.l.b16 %v57
  %v188 = vunpack.c.l.b16 %v58
  %v189 = vunpack.c.l.b16 %v59
  %v190 = vunpack.c.l.b16 %v60
  %v191 = vunpack.c.l.b16 %v61
  %v192 = vunpack.c.l.b16 %v62
  %v193 = vunpack.c.l.b16 %v63
  %v194 = vunpack.c.l.b16 %v64
  %v195 = vunpack.c.l.b16 %v65
  %v196 = vunpack.c.l.b16 %v66
  %v197 = vunpack.c.l.b16 %v67
  %v198 = vunpack.c.l.b16 %v68
  %v199 = vunpack.c.l.b16 %v69
  %v200 = vunpack.c.l.b16 %v70
  %v201 = vunpack.c.l.b16 %v71
  %v202 = vunpack.c.l.b16 %v72
  %v203 = vunpack.c.l.b16 %v73
  %v204 = vunpack.c.l.b16 %v74
  %v205 = vunpack.c.l.b16 %v75
  %v206 = vunpack.c.l.b16 %v76
  %v207 = vunpack.c.l.b16 %v77
  %v208 = vunpack.c.l.b16 %v78
  %v209 = vpack.c.b16 %v146, %v145
  %v210 = vpack.c.b16 %v148, %v147
  %v211 = vpack.c.b16 %v150, %v149
  %v212 = vpack.c.b16 %v152, %v151
  %v213 = vpack.c.b16 %v154, %v153
  %v214 = vpack.c.b16 %v156, %v155
  %v215 = vpack.c.b16 %v158, %v157
  %v216 = vpack.c.b16 %v160, %v159
  %v217 = vpack.c.b16 %v162, %v161
  %v218 = vpack.c.b16 %v164, %v163
  %v219 = vpack.c.b16 %v166, %v165
  %v220 = vpack.c.b16 %v168, %v167
  %v221 = vpack.c.b16 %v170, %v169
  %v222 = vpack.c.b16 %v172, %v171
  %v223 = vpack.c.b16 %v174, %v173
  %v224 = vpack.c.b16 %v176, %v175
  %v225 = vpack.c.b16 %v178, %v177
  %v226 = vpack.c.b16 %v180, %v179
  %v227 = vpack.c.b16 %v182, %v181
  %v228 = vpack.c.b16 %v184, %v183
  %v229 = vpack.c.b16 %v186, %v185
  %v230 = vpack.c.b16 %v188, %v187
  %v231 = vpack.c.b16 %v190, %v189
  %v232 = vpack.c.b16 %v192, %v191
  %v233 = vpack.c.b16 %v194, %v193
  %v234 = vpack.c.b16 %v196, %v195
  %v235 = vpack.c.b16 %v198, %v197
  %v236 = vpack.c.b16 %v200, %v199
  %v237 = vpack.c.b16 %v202, %v201
  %v238 = vpack.c.b16 %v204, %v203
  %v239 = vpack.c.b16 %v206, %v205
  %v240 = vpack.c.b16 %v208, %v207
  %v243 = vunpack.c.l.b16 %v79
  %v244 = vunpack.c.l.b16 %v80
  %v245 = vpack.c.b16 %v244, %v243
  %vm246 = vcmask 72704
  %v248 = vsel %vm246, %v209, 0
  %v251 = vsel %vm246, %v210, 0
  %v254 = vsel %vm246, %v211, 0
  %v257 = vsel %vm246, %v212, 0
  %v260 = vsel %vm246, %v213, 0
  %v263 = vsel %vm246, %v214, 0
  %v266 = vsel %vm246, %v215, 0
  %v269 = vsel %vm246, %v216, 0
  %v272 = vsel %vm246, %v217, 0
  %v275 = vsel %vm246, %v218, 0
  %v278 = vsel %vm246, %v219, 0
  %v281 = vsel %vm246, %v220, 0
  %v284 = vsel %vm246, %v221, 0
  %v287 = vsel %vm246, %v222, 0
  %v290 = vsel %vm246, %v223, 0
  %v293 = vsel %vm246, %v224, 0
  %v296 = vsel %vm246, %v225, 0
  %v299 = vsel %vm246, %v226, 0
  %v302 = vsel %vm246, %v227, 0
  %v305 = vsel %vm246, %v228, 0
  %v308 = vsel %vm246, %v229, 0
  %v311 = vsel %vm246, %v230, 0
  %v314 = vsel %vm246, %v231, 0
  %v317 = vsel %vm246, %v232, 0
  %v320 = vsel %vm246, %v233, 0
  %v323 = vsel %vm246, %v234, 0
  %v326 = vsel %vm246, %v235, 0
  %v329 = vsel %vm246, %v236, 0
  %v332 = vsel %vm246, %v237, 0
  %v335 = vsel %vm246, %v238, 0
  %v338 = vsel %vm246, %v239, 0
  %v341 = vsel %vm246, %v240, 0
  %vm343 = vcmask 1043456
  %vm344 = vcmask 1044480
  %v345 = vsel %vm343, 4294967295, 65535
  %v346 = vsel %vm344, %v345, 0
  %v348 = vand.u32 %v245, %v346
  %350 = vmatprep.subr.bf16.mxu0 0
  %351 = vmatpush1.bf16.msra.mxu0 %v348
  %352 = vmatprep.subr.bf16.mxu0 0
  %353 = vmatpush1.bf16.msra.mxu0 0
  %354 = vmatprep.subr.bf16.mxu0 0
  %355 = vmatpush1.bf16.msra.mxu0 0
  %356 = vmatprep.subr.bf16.mxu0 0
  %357 = vmatpush1.bf16.msra.mxu0 0
  %358 = vmatprep.subr.bf16.mxu0 0
  %359 = vmatpush1.bf16.msra.mxu0 0
  %360 = vmatprep.subr.bf16.mxu0 0
  %361 = vmatpush1.bf16.msra.mxu0 0
  %362 = vmatprep.subr.bf16.mxu0 0
  %363 = vmatpush1.bf16.msra.mxu0 0
  %364 = vmatprep.subr.bf16.mxu0 0
  %365 = vmatpush1.bf16.msra.mxu0 0
  %366 = vmatprep.subr.bf16.mxu0 0
  %367 = vmatpush1.bf16.msra.mxu0 0
  %368 = vmatprep.subr.bf16.mxu0 0
  %369 = vmatpush1.bf16.msra.mxu0 0
  %370 = vmatprep.subr.bf16.mxu0 0
  %371 = vmatpush1.bf16.msra.mxu0 0
  %372 = vmatprep.subr.bf16.mxu0 0
  %373 = vmatpush1.bf16.msra.mxu0 0
  %374 = vmatprep.subr.bf16.mxu0 0
  %375 = vmatpush1.bf16.msra.mxu0 0
  %376 = vmatprep.subr.bf16.mxu0 0
  %377 = vmatpush1.bf16.msra.mxu0 0
  %378 = vmatprep.subr.bf16.mxu0 0
  %379 = vmatpush1.bf16.msra.mxu0 0
  %380 = vmatprep.subr.bf16.mxu0 0
  %381 = vmatpush1.bf16.msra.mxu0 0
  %382 = vmatprep.mubr.bf16.mxu0 0
  %383 = vmatmul.mubr.bf16.gmra.mrb[0].mxu0 %v248
  %v384 = vpop.f32.mrb[0].mxu0
  %v385 = vadd.f32 0.0, %v384
  %v386 = vpop.f32.mrb[0].mxu0
  %v387 = vpop.f32.mrb[0].mxu0
  %v388 = vadd.f32 0.0, %v387
  %v389 = vpop.f32.mrb[0].mxu0
  %390 = vmatprep.mubr.bf16.mxu0 0
  %391 = vmatmul.mubr.bf16.gmra.mrb[0].mxu0 %v251
  %v392 = vpop.f32.mrb[0].mxu0
  %v393 = vadd.f32 0.0, %v392
  %v394 = vpop.f32.mrb[0].mxu0
  %v395 = vpop.f32.mrb[0].mxu0
  %v396 = vadd.f32 0.0, %v395
  %v397 = vpop.f32.mrb[0].mxu0
  %398 = vmatprep.mubr.bf16.mxu0 0
  %399 = vmatmul.mubr.bf16.gmra.mrb[0].mxu0 %v254
  %v400 = vpop.f32.mrb[0].mxu0
  %v401 = vadd.f32 0.0, %v400
  %v402 = vpop.f32.mrb[0].mxu0
  %v403 = vpop.f32.mrb[0].mxu0
  %v404 = vadd.f32 0.0, %v403
  %v405 = vpop.f32.mrb[0].mxu0
  %406 = vmatprep.mubr.bf16.mxu0 0
  %407 = vmatmul.mubr.bf16.gmra.mrb[0].mxu0 %v257
  %v408 = vpop.f32.mrb[0].mxu0
  %v409 = vadd.f32 0.0, %v408
  %v410 = vpop.f32.mrb[0].mxu0
  %v411 = vpop.f32.mrb[0].mxu0
  %v412 = vadd.f32 0.0, %v411
  %v413 = vpop.f32.mrb[0].mxu0
  %414 = vmatprep.mubr.bf16.mxu0 0
  %415 = vmatmul.mubr.bf16.gmra.mrb[0].mxu0 %v260
  %v416 = vpop.f32.mrb[0].mxu0
  %v417 = vadd.f32 0.0, %v416
  %v418 = vpop.f32.mrb[0].mxu0
  %v419 = vpop.f32.mrb[0].mxu0
  %v420 = vadd.f32 0.0, %v419
  %v421 = vpop.f32.mrb[0].mxu0
  %422 = vmatprep.mubr.bf16.mxu0 0
  %423 = vmatmul.mubr.bf16.gmra.mrb[0].mxu0 %v263
  %v424 = vpop.f32.mrb[0].mxu0
  %v425 = vadd.f32 0.0, %v424
  %v426 = vpop.f32.mrb[0].mxu0
  %v427 = vpop.f32.mrb[0].mxu0
  %v428 = vadd.f32 0.0, %v427
  %v429 = vpop.f32.mrb[0].mxu0
  %430 = vmatprep.mubr.bf16.mxu0 0
  %431 = vmatmul.mubr.bf16.gmra.mrb[0].mxu0 %v266
  %v432 = vpop.f32.mrb[0].mxu0
  %v433 = vadd.f32 0.0, %v432
  %v434 = vpop.f32.mrb[0].mxu0
  %v435 = vpop.f32.mrb[0].mxu0
  %v436 = vadd.f32 0.0, %v435
  %v437 = vpop.f32.mrb[0].mxu0
  %438 = vmatprep.mubr.bf16.mxu0 0
  %439 = vmatmul.mubr.bf16.gmra.mrb[0].mxu0 %v269
  %v440 = vpop.f32.mrb[0].mxu0
  %v441 = vadd.f32 0.0, %v440
  %v442 = vpop.f32.mrb[0].mxu0
  %v443 = vpop.f32.mrb[0].mxu0
  %v444 = vadd.f32 0.0, %v443
  %v445 = vpop.f32.mrb[0].mxu0
  %446 = vmatprep.mubr.bf16.mxu0 0
  %447 = vmatmul.mubr.bf16.gmra.mrb[0].mxu0 %v272
  %v448 = vpop.f32.mrb[0].mxu0
  %v449 = vadd.f32 0.0, %v448
  %v450 = vpop.f32.mrb[0].mxu0
  %v451 = vpop.f32.mrb[0].mxu0
  %v452 = vadd.f32 0.0, %v451
  %v453 = vpop.f32.mrb[0].mxu0
  %454 = vmatprep.mubr.bf16.mxu0 0
  %455 = vmatmul.mubr.bf16.gmra.mrb[0].mxu0 %v275
  %v456 = vpop.f32.mrb[0].mxu0
  %v457 = vadd.f32 0.0, %v456
  %v458 = vpop.f32.mrb[0].mxu0
  %v459 = vpop.f32.mrb[0].mxu0
  %v460 = vadd.f32 0.0, %v459
  %v461 = vpop.f32.mrb[0].mxu0
  %462 = vmatprep.mubr.bf16.mxu0 0
  %463 = vmatmul.mubr.bf16.gmra.mrb[0].mxu0 %v278
  %v464 = vpop.f32.mrb[0].mxu0
  %v465 = vadd.f32 0.0, %v464
  %v466 = vpop.f32.mrb[0].mxu0
  %v467 = vpop.f32.mrb[0].mxu0
  %v468 = vadd.f32 0.0, %v467
  %v469 = vpop.f32.mrb[0].mxu0
  %470 = vmatprep.mubr.bf16.mxu0 0
  %471 = vmatmul.mubr.bf16.gmra.mrb[0].mxu0 %v281
  %v472 = vpop.f32.mrb[0].mxu0
  %v473 = vadd.f32 0.0, %v472
  %v474 = vpop.f32.mrb[0].mxu0
  %v475 = vpop.f32.mrb[0].mxu0
  %v476 = vadd.f32 0.0, %v475
  %v477 = vpop.f32.mrb[0].mxu0
  %478 = vmatprep.mubr.bf16.mxu0 0
  %479 = vmatmul.mubr.bf16.gmra.mrb[0].mxu0 %v284
  %v480 = vpop.f32.mrb[0].mxu0
  %v481 = vadd.f32 0.0, %v480
  %v482 = vpop.f32.mrb[0].mxu0
  %v483 = vpop.f32.mrb[0].mxu0
  %v484 = vadd.f32 0.0, %v483
  %v485 = vpop.f32.mrb[0].mxu0
  %486 = vmatprep.mubr.bf16.mxu0 0
  %487 = vmatmul.mubr.bf16.gmra.mrb[0].mxu0 %v287
  %v488 = vpop.f32.mrb[0].mxu0
  %v489 = vadd.f32 0.0, %v488
  %v490 = vpop.f32.mrb[0].mxu0
  %v491 = vpop.f32.mrb[0].mxu0
  %v492 = vadd.f32 0.0, %v491
  %v493 = vpop.f32.mrb[0].mxu0
  %494 = vmatprep.mubr.bf16.mxu0 0
  %495 = vmatmul.mubr.bf16.gmra.mrb[0].mxu0 %v290
  %v496 = vpop.f32.mrb[0].mxu0
  %v497 = vadd.f32 0.0, %v496
  %v498 = vpop.f32.mrb[0].mxu0
  %v499 = vpop.f32.mrb[0].mxu0
  %v500 = vadd.f32 0.0, %v499
  %v501 = vpop.f32.mrb[0].mxu0
  %502 = vmatprep.mubr.bf16.mxu0 0
  %503 = vmatmul.mubr.bf16.gmra.mrb[0].mxu0 %v293
  %v504 = vpop.f32.mrb[0].mxu0
  %v505 = vadd.f32 0.0, %v504
  %v506 = vpop.f32.mrb[0].mxu0
  %v507 = vpop.f32.mrb[0].mxu0
  %v508 = vadd.f32 0.0, %v507
  %v509 = vpop.f32.mrb[0].mxu0
  %510 = vmatprep.mubr.bf16.mxu0 0
  %511 = vmatmul.mubr.bf16.gmra.mrb[0].mxu0 %v296
  %v512 = vpop.f32.mrb[0].mxu0
  %v513 = vadd.f32 0.0, %v512
  %v514 = vpop.f32.mrb[0].mxu0
  %v515 = vpop.f32.mrb[0].mxu0
  %v516 = vadd.f32 0.0, %v515
  %v517 = vpop.f32.mrb[0].mxu0
  %518 = vmatprep.mubr.bf16.mxu0 0
  %519 = vmatmul.mubr.bf16.gmra.mrb[0].mxu0 %v299
  %v520 = vpop.f32.mrb[0].mxu0
  %v521 = vadd.f32 0.0, %v520
  %v522 = vpop.f32.mrb[0].mxu0
  %v523 = vpop.f32.mrb[0].mxu0
  %v524 = vadd.f32 0.0, %v523
  %v525 = vpop.f32.mrb[0].mxu0
  %526 = vmatprep.mubr.bf16.mxu0 0
  %527 = vmatmul.mubr.bf16.gmra.mrb[0].mxu0 %v302
  %v528 = vpop.f32.mrb[0].mxu0
  %v529 = vadd.f32 0.0, %v528
  %v530 = vpop.f32.mrb[0].mxu0
  %v531 = vpop.f32.mrb[0].mxu0
  %v532 = vadd.f32 0.0, %v531
  %v533 = vpop.f32.mrb[0].mxu0
  %534 = vmatprep.mubr.bf16.mxu0 0
  %535 = vmatmul.mubr.bf16.gmra.mrb[0].mxu0 %v305
  %v536 = vpop.f32.mrb[0].mxu0
  %v537 = vadd.f32 0.0, %v536
  %v538 = vpop.f32.mrb[0].mxu0
  %v539 = vpop.f32.mrb[0].mxu0
  %v540 = vadd.f32 0.0, %v539
  %v541 = vpop.f32.mrb[0].mxu0
  %542 = vmatprep.mubr.bf16.mxu0 0
  %543 = vmatmul.mubr.bf16.gmra.mrb[0].mxu0 %v308
  %v544 = vpop.f32.mrb[0].mxu0
  %v545 = vadd.f32 0.0, %v544
  %v546 = vpop.f32.mrb[0].mxu0
  %v547 = vpop.f32.mrb[0].mxu0
  %v548 = vadd.f32 0.0, %v547
  %v549 = vpop.f32.mrb[0].mxu0
  %550 = vmatprep.mubr.bf16.mxu0 0
  %551 = vmatmul.mubr.bf16.gmra.mrb[0].mxu0 %v311
  %v552 = vpop.f32.mrb[0].mxu0
  %v553 = vadd.f32 0.0, %v552
  %v554 = vpop.f32.mrb[0].mxu0
  %v555 = vpop.f32.mrb[0].mxu0
  %v556 = vadd.f32 0.0, %v555
  %v557 = vpop.f32.mrb[0].mxu0
  %558 = vmatprep.mubr.bf16.mxu0 0
  %559 = vmatmul.mubr.bf16.gmra.mrb[0].mxu0 %v314
  %v560 = vpop.f32.mrb[0].mxu0
  %v561 = vadd.f32 0.0, %v560
  %v562 = vpop.f32.mrb[0].mxu0
  %v563 = vpop.f32.mrb[0].mxu0
  %v564 = vadd.f32 0.0, %v563
  %v565 = vpop.f32.mrb[0].mxu0
  %566 = vmatprep.mubr.bf16.mxu0 0
  %567 = vmatmul.mubr.bf16.gmra.mrb[0].mxu0 %v317
  %v568 = vpop.f32.mrb[0].mxu0
  %v569 = vadd.f32 0.0, %v568
  %v570 = vpop.f32.mrb[0].mxu0
  %v571 = vpop.f32.mrb[0].mxu0
  %v572 = vadd.f32 0.0, %v571
  %v573 = vpop.f32.mrb[0].mxu0
  %574 = vmatprep.mubr.bf16.mxu0 0
  %575 = vmatmul.mubr.bf16.gmra.mrb[0].mxu0 %v320
  %v576 = vpop.f32.mrb[0].mxu0
  %v577 = vadd.f32 0.0, %v576
  %v578 = vpop.f32.mrb[0].mxu0
  %v579 = vpop.f32.mrb[0].mxu0
  %v580 = vadd.f32 0.0, %v579
  %v581 = vpop.f32.mrb[0].mxu0
  %582 = vmatprep.mubr.bf16.mxu0 0
  %583 = vmatmul.mubr.bf16.gmra.mrb[0].mxu0 %v323
  %v584 = vpop.f32.mrb[0].mxu0
  %v585 = vadd.f32 0.0, %v584
  %v586 = vpop.f32.mrb[0].mxu0
  %v587 = vpop.f32.mrb[0].mxu0
  %v588 = vadd.f32 0.0, %v587
  %v589 = vpop.f32.mrb[0].mxu0
  %590 = vmatprep.mubr.bf16.mxu0 0
  %591 = vmatmul.mubr.bf16.gmra.mrb[0].mxu0 %v326
  %v592 = vpop.f32.mrb[0].mxu0
  %v593 = vadd.f32 0.0, %v592
  %v594 = vpop.f32.mrb[0].mxu0
  %v595 = vpop.f32.mrb[0].mxu0
  %v596 = vadd.f32 0.0, %v595
  %v597 = vpop.f32.mrb[0].mxu0
  %598 = vmatprep.mubr.bf16.mxu0 0
  %599 = vmatmul.mubr.bf16.gmra.mrb[0].mxu0 %v329
  %v600 = vpop.f32.mrb[0].mxu0
  %v601 = vadd.f32 0.0, %v600
  %v602 = vpop.f32.mrb[0].mxu0
  %v603 = vpop.f32.mrb[0].mxu0
  %v604 = vadd.f32 0.0, %v603
  %v605 = vpop.f32.mrb[0].mxu0
  %606 = vmatprep.mubr.bf16.mxu0 0
  %607 = vmatmul.mubr.bf16.gmra.mrb[0].mxu0 %v332
  %v608 = vpop.f32.mrb[0].mxu0
  %v609 = vadd.f32 0.0, %v608
  %v610 = vpop.f32.mrb[0].mxu0
  %v611 = vpop.f32.mrb[0].mxu0
  %v612 = vadd.f32 0.0, %v611
  %v613 = vpop.f32.mrb[0].mxu0
  %614 = vmatprep.mubr.bf16.mxu0 0
  %615 = vmatmul.mubr.bf16.gmra.mrb[0].mxu0 %v335
  %v616 = vpop.f32.mrb[0].mxu0
  %v617 = vadd.f32 0.0, %v616
  %v618 = vpop.f32.mrb[0].mxu0
  %v619 = vpop.f32.mrb[0].mxu0
  %v620 = vadd.f32 0.0, %v619
  %v621 = vpop.f32.mrb[0].mxu0
  %622 = vmatprep.mubr.bf16.mxu0 0
  %623 = vmatmul.mubr.bf16.gmra.mrb[0].mxu0 %v338
  %v624 = vpop.f32.mrb[0].mxu0
  %v625 = vadd.f32 0.0, %v624
  %v626 = vpop.f32.mrb[0].mxu0
  %v627 = vpop.f32.mrb[0].mxu0
  %v628 = vadd.f32 0.0, %v627
  %v629 = vpop.f32.mrb[0].mxu0
  %630 = vmatprep.mubr.bf16.mxu0 0
  %631 = vmatmul.mubr.bf16.gmra.mrb[0].mxu0 %v341
  %v632 = vpop.f32.mrb[0].mxu0
  %v633 = vadd.f32 0.0, %v632
  %v634 = vpop.f32.mrb[0].mxu0
  %v635 = vpop.f32.mrb[0].mxu0
  %v636 = vadd.f32 0.0, %v635
  %v637 = vpop.f32.mrb[0].mxu0
  %638 = vdwg.mxu0
  %s639 = scalar_lea.vmem %s0, 256
  %v640 = vld [vmem:[%s639] sm:$0xf]
  %v641 = vld [vmem:[%s639 + $0x4] sm:$0xf]
  %v642 = vld [vmem:[%s639 + $0x8] sm:$0xf]
  %v643 = vld [vmem:[%s639 + $0xc] sm:$0xf]
  %v644 = vld [vmem:[%s639 + $0x10] sm:$0xf]
  %v645 = vld [vmem:[%s639 + $0x14] sm:$0xf]
  %v646 = vld [vmem:[%s639 + $0x18] sm:$0xf]
  %v647 = vld [vmem:[%s639 + $0x1c] sm:$0xf]
  %v648 = vld [vmem:[%s639 + $0x20] sm:$0xf]
  %v649 = vld [vmem:[%s639 + $0x24] sm:$0xf]
  %v650 = vld [vmem:[%s639 + $0x28] sm:$0xf]
  %v651 = vld [vmem:[%s639 + $0x2c] sm:$0xf]
  %v652 = vld [vmem:[%s639 + $0x30] sm:$0xf]
  %v653 = vld [vmem:[%s639 + $0x34] sm:$0xf]
  %v654 = vld [vmem:[%s639 + $0x38] sm:$0xf]
  %v655 = vld [vmem:[%s639 + $0x3c] sm:$0xf]
  %v656 = vld [vmem:[%s639 + $0x40] sm:$0xf]
  %v657 = vld [vmem:[%s639 + $0x44] sm:$0xf]
  %v658 = vld [vmem:[%s639 + $0x48] sm:$0xf]
  %v659 = vld [vmem:[%s639 + $0x4c] sm:$0xf]
  %v660 = vld [vmem:[%s639 + $0x50] sm:$0xf]
  %v661 = vld [vmem:[%s639 + $0x54] sm:$0xf]
  %v662 = vld [vmem:[%s639 + $0x58] sm:$0xf]
  %v663 = vld [vmem:[%s639 + $0x5c] sm:$0xf]
  %v664 = vld [vmem:[%s639 + $0x60] sm:$0xf]
  %v665 = vld [vmem:[%s639 + $0x64] sm:$0xf]
  %v666 = vld [vmem:[%s639 + $0x68] sm:$0xf]
  %v667 = vld [vmem:[%s639 + $0x6c] sm:$0xf]
  %v668 = vld [vmem:[%s639 + $0x70] sm:$0xf]
  %v669 = vld [vmem:[%s639 + $0x74] sm:$0xf]
  %v670 = vld [vmem:[%s639 + $0x78] sm:$0xf]
  %v671 = vld [vmem:[%s639 + $0x7c] sm:$0xf]
  %v672 = vld [vmem:[%s639 + $0x80] sm:$0xf]
  %v673 = vld [vmem:[%s639 + $0x84] sm:$0xf]
  %v674 = vld [vmem:[%s639 + $0x88] sm:$0xf]
  %v675 = vld [vmem:[%s639 + $0x8c] sm:$0xf]
  %v676 = vld [vmem:[%s639 + $0x90] sm:$0xf]
  %v677 = vld [vmem:[%s639 + $0x94] sm:$0xf]
  %v678 = vld [vmem:[%s639 + $0x98] sm:$0xf]
  %v679 = vld [vmem:[%s639 + $0x9c] sm:$0xf]
  %v680 = vld [vmem:[%s639 + $0xa0] sm:$0xf]
  %v681 = vld [vmem:[%s639 + $0xa4] sm:$0xf]
  %v682 = vld [vmem:[%s639 + $0xa8] sm:$0xf]
  %v683 = vld [vmem:[%s639 + $0xac] sm:$0xf]
  %v684 = vld [vmem:[%s639 + $0xb0] sm:$0xf]
  %v685 = vld [vmem:[%s639 + $0xb4] sm:$0xf]
  %v686 = vld [vmem:[%s639 + $0xb8] sm:$0xf]
  %v687 = vld [vmem:[%s639 + $0xbc] sm:$0xf]
  %v688 = vld [vmem:[%s639 + $0xc0] sm:$0xf]
  %v689 = vld [vmem:[%s639 + $0xc4] sm:$0xf]
  %v690 = vld [vmem:[%s639 + $0xc8] sm:$0xf]
  %v691 = vld [vmem:[%s639 + $0xcc] sm:$0xf]
  %v692 = vld [vmem:[%s639 + $0xd0] sm:$0xf]
  %v693 = vld [vmem:[%s639 + $0xd4] sm:$0xf]
  %v694 = vld [vmem:[%s639 + $0xd8] sm:$0xf]
  %v695 = vld [vmem:[%s639 + $0xdc] sm:$0xf]
  %v696 = vld [vmem:[%s639 + $0xe0] sm:$0xf]
  %v697 = vld [vmem:[%s639 + $0xe4] sm:$0xf]
  %v698 = vld [vmem:[%s639 + $0xe8] sm:$0xf]
  %v699 = vld [vmem:[%s639 + $0xec] sm:$0xf]
  %v700 = vld [vmem:[%s639 + $0xf0] sm:$0xf]
  %v701 = vld [vmem:[%s639 + $0xf4] sm:$0xf]
  %v702 = vld [vmem:[%s639 + $0xf8] sm:$0xf]
  %v703 = vld [vmem:[%s639 + $0xfc] sm:$0xf]
  %v768 = vunpack.c.l.b16 %v640
  %v769 = vunpack.c.l.b16 %v641
  %v770 = vunpack.c.l.b16 %v642
  %v771 = vunpack.c.l.b16 %v643
  %v772 = vunpack.c.l.b16 %v644
  %v773 = vunpack.c.l.b16 %v645
  %v774 = vunpack.c.l.b16 %v646
  %v775 = vunpack.c.l.b16 %v647
  %v776 = vunpack.c.l.b16 %v648
  %v777 = vunpack.c.l.b16 %v649
  %v778 = vunpack.c.l.b16 %v650
  %v779 = vunpack.c.l.b16 %v651
  %v780 = vunpack.c.l.b16 %v652
  %v781 = vunpack.c.l.b16 %v653
  %v782 = vunpack.c.l.b16 %v654
  %v783 = vunpack.c.l.b16 %v655
  %v784 = vunpack.c.l.b16 %v656
  %v785 = vunpack.c.l.b16 %v657
  %v786 = vunpack.c.l.b16 %v658
  %v787 = vunpack.c.l.b16 %v659
  %v788 = vunpack.c.l.b16 %v660
  %v789 = vunpack.c.l.b16 %v661
  %v790 = vunpack.c.l.b16 %v662
  %v791 = vunpack.c.l.b16 %v663
  %v792 = vunpack.c.l.b16 %v664
  %v793 = vunpack.c.l.b16 %v665
  %v794 = vunpack.c.l.b16 %v666
  %v795 = vunpack.c.l.b16 %v667
  %v796 = vunpack.c.l.b16 %v668
  %v797 = vunpack.c.l.b16 %v669
  %v798 = vunpack.c.l.b16 %v670
  %v799 = vunpack.c.l.b16 %v671
  %v800 = vunpack.c.l.b16 %v672
  %v801 = vunpack.c.l.b16 %v673
  %v802 = vunpack.c.l.b16 %v674
  %v803 = vunpack.c.l.b16 %v675
  %v804 = vunpack.c.l.b16 %v676
  %v805 = vunpack.c.l.b16 %v677
  %v806 = vunpack.c.l.b16 %v678
  %v807 = vunpack.c.l.b16 %v679
  %v808 = vunpack.c.l.b16 %v680
  %v809 = vunpack.c.l.b16 %v681
  %v810 = vunpack.c.l.b16 %v682
  %v811 = vunpack.c.l.b16 %v683
  %v812 = vunpack.c.l.b16 %v684
  %v813 = vunpack.c.l.b16 %v685
  %v814 = vunpack.c.l.b16 %v686
  %v815 = vunpack.c.l.b16 %v687
  %v816 = vunpack.c.l.b16 %v688
  %v817 = vunpack.c.l.b16 %v689
  %v818 = vunpack.c.l.b16 %v690
  %v819 = vunpack.c.l.b16 %v691
  %v820 = vunpack.c.l.b16 %v692
  %v821 = vunpack.c.l.b16 %v693
  %v822 = vunpack.c.l.b16 %v694
  %v823 = vunpack.c.l.b16 %v695
  %v824 = vunpack.c.l.b16 %v696
  %v825 = vunpack.c.l.b16 %v697
  %v826 = vunpack.c.l.b16 %v698
  %v827 = vunpack.c.l.b16 %v699
  %v828 = vunpack.c.l.b16 %v700
  %v829 = vunpack.c.l.b16 %v701
  %v830 = vunpack.c.l.b16 %v702
  %v831 = vunpack.c.l.b16 %v703
  %v832 = vpack.c.b16 %v769, %v768
  %v833 = vpack.c.b16 %v771, %v770
  %v834 = vpack.c.b16 %v773, %v772
  %v835 = vpack.c.b16 %v775, %v774
  %v836 = vpack.c.b16 %v777, %v776
  %v837 = vpack.c.b16 %v779, %v778
  %v838 = vpack.c.b16 %v781, %v780
  %v839 = vpack.c.b16 %v783, %v782
  %v840 = vpack.c.b16 %v785, %v784
  %v841 = vpack.c.b16 %v787, %v786
  %v842 = vpack.c.b16 %v789, %v788
  %v843 = vpack.c.b16 %v791, %v790
  %v844 = vpack.c.b16 %v793, %v792
  %v845 = vpack.c.b16 %v795, %v794
  %v846 = vpack.c.b16 %v797, %v796
  %v847 = vpack.c.b16 %v799, %v798
  %v848 = vpack.c.b16 %v801, %v800
  %v849 = vpack.c.b16 %v803, %v802
  %v850 = vpack.c.b16 %v805, %v804
  %v851 = vpack.c.b16 %v807, %v806
  %v852 = vpack.c.b16 %v809, %v808
  %v853 = vpack.c.b16 %v811, %v810
  %v854 = vpack.c.b16 %v813, %v812
  %v855 = vpack.c.b16 %v815, %v814
  %v856 = vpack.c.b16 %v817, %v816
  %v857 = vpack.c.b16 %v819, %v818
  %v858 = vpack.c.b16 %v821, %v820
  %v859 = vpack.c.b16 %v823, %v822
  %v860 = vpack.c.b16 %v825, %v824
  %v861 = vpack.c.b16 %v827, %v826
  %v862 = vpack.c.b16 %v829, %v828
  %v863 = vpack.c.b16 %v831, %v830
  %v865 = vsel %vm246, %v832, 0
  %v868 = vsel %vm246, %v833, 0
  %v871 = vsel %vm246, %v834, 0
  %v874 = vsel %vm246, %v835, 0
  %v877 = vsel %vm246, %v836, 0
  %v880 = vsel %vm246, %v837, 0
  %v883 = vsel %vm246, %v838, 0
  %v886 = vsel %vm246, %v839, 0
  %v889 = vsel %vm246, %v840, 0
  %v892 = vsel %vm246, %v841, 0
  %v895 = vsel %vm246, %v842, 0
  %v898 = vsel %vm246, %v843, 0
  %v901 = vsel %vm246, %v844, 0
  %v904 = vsel %vm246, %v845, 0
  %v907 = vsel %vm246, %v846, 0
  %v910 = vsel %vm246, %v847, 0
  %v913 = vsel %vm246, %v848, 0
  %v916 = vsel %vm246, %v849, 0
  %v919 = vsel %vm246, %v850, 0
  %v922 = vsel %vm246, %v851, 0
  %v925 = vsel %vm246, %v852, 0
  %v928 = vsel %vm246, %v853, 0
  %v931 = vsel %vm246, %v854, 0
  %v934 = vsel %vm246, %v855, 0
  %v937 = vsel %vm246, %v856, 0
  %v940 = vsel %vm246, %v857, 0
  %v943 = vsel %vm246, %v858, 0
  %v946 = vsel %vm246, %v859, 0
  %v949 = vsel %vm246, %v860, 0
  %v952 = vsel %vm246, %v861, 0
  %v955 = vsel %vm246, %v862, 0
  %v958 = vsel %vm246, %v863, 0
  %960 = vmatprep.subr.bf16.mxu0 0
  %961 = vmatpush1.bf16.msra.mxu0 %v348
  %962 = vmatprep.subr.bf16.mxu0 0
  %963 = vmatpush1.bf16.msra.mxu0 0
  %964 = vmatprep.subr.bf16.mxu0 0
  %965 = vmatpush1.bf16.msra.mxu0 0
  %966 = vmatprep.subr.bf16.mxu0 0
  %967 = vmatpush1.bf16.msra.mxu0 0
  %968 = vmatprep.subr.bf16.mxu0 0
  %969 = vmatpush1.bf16.msra.mxu0 0
  %970 = vmatprep.subr.bf16.mxu0 0
  %971 = vmatpush1.bf16.msra.mxu0 0
  %972 = vmatprep.subr.bf16.mxu0 0
  %973 = vmatpush1.bf16.msra.mxu0 0
  %974 = vmatprep.subr.bf16.mxu0 0
  %975 = vmatpush1.bf16.msra.mxu0 0
  %976 = vmatprep.subr.bf16.mxu0 0
  %977 = vmatpush1.bf16.msra.mxu0 0
  %978 = vmatprep.subr.bf16.mxu0 0
  %979 = vmatpush1.bf16.msra.mxu0 0
  %980 = vmatprep.subr.bf16.mxu0 0
  %981 = vmatpush1.bf16.msra.mxu0 0
  %982 = vmatprep.subr.bf16.mxu0 0
  %983 = vmatpush1.bf16.msra.mxu0 0
  %984 = vmatprep.subr.bf16.mxu0 0
  %985 = vmatpush1.bf16.msra.mxu0 0
  %986 = vmatprep.subr.bf16.mxu0 0
  %987 = vmatpush1.bf16.msra.mxu0 0
  %988 = vmatprep.subr.bf16.mxu0 0
  %989 = vmatpush1.bf16.msra.mxu0 0
  %990 = vmatprep.subr.bf16.mxu0 0
  %991 = vmatpush1.bf16.msra.mxu0 0
  %992 = vmatprep.mubr.bf16.mxu0 0
  %993 = vmatmul.mubr.bf16.gmra.mrb[0].mxu0 %v865
  %v994 = vpop.f32.mrb[0].mxu0
  %v995 = vadd.f32 0.0, %v994
  %v996 = vpop.f32.mrb[0].mxu0
  %v997 = vpop.f32.mrb[0].mxu0
  %v998 = vadd.f32 0.0, %v997
  %v999 = vpop.f32.mrb[0].mxu0
  %1000 = vmatprep.mubr.bf16.mxu0 0
  %1001 = vmatmul.mubr.bf16.gmra.mrb[0].mxu0 %v868
  %v1002 = vpop.f32.mrb[0].mxu0
  %v1003 = vadd.f32 0.0, %v1002
  %v1004 = vpop.f32.mrb[0].mxu0
  %v1005 = vpop.f32.mrb[0].mxu0
  %v1006 = vadd.f32 0.0, %v1005
  %v1007 = vpop.f32.mrb[0].mxu0
  %1008 = vmatprep.mubr.bf16.mxu0 0
  %1009 = vmatmul.mubr.bf16.gmra.mrb[0].mxu0 %v871
  %v1010 = vpop.f32.mrb[0].mxu0
  %v1011 = vadd.f32 0.0, %v1010
  %v1012 = vpop.f32.mrb[0].mxu0
  %v1013 = vpop.f32.mrb[0].mxu0
  %v1014 = vadd.f32 0.0, %v1013
  %v1015 = vpop.f32.mrb[0].mxu0
  %1016 = vmatprep.mubr.bf16.mxu0 0
  %1017 = vmatmul.mubr.bf16.gmra.mrb[0].mxu0 %v874
  %v1018 = vpop.f32.mrb[0].mxu0
  %v1019 = vadd.f32 0.0, %v1018
  %v1020 = vpop.f32.mrb[0].mxu0
  %v1021 = vpop.f32.mrb[0].mxu0
  %v1022 = vadd.f32 0.0, %v1021
  %v1023 = vpop.f32.mrb[0].mxu0
  %1024 = vmatprep.mubr.bf16.mxu0 0
  %1025 = vmatmul.mubr.bf16.gmra.mrb[0].mxu0 %v877
  %v1026 = vpop.f32.mrb[0].mxu0
  %v1027 = vadd.f32 0.0, %v1026
  %v1028 = vpop.f32.mrb[0].mxu0
  %v1029 = vpop.f32.mrb[0].mxu0
  %v1030 = vadd.f32 0.0, %v1029
  %v1031 = vpop.f32.mrb[0].mxu0
  %1032 = vmatprep.mubr.bf16.mxu0 0
  %1033 = vmatmul.mubr.bf16.gmra.mrb[0].mxu0 %v880
  %v1034 = vpop.f32.mrb[0].mxu0
  %v1035 = vadd.f32 0.0, %v1034
  %v1036 = vpop.f32.mrb[0].mxu0
  %v1037 = vpop.f32.mrb[0].mxu0
  %v1038 = vadd.f32 0.0, %v1037
  %v1039 = vpop.f32.mrb[0].mxu0
  %1040 = vmatprep.mubr.bf16.mxu0 0
  %1041 = vmatmul.mubr.bf16.gmra.mrb[0].mxu0 %v883
  %v1042 = vpop.f32.mrb[0].mxu0
  %v1043 = vadd.f32 0.0, %v1042
  %v1044 = vpop.f32.mrb[0].mxu0
  %v1045 = vpop.f32.mrb[0].mxu0
  %v1046 = vadd.f32 0.0, %v1045
  %v1047 = vpop.f32.mrb[0].mxu0
  %1048 = vmatprep.mubr.bf16.mxu0 0
  %1049 = vmatmul.mubr.bf16.gmra.mrb[0].mxu0 %v886
  %v1050 = vpop.f32.mrb[0].mxu0
  %v1051 = vadd.f32 0.0, %v1050
  %v1052 = vpop.f32.mrb[0].mxu0
  %v1053 = vpop.f32.mrb[0].mxu0
  %v1054 = vadd.f32 0.0, %v1053
  %v1055 = vpop.f32.mrb[0].mxu0
  %1056 = vmatprep.mubr.bf16.mxu0 0
  %1057 = vmatmul.mubr.bf16.gmra.mrb[0].mxu0 %v889
  %v1058 = vpop.f32.mrb[0].mxu0
  %v1059 = vadd.f32 0.0, %v1058
  %v1060 = vpop.f32.mrb[0].mxu0
  %v1061 = vpop.f32.mrb[0].mxu0
  %v1062 = vadd.f32 0.0, %v1061
  %v1063 = vpop.f32.mrb[0].mxu0
  %1064 = vmatprep.mubr.bf16.mxu0 0
  %1065 = vmatmul.mubr.bf16.gmra.mrb[0].mxu0 %v892
  %v1066 = vpop.f32.mrb[0].mxu0
  %v1067 = vadd.f32 0.0, %v1066
  %v1068 = vpop.f32.mrb[0].mxu0
  %v1069 = vpop.f32.mrb[0].mxu0
  %v1070 = vadd.f32 0.0, %v1069
  %v1071 = vpop.f32.mrb[0].mxu0
  %1072 = vmatprep.mubr.bf16.mxu0 0
  %1073 = vmatmul.mubr.bf16.gmra.mrb[0].mxu0 %v895
  %v1074 = vpop.f32.mrb[0].mxu0
  %v1075 = vadd.f32 0.0, %v1074
  %v1076 = vpop.f32.mrb[0].mxu0
  %v1077 = vpop.f32.mrb[0].mxu0
  %v1078 = vadd.f32 0.0, %v1077
  %v1079 = vpop.f32.mrb[0].mxu0
  %1080 = vmatprep.mubr.bf16.mxu0 0
  %1081 = vmatmul.mubr.bf16.gmra.mrb[0].mxu0 %v898
  %v1082 = vpop.f32.mrb[0].mxu0
  %v1083 = vadd.f32 0.0, %v1082
  %v1084 = vpop.f32.mrb[0].mxu0
  %v1085 = vpop.f32.mrb[0].mxu0
  %v1086 = vadd.f32 0.0, %v1085
  %v1087 = vpop.f32.mrb[0].mxu0
  %1088 = vmatprep.mubr.bf16.mxu0 0
  %1089 = vmatmul.mubr.bf16.gmra.mrb[0].mxu0 %v901
  %v1090 = vpop.f32.mrb[0].mxu0
  %v1091 = vadd.f32 0.0, %v1090
  %v1092 = vpop.f32.mrb[0].mxu0
  %v1093 = vpop.f32.mrb[0].mxu0
  %v1094 = vadd.f32 0.0, %v1093
  %v1095 = vpop.f32.mrb[0].mxu0
  %1096 = vmatprep.mubr.bf16.mxu0 0
  %1097 = vmatmul.mubr.bf16.gmra.mrb[0].mxu0 %v904
  %v1098 = vpop.f32.mrb[0].mxu0
  %v1099 = vadd.f32 0.0, %v1098
  %v1100 = vpop.f32.mrb[0].mxu0
  %v1101 = vpop.f32.mrb[0].mxu0
  %v1102 = vadd.f32 0.0, %v1101
  %v1103 = vpop.f32.mrb[0].mxu0
  %1104 = vmatprep.mubr.bf16.mxu0 0
  %1105 = vmatmul.mubr.bf16.gmra.mrb[0].mxu0 %v907
  %v1106 = vpop.f32.mrb[0].mxu0
  %v1107 = vadd.f32 0.0, %v1106
  %v1108 = vpop.f32.mrb[0].mxu0
  %v1109 = vpop.f32.mrb[0].mxu0
  %v1110 = vadd.f32 0.0, %v1109
  %v1111 = vpop.f32.mrb[0].mxu0
  %1112 = vmatprep.mubr.bf16.mxu0 0
  %1113 = vmatmul.mubr.bf16.gmra.mrb[0].mxu0 %v910
  %v1114 = vpop.f32.mrb[0].mxu0
  %v1115 = vadd.f32 0.0, %v1114
  %v1116 = vpop.f32.mrb[0].mxu0
  %v1117 = vpop.f32.mrb[0].mxu0
  %v1118 = vadd.f32 0.0, %v1117
  %v1119 = vpop.f32.mrb[0].mxu0
  %1120 = vmatprep.mubr.bf16.mxu0 0
  %1121 = vmatmul.mubr.bf16.gmra.mrb[0].mxu0 %v913
  %v1122 = vpop.f32.mrb[0].mxu0
  %v1123 = vadd.f32 0.0, %v1122
  %v1124 = vpop.f32.mrb[0].mxu0
  %v1125 = vpop.f32.mrb[0].mxu0
  %v1126 = vadd.f32 0.0, %v1125
  %v1127 = vpop.f32.mrb[0].mxu0
  %1128 = vmatprep.mubr.bf16.mxu0 0
  %1129 = vmatmul.mubr.bf16.gmra.mrb[0].mxu0 %v916
  %v1130 = vpop.f32.mrb[0].mxu0
  %v1131 = vadd.f32 0.0, %v1130
  %v1132 = vpop.f32.mrb[0].mxu0
  %v1133 = vpop.f32.mrb[0].mxu0
  %v1134 = vadd.f32 0.0, %v1133
  %v1135 = vpop.f32.mrb[0].mxu0
  %1136 = vmatprep.mubr.bf16.mxu0 0
  %1137 = vmatmul.mubr.bf16.gmra.mrb[0].mxu0 %v919
  %v1138 = vpop.f32.mrb[0].mxu0
  %v1139 = vadd.f32 0.0, %v1138
  %v1140 = vpop.f32.mrb[0].mxu0
  %v1141 = vpop.f32.mrb[0].mxu0
  %v1142 = vadd.f32 0.0, %v1141
  %v1143 = vpop.f32.mrb[0].mxu0
  %1144 = vmatprep.mubr.bf16.mxu0 0
  %1145 = vmatmul.mubr.bf16.gmra.mrb[0].mxu0 %v922
  %v1146 = vpop.f32.mrb[0].mxu0
  %v1147 = vadd.f32 0.0, %v1146
  %v1148 = vpop.f32.mrb[0].mxu0
  %v1149 = vpop.f32.mrb[0].mxu0
  %v1150 = vadd.f32 0.0, %v1149
  %v1151 = vpop.f32.mrb[0].mxu0
  %1152 = vmatprep.mubr.bf16.mxu0 0
  %1153 = vmatmul.mubr.bf16.gmra.mrb[0].mxu0 %v925
  %v1154 = vpop.f32.mrb[0].mxu0
  %v1155 = vadd.f32 0.0, %v1154
  %v1156 = vpop.f32.mrb[0].mxu0
  %v1157 = vpop.f32.mrb[0].mxu0
  %v1158 = vadd.f32 0.0, %v1157
  %v1159 = vpop.f32.mrb[0].mxu0
  %1160 = vmatprep.mubr.bf16.mxu0 0
  %1161 = vmatmul.mubr.bf16.gmra.mrb[0].mxu0 %v928
  %v1162 = vpop.f32.mrb[0].mxu0
  %v1163 = vadd.f32 0.0, %v1162
  %v1164 = vpop.f32.mrb[0].mxu0
  %v1165 = vpop.f32.mrb[0].mxu0
  %v1166 = vadd.f32 0.0, %v1165
  %v1167 = vpop.f32.mrb[0].mxu0
  %1168 = vmatprep.mubr.bf16.mxu0 0
  %1169 = vmatmul.mubr.bf16.gmra.mrb[0].mxu0 %v931
  %v1170 = vpop.f32.mrb[0].mxu0
  %v1171 = vadd.f32 0.0, %v1170
  %v1172 = vpop.f32.mrb[0].mxu0
  %v1173 = vpop.f32.mrb[0].mxu0
  %v1174 = vadd.f32 0.0, %v1173
  %v1175 = vpop.f32.mrb[0].mxu0
  %1176 = vmatprep.mubr.bf16.mxu0 0
  %1177 = vmatmul.mubr.bf16.gmra.mrb[0].mxu0 %v934
  %v1178 = vpop.f32.mrb[0].mxu0
  %v1179 = vadd.f32 0.0, %v1178
  %v1180 = vpop.f32.mrb[0].mxu0
  %v1181 = vpop.f32.mrb[0].mxu0
  %v1182 = vadd.f32 0.0, %v1181
  %v1183 = vpop.f32.mrb[0].mxu0
  %1184 = vmatprep.mubr.bf16.mxu0 0
  %1185 = vmatmul.mubr.bf16.gmra.mrb[0].mxu0 %v937
  %v1186 = vpop.f32.mrb[0].mxu0
  %v1187 = vadd.f32 0.0, %v1186
  %v1188 = vpop.f32.mrb[0].mxu0
  %v1189 = vpop.f32.mrb[0].mxu0
  %v1190 = vadd.f32 0.0, %v1189
  %v1191 = vpop.f32.mrb[0].mxu0
  %1192 = vmatprep.mubr.bf16.mxu0 0
  %1193 = vmatmul.mubr.bf16.gmra.mrb[0].mxu0 %v940
  %v1194 = vpop.f32.mrb[0].mxu0
  %v1195 = vadd.f32 0.0, %v1194
  %v1196 = vpop.f32.mrb[0].mxu0
  %v1197 = vpop.f32.mrb[0].mxu0
  %v1198 = vadd.f32 0.0, %v1197
  %v1199 = vpop.f32.mrb[0].mxu0
  %1200 = vmatprep.mubr.bf16.mxu0 0
  %1201 = vmatmul.mubr.bf16.gmra.mrb[0].mxu0 %v943
  %v1202 = vpop.f32.mrb[0].mxu0
  %v1203 = vadd.f32 0.0, %v1202
  %v1204 = vpop.f32.mrb[0].mxu0
  %v1205 = vpop.f32.mrb[0].mxu0
  %v1206 = vadd.f32 0.0, %v1205
  %v1207 = vpop.f32.mrb[0].mxu0
  %1208 = vmatprep.mubr.bf16.mxu0 0
  %1209 = vmatmul.mubr.bf16.gmra.mrb[0].mxu0 %v946
  %v1210 = vpop.f32.mrb[0].mxu0
  %v1211 = vadd.f32 0.0, %v1210
  %v1212 = vpop.f32.mrb[0].mxu0
  %v1213 = vpop.f32.mrb[0].mxu0
  %v1214 = vadd.f32 0.0, %v1213
  %v1215 = vpop.f32.mrb[0].mxu0
  %1216 = vmatprep.mubr.bf16.mxu0 0
  %1217 = vmatmul.mubr.bf16.gmra.mrb[0].mxu0 %v949
  %v1218 = vpop.f32.mrb[0].mxu0
  %v1219 = vadd.f32 0.0, %v1218
  %v1220 = vpop.f32.mrb[0].mxu0
  %v1221 = vpop.f32.mrb[0].mxu0
  %v1222 = vadd.f32 0.0, %v1221
  %v1223 = vpop.f32.mrb[0].mxu0
  %1224 = vmatprep.mubr.bf16.mxu0 0
  %1225 = vmatmul.mubr.bf16.gmra.mrb[0].mxu0 %v952
  %v1226 = vpop.f32.mrb[0].mxu0
  %v1227 = vadd.f32 0.0, %v1226
  %v1228 = vpop.f32.mrb[0].mxu0
  %v1229 = vpop.f32.mrb[0].mxu0
  %v1230 = vadd.f32 0.0, %v1229
  %v1231 = vpop.f32.mrb[0].mxu0
  %1232 = vmatprep.mubr.bf16.mxu0 0
  %1233 = vmatmul.mubr.bf16.gmra.mrb[0].mxu0 %v955
  %v1234 = vpop.f32.mrb[0].mxu0
  %v1235 = vadd.f32 0.0, %v1234
  %v1236 = vpop.f32.mrb[0].mxu0
  %v1237 = vpop.f32.mrb[0].mxu0
  %v1238 = vadd.f32 0.0, %v1237
  %v1239 = vpop.f32.mrb[0].mxu0
  %1240 = vmatprep.mubr.bf16.mxu0 0
  %1241 = vmatmul.mubr.bf16.gmra.mrb[0].mxu0 %v958
  %v1242 = vpop.f32.mrb[0].mxu0
  %v1243 = vadd.f32 0.0, %v1242
  %v1244 = vpop.f32.mrb[0].mxu0
  %v1245 = vpop.f32.mrb[0].mxu0
  %v1246 = vadd.f32 0.0, %v1245
  %v1247 = vpop.f32.mrb[0].mxu0
  %1248 = vdwg.mxu0
  %v1249 = vmax.f32 %v385, %v995
  %v1250 = vmax.f32 %v388, %v998
  %v1251 = vmax.f32 %v393, %v1003
  %v1252 = vmax.f32 %v396, %v1006
  %v1253 = vmax.f32 %v401, %v1011
  %v1254 = vmax.f32 %v404, %v1014
  %v1255 = vmax.f32 %v409, %v1019
  %v1256 = vmax.f32 %v412, %v1022
  %v1257 = vmax.f32 %v417, %v1027
  %v1258 = vmax.f32 %v420, %v1030
  %v1259 = vmax.f32 %v425, %v1035
  %v1260 = vmax.f32 %v428, %v1038
  %v1261 = vmax.f32 %v433, %v1043
  %v1262 = vmax.f32 %v436, %v1046
  %v1263 = vmax.f32 %v441, %v1051
  %v1264 = vmax.f32 %v444, %v1054
  %v1265 = vmax.f32 %v449, %v1059
  %v1266 = vmax.f32 %v452, %v1062
  %v1267 = vmax.f32 %v457, %v1067
  %v1268 = vmax.f32 %v460, %v1070
  %v1269 = vmax.f32 %v465, %v1075
  %v1270 = vmax.f32 %v468, %v1078
  %v1271 = vmax.f32 %v473, %v1083
  %v1272 = vmax.f32 %v476, %v1086
  %v1273 = vmax.f32 %v481, %v1091
  %v1274 = vmax.f32 %v484, %v1094
  %v1275 = vmax.f32 %v489, %v1099
  %v1276 = vmax.f32 %v492, %v1102
  %v1277 = vmax.f32 %v497, %v1107
  %v1278 = vmax.f32 %v500, %v1110
  %v1279 = vmax.f32 %v505, %v1115
  %v1280 = vmax.f32 %v508, %v1118
  %v1281 = vmax.f32 %v513, %v1123
  %v1282 = vmax.f32 %v516, %v1126
  %v1283 = vmax.f32 %v521, %v1131
  %v1284 = vmax.f32 %v524, %v1134
  %v1285 = vmax.f32 %v529, %v1139
  %v1286 = vmax.f32 %v532, %v1142
  %v1287 = vmax.f32 %v537, %v1147
  %v1288 = vmax.f32 %v540, %v1150
  %v1289 = vmax.f32 %v545, %v1155
  %v1290 = vmax.f32 %v548, %v1158
  %v1291 = vmax.f32 %v553, %v1163
  %v1292 = vmax.f32 %v556, %v1166
  %v1293 = vmax.f32 %v561, %v1171
  %v1294 = vmax.f32 %v564, %v1174
  %v1295 = vmax.f32 %v569, %v1179
  %v1296 = vmax.f32 %v572, %v1182
  %v1297 = vmax.f32 %v577, %v1187
  %v1298 = vmax.f32 %v580, %v1190
  %v1299 = vmax.f32 %v585, %v1195
  %v1300 = vmax.f32 %v588, %v1198
  %v1301 = vmax.f32 %v593, %v1203
  %v1302 = vmax.f32 %v596, %v1206
  %v1303 = vmax.f32 %v601, %v1211
  %v1304 = vmax.f32 %v604, %v1214
  %v1305 = vmax.f32 %v609, %v1219
  %v1306 = vmax.f32 %v612, %v1222
  %v1307 = vmax.f32 %v617, %v1227
  %v1308 = vmax.f32 %v620, %v1230
  %v1309 = vmax.f32 %v625, %v1235
  %v1310 = vmax.f32 %v628, %v1238
  %v1311 = vmax.f32 %v633, %v1243
  %v1312 = vmax.f32 %v636, %v1246
  %s1313 = scalar_lea.vmem %s0, 512
  %v1314 = vld [vmem:[%s1313] sm:$0xf]
  %v1315 = vld [vmem:[%s1313 + $0x4] sm:$0xf]
  %v1316 = vld [vmem:[%s1313 + $0x8] sm:$0xf]
  %v1317 = vld [vmem:[%s1313 + $0xc] sm:$0xf]
  %v1318 = vld [vmem:[%s1313 + $0x10] sm:$0xf]
  %v1319 = vld [vmem:[%s1313 + $0x14] sm:$0xf]
  %v1320 = vld [vmem:[%s1313 + $0x18] sm:$0xf]
  %v1321 = vld [vmem:[%s1313 + $0x1c] sm:$0xf]
  %v1322 = vld [vmem:[%s1313 + $0x20] sm:$0xf]
  %v1323 = vld [vmem:[%s1313 + $0x24] sm:$0xf]
  %v1324 = vld [vmem:[%s1313 + $0x28] sm:$0xf]
  %v1325 = vld [vmem:[%s1313 + $0x2c] sm:$0xf]
  %v1326 = vld [vmem:[%s1313 + $0x30] sm:$0xf]
  %v1327 = vld [vmem:[%s1313 + $0x34] sm:$0xf]
  %v1328 = vld [vmem:[%s1313 + $0x38] sm:$0xf]
  %v1329 = vld [vmem:[%s1313 + $0x3c] sm:$0xf]
  %v1330 = vld [vmem:[%s1313 + $0x40] sm:$0xf]
  %v1331 = vld [vmem:[%s1313 + $0x44] sm:$0xf]
  %v1332 = vld [vmem:[%s1313 + $0x48] sm:$0xf]
  %v1333 = vld [vmem:[%s1313 + $0x4c] sm:$0xf]
  %v1334 = vld [vmem:[%s1313 + $0x50] sm:$0xf]
  %v1335 = vld [vmem:[%s1313 + $0x54] sm:$0xf]
  %v1336 = vld [vmem:[%s1313 + $0x58] sm:$0xf]
  %v1337 = vld [vmem:[%s1313 + $0x5c] sm:$0xf]
  %v1338 = vld [vmem:[%s1313 + $0x60] sm:$0xf]
  %v1339 = vld [vmem:[%s1313 + $0x64] sm:$0xf]
  %v1340 = vld [vmem:[%s1313 + $0x68] sm:$0xf]
  %v1341 = vld [vmem:[%s1313 + $0x6c] sm:$0xf]
  %v1342 = vld [vmem:[%s1313 + $0x70] sm:$0xf]
  %v1343 = vld [vmem:[%s1313 + $0x74] sm:$0xf]
  %v1344 = vld [vmem:[%s1313 + $0x78] sm:$0xf]
  %v1345 = vld [vmem:[%s1313 + $0x7c] sm:$0xf]
  %v1346 = vld [vmem:[%s1313 + $0x80] sm:$0xf]
  %v1347 = vld [vmem:[%s1313 + $0x84] sm:$0xf]
  %v1348 = vld [vmem:[%s1313 + $0x88] sm:$0xf]
  %v1349 = vld [vmem:[%s1313 + $0x8c] sm:$0xf]
  %v1350 = vld [vmem:[%s1313 + $0x90] sm:$0xf]
  %v1351 = vld [vmem:[%s1313 + $0x94] sm:$0xf]
  %v1352 = vld [vmem:[%s1313 + $0x98] sm:$0xf]
  %v1353 = vld [vmem:[%s1313 + $0x9c] sm:$0xf]
  %v1354 = vld [vmem:[%s1313 + $0xa0] sm:$0xf]
  %v1355 = vld [vmem:[%s1313 + $0xa4] sm:$0xf]
  %v1356 = vld [vmem:[%s1313 + $0xa8] sm:$0xf]
  %v1357 = vld [vmem:[%s1313 + $0xac] sm:$0xf]
  %v1358 = vld [vmem:[%s1313 + $0xb0] sm:$0xf]
  %v1359 = vld [vmem:[%s1313 + $0xb4] sm:$0xf]
  %v1360 = vld [vmem:[%s1313 + $0xb8] sm:$0xf]
  %v1361 = vld [vmem:[%s1313 + $0xbc] sm:$0xf]
  %v1362 = vld [vmem:[%s1313 + $0xc0] sm:$0xf]
  %v1363 = vld [vmem:[%s1313 + $0xc4] sm:$0xf]
  %v1364 = vld [vmem:[%s1313 + $0xc8] sm:$0xf]
  %v1365 = vld [vmem:[%s1313 + $0xcc] sm:$0xf]
  %v1366 = vld [vmem:[%s1313 + $0xd0] sm:$0xf]
  %v1367 = vld [vmem:[%s1313 + $0xd4] sm:$0xf]
  %v1368 = vld [vmem:[%s1313 + $0xd8] sm:$0xf]
  %v1369 = vld [vmem:[%s1313 + $0xdc] sm:$0xf]
  %v1370 = vld [vmem:[%s1313 + $0xe0] sm:$0xf]
  %v1371 = vld [vmem:[%s1313 + $0xe4] sm:$0xf]
  %v1372 = vld [vmem:[%s1313 + $0xe8] sm:$0xf]
  %v1373 = vld [vmem:[%s1313 + $0xec] sm:$0xf]
  %v1374 = vld [vmem:[%s1313 + $0xf0] sm:$0xf]
  %v1375 = vld [vmem:[%s1313 + $0xf4] sm:$0xf]
  %v1376 = vld [vmem:[%s1313 + $0xf8] sm:$0xf]
  %v1377 = vld [vmem:[%s1313 + $0xfc] sm:$0xf]
  %v1442 = vunpack.c.l.b16 %v1314
  %v1443 = vunpack.c.l.b16 %v1315
  %v1444 = vunpack.c.l.b16 %v1316
  %v1445 = vunpack.c.l.b16 %v1317
  %v1446 = vunpack.c.l.b16 %v1318
  %v1447 = vunpack.c.l.b16 %v1319
  %v1448 = vunpack.c.l.b16 %v1320
  %v1449 = vunpack.c.l.b16 %v1321
  %v1450 = vunpack.c.l.b16 %v1322
  %v1451 = vunpack.c.l.b16 %v1323
  %v1452 = vunpack.c.l.b16 %v1324
  %v1453 = vunpack.c.l.b16 %v1325
  %v1454 = vunpack.c.l.b16 %v1326
  %v1455 = vunpack.c.l.b16 %v1327
  %v1456 = vunpack.c.l.b16 %v1328
  %v1457 = vunpack.c.l.b16 %v1329
  %v1458 = vunpack.c.l.b16 %v1330
  %v1459 = vunpack.c.l.b16 %v1331
  %v1460 = vunpack.c.l.b16 %v1332
  %v1461 = vunpack.c.l.b16 %v1333
  %v1462 = vunpack.c.l.b16 %v1334
  %v1463 = vunpack.c.l.b16 %v1335
  %v1464 = vunpack.c.l.b16 %v1336
  %v1465 = vunpack.c.l.b16 %v1337
  %v1466 = vunpack.c.l.b16 %v1338
  %v1467 = vunpack.c.l.b16 %v1339
  %v1468 = vunpack.c.l.b16 %v1340
  %v1469 = vunpack.c.l.b16 %v1341
  %v1470 = vunpack.c.l.b16 %v1342
  %v1471 = vunpack.c.l.b16 %v1343
  %v1472 = vunpack.c.l.b16 %v1344
  %v1473 = vunpack.c.l.b16 %v1345
  %v1474 = vunpack.c.l.b16 %v1346
  %v1475 = vunpack.c.l.b16 %v1347
  %v1476 = vunpack.c.l.b16 %v1348
  %v1477 = vunpack.c.l.b16 %v1349
  %v1478 = vunpack.c.l.b16 %v1350
  %v1479 = vunpack.c.l.b16 %v1351
  %v1480 = vunpack.c.l.b16 %v1352
  %v1481 = vunpack.c.l.b16 %v1353
  %v1482 = vunpack.c.l.b16 %v1354
  %v1483 = vunpack.c.l.b16 %v1355
  %v1484 = vunpack.c.l.b16 %v1356
  %v1485 = vunpack.c.l.b16 %v1357
  %v1486 = vunpack.c.l.b16 %v1358
  %v1487 = vunpack.c.l.b16 %v1359
  %v1488 = vunpack.c.l.b16 %v1360
  %v1489 = vunpack.c.l.b16 %v1361
  %v1490 = vunpack.c.l.b16 %v1362
  %v1491 = vunpack.c.l.b16 %v1363
  %v1492 = vunpack.c.l.b16 %v1364
  %v1493 = vunpack.c.l.b16 %v1365
  %v1494 = vunpack.c.l.b16 %v1366
  %v1495 = vunpack.c.l.b16 %v1367
  %v1496 = vunpack.c.l.b16 %v1368
  %v1497 = vunpack.c.l.b16 %v1369
  %v1498 = vunpack.c.l.b16 %v1370
  %v1499 = vunpack.c.l.b16 %v1371
  %v1500 = vunpack.c.l.b16 %v1372
  %v1501 = vunpack.c.l.b16 %v1373
  %v1502 = vunpack.c.l.b16 %v1374
  %v1503 = vunpack.c.l.b16 %v1375
  %v1504 = vunpack.c.l.b16 %v1376
  %v1505 = vunpack.c.l.b16 %v1377
  %v1506 = vpack.c.b16 %v1443, %v1442
  %v1507 = vpack.c.b16 %v1445, %v1444
  %v1508 = vpack.c.b16 %v1447, %v1446
  %v1509 = vpack.c.b16 %v1449, %v1448
  %v1510 = vpack.c.b16 %v1451, %v1450
  %v1511 = vpack.c.b16 %v1453, %v1452
  %v1512 = vpack.c.b16 %v1455, %v1454
  %v1513 = vpack.c.b16 %v1457, %v1456
  %v1514 = vpack.c.b16 %v1459, %v1458
  %v1515 = vpack.c.b16 %v1461, %v1460
  %v1516 = vpack.c.b16 %v1463, %v1462
  %v1517 = vpack.c.b16 %v1465, %v1464
  %v1518 = vpack.c.b16 %v1467, %v1466
  %v1519 = vpack.c.b16 %v1469, %v1468
  %v1520 = vpack.c.b16 %v1471, %v1470
  %v1521 = vpack.c.b16 %v1473, %v1472
  %v1522 = vpack.c.b16 %v1475, %v1474
  %v1523 = vpack.c.b16 %v1477, %v1476
  %v1524 = vpack.c.b16 %v1479, %v1478
  %v1525 = vpack.c.b16 %v1481, %v1480
  %v1526 = vpack.c.b16 %v1483, %v1482
  %v1527 = vpack.c.b16 %v1485, %v1484
  %v1528 = vpack.c.b16 %v1487, %v1486
  %v1529 = vpack.c.b16 %v1489, %v1488
  %v1530 = vpack.c.b16 %v1491, %v1490
  %v1531 = vpack.c.b16 %v1493, %v1492
  %v1532 = vpack.c.b16 %v1495, %v1494
  %v1533 = vpack.c.b16 %v1497, %v1496
  %v1534 = vpack.c.b16 %v1499, %v1498
  %v1535 = vpack.c.b16 %v1501, %v1500
  %v1536 = vpack.c.b16 %v1503, %v1502
  %v1537 = vpack.c.b16 %v1505, %v1504
  %v1539 = vsel %vm246, %v1506, 0
  %v1542 = vsel %vm246, %v1507, 0
  %v1545 = vsel %vm246, %v1508, 0
  %v1548 = vsel %vm246, %v1509, 0
  %v1551 = vsel %vm246, %v1510, 0
  %v1554 = vsel %vm246, %v1511, 0
  %v1557 = vsel %vm246, %v1512, 0
  %v1560 = vsel %vm246, %v1513, 0
  %v1563 = vsel %vm246, %v1514, 0
  %v1566 = vsel %vm246, %v1515, 0
  %v1569 = vsel %vm246, %v1516, 0
  %v1572 = vsel %vm246, %v1517, 0
  %v1575 = vsel %vm246, %v1518, 0
  %v1578 = vsel %vm246, %v1519, 0
  %v1581 = vsel %vm246, %v1520, 0
  %v1584 = vsel %vm246, %v1521, 0
  %v1587 = vsel %vm246, %v1522, 0
  %v1590 = vsel %vm246, %v1523, 0
  %v1593 = vsel %vm246, %v1524, 0
  %v1596 = vsel %vm246, %v1525, 0
  %v1599 = vsel %vm246, %v1526, 0
  %v1602 = vsel %vm246, %v1527, 0
  %v1605 = vsel %vm246, %v1528, 0
  %v1608 = vsel %vm246, %v1529, 0
  %v1611 = vsel %vm246, %v1530, 0
  %v1614 = vsel %vm246, %v1531, 0
  %v1617 = vsel %vm246, %v1532, 0
  %v1620 = vsel %vm246, %v1533, 0
  %v1623 = vsel %vm246, %v1534, 0
  %v1626 = vsel %vm246, %v1535, 0
  %v1629 = vsel %vm246, %v1536, 0
  %v1632 = vsel %vm246, %v1537, 0
  %1634 = vmatprep.subr.bf16.mxu0 0
  %1635 = vmatpush1.bf16.msra.mxu0 %v348
  %1636 = vmatprep.subr.bf16.mxu0 0
  %1637 = vmatpush1.bf16.msra.mxu0 0
  %1638 = vmatprep.subr.bf16.mxu0 0
  %1639 = vmatpush1.bf16.msra.mxu0 0
  %1640 = vmatprep.subr.bf16.mxu0 0
  %1641 = vmatpush1.bf16.msra.mxu0 0
  %1642 = vmatprep.subr.bf16.mxu0 0
  %1643 = vmatpush1.bf16.msra.mxu0 0
  %1644 = vmatprep.subr.bf16.mxu0 0
  %1645 = vmatpush1.bf16.msra.mxu0 0
  %1646 = vmatprep.subr.bf16.mxu0 0
  %1647 = vmatpush1.bf16.msra.mxu0 0
  %1648 = vmatprep.subr.bf16.mxu0 0
  %1649 = vmatpush1.bf16.msra.mxu0 0
  %1650 = vmatprep.subr.bf16.mxu0 0
  %1651 = vmatpush1.bf16.msra.mxu0 0
  %1652 = vmatprep.subr.bf16.mxu0 0
  %1653 = vmatpush1.bf16.msra.mxu0 0
  %1654 = vmatprep.subr.bf16.mxu0 0
  %1655 = vmatpush1.bf16.msra.mxu0 0
  %1656 = vmatprep.subr.bf16.mxu0 0
  %1657 = vmatpush1.bf16.msra.mxu0 0
  %1658 = vmatprep.subr.bf16.mxu0 0
  %1659 = vmatpush1.bf16.msra.mxu0 0
  %1660 = vmatprep.subr.bf16.mxu0 0
  %1661 = vmatpush1.bf16.msra.mxu0 0
  %1662 = vmatprep.subr.bf16.mxu0 0
  %1663 = vmatpush1.bf16.msra.mxu0 0
  %1664 = vmatprep.subr.bf16.mxu0 0
  %1665 = vmatpush1.bf16.msra.mxu0 0
  %1666 = vmatprep.mubr.bf16.mxu0 0
  %1667 = vmatmul.mubr.bf16.gmra.mrb[0].mxu0 %v1539
  %v1668 = vpop.f32.mrb[0].mxu0
  %v1669 = vadd.f32 0.0, %v1668
  %v1670 = vpop.f32.mrb[0].mxu0
  %v1671 = vpop.f32.mrb[0].mxu0
  %v1672 = vadd.f32 0.0, %v1671
  %v1673 = vpop.f32.mrb[0].mxu0
  %1674 = vmatprep.mubr.bf16.mxu0 0
  %1675 = vmatmul.mubr.bf16.gmra.mrb[0].mxu0 %v1542
  %v1676 = vpop.f32.mrb[0].mxu0
  %v1677 = vadd.f32 0.0, %v1676
  %v1678 = vpop.f32.mrb[0].mxu0
  %v1679 = vpop.f32.mrb[0].mxu0
  %v1680 = vadd.f32 0.0, %v1679
  %v1681 = vpop.f32.mrb[0].mxu0
  %1682 = vmatprep.mubr.bf16.mxu0 0
  %1683 = vmatmul.mubr.bf16.gmra.mrb[0].mxu0 %v1545
  %v1684 = vpop.f32.mrb[0].mxu0
  %v1685 = vadd.f32 0.0, %v1684
  %v1686 = vpop.f32.mrb[0].mxu0
  %v1687 = vpop.f32.mrb[0].mxu0
  %v1688 = vadd.f32 0.0, %v1687
  %v1689 = vpop.f32.mrb[0].mxu0
  %1690 = vmatprep.mubr.bf16.mxu0 0
  %1691 = vmatmul.mubr.bf16.gmra.mrb[0].mxu0 %v1548
  %v1692 = vpop.f32.mrb[0].mxu0
  %v1693 = vadd.f32 0.0, %v1692
  %v1694 = vpop.f32.mrb[0].mxu0
  %v1695 = vpop.f32.mrb[0].mxu0
  %v1696 = vadd.f32 0.0, %v1695
  %v1697 = vpop.f32.mrb[0].mxu0
  %1698 = vmatprep.mubr.bf16.mxu0 0
  %1699 = vmatmul.mubr.bf16.gmra.mrb[0].mxu0 %v1551
  %v1700 = vpop.f32.mrb[0].mxu0
  %v1701 = vadd.f32 0.0, %v1700
  %v1702 = vpop.f32.mrb[0].mxu0
  %v1703 = vpop.f32.mrb[0].mxu0
  %v1704 = vadd.f32 0.0, %v1703
  %v1705 = vpop.f32.mrb[0].mxu0
  %1706 = vmatprep.mubr.bf16.mxu0 0
  %1707 = vmatmul.mubr.bf16.gmra.mrb[0].mxu0 %v1554
  %v1708 = vpop.f32.mrb[0].mxu0
  %v1709 = vadd.f32 0.0, %v1708
  %v1710 = vpop.f32.mrb[0].mxu0
  %v1711 = vpop.f32.mrb[0].mxu0
  %v1712 = vadd.f32 0.0, %v1711
  %v1713 = vpop.f32.mrb[0].mxu0
  %1714 = vmatprep.mubr.bf16.mxu0 0
  %1715 = vmatmul.mubr.bf16.gmra.mrb[0].mxu0 %v1557
  %v1716 = vpop.f32.mrb[0].mxu0
  %v1717 = vadd.f32 0.0, %v1716
  %v1718 = vpop.f32.mrb[0].mxu0
  %v1719 = vpop.f32.mrb[0].mxu0
  %v1720 = vadd.f32 0.0, %v1719
  %v1721 = vpop.f32.mrb[0].mxu0
  %1722 = vmatprep.mubr.bf16.mxu0 0
  %1723 = vmatmul.mubr.bf16.gmra.mrb[0].mxu0 %v1560
  %v1724 = vpop.f32.mrb[0].mxu0
  %v1725 = vadd.f32 0.0, %v1724
  %v1726 = vpop.f32.mrb[0].mxu0
  %v1727 = vpop.f32.mrb[0].mxu0
  %v1728 = vadd.f32 0.0, %v1727
  %v1729 = vpop.f32.mrb[0].mxu0
  %1730 = vmatprep.mubr.bf16.mxu0 0
  %1731 = vmatmul.mubr.bf16.gmra.mrb[0].mxu0 %v1563
  %v1732 = vpop.f32.mrb[0].mxu0
  %v1733 = vadd.f32 0.0, %v1732
  %v1734 = vpop.f32.mrb[0].mxu0
  %v1735 = vpop.f32.mrb[0].mxu0
  %v1736 = vadd.f32 0.0, %v1735
  %v1737 = vpop.f32.mrb[0].mxu0
  %1738 = vmatprep.mubr.bf16.mxu0 0
  %1739 = vmatmul.mubr.bf16.gmra.mrb[0].mxu0 %v1566
  %v1740 = vpop.f32.mrb[0].mxu0
  %v1741 = vadd.f32 0.0, %v1740
  %v1742 = vpop.f32.mrb[0].mxu0
  %v1743 = vpop.f32.mrb[0].mxu0
  %v1744 = vadd.f32 0.0, %v1743
  %v1745 = vpop.f32.mrb[0].mxu0
  %1746 = vmatprep.mubr.bf16.mxu0 0
  %1747 = vmatmul.mubr.bf16.gmra.mrb[0].mxu0 %v1569
  %v1748 = vpop.f32.mrb[0].mxu0
  %v1749 = vadd.f32 0.0, %v1748
  %v1750 = vpop.f32.mrb[0].mxu0
  %v1751 = vpop.f32.mrb[0].mxu0
  %v1752 = vadd.f32 0.0, %v1751
  %v1753 = vpop.f32.mrb[0].mxu0
  %1754 = vmatprep.mubr.bf16.mxu0 0
  %1755 = vmatmul.mubr.bf16.gmra.mrb[0].mxu0 %v1572
  %v1756 = vpop.f32.mrb[0].mxu0
  %v1757 = vadd.f32 0.0, %v1756
  %v1758 = vpop.f32.mrb[0].mxu0
  %v1759 = vpop.f32.mrb[0].mxu0
  %v1760 = vadd.f32 0.0, %v1759
  %v1761 = vpop.f32.mrb[0].mxu0
  %1762 = vmatprep.mubr.bf16.mxu0 0
  %1763 = vmatmul.mubr.bf16.gmra.mrb[0].mxu0 %v1575
  %v1764 = vpop.f32.mrb[0].mxu0
  %v1765 = vadd.f32 0.0, %v1764
  %v1766 = vpop.f32.mrb[0].mxu0
  %v1767 = vpop.f32.mrb[0].mxu0
  %v1768 = vadd.f32 0.0, %v1767
  %v1769 = vpop.f32.mrb[0].mxu0
  %1770 = vmatprep.mubr.bf16.mxu0 0
  %1771 = vmatmul.mubr.bf16.gmra.mrb[0].mxu0 %v1578
  %v1772 = vpop.f32.mrb[0].mxu0
  %v1773 = vadd.f32 0.0, %v1772
  %v1774 = vpop.f32.mrb[0].mxu0
  %v1775 = vpop.f32.mrb[0].mxu0
  %v1776 = vadd.f32 0.0, %v1775
  %v1777 = vpop.f32.mrb[0].mxu0
  %1778 = vmatprep.mubr.bf16.mxu0 0
  %1779 = vmatmul.mubr.bf16.gmra.mrb[0].mxu0 %v1581
  %v1780 = vpop.f32.mrb[0].mxu0
  %v1781 = vadd.f32 0.0, %v1780
  %v1782 = vpop.f32.mrb[0].mxu0
  %v1783 = vpop.f32.mrb[0].mxu0
  %v1784 = vadd.f32 0.0, %v1783
  %v1785 = vpop.f32.mrb[0].mxu0
  %1786 = vmatprep.mubr.bf16.mxu0 0
  %1787 = vmatmul.mubr.bf16.gmra.mrb[0].mxu0 %v1584
  %v1788 = vpop.f32.mrb[0].mxu0
  %v1789 = vadd.f32 0.0, %v1788
  %v1790 = vpop.f32.mrb[0].mxu0
  %v1791 = vpop.f32.mrb[0].mxu0
  %v1792 = vadd.f32 0.0, %v1791
  %v1793 = vpop.f32.mrb[0].mxu0
  %1794 = vmatprep.mubr.bf16.mxu0 0
  %1795 = vmatmul.mubr.bf16.gmra.mrb[0].mxu0 %v1587
  %v1796 = vpop.f32.mrb[0].mxu0
  %v1797 = vadd.f32 0.0, %v1796
  %v1798 = vpop.f32.mrb[0].mxu0
  %v1799 = vpop.f32.mrb[0].mxu0
  %v1800 = vadd.f32 0.0, %v1799
  %v1801 = vpop.f32.mrb[0].mxu0
  %1802 = vmatprep.mubr.bf16.mxu0 0
  %1803 = vmatmul.mubr.bf16.gmra.mrb[0].mxu0 %v1590
  %v1804 = vpop.f32.mrb[0].mxu0
  %v1805 = vadd.f32 0.0, %v1804
  %v1806 = vpop.f32.mrb[0].mxu0
  %v1807 = vpop.f32.mrb[0].mxu0
  %v1808 = vadd.f32 0.0, %v1807
  %v1809 = vpop.f32.mrb[0].mxu0
  %1810 = vmatprep.mubr.bf16.mxu0 0
  %1811 = vmatmul.mubr.bf16.gmra.mrb[0].mxu0 %v1593
  %v1812 = vpop.f32.mrb[0].mxu0
  %v1813 = vadd.f32 0.0, %v1812
  %v1814 = vpop.f32.mrb[0].mxu0
  %v1815 = vpop.f32.mrb[0].mxu0
  %v1816 = vadd.f32 0.0, %v1815
  %v1817 = vpop.f32.mrb[0].mxu0
  %1818 = vmatprep.mubr.bf16.mxu0 0
  %1819 = vmatmul.mubr.bf16.gmra.mrb[0].mxu0 %v1596
  %v1820 = vpop.f32.mrb[0].mxu0
  %v1821 = vadd.f32 0.0, %v1820
  %v1822 = vpop.f32.mrb[0].mxu0
  %v1823 = vpop.f32.mrb[0].mxu0
  %v1824 = vadd.f32 0.0, %v1823
  %v1825 = vpop.f32.mrb[0].mxu0
  %1826 = vmatprep.mubr.bf16.mxu0 0
  %1827 = vmatmul.mubr.bf16.gmra.mrb[0].mxu0 %v1599
  %v1828 = vpop.f32.mrb[0].mxu0
  %v1829 = vadd.f32 0.0, %v1828
  %v1830 = vpop.f32.mrb[0].mxu0
  %v1831 = vpop.f32.mrb[0].mxu0
  %v1832 = vadd.f32 0.0, %v1831
  %v1833 = vpop.f32.mrb[0].mxu0
  %1834 = vmatprep.mubr.bf16.mxu0 0
  %1835 = vmatmul.mubr.bf16.gmra.mrb[0].mxu0 %v1602
  %v1836 = vpop.f32.mrb[0].mxu0
  %v1837 = vadd.f32 0.0, %v1836
  %v1838 = vpop.f32.mrb[0].mxu0
  %v1839 = vpop.f32.mrb[0].mxu0
  %v1840 = vadd.f32 0.0, %v1839
  %v1841 = vpop.f32.mrb[0].mxu0
  %1842 = vmatprep.mubr.bf16.mxu0 0
  %1843 = vmatmul.mubr.bf16.gmra.mrb[0].mxu0 %v1605
  %v1844 = vpop.f32.mrb[0].mxu0
  %v1845 = vadd.f32 0.0, %v1844
  %v1846 = vpop.f32.mrb[0].mxu0
  %v1847 = vpop.f32.mrb[0].mxu0
  %v1848 = vadd.f32 0.0, %v1847
  %v1849 = vpop.f32.mrb[0].mxu0
  %1850 = vmatprep.mubr.bf16.mxu0 0
  %1851 = vmatmul.mubr.bf16.gmra.mrb[0].mxu0 %v1608
  %v1852 = vpop.f32.mrb[0].mxu0
  %v1853 = vadd.f32 0.0, %v1852
  %v1854 = vpop.f32.mrb[0].mxu0
  %v1855 = vpop.f32.mrb[0].mxu0
  %v1856 = vadd.f32 0.0, %v1855
  %v1857 = vpop.f32.mrb[0].mxu0
  %1858 = vmatprep.mubr.bf16.mxu0 0
  %1859 = vmatmul.mubr.bf16.gmra.mrb[0].mxu0 %v1611
  %v1860 = vpop.f32.mrb[0].mxu0
  %v1861 = vadd.f32 0.0, %v1860
  %v1862 = vpop.f32.mrb[0].mxu0
  %v1863 = vpop.f32.mrb[0].mxu0
  %v1864 = vadd.f32 0.0, %v1863
  %v1865 = vpop.f32.mrb[0].mxu0
  %1866 = vmatprep.mubr.bf16.mxu0 0
  %1867 = vmatmul.mubr.bf16.gmra.mrb[0].mxu0 %v1614
  %v1868 = vpop.f32.mrb[0].mxu0
  %v1869 = vadd.f32 0.0, %v1868
  %v1870 = vpop.f32.mrb[0].mxu0
  %v1871 = vpop.f32.mrb[0].mxu0
  %v1872 = vadd.f32 0.0, %v1871
  %v1873 = vpop.f32.mrb[0].mxu0
  %1874 = vmatprep.mubr.bf16.mxu0 0
  %1875 = vmatmul.mubr.bf16.gmra.mrb[0].mxu0 %v1617
  %v1876 = vpop.f32.mrb[0].mxu0
  %v1877 = vadd.f32 0.0, %v1876
  %v1878 = vpop.f32.mrb[0].mxu0
  %v1879 = vpop.f32.mrb[0].mxu0
  %v1880 = vadd.f32 0.0, %v1879
  %v1881 = vpop.f32.mrb[0].mxu0
  %1882 = vmatprep.mubr.bf16.mxu0 0
  %1883 = vmatmul.mubr.bf16.gmra.mrb[0].mxu0 %v1620
  %v1884 = vpop.f32.mrb[0].mxu0
  %v1885 = vadd.f32 0.0, %v1884
  %v1886 = vpop.f32.mrb[0].mxu0
  %v1887 = vpop.f32.mrb[0].mxu0
  %v1888 = vadd.f32 0.0, %v1887
  %v1889 = vpop.f32.mrb[0].mxu0
  %1890 = vmatprep.mubr.bf16.mxu0 0
  %1891 = vmatmul.mubr.bf16.gmra.mrb[0].mxu0 %v1623
  %v1892 = vpop.f32.mrb[0].mxu0
  %v1893 = vadd.f32 0.0, %v1892
  %v1894 = vpop.f32.mrb[0].mxu0
  %v1895 = vpop.f32.mrb[0].mxu0
  %v1896 = vadd.f32 0.0, %v1895
  %v1897 = vpop.f32.mrb[0].mxu0
  %1898 = vmatprep.mubr.bf16.mxu0 0
  %1899 = vmatmul.mubr.bf16.gmra.mrb[0].mxu0 %v1626
  %v1900 = vpop.f32.mrb[0].mxu0
  %v1901 = vadd.f32 0.0, %v1900
  %v1902 = vpop.f32.mrb[0].mxu0
  %v1903 = vpop.f32.mrb[0].mxu0
  %v1904 = vadd.f32 0.0, %v1903
  %v1905 = vpop.f32.mrb[0].mxu0
  %1906 = vmatprep.mubr.bf16.mxu0 0
  %1907 = vmatmul.mubr.bf16.gmra.mrb[0].mxu0 %v1629
  %v1908 = vpop.f32.mrb[0].mxu0
  %v1909 = vadd.f32 0.0, %v1908
  %v1910 = vpop.f32.mrb[0].mxu0
  %v1911 = vpop.f32.mrb[0].mxu0
  %v1912 = vadd.f32 0.0, %v1911
  %v1913 = vpop.f32.mrb[0].mxu0
  %1914 = vmatprep.mubr.bf16.mxu0 0
  %1915 = vmatmul.mubr.bf16.gmra.mrb[0].mxu0 %v1632
  %v1916 = vpop.f32.mrb[0].mxu0
  %v1917 = vadd.f32 0.0, %v1916
  %v1918 = vpop.f32.mrb[0].mxu0
  %v1919 = vpop.f32.mrb[0].mxu0
  %v1920 = vadd.f32 0.0, %v1919
  %v1921 = vpop.f32.mrb[0].mxu0
  %1922 = vdwg.mxu0
  %v1923 = vmax.f32 %v1249, %v1669
  %v1924 = vmax.f32 %v1250, %v1672
  %v1925 = vmax.f32 %v1251, %v1677
  %v1926 = vmax.f32 %v1252, %v1680
  %v1927 = vmax.f32 %v1253, %v1685
  %v1928 = vmax.f32 %v1254, %v1688
  %v1929 = vmax.f32 %v1255, %v1693
  %v1930 = vmax.f32 %v1256, %v1696
  %v1931 = vmax.f32 %v1257, %v1701
  %v1932 = vmax.f32 %v1258, %v1704
  %v1933 = vmax.f32 %v1259, %v1709
  %v1934 = vmax.f32 %v1260, %v1712
  %v1935 = vmax.f32 %v1261, %v1717
  %v1936 = vmax.f32 %v1262, %v1720
  %v1937 = vmax.f32 %v1263, %v1725
  %v1938 = vmax.f32 %v1264, %v1728
  %v1939 = vmax.f32 %v1265, %v1733
  %v1940 = vmax.f32 %v1266, %v1736
  %v1941 = vmax.f32 %v1267, %v1741
  %v1942 = vmax.f32 %v1268, %v1744
  %v1943 = vmax.f32 %v1269, %v1749
  %v1944 = vmax.f32 %v1270, %v1752
  %v1945 = vmax.f32 %v1271, %v1757
  %v1946 = vmax.f32 %v1272, %v1760
  %v1947 = vmax.f32 %v1273, %v1765
  %v1948 = vmax.f32 %v1274, %v1768
  %v1949 = vmax.f32 %v1275, %v1773
  %v1950 = vmax.f32 %v1276, %v1776
  %v1951 = vmax.f32 %v1277, %v1781
  %v1952 = vmax.f32 %v1278, %v1784
  %v1953 = vmax.f32 %v1279, %v1789
  %v1954 = vmax.f32 %v1280, %v1792
  %v1955 = vmax.f32 %v1281, %v1797
  %v1956 = vmax.f32 %v1282, %v1800
  %v1957 = vmax.f32 %v1283, %v1805
  %v1958 = vmax.f32 %v1284, %v1808
  %v1959 = vmax.f32 %v1285, %v1813
  %v1960 = vmax.f32 %v1286, %v1816
  %v1961 = vmax.f32 %v1287, %v1821
  %v1962 = vmax.f32 %v1288, %v1824
  %v1963 = vmax.f32 %v1289, %v1829
  %v1964 = vmax.f32 %v1290, %v1832
  %v1965 = vmax.f32 %v1291, %v1837
  %v1966 = vmax.f32 %v1292, %v1840
  %v1967 = vmax.f32 %v1293, %v1845
  %v1968 = vmax.f32 %v1294, %v1848
  %v1969 = vmax.f32 %v1295, %v1853
  %v1970 = vmax.f32 %v1296, %v1856
  %v1971 = vmax.f32 %v1297, %v1861
  %v1972 = vmax.f32 %v1298, %v1864
  %v1973 = vmax.f32 %v1299, %v1869
  %v1974 = vmax.f32 %v1300, %v1872
  %v1975 = vmax.f32 %v1301, %v1877
  %v1976 = vmax.f32 %v1302, %v1880
  %v1977 = vmax.f32 %v1303, %v1885
  %v1978 = vmax.f32 %v1304, %v1888
  %v1979 = vmax.f32 %v1305, %v1893
  %v1980 = vmax.f32 %v1306, %v1896
  %v1981 = vmax.f32 %v1307, %v1901
  %v1982 = vmax.f32 %v1308, %v1904
  %v1983 = vmax.f32 %v1309, %v1909
  %v1984 = vmax.f32 %v1310, %v1912
  %v1985 = vmax.f32 %v1311, %v1917
  %v1986 = vmax.f32 %v1312, %v1920
  %s1987 = scalar_lea.vmem %s0, 768
  %v1988 = vld [vmem:[%s1987] sm:$0xf]
  %v1989 = vld [vmem:[%s1987 + $0x4] sm:$0xf]
  %v1990 = vld [vmem:[%s1987 + $0x8] sm:$0xf]
  %v1991 = vld [vmem:[%s1987 + $0xc] sm:$0xf]
  %v1992 = vld [vmem:[%s1987 + $0x10] sm:$0xf]
  %v1993 = vld [vmem:[%s1987 + $0x14] sm:$0xf]
  %v1994 = vld [vmem:[%s1987 + $0x18] sm:$0xf]
  %v1995 = vld [vmem:[%s1987 + $0x1c] sm:$0xf]
  %v1996 = vld [vmem:[%s1987 + $0x20] sm:$0xf]
  %v1997 = vld [vmem:[%s1987 + $0x24] sm:$0xf]
  %v1998 = vld [vmem:[%s1987 + $0x28] sm:$0xf]
  %v1999 = vld [vmem:[%s1987 + $0x2c] sm:$0xf]
  %v2000 = vld [vmem:[%s1987 + $0x30] sm:$0xf]
  %v2001 = vld [vmem:[%s1987 + $0x34] sm:$0xf]
  %v2002 = vld [vmem:[%s1987 + $0x38] sm:$0xf]
  %v2003 = vld [vmem:[%s1987 + $0x3c] sm:$0xf]
  %v2004 = vld [vmem:[%s1987 + $0x40] sm:$0xf]
  %v2005 = vld [vmem:[%s1987 + $0x44] sm:$0xf]
  %v2006 = vld [vmem:[%s1987 + $0x48] sm:$0xf]
  %v2007 = vld [vmem:[%s1987 + $0x4c] sm:$0xf]
  %v2008 = vld [vmem:[%s1987 + $0x50] sm:$0xf]
  %v2009 = vld [vmem:[%s1987 + $0x54] sm:$0xf]
  %v2010 = vld [vmem:[%s1987 + $0x58] sm:$0xf]
  %v2011 = vld [vmem:[%s1987 + $0x5c] sm:$0xf]
  %v2012 = vld [vmem:[%s1987 + $0x60] sm:$0xf]
  %v2013 = vld [vmem:[%s1987 + $0x64] sm:$0xf]
  %v2014 = vld [vmem:[%s1987 + $0x68] sm:$0xf]
  %v2015 = vld [vmem:[%s1987 + $0x6c] sm:$0xf]
  %v2016 = vld [vmem:[%s1987 + $0x70] sm:$0xf]
  %v2017 = vld [vmem:[%s1987 + $0x74] sm:$0xf]
  %v2018 = vld [vmem:[%s1987 + $0x78] sm:$0xf]
  %v2019 = vld [vmem:[%s1987 + $0x7c] sm:$0xf]
  %v2020 = vld [vmem:[%s1987 + $0x80] sm:$0xf]
  %v2021 = vld [vmem:[%s1987 + $0x84] sm:$0xf]
  %v2022 = vld [vmem:[%s1987 + $0x88] sm:$0xf]
  %v2023 = vld [vmem:[%s1987 + $0x8c] sm:$0xf]
  %v2024 = vld [vmem:[%s1987 + $0x90] sm:$0xf]
  %v2025 = vld [vmem:[%s1987 + $0x94] sm:$0xf]
  %v2026 = vld [vmem:[%s1987 + $0x98] sm:$0xf]
  %v2027 = vld [vmem:[%s1987 + $0x9c] sm:$0xf]
  %v2028 = vld [vmem:[%s1987 + $0xa0] sm:$0xf]
  %v2029 = vld [vmem:[%s1987 + $0xa4] sm:$0xf]
  %v2030 = vld [vmem:[%s1987 + $0xa8] sm:$0xf]
  %v2031 = vld [vmem:[%s1987 + $0xac] sm:$0xf]
  %v2032 = vld [vmem:[%s1987 + $0xb0] sm:$0xf]
  %v2033 = vld [vmem:[%s1987 + $0xb4] sm:$0xf]
  %v2034 = vld [vmem:[%s1987 + $0xb8] sm:$0xf]
  %v2035 = vld [vmem:[%s1987 + $0xbc] sm:$0xf]
  %v2036 = vld [vmem:[%s1987 + $0xc0] sm:$0xf]
  %v2037 = vld [vmem:[%s1987 + $0xc4] sm:$0xf]
  %v2038 = vld [vmem:[%s1987 + $0xc8] sm:$0xf]
  %v2039 = vld [vmem:[%s1987 + $0xcc] sm:$0xf]
  %v2040 = vld [vmem:[%s1987 + $0xd0] sm:$0xf]
  %v2041 = vld [vmem:[%s1987 + $0xd4] sm:$0xf]
  %v2042 = vld [vmem:[%s1987 + $0xd8] sm:$0xf]
  %v2043 = vld [vmem:[%s1987 + $0xdc] sm:$0xf]
  %v2044 = vld [vmem:[%s1987 + $0xe0] sm:$0xf]
  %v2045 = vld [vmem:[%s1987 + $0xe4] sm:$0xf]
  %v2046 = vld [vmem:[%s1987 + $0xe8] sm:$0xf]
  %v2047 = vld [vmem:[%s1987 + $0xec] sm:$0xf]
  %v2048 = vld [vmem:[%s1987 + $0xf0] sm:$0xf]
  %v2049 = vld [vmem:[%s1987 + $0xf4] sm:$0xf]
  %v2050 = vld [vmem:[%s1987 + $0xf8] sm:$0xf]
  %v2051 = vld [vmem:[%s1987 + $0xfc] sm:$0xf]
  %v2116 = vunpack.c.l.b16 %v1988
  %v2117 = vunpack.c.l.b16 %v1989
  %v2118 = vunpack.c.l.b16 %v1990
  %v2119 = vunpack.c.l.b16 %v1991
  %v2120 = vunpack.c.l.b16 %v1992
  %v2121 = vunpack.c.l.b16 %v1993
  %v2122 = vunpack.c.l.b16 %v1994
  %v2123 = vunpack.c.l.b16 %v1995
  %v2124 = vunpack.c.l.b16 %v1996
  %v2125 = vunpack.c.l.b16 %v1997
  %v2126 = vunpack.c.l.b16 %v1998
  %v2127 = vunpack.c.l.b16 %v1999
  %v2128 = vunpack.c.l.b16 %v2000
  %v2129 = vunpack.c.l.b16 %v2001
  %v2130 = vunpack.c.l.b16 %v2002
  %v2131 = vunpack.c.l.b16 %v2003
  %v2132 = vunpack.c.l.b16 %v2004
  %v2133 = vunpack.c.l.b16 %v2005
  %v2134 = vunpack.c.l.b16 %v2006
  %v2135 = vunpack.c.l.b16 %v2007
  %v2136 = vunpack.c.l.b16 %v2008
  %v2137 = vunpack.c.l.b16 %v2009
  %v2138 = vunpack.c.l.b16 %v2010
  %v2139 = vunpack.c.l.b16 %v2011
  %v2140 = vunpack.c.l.b16 %v2012
  %v2141 = vunpack.c.l.b16 %v2013
  %v2142 = vunpack.c.l.b16 %v2014
  %v2143 = vunpack.c.l.b16 %v2015
  %v2144 = vunpack.c.l.b16 %v2016
  %v2145 = vunpack.c.l.b16 %v2017
  %v2146 = vunpack.c.l.b16 %v2018
  %v2147 = vunpack.c.l.b16 %v2019
  %v2148 = vunpack.c.l.b16 %v2020
  %v2149 = vunpack.c.l.b16 %v2021
  %v2150 = vunpack.c.l.b16 %v2022
  %v2151 = vunpack.c.l.b16 %v2023
  %v2152 = vunpack.c.l.b16 %v2024
  %v2153 = vunpack.c.l.b16 %v2025
  %v2154 = vunpack.c.l.b16 %v2026
  %v2155 = vunpack.c.l.b16 %v2027
  %v2156 = vunpack.c.l.b16 %v2028
  %v2157 = vunpack.c.l.b16 %v2029
  %v2158 = vunpack.c.l.b16 %v2030
  %v2159 = vunpack.c.l.b16 %v2031
  %v2160 = vunpack.c.l.b16 %v2032
  %v2161 = vunpack.c.l.b16 %v2033
  %v2162 = vunpack.c.l.b16 %v2034
  %v2163 = vunpack.c.l.b16 %v2035
  %v2164 = vunpack.c.l.b16 %v2036
  %v2165 = vunpack.c.l.b16 %v2037
  %v2166 = vunpack.c.l.b16 %v2038
  %v2167 = vunpack.c.l.b16 %v2039
  %v2168 = vunpack.c.l.b16 %v2040
  %v2169 = vunpack.c.l.b16 %v2041
  %v2170 = vunpack.c.l.b16 %v2042
  %v2171 = vunpack.c.l.b16 %v2043
  %v2172 = vunpack.c.l.b16 %v2044
  %v2173 = vunpack.c.l.b16 %v2045
  %v2174 = vunpack.c.l.b16 %v2046
  %v2175 = vunpack.c.l.b16 %v2047
  %v2176 = vunpack.c.l.b16 %v2048
  %v2177 = vunpack.c.l.b16 %v2049
  %v2178 = vunpack.c.l.b16 %v2050
  %v2179 = vunpack.c.l.b16 %v2051
  %v2180 = vpack.c.b16 %v2117, %v2116
  %v2181 = vpack.c.b16 %v2119, %v2118
  %v2182 = vpack.c.b16 %v2121, %v2120
  %v2183 = vpack.c.b16 %v2123, %v2122
  %v2184 = vpack.c.b16 %v2125, %v2124
  %v2185 = vpack.c.b16 %v2127, %v2126
  %v2186 = vpack.c.b16 %v2129, %v2128
  %v2187 = vpack.c.b16 %v2131, %v2130
  %v2188 = vpack.c.b16 %v2133, %v2132
  %v2189 = vpack.c.b16 %v2135, %v2134
  %v2190 = vpack.c.b16 %v2137, %v2136
  %v2191 = vpack.c.b16 %v2139, %v2138
  %v2192 = vpack.c.b16 %v2141, %v2140
  %v2193 = vpack.c.b16 %v2143, %v2142
  %v2194 = vpack.c.b16 %v2145, %v2144
  %v2195 = vpack.c.b16 %v2147, %v2146
  %v2196 = vpack.c.b16 %v2149, %v2148
  %v2197 = vpack.c.b16 %v2151, %v2150
  %v2198 = vpack.c.b16 %v2153, %v2152
  %v2199 = vpack.c.b16 %v2155, %v2154
  %v2200 = vpack.c.b16 %v2157, %v2156
  %v2201 = vpack.c.b16 %v2159, %v2158
  %v2202 = vpack.c.b16 %v2161, %v2160
  %v2203 = vpack.c.b16 %v2163, %v2162
  %v2204 = vpack.c.b16 %v2165, %v2164
  %v2205 = vpack.c.b16 %v2167, %v2166
  %v2206 = vpack.c.b16 %v2169, %v2168
  %v2207 = vpack.c.b16 %v2171, %v2170
  %v2208 = vpack.c.b16 %v2173, %v2172
  %v2209 = vpack.c.b16 %v2175, %v2174
  %v2210 = vpack.c.b16 %v2177, %v2176
  %v2211 = vpack.c.b16 %v2179, %v2178
  %v2213 = vsel %vm246, %v2180, 0
  %v2216 = vsel %vm246, %v2181, 0
  %v2219 = vsel %vm246, %v2182, 0
  %v2222 = vsel %vm246, %v2183, 0
  %v2225 = vsel %vm246, %v2184, 0
  %v2228 = vsel %vm246, %v2185, 0
  %v2231 = vsel %vm246, %v2186, 0
  %v2234 = vsel %vm246, %v2187, 0
  %v2237 = vsel %vm246, %v2188, 0
  %v2240 = vsel %vm246, %v2189, 0
  %v2243 = vsel %vm246, %v2190, 0
  %v2246 = vsel %vm246, %v2191, 0
  %v2249 = vsel %vm246, %v2192, 0
  %v2252 = vsel %vm246, %v2193, 0
  %v2255 = vsel %vm246, %v2194, 0
  %v2258 = vsel %vm246, %v2195, 0
  %v2261 = vsel %vm246, %v2196, 0
  %v2264 = vsel %vm246, %v2197, 0
  %v2267 = vsel %vm246, %v2198, 0
  %v2270 = vsel %vm246, %v2199, 0
  %v2273 = vsel %vm246, %v2200, 0
  %v2276 = vsel %vm246, %v2201, 0
  %v2279 = vsel %vm246, %v2202, 0
  %v2282 = vsel %vm246, %v2203, 0
  %v2285 = vsel %vm246, %v2204, 0
  %v2288 = vsel %vm246, %v2205, 0
  %v2291 = vsel %vm246, %v2206, 0
  %v2294 = vsel %vm246, %v2207, 0
  %v2297 = vsel %vm246, %v2208, 0
  %v2300 = vsel %vm246, %v2209, 0
  %v2303 = vsel %vm246, %v2210, 0
  %v2306 = vsel %vm246, %v2211, 0
  %2308 = vmatprep.subr.bf16.mxu0 0
  %2309 = vmatpush1.bf16.msra.mxu0 %v348
  %2310 = vmatprep.subr.bf16.mxu0 0
  %2311 = vmatpush1.bf16.msra.mxu0 0
  %2312 = vmatprep.subr.bf16.mxu0 0
  %2313 = vmatpush1.bf16.msra.mxu0 0
  %2314 = vmatprep.subr.bf16.mxu0 0
  %2315 = vmatpush1.bf16.msra.mxu0 0
  %2316 = vmatprep.subr.bf16.mxu0 0
  %2317 = vmatpush1.bf16.msra.mxu0 0
  %2318 = vmatprep.subr.bf16.mxu0 0
  %2319 = vmatpush1.bf16.msra.mxu0 0
  %2320 = vmatprep.subr.bf16.mxu0 0
  %2321 = vmatpush1.bf16.msra.mxu0 0
  %2322 = vmatprep.subr.bf16.mxu0 0
  %2323 = vmatpush1.bf16.msra.mxu0 0
  %2324 = vmatprep.subr.bf16.mxu0 0
  %2325 = vmatpush1.bf16.msra.mxu0 0
  %2326 = vmatprep.subr.bf16.mxu0 0
  %2327 = vmatpush1.bf16.msra.mxu0 0
  %2328 = vmatprep.subr.bf16.mxu0 0
  %2329 = vmatpush1.bf16.msra.mxu0 0
  %2330 = vmatprep.subr.bf16.mxu0 0
  %2331 = vmatpush1.bf16.msra.mxu0 0
  %2332 = vmatprep.subr.bf16.mxu0 0
  %2333 = vmatpush1.bf16.msra.mxu0 0
  %2334 = vmatprep.subr.bf16.mxu0 0
  %2335 = vmatpush1.bf16.msra.mxu0 0
  %2336 = vmatprep.subr.bf16.mxu0 0
  %2337 = vmatpush1.bf16.msra.mxu0 0
  %2338 = vmatprep.subr.bf16.mxu0 0
  %2339 = vmatpush1.bf16.msra.mxu0 0
  %2340 = vmatprep.mubr.bf16.mxu0 0
  %2341 = vmatmul.mubr.bf16.gmra.mrb[0].mxu0 %v2213
  %v2342 = vpop.f32.mrb[0].mxu0
  %v2343 = vadd.f32 0.0, %v2342
  %v2344 = vpop.f32.mrb[0].mxu0
  %v2345 = vpop.f32.mrb[0].mxu0
  %v2346 = vadd.f32 0.0, %v2345
  %v2347 = vpop.f32.mrb[0].mxu0
  %2348 = vmatprep.mubr.bf16.mxu0 0
  %2349 = vmatmul.mubr.bf16.gmra.mrb[0].mxu0 %v2216
  %v2350 = vpop.f32.mrb[0].mxu0
  %v2351 = vadd.f32 0.0, %v2350
  %v2352 = vpop.f32.mrb[0].mxu0
  %v2353 = vpop.f32.mrb[0].mxu0
  %v2354 = vadd.f32 0.0, %v2353
  %v2355 = vpop.f32.mrb[0].mxu0
  %2356 = vmatprep.mubr.bf16.mxu0 0
  %2357 = vmatmul.mubr.bf16.gmra.mrb[0].mxu0 %v2219
  %v2358 = vpop.f32.mrb[0].mxu0
  %v2359 = vadd.f32 0.0, %v2358
  %v2360 = vpop.f32.mrb[0].mxu0
  %v2361 = vpop.f32.mrb[0].mxu0
  %v2362 = vadd.f32 0.0, %v2361
  %v2363 = vpop.f32.mrb[0].mxu0
  %2364 = vmatprep.mubr.bf16.mxu0 0
  %2365 = vmatmul.mubr.bf16.gmra.mrb[0].mxu0 %v2222
  %v2366 = vpop.f32.mrb[0].mxu0
  %v2367 = vadd.f32 0.0, %v2366
  %v2368 = vpop.f32.mrb[0].mxu0
  %v2369 = vpop.f32.mrb[0].mxu0
  %v2370 = vadd.f32 0.0, %v2369
  %v2371 = vpop.f32.mrb[0].mxu0
  %2372 = vmatprep.mubr.bf16.mxu0 0
  %2373 = vmatmul.mubr.bf16.gmra.mrb[0].mxu0 %v2225
  %v2374 = vpop.f32.mrb[0].mxu0
  %v2375 = vadd.f32 0.0, %v2374
  %v2376 = vpop.f32.mrb[0].mxu0
  %v2377 = vpop.f32.mrb[0].mxu0
  %v2378 = vadd.f32 0.0, %v2377
  %v2379 = vpop.f32.mrb[0].mxu0
  %2380 = vmatprep.mubr.bf16.mxu0 0
  %2381 = vmatmul.mubr.bf16.gmra.mrb[0].mxu0 %v2228
  %v2382 = vpop.f32.mrb[0].mxu0
  %v2383 = vadd.f32 0.0, %v2382
  %v2384 = vpop.f32.mrb[0].mxu0
  %v2385 = vpop.f32.mrb[0].mxu0
  %v2386 = vadd.f32 0.0, %v2385
  %v2387 = vpop.f32.mrb[0].mxu0
  %2388 = vmatprep.mubr.bf16.mxu0 0
  %2389 = vmatmul.mubr.bf16.gmra.mrb[0].mxu0 %v2231
  %v2390 = vpop.f32.mrb[0].mxu0
  %v2391 = vadd.f32 0.0, %v2390
  %v2392 = vpop.f32.mrb[0].mxu0
  %v2393 = vpop.f32.mrb[0].mxu0
  %v2394 = vadd.f32 0.0, %v2393
  %v2395 = vpop.f32.mrb[0].mxu0
  %2396 = vmatprep.mubr.bf16.mxu0 0
  %2397 = vmatmul.mubr.bf16.gmra.mrb[0].mxu0 %v2234
  %v2398 = vpop.f32.mrb[0].mxu0
  %v2399 = vadd.f32 0.0, %v2398
  %v2400 = vpop.f32.mrb[0].mxu0
  %v2401 = vpop.f32.mrb[0].mxu0
  %v2402 = vadd.f32 0.0, %v2401
  %v2403 = vpop.f32.mrb[0].mxu0
  %2404 = vmatprep.mubr.bf16.mxu0 0
  %2405 = vmatmul.mubr.bf16.gmra.mrb[0].mxu0 %v2237
  %v2406 = vpop.f32.mrb[0].mxu0
  %v2407 = vadd.f32 0.0, %v2406
  %v2408 = vpop.f32.mrb[0].mxu0
  %v2409 = vpop.f32.mrb[0].mxu0
  %v2410 = vadd.f32 0.0, %v2409
  %v2411 = vpop.f32.mrb[0].mxu0
  %2412 = vmatprep.mubr.bf16.mxu0 0
  %2413 = vmatmul.mubr.bf16.gmra.mrb[0].mxu0 %v2240
  %v2414 = vpop.f32.mrb[0].mxu0
  %v2415 = vadd.f32 0.0, %v2414
  %v2416 = vpop.f32.mrb[0].mxu0
  %v2417 = vpop.f32.mrb[0].mxu0
  %v2418 = vadd.f32 0.0, %v2417
  %v2419 = vpop.f32.mrb[0].mxu0
  %2420 = vmatprep.mubr.bf16.mxu0 0
  %2421 = vmatmul.mubr.bf16.gmra.mrb[0].mxu0 %v2243
  %v2422 = vpop.f32.mrb[0].mxu0
  %v2423 = vadd.f32 0.0, %v2422
  %v2424 = vpop.f32.mrb[0].mxu0
  %v2425 = vpop.f32.mrb[0].mxu0
  %v2426 = vadd.f32 0.0, %v2425
  %v2427 = vpop.f32.mrb[0].mxu0
  %2428 = vmatprep.mubr.bf16.mxu0 0
  %2429 = vmatmul.mubr.bf16.gmra.mrb[0].mxu0 %v2246
  %v2430 = vpop.f32.mrb[0].mxu0
  %v2431 = vadd.f32 0.0, %v2430
  %v2432 = vpop.f32.mrb[0].mxu0
  %v2433 = vpop.f32.mrb[0].mxu0
  %v2434 = vadd.f32 0.0, %v2433
  %v2435 = vpop.f32.mrb[0].mxu0
  %2436 = vmatprep.mubr.bf16.mxu0 0
  %2437 = vmatmul.mubr.bf16.gmra.mrb[0].mxu0 %v2249
  %v2438 = vpop.f32.mrb[0].mxu0
  %v2439 = vadd.f32 0.0, %v2438
  %v2440 = vpop.f32.mrb[0].mxu0
  %v2441 = vpop.f32.mrb[0].mxu0
  %v2442 = vadd.f32 0.0, %v2441
  %v2443 = vpop.f32.mrb[0].mxu0
  %2444 = vmatprep.mubr.bf16.mxu0 0
  %2445 = vmatmul.mubr.bf16.gmra.mrb[0].mxu0 %v2252
  %v2446 = vpop.f32.mrb[0].mxu0
  %v2447 = vadd.f32 0.0, %v2446
  %v2448 = vpop.f32.mrb[0].mxu0
  %v2449 = vpop.f32.mrb[0].mxu0
  %v2450 = vadd.f32 0.0, %v2449
  %v2451 = vpop.f32.mrb[0].mxu0
  %2452 = vmatprep.mubr.bf16.mxu0 0
  %2453 = vmatmul.mubr.bf16.gmra.mrb[0].mxu0 %v2255
  %v2454 = vpop.f32.mrb[0].mxu0
  %v2455 = vadd.f32 0.0, %v2454
  %v2456 = vpop.f32.mrb[0].mxu0
  %v2457 = vpop.f32.mrb[0].mxu0
  %v2458 = vadd.f32 0.0, %v2457
  %v2459 = vpop.f32.mrb[0].mxu0
  %2460 = vmatprep.mubr.bf16.mxu0 0
  %2461 = vmatmul.mubr.bf16.gmra.mrb[0].mxu0 %v2258
  %v2462 = vpop.f32.mrb[0].mxu0
  %v2463 = vadd.f32 0.0, %v2462
  %v2464 = vpop.f32.mrb[0].mxu0
  %v2465 = vpop.f32.mrb[0].mxu0
  %v2466 = vadd.f32 0.0, %v2465
  %v2467 = vpop.f32.mrb[0].mxu0
  %2468 = vmatprep.mubr.bf16.mxu0 0
  %2469 = vmatmul.mubr.bf16.gmra.mrb[0].mxu0 %v2261
  %v2470 = vpop.f32.mrb[0].mxu0
  %v2471 = vadd.f32 0.0, %v2470
  %v2472 = vpop.f32.mrb[0].mxu0
  %v2473 = vpop.f32.mrb[0].mxu0
  %v2474 = vadd.f32 0.0, %v2473
  %v2475 = vpop.f32.mrb[0].mxu0
  %2476 = vmatprep.mubr.bf16.mxu0 0
  %2477 = vmatmul.mubr.bf16.gmra.mrb[0].mxu0 %v2264
  %v2478 = vpop.f32.mrb[0].mxu0
  %v2479 = vadd.f32 0.0, %v2478
  %v2480 = vpop.f32.mrb[0].mxu0
  %v2481 = vpop.f32.mrb[0].mxu0
  %v2482 = vadd.f32 0.0, %v2481
  %v2483 = vpop.f32.mrb[0].mxu0
  %2484 = vmatprep.mubr.bf16.mxu0 0
  %2485 = vmatmul.mubr.bf16.gmra.mrb[0].mxu0 %v2267
  %v2486 = vpop.f32.mrb[0].mxu0
  %v2487 = vadd.f32 0.0, %v2486
  %v2488 = vpop.f32.mrb[0].mxu0
  %v2489 = vpop.f32.mrb[0].mxu0
  %v2490 = vadd.f32 0.0, %v2489
  %v2491 = vpop.f32.mrb[0].mxu0
  %2492 = vmatprep.mubr.bf16.mxu0 0
  %2493 = vmatmul.mubr.bf16.gmra.mrb[0].mxu0 %v2270
  %v2494 = vpop.f32.mrb[0].mxu0
  %v2495 = vadd.f32 0.0, %v2494
  %v2496 = vpop.f32.mrb[0].mxu0
  %v2497 = vpop.f32.mrb[0].mxu0
  %v2498 = vadd.f32 0.0, %v2497
  %v2499 = vpop.f32.mrb[0].mxu0
  %2500 = vmatprep.mubr.bf16.mxu0 0
  %2501 = vmatmul.mubr.bf16.gmra.mrb[0].mxu0 %v2273
  %v2502 = vpop.f32.mrb[0].mxu0
  %v2503 = vadd.f32 0.0, %v2502
  %v2504 = vpop.f32.mrb[0].mxu0
  %v2505 = vpop.f32.mrb[0].mxu0
  %v2506 = vadd.f32 0.0, %v2505
  %v2507 = vpop.f32.mrb[0].mxu0
  %2508 = vmatprep.mubr.bf16.mxu0 0
  %2509 = vmatmul.mubr.bf16.gmra.mrb[0].mxu0 %v2276
  %v2510 = vpop.f32.mrb[0].mxu0
  %v2511 = vadd.f32 0.0, %v2510
  %v2512 = vpop.f32.mrb[0].mxu0
  %v2513 = vpop.f32.mrb[0].mxu0
  %v2514 = vadd.f32 0.0, %v2513
  %v2515 = vpop.f32.mrb[0].mxu0
  %2516 = vmatprep.mubr.bf16.mxu0 0
  %2517 = vmatmul.mubr.bf16.gmra.mrb[0].mxu0 %v2279
  %v2518 = vpop.f32.mrb[0].mxu0
  %v2519 = vadd.f32 0.0, %v2518
  %v2520 = vpop.f32.mrb[0].mxu0
  %v2521 = vpop.f32.mrb[0].mxu0
  %v2522 = vadd.f32 0.0, %v2521
  %v2523 = vpop.f32.mrb[0].mxu0
  %2524 = vmatprep.mubr.bf16.mxu0 0
  %2525 = vmatmul.mubr.bf16.gmra.mrb[0].mxu0 %v2282
  %v2526 = vpop.f32.mrb[0].mxu0
  %v2527 = vadd.f32 0.0, %v2526
  %v2528 = vpop.f32.mrb[0].mxu0
  %v2529 = vpop.f32.mrb[0].mxu0
  %v2530 = vadd.f32 0.0, %v2529
  %v2531 = vpop.f32.mrb[0].mxu0
  %2532 = vmatprep.mubr.bf16.mxu0 0
  %2533 = vmatmul.mubr.bf16.gmra.mrb[0].mxu0 %v2285
  %v2534 = vpop.f32.mrb[0].mxu0
  %v2535 = vadd.f32 0.0, %v2534
  %v2536 = vpop.f32.mrb[0].mxu0
  %v2537 = vpop.f32.mrb[0].mxu0
  %v2538 = vadd.f32 0.0, %v2537
  %v2539 = vpop.f32.mrb[0].mxu0
  %2540 = vmatprep.mubr.bf16.mxu0 0
  %2541 = vmatmul.mubr.bf16.gmra.mrb[0].mxu0 %v2288
  %v2542 = vpop.f32.mrb[0].mxu0
  %v2543 = vadd.f32 0.0, %v2542
  %v2544 = vpop.f32.mrb[0].mxu0
  %v2545 = vpop.f32.mrb[0].mxu0
  %v2546 = vadd.f32 0.0, %v2545
  %v2547 = vpop.f32.mrb[0].mxu0
  %2548 = vmatprep.mubr.bf16.mxu0 0
  %2549 = vmatmul.mubr.bf16.gmra.mrb[0].mxu0 %v2291
  %v2550 = vpop.f32.mrb[0].mxu0
  %v2551 = vadd.f32 0.0, %v2550
  %v2552 = vpop.f32.mrb[0].mxu0
  %v2553 = vpop.f32.mrb[0].mxu0
  %v2554 = vadd.f32 0.0, %v2553
  %v2555 = vpop.f32.mrb[0].mxu0
  %2556 = vmatprep.mubr.bf16.mxu0 0
  %2557 = vmatmul.mubr.bf16.gmra.mrb[0].mxu0 %v2294
  %v2558 = vpop.f32.mrb[0].mxu0
  %v2559 = vadd.f32 0.0, %v2558
  %v2560 = vpop.f32.mrb[0].mxu0
  %v2561 = vpop.f32.mrb[0].mxu0
  %v2562 = vadd.f32 0.0, %v2561
  %v2563 = vpop.f32.mrb[0].mxu0
  %2564 = vmatprep.mubr.bf16.mxu0 0
  %2565 = vmatmul.mubr.bf16.gmra.mrb[0].mxu0 %v2297
  %v2566 = vpop.f32.mrb[0].mxu0
  %v2567 = vadd.f32 0.0, %v2566
  %v2568 = vpop.f32.mrb[0].mxu0
  %v2569 = vpop.f32.mrb[0].mxu0
  %v2570 = vadd.f32 0.0, %v2569
  %v2571 = vpop.f32.mrb[0].mxu0
  %2572 = vmatprep.mubr.bf16.mxu0 0
  %2573 = vmatmul.mubr.bf16.gmra.mrb[0].mxu0 %v2300
  %v2574 = vpop.f32.mrb[0].mxu0
  %v2575 = vadd.f32 0.0, %v2574
  %v2576 = vpop.f32.mrb[0].mxu0
  %v2577 = vpop.f32.mrb[0].mxu0
  %v2578 = vadd.f32 0.0, %v2577
  %v2579 = vpop.f32.mrb[0].mxu0
  %2580 = vmatprep.mubr.bf16.mxu0 0
  %2581 = vmatmul.mubr.bf16.gmra.mrb[0].mxu0 %v2303
  %v2582 = vpop.f32.mrb[0].mxu0
  %v2583 = vadd.f32 0.0, %v2582
  %v2584 = vpop.f32.mrb[0].mxu0
  %v2585 = vpop.f32.mrb[0].mxu0
  %v2586 = vadd.f32 0.0, %v2585
  %v2587 = vpop.f32.mrb[0].mxu0
  %2588 = vmatprep.mubr.bf16.mxu0 0
  %2589 = vmatmul.mubr.bf16.gmra.mrb[0].mxu0 %v2306
  %v2590 = vpop.f32.mrb[0].mxu0
  %v2591 = vadd.f32 0.0, %v2590
  %v2592 = vpop.f32.mrb[0].mxu0
  %v2593 = vpop.f32.mrb[0].mxu0
  %v2594 = vadd.f32 0.0, %v2593
  %v2595 = vpop.f32.mrb[0].mxu0
  %2596 = vdwg.mxu0
  %v2597 = vmax.f32 %v1923, %v2343
  %v2598 = vmax.f32 %v1924, %v2346
  %v2599 = vmax.f32 %v1925, %v2351
  %v2600 = vmax.f32 %v1926, %v2354
  %v2601 = vmax.f32 %v1927, %v2359
  %v2602 = vmax.f32 %v1928, %v2362
  %v2603 = vmax.f32 %v1929, %v2367
  %v2604 = vmax.f32 %v1930, %v2370
  %v2605 = vmax.f32 %v1931, %v2375
  %v2606 = vmax.f32 %v1932, %v2378
  %v2607 = vmax.f32 %v1933, %v2383
  %v2608 = vmax.f32 %v1934, %v2386
  %v2609 = vmax.f32 %v1935, %v2391
  %v2610 = vmax.f32 %v1936, %v2394
  %v2611 = vmax.f32 %v1937, %v2399
  %v2612 = vmax.f32 %v1938, %v2402
  %v2613 = vmax.f32 %v1939, %v2407
  %v2614 = vmax.f32 %v1940, %v2410
  %v2615 = vmax.f32 %v1941, %v2415
  %v2616 = vmax.f32 %v1942, %v2418
  %v2617 = vmax.f32 %v1943, %v2423
  %v2618 = vmax.f32 %v1944, %v2426
  %v2619 = vmax.f32 %v1945, %v2431
  %v2620 = vmax.f32 %v1946, %v2434
  %v2621 = vmax.f32 %v1947, %v2439
  %v2622 = vmax.f32 %v1948, %v2442
  %v2623 = vmax.f32 %v1949, %v2447
  %v2624 = vmax.f32 %v1950, %v2450
  %v2625 = vmax.f32 %v1951, %v2455
  %v2626 = vmax.f32 %v1952, %v2458
  %v2627 = vmax.f32 %v1953, %v2463
  %v2628 = vmax.f32 %v1954, %v2466
  %v2629 = vmax.f32 %v1955, %v2471
  %v2630 = vmax.f32 %v1956, %v2474
  %v2631 = vmax.f32 %v1957, %v2479
  %v2632 = vmax.f32 %v1958, %v2482
  %v2633 = vmax.f32 %v1959, %v2487
  %v2634 = vmax.f32 %v1960, %v2490
  %v2635 = vmax.f32 %v1961, %v2495
  %v2636 = vmax.f32 %v1962, %v2498
  %v2637 = vmax.f32 %v1963, %v2503
  %v2638 = vmax.f32 %v1964, %v2506
  %v2639 = vmax.f32 %v1965, %v2511
  %v2640 = vmax.f32 %v1966, %v2514
  %v2641 = vmax.f32 %v1967, %v2519
  %v2642 = vmax.f32 %v1968, %v2522
  %v2643 = vmax.f32 %v1969, %v2527
  %v2644 = vmax.f32 %v1970, %v2530
  %v2645 = vmax.f32 %v1971, %v2535
  %v2646 = vmax.f32 %v1972, %v2538
  %v2647 = vmax.f32 %v1973, %v2543
  %v2648 = vmax.f32 %v1974, %v2546
  %v2649 = vmax.f32 %v1975, %v2551
  %v2650 = vmax.f32 %v1976, %v2554
  %v2651 = vmax.f32 %v1977, %v2559
  %v2652 = vmax.f32 %v1978, %v2562
  %v2653 = vmax.f32 %v1979, %v2567
  %v2654 = vmax.f32 %v1980, %v2570
  %v2655 = vmax.f32 %v1981, %v2575
  %v2656 = vmax.f32 %v1982, %v2578
  %v2657 = vmax.f32 %v1983, %v2583
  %v2658 = vmax.f32 %v1984, %v2586
  %v2659 = vmax.f32 %v1985, %v2591
  %v2660 = vmax.f32 %v1986, %v2594
  %v2661 = vld [vmem:[%s2] sm:$0x1]
  %v2663 = vlaneseq
  %v2664 = vshrl.u32 %v2663, 7
  %v2665 = vsub.s32 0, %v2664
  %v2666 = vrot.slane %v2661, %v2665
  %v2668 = vadd.f32 %v2597, %v2666
  %v2669 = vadd.f32 %v2598, %v2666
  %v2670 = vadd.f32 %v2599, %v2666
  %v2671 = vadd.f32 %v2600, %v2666
  %v2672 = vadd.f32 %v2601, %v2666
  %v2673 = vadd.f32 %v2602, %v2666
  %v2674 = vadd.f32 %v2603, %v2666
  %v2675 = vadd.f32 %v2604, %v2666
  %v2676 = vadd.f32 %v2605, %v2666
  %v2677 = vadd.f32 %v2606, %v2666
  %v2678 = vadd.f32 %v2607, %v2666
  %v2679 = vadd.f32 %v2608, %v2666
  %v2680 = vadd.f32 %v2609, %v2666
  %v2681 = vadd.f32 %v2610, %v2666
  %v2682 = vadd.f32 %v2611, %v2666
  %v2683 = vadd.f32 %v2612, %v2666
  %v2684 = vadd.f32 %v2613, %v2666
  %v2685 = vadd.f32 %v2614, %v2666
  %v2686 = vadd.f32 %v2615, %v2666
  %v2687 = vadd.f32 %v2616, %v2666
  %v2688 = vadd.f32 %v2617, %v2666
  %v2689 = vadd.f32 %v2618, %v2666
  %v2690 = vadd.f32 %v2619, %v2666
  %v2691 = vadd.f32 %v2620, %v2666
  %v2692 = vadd.f32 %v2621, %v2666
  %v2693 = vadd.f32 %v2622, %v2666
  %v2694 = vadd.f32 %v2623, %v2666
  %v2695 = vadd.f32 %v2624, %v2666
  %v2696 = vadd.f32 %v2625, %v2666
  %v2697 = vadd.f32 %v2626, %v2666
  %v2698 = vadd.f32 %v2627, %v2666
  %v2699 = vadd.f32 %v2628, %v2666
  %v2700 = vadd.f32 %v2629, %v2666
  %v2701 = vadd.f32 %v2630, %v2666
  %v2702 = vadd.f32 %v2631, %v2666
  %v2703 = vadd.f32 %v2632, %v2666
  %v2704 = vadd.f32 %v2633, %v2666
  %v2705 = vadd.f32 %v2634, %v2666
  %v2706 = vadd.f32 %v2635, %v2666
  %v2707 = vadd.f32 %v2636, %v2666
  %v2708 = vadd.f32 %v2637, %v2666
  %v2709 = vadd.f32 %v2638, %v2666
  %v2710 = vadd.f32 %v2639, %v2666
  %v2711 = vadd.f32 %v2640, %v2666
  %v2712 = vadd.f32 %v2641, %v2666
  %v2713 = vadd.f32 %v2642, %v2666
  %v2714 = vadd.f32 %v2643, %v2666
  %v2715 = vadd.f32 %v2644, %v2666
  %v2716 = vadd.f32 %v2645, %v2666
  %v2717 = vadd.f32 %v2646, %v2666
  %v2718 = vadd.f32 %v2647, %v2666
  %v2719 = vadd.f32 %v2648, %v2666
  %v2720 = vadd.f32 %v2649, %v2666
  %v2721 = vadd.f32 %v2650, %v2666
  %v2722 = vadd.f32 %v2651, %v2666
  %v2723 = vadd.f32 %v2652, %v2666
  %v2724 = vadd.f32 %v2653, %v2666
  %v2725 = vadd.f32 %v2654, %v2666
  %v2726 = vadd.f32 %v2655, %v2666
  %v2727 = vadd.f32 %v2656, %v2666
  %v2728 = vadd.f32 %v2657, %v2666
  %v2729 = vadd.f32 %v2658, %v2666
  %v2730 = vadd.f32 %v2659, %v2666
  %v2731 = vadd.f32 %v2660, %v2666
  %v2732 = vmax.f32 %v2668, 0.0
  %v2733 = vmax.f32 %v2669, 0.0
  %v2734 = vmax.f32 %v2670, 0.0
  %v2735 = vmax.f32 %v2671, 0.0
  %v2736 = vmax.f32 %v2672, 0.0
  %v2737 = vmax.f32 %v2673, 0.0
  %v2738 = vmax.f32 %v2674, 0.0
  %v2739 = vmax.f32 %v2675, 0.0
  %v2740 = vmax.f32 %v2676, 0.0
  %v2741 = vmax.f32 %v2677, 0.0
  %v2742 = vmax.f32 %v2678, 0.0
  %v2743 = vmax.f32 %v2679, 0.0
  %v2744 = vmax.f32 %v2680, 0.0
  %v2745 = vmax.f32 %v2681, 0.0
  %v2746 = vmax.f32 %v2682, 0.0
  %v2747 = vmax.f32 %v2683, 0.0
  %v2748 = vmax.f32 %v2684, 0.0
  %v2749 = vmax.f32 %v2685, 0.0
  %v2750 = vmax.f32 %v2686, 0.0
  %v2751 = vmax.f32 %v2687, 0.0
  %v2752 = vmax.f32 %v2688, 0.0
  %v2753 = vmax.f32 %v2689, 0.0
  %v2754 = vmax.f32 %v2690, 0.0
  %v2755 = vmax.f32 %v2691, 0.0
  %v2756 = vmax.f32 %v2692, 0.0
  %v2757 = vmax.f32 %v2693, 0.0
  %v2758 = vmax.f32 %v2694, 0.0
  %v2759 = vmax.f32 %v2695, 0.0
  %v2760 = vmax.f32 %v2696, 0.0
  %v2761 = vmax.f32 %v2697, 0.0
  %v2762 = vmax.f32 %v2698, 0.0
  %v2763 = vmax.f32 %v2699, 0.0
  %v2764 = vmax.f32 %v2700, 0.0
  %v2765 = vmax.f32 %v2701, 0.0
  %v2766 = vmax.f32 %v2702, 0.0
  %v2767 = vmax.f32 %v2703, 0.0
  %v2768 = vmax.f32 %v2704, 0.0
  %v2769 = vmax.f32 %v2705, 0.0
  %v2770 = vmax.f32 %v2706, 0.0
  %v2771 = vmax.f32 %v2707, 0.0
  %v2772 = vmax.f32 %v2708, 0.0
  %v2773 = vmax.f32 %v2709, 0.0
  %v2774 = vmax.f32 %v2710, 0.0
  %v2775 = vmax.f32 %v2711, 0.0
  %v2776 = vmax.f32 %v2712, 0.0
  %v2777 = vmax.f32 %v2713, 0.0
  %v2778 = vmax.f32 %v2714, 0.0
  %v2779 = vmax.f32 %v2715, 0.0
  %v2780 = vmax.f32 %v2716, 0.0
  %v2781 = vmax.f32 %v2717, 0.0
  %v2782 = vmax.f32 %v2718, 0.0
  %v2783 = vmax.f32 %v2719, 0.0
  %v2784 = vmax.f32 %v2720, 0.0
  %v2785 = vmax.f32 %v2721, 0.0
  %v2786 = vmax.f32 %v2722, 0.0
  %v2787 = vmax.f32 %v2723, 0.0
  %v2788 = vmax.f32 %v2724, 0.0
  %v2789 = vmax.f32 %v2725, 0.0
  %v2790 = vmax.f32 %v2726, 0.0
  %v2791 = vmax.f32 %v2727, 0.0
  %v2792 = vmax.f32 %v2728, 0.0
  %v2793 = vmax.f32 %v2729, 0.0
  %v2794 = vmax.f32 %v2730, 0.0
  %v2795 = vmax.f32 %v2731, 0.0
  %v2796 = vpack.c.bf16 %v2733, %v2732
  %v2797 = vpack.c.bf16 %v2735, %v2734
  %v2798 = vpack.c.bf16 %v2737, %v2736
  %v2799 = vpack.c.bf16 %v2739, %v2738
  %v2800 = vpack.c.bf16 %v2741, %v2740
  %v2801 = vpack.c.bf16 %v2743, %v2742
  %v2802 = vpack.c.bf16 %v2745, %v2744
  %v2803 = vpack.c.bf16 %v2747, %v2746
  %v2804 = vpack.c.bf16 %v2749, %v2748
  %v2805 = vpack.c.bf16 %v2751, %v2750
  %v2806 = vpack.c.bf16 %v2753, %v2752
  %v2807 = vpack.c.bf16 %v2755, %v2754
  %v2808 = vpack.c.bf16 %v2757, %v2756
  %v2809 = vpack.c.bf16 %v2759, %v2758
  %v2810 = vpack.c.bf16 %v2761, %v2760
  %v2811 = vpack.c.bf16 %v2763, %v2762
  %v2812 = vpack.c.bf16 %v2765, %v2764
  %v2813 = vpack.c.bf16 %v2767, %v2766
  %v2814 = vpack.c.bf16 %v2769, %v2768
  %v2815 = vpack.c.bf16 %v2771, %v2770
  %v2816 = vpack.c.bf16 %v2773, %v2772
  %v2817 = vpack.c.bf16 %v2775, %v2774
  %v2818 = vpack.c.bf16 %v2777, %v2776
  %v2819 = vpack.c.bf16 %v2779, %v2778
  %v2820 = vpack.c.bf16 %v2781, %v2780
  %v2821 = vpack.c.bf16 %v2783, %v2782
  %v2822 = vpack.c.bf16 %v2785, %v2784
  %v2823 = vpack.c.bf16 %v2787, %v2786
  %v2824 = vpack.c.bf16 %v2789, %v2788
  %v2825 = vpack.c.bf16 %v2791, %v2790
  %v2826 = vpack.c.bf16 %v2793, %v2792
  %v2827 = vpack.c.bf16 %v2795, %v2794
  %v2860 = vunpack.c.l.b16 %v2796
  %v2861 = vunpack.c.h.b16 %v2796
  %v2862 = vunpack.c.l.b16 %v2797
  %v2863 = vunpack.c.h.b16 %v2797
  %v2864 = vunpack.c.l.b16 %v2798
  %v2865 = vunpack.c.h.b16 %v2798
  %v2866 = vunpack.c.l.b16 %v2799
  %v2867 = vunpack.c.h.b16 %v2799
  %v2868 = vunpack.c.l.b16 %v2800
  %v2869 = vunpack.c.h.b16 %v2800
  %v2870 = vunpack.c.l.b16 %v2801
  %v2871 = vunpack.c.h.b16 %v2801
  %v2872 = vunpack.c.l.b16 %v2802
  %v2873 = vunpack.c.h.b16 %v2802
  %v2874 = vunpack.c.l.b16 %v2803
  %v2875 = vunpack.c.h.b16 %v2803
  %v2876 = vunpack.c.l.b16 %v2804
  %v2877 = vunpack.c.h.b16 %v2804
  %v2878 = vunpack.c.l.b16 %v2805
  %v2879 = vunpack.c.h.b16 %v2805
  %v2880 = vunpack.c.l.b16 %v2806
  %v2881 = vunpack.c.h.b16 %v2806
  %v2882 = vunpack.c.l.b16 %v2807
  %v2883 = vunpack.c.h.b16 %v2807
  %v2884 = vunpack.c.l.b16 %v2808
  %v2885 = vunpack.c.h.b16 %v2808
  %v2886 = vunpack.c.l.b16 %v2809
  %v2887 = vunpack.c.h.b16 %v2809
  %v2888 = vunpack.c.l.b16 %v2810
  %v2889 = vunpack.c.h.b16 %v2810
  %v2890 = vunpack.c.l.b16 %v2811
  %v2891 = vunpack.c.h.b16 %v2811
  %v2892 = vunpack.c.l.b16 %v2812
  %v2893 = vunpack.c.h.b16 %v2812
  %v2894 = vunpack.c.l.b16 %v2813
  %v2895 = vunpack.c.h.b16 %v2813
  %v2896 = vunpack.c.l.b16 %v2814
  %v2897 = vunpack.c.h.b16 %v2814
  %v2898 = vunpack.c.l.b16 %v2815
  %v2899 = vunpack.c.h.b16 %v2815
  %v2900 = vunpack.c.l.b16 %v2816
  %v2901 = vunpack.c.h.b16 %v2816
  %v2902 = vunpack.c.l.b16 %v2817
  %v2903 = vunpack.c.h.b16 %v2817
  %v2904 = vunpack.c.l.b16 %v2818
  %v2905 = vunpack.c.h.b16 %v2818
  %v2906 = vunpack.c.l.b16 %v2819
  %v2907 = vunpack.c.h.b16 %v2819
  %v2908 = vunpack.c.l.b16 %v2820
  %v2909 = vunpack.c.h.b16 %v2820
  %v2910 = vunpack.c.l.b16 %v2821
  %v2911 = vunpack.c.h.b16 %v2821
  %v2912 = vunpack.c.l.b16 %v2822
  %v2913 = vunpack.c.h.b16 %v2822
  %v2914 = vunpack.c.l.b16 %v2823
  %v2915 = vunpack.c.h.b16 %v2823
  %v2916 = vunpack.c.l.b16 %v2824
  %v2917 = vunpack.c.h.b16 %v2824
  %v2918 = vunpack.c.l.b16 %v2825
  %v2919 = vunpack.c.h.b16 %v2825
  %v2920 = vunpack.c.l.b16 %v2826
  %v2921 = vunpack.c.h.b16 %v2826
  %v2922 = vunpack.c.l.b16 %v2827
  %v2923 = vunpack.c.h.b16 %v2827
  %v2924 = vpack.c.b16 %v2860, %v2860
  %v2925 = vpack.c.b16 %v2861, %v2861
  %v2926 = vpack.c.b16 %v2862, %v2862
  %v2927 = vpack.c.b16 %v2863, %v2863
  %v2928 = vpack.c.b16 %v2864, %v2864
  %v2929 = vpack.c.b16 %v2865, %v2865
  %v2930 = vpack.c.b16 %v2866, %v2866
  %v2931 = vpack.c.b16 %v2867, %v2867
  %v2932 = vpack.c.b16 %v2868, %v2868
  %v2933 = vpack.c.b16 %v2869, %v2869
  %v2934 = vpack.c.b16 %v2870, %v2870
  %v2935 = vpack.c.b16 %v2871, %v2871
  %v2936 = vpack.c.b16 %v2872, %v2872
  %v2937 = vpack.c.b16 %v2873, %v2873
  %v2938 = vpack.c.b16 %v2874, %v2874
  %v2939 = vpack.c.b16 %v2875, %v2875
  %v2940 = vpack.c.b16 %v2876, %v2876
  %v2941 = vpack.c.b16 %v2877, %v2877
  %v2942 = vpack.c.b16 %v2878, %v2878
  %v2943 = vpack.c.b16 %v2879, %v2879
  %v2944 = vpack.c.b16 %v2880, %v2880
  %v2945 = vpack.c.b16 %v2881, %v2881
  %v2946 = vpack.c.b16 %v2882, %v2882
  %v2947 = vpack.c.b16 %v2883, %v2883
  %v2948 = vpack.c.b16 %v2884, %v2884
  %v2949 = vpack.c.b16 %v2885, %v2885
  %v2950 = vpack.c.b16 %v2886, %v2886
  %v2951 = vpack.c.b16 %v2887, %v2887
  %v2952 = vpack.c.b16 %v2888, %v2888
  %v2953 = vpack.c.b16 %v2889, %v2889
  %v2954 = vpack.c.b16 %v2890, %v2890
  %v2955 = vpack.c.b16 %v2891, %v2891
  %v2956 = vpack.c.b16 %v2892, %v2892
  %v2957 = vpack.c.b16 %v2893, %v2893
  %v2958 = vpack.c.b16 %v2894, %v2894
  %v2959 = vpack.c.b16 %v2895, %v2895
  %v2960 = vpack.c.b16 %v2896, %v2896
  %v2961 = vpack.c.b16 %v2897, %v2897
  %v2962 = vpack.c.b16 %v2898, %v2898
  %v2963 = vpack.c.b16 %v2899, %v2899
  %v2964 = vpack.c.b16 %v2900, %v2900
  %v2965 = vpack.c.b16 %v2901, %v2901
  %v2966 = vpack.c.b16 %v2902, %v2902
  %v2967 = vpack.c.b16 %v2903, %v2903
  %v2968 = vpack.c.b16 %v2904, %v2904
  %v2969 = vpack.c.b16 %v2905, %v2905
  %v2970 = vpack.c.b16 %v2906, %v2906
  %v2971 = vpack.c.b16 %v2907, %v2907
  %v2972 = vpack.c.b16 %v2908, %v2908
  %v2973 = vpack.c.b16 %v2909, %v2909
  %v2974 = vpack.c.b16 %v2910, %v2910
  %v2975 = vpack.c.b16 %v2911, %v2911
  %v2976 = vpack.c.b16 %v2912, %v2912
  %v2977 = vpack.c.b16 %v2913, %v2913
  %v2978 = vpack.c.b16 %v2914, %v2914
  %v2979 = vpack.c.b16 %v2915, %v2915
  %v2980 = vpack.c.b16 %v2916, %v2916
  %v2981 = vpack.c.b16 %v2917, %v2917
  %v2982 = vpack.c.b16 %v2918, %v2918
  %v2983 = vpack.c.b16 %v2919, %v2919
  %v2984 = vpack.c.b16 %v2920, %v2920
  %v2985 = vpack.c.b16 %v2921, %v2921
  %v2986 = vpack.c.b16 %v2922, %v2922
  %v2987 = vpack.c.b16 %v2923, %v2923
  %vm3052 = vcmask 519168
  %3053 = vst.msk [vmem:[%s3] sm:$0xf] %vm3052, %v2924
  %3054 = vst.msk [vmem:[%s3 + $0x4] sm:$0xf] %vm3052, %v2925
  %3055 = vst.msk [vmem:[%s3 + $0x8] sm:$0xf] %vm3052, %v2926
  %3056 = vst.msk [vmem:[%s3 + $0xc] sm:$0xf] %vm3052, %v2927
  %3057 = vst.msk [vmem:[%s3 + $0x10] sm:$0xf] %vm3052, %v2928
  %3058 = vst.msk [vmem:[%s3 + $0x14] sm:$0xf] %vm3052, %v2929
  %3059 = vst.msk [vmem:[%s3 + $0x18] sm:$0xf] %vm3052, %v2930
  %3060 = vst.msk [vmem:[%s3 + $0x1c] sm:$0xf] %vm3052, %v2931
  %3061 = vst.msk [vmem:[%s3 + $0x20] sm:$0xf] %vm3052, %v2932
  %3062 = vst.msk [vmem:[%s3 + $0x24] sm:$0xf] %vm3052, %v2933
  %3063 = vst.msk [vmem:[%s3 + $0x28] sm:$0xf] %vm3052, %v2934
  %3064 = vst.msk [vmem:[%s3 + $0x2c] sm:$0xf] %vm3052, %v2935
  %3065 = vst.msk [vmem:[%s3 + $0x30] sm:$0xf] %vm3052, %v2936
  %3066 = vst.msk [vmem:[%s3 + $0x34] sm:$0xf] %vm3052, %v2937
  %3067 = vst.msk [vmem:[%s3 + $0x38] sm:$0xf] %vm3052, %v2938
  %3068 = vst.msk [vmem:[%s3 + $0x3c] sm:$0xf] %vm3052, %v2939
  %3069 = vst.msk [vmem:[%s3 + $0x40] sm:$0xf] %vm3052, %v2940
  %3070 = vst.msk [vmem:[%s3 + $0x44] sm:$0xf] %vm3052, %v2941
  %3071 = vst.msk [vmem:[%s3 + $0x48] sm:$0xf] %vm3052, %v2942
  %3072 = vst.msk [vmem:[%s3 + $0x4c] sm:$0xf] %vm3052, %v2943
  %3073 = vst.msk [vmem:[%s3 + $0x50] sm:$0xf] %vm3052, %v2944
  %3074 = vst.msk [vmem:[%s3 + $0x54] sm:$0xf] %vm3052, %v2945
  %3075 = vst.msk [vmem:[%s3 + $0x58] sm:$0xf] %vm3052, %v2946
  %3076 = vst.msk [vmem:[%s3 + $0x5c] sm:$0xf] %vm3052, %v2947
  %3077 = vst.msk [vmem:[%s3 + $0x60] sm:$0xf] %vm3052, %v2948
  %3078 = vst.msk [vmem:[%s3 + $0x64] sm:$0xf] %vm3052, %v2949
  %3079 = vst.msk [vmem:[%s3 + $0x68] sm:$0xf] %vm3052, %v2950
  %3080 = vst.msk [vmem:[%s3 + $0x6c] sm:$0xf] %vm3052, %v2951
  %3081 = vst.msk [vmem:[%s3 + $0x70] sm:$0xf] %vm3052, %v2952
  %3082 = vst.msk [vmem:[%s3 + $0x74] sm:$0xf] %vm3052, %v2953
  %3083 = vst.msk [vmem:[%s3 + $0x78] sm:$0xf] %vm3052, %v2954
  %3084 = vst.msk [vmem:[%s3 + $0x7c] sm:$0xf] %vm3052, %v2955
  %3085 = vst.msk [vmem:[%s3 + $0x80] sm:$0xf] %vm3052, %v2956
  %3086 = vst.msk [vmem:[%s3 + $0x84] sm:$0xf] %vm3052, %v2957
  %3087 = vst.msk [vmem:[%s3 + $0x88] sm:$0xf] %vm3052, %v2958
  %3088 = vst.msk [vmem:[%s3 + $0x8c] sm:$0xf] %vm3052, %v2959
  %3089 = vst.msk [vmem:[%s3 + $0x90] sm:$0xf] %vm3052, %v2960
  %3090 = vst.msk [vmem:[%s3 + $0x94] sm:$0xf] %vm3052, %v2961
  %3091 = vst.msk [vmem:[%s3 + $0x98] sm:$0xf] %vm3052, %v2962
  %3092 = vst.msk [vmem:[%s3 + $0x9c] sm:$0xf] %vm3052, %v2963
  %3093 = vst.msk [vmem:[%s3 + $0xa0] sm:$0xf] %vm3052, %v2964
  %3094 = vst.msk [vmem:[%s3 + $0xa4] sm:$0xf] %vm3052, %v2965
  %3095 = vst.msk [vmem:[%s3 + $0xa8] sm:$0xf] %vm3052, %v2966
  %3096 = vst.msk [vmem:[%s3 + $0xac] sm:$0xf] %vm3052, %v2967
  %3097 = vst.msk [vmem:[%s3 + $0xb0] sm:$0xf] %vm3052, %v2968
  %3098 = vst.msk [vmem:[%s3 + $0xb4] sm:$0xf] %vm3052, %v2969
  %3099 = vst.msk [vmem:[%s3 + $0xb8] sm:$0xf] %vm3052, %v2970
  %3100 = vst.msk [vmem:[%s3 + $0xbc] sm:$0xf] %vm3052, %v2971
  %3101 = vst.msk [vmem:[%s3 + $0xc0] sm:$0xf] %vm3052, %v2972
  %3102 = vst.msk [vmem:[%s3 + $0xc4] sm:$0xf] %vm3052, %v2973
  %3103 = vst.msk [vmem:[%s3 + $0xc8] sm:$0xf] %vm3052, %v2974
  %3104 = vst.msk [vmem:[%s3 + $0xcc] sm:$0xf] %vm3052, %v2975
  %3105 = vst.msk [vmem:[%s3 + $0xd0] sm:$0xf] %vm3052, %v2976
  %3106 = vst.msk [vmem:[%s3 + $0xd4] sm:$0xf] %vm3052, %v2977
  %3107 = vst.msk [vmem:[%s3 + $0xd8] sm:$0xf] %vm3052, %v2978
  %3108 = vst.msk [vmem:[%s3 + $0xdc] sm:$0xf] %vm3052, %v2979
  %3109 = vst.msk [vmem:[%s3 + $0xe0] sm:$0xf] %vm3052, %v2980
  %3110 = vst.msk [vmem:[%s3 + $0xe4] sm:$0xf] %vm3052, %v2981
  %3111 = vst.msk [vmem:[%s3 + $0xe8] sm:$0xf] %vm3052, %v2982
  %3112 = vst.msk [vmem:[%s3 + $0xec] sm:$0xf] %vm3052, %v2983
  %3113 = vst.msk [vmem:[%s3 + $0xf0] sm:$0xf] %vm3052, %v2984
  %3114 = vst.msk [vmem:[%s3 + $0xf4] sm:$0xf] %vm3052, %v2985
  %3115 = vst.msk [vmem:[%s3 + $0xf8] sm:$0xf] %vm3052, %v2986
  %3116 = vst.msk [vmem:[%s3 + $0xfc] sm:$0xf] %vm3052, %v2987
  // Predicated region
  $region14: #{cnn_regression_forward.3} parent=0 // pred_check
    _
  $region15: #{cnn_regression_forward.3} parent=0 // pred_check_branch
    %3118 = sbr.rel (0) target = $region17
  $region16: #{cnn_regression_forward.3} parent=0 // pred_region
    _
  $region17: #{cnn_regression_forward.3} parent=0 // pred_fallthru
    _
  // Predicated region
  $region18: #{cnn_regression_forward.3} parent=0 // pred_check
    _
  $region19: #{cnn_regression_forward.3} parent=0 // pred_check_branch
    %3120 = sbr.rel (0) target = $region21
  $region20: #{cnn_regression_forward.3} parent=0 // pred_region
    _
  $region21: #{cnn_regression_forward.3} parent=0 // pred_fallthru
    _

// kernel: cnn_regression_forward.4
$region0: #{cnn_regression_forward.4}
  #allocation0 [shape = 'u32[]', space=smem, size = 0x4, offset = 0x4, fixed_abs, tag = 'smem constant byte address 0x4 - core index']
  #allocation1 [shape = 'u32[144,128]{1,0:T(1,128)}', space=vmem, size = 0x12000, scoped, tag = 'internal scratch']
  %s0 = inlined_call_operand.vmem [shape: bf16[4,128,576], index: 0, kind: input, shape index: {}]
  %s1 = inlined_call_operand.vmem [shape: bf16[576,64], index: 1, kind: input, shape index: {}]
  %s2 = inlined_call_operand.vmem [shape: f32[1,64], index: 2, kind: input, shape index: {}]
  %s3 = inlined_call_operand.vmem [shape: bf16[128,64], index: 3, kind: output, shape index: {}]
  %s4 = sld [smem:[#allocation0]]
  $region22: #{cnn_regression_forward.4} parent=0
    _
  %s6 = ssub.s32 1, %s4
  %s7 = scalar_select 0, %s6, %s4
  // Predicated region
  $region2: #{cnn_regression_forward.4} parent=0 // pred_check
    _
  $region3: #{cnn_regression_forward.4} parent=0 // pred_check_branch
    %9 = sbr.rel (0) target = $region5
  $region4: #{cnn_regression_forward.4} parent=0 // pred_region
    _
  $region5: #{cnn_regression_forward.4} parent=0 // pred_fallthru
    _
  // Predicated region
  $region6: #{cnn_regression_forward.4} parent=0 // pred_check
    _
  $region7: #{cnn_regression_forward.4} parent=0 // pred_check_branch
    %11 = sbr.rel (0) target = $region9
  $region8: #{cnn_regression_forward.4} parent=0 // pred_region
    _
  $region9: #{cnn_regression_forward.4} parent=0 // pred_fallthru
    _
  // Predicated region
  $region10: #{cnn_regression_forward.4} parent=0 // pred_check
    _
  $region11: #{cnn_regression_forward.4} parent=0 // pred_check_branch
    %13 = sbr.rel (0) target = $region13
  $region12: #{cnn_regression_forward.4} parent=0 // pred_region
    _
  $region13: #{cnn_regression_forward.4} parent=0 // pred_fallthru
    _
  %v15 = vld [vmem:[%s0] sm:$0xff]
  %v16 = vld [vmem:[%s0 + $0x8] sm:$0xff]
  %v17 = vld [vmem:[%s0 + $0x10] sm:$0xf]
  %v18 = vld [vmem:[%s0 + $0x14] sm:$0xff]
  %v19 = vld [vmem:[%s0 + $0x1c] sm:$0xff]
  %v20 = vld [vmem:[%s0 + $0x24] sm:$0xf]
  %v21 = vld [vmem:[%s0 + $0x28] sm:$0xff]
  %v22 = vld [vmem:[%s0 + $0x30] sm:$0xff]
  %v23 = vld [vmem:[%s0 + $0x38] sm:$0xf]
  %v24 = vld [vmem:[%s0 + $0x3c] sm:$0xff]
  %v25 = vld [vmem:[%s0 + $0x44] sm:$0xff]
  %v26 = vld [vmem:[%s0 + $0x4c] sm:$0xf]
  %v27 = vld [vmem:[%s0 + $0x50] sm:$0xff]
  %v28 = vld [vmem:[%s0 + $0x58] sm:$0xff]
  %v29 = vld [vmem:[%s0 + $0x60] sm:$0xf]
  %v30 = vld [vmem:[%s0 + $0x64] sm:$0xff]
  %v31 = vld [vmem:[%s0 + $0x6c] sm:$0xff]
  %v32 = vld [vmem:[%s0 + $0x74] sm:$0xf]
  %v33 = vld [vmem:[%s0 + $0x78] sm:$0xff]
  %v34 = vld [vmem:[%s0 + $0x80] sm:$0xff]
  %v35 = vld [vmem:[%s0 + $0x88] sm:$0xf]
  %v36 = vld [vmem:[%s0 + $0x8c] sm:$0xff]
  %v37 = vld [vmem:[%s0 + $0x94] sm:$0xff]
  %v38 = vld [vmem:[%s0 + $0x9c] sm:$0xf]
  %v39 = vld [vmem:[%s0 + $0xa0] sm:$0xff]
  %v40 = vld [vmem:[%s0 + $0xa8] sm:$0xff]
  %v41 = vld [vmem:[%s0 + $0xb0] sm:$0xf]
  %v42 = vld [vmem:[%s0 + $0xb4] sm:$0xff]
  %v43 = vld [vmem:[%s0 + $0xbc] sm:$0xff]
  %v44 = vld [vmem:[%s0 + $0xc4] sm:$0xf]
  %v45 = vld [vmem:[%s0 + $0xc8] sm:$0xff]
  %v46 = vld [vmem:[%s0 + $0xd0] sm:$0xff]
  %v47 = vld [vmem:[%s0 + $0xd8] sm:$0xf]
  %v48 = vld [vmem:[%s0 + $0xdc] sm:$0xff]
  %v49 = vld [vmem:[%s0 + $0xe4] sm:$0xff]
  %v50 = vld [vmem:[%s0 + $0xec] sm:$0xf]
  %v51 = vld [vmem:[%s0 + $0xf0] sm:$0xff]
  %v52 = vld [vmem:[%s0 + $0xf8] sm:$0xff]
  %v53 = vld [vmem:[%s0 + $0x100] sm:$0xf]
  %v54 = vld [vmem:[%s0 + $0x104] sm:$0xff]
  %v55 = vld [vmem:[%s0 + $0x10c] sm:$0xff]
  %v56 = vld [vmem:[%s0 + $0x114] sm:$0xf]
  %v57 = vld [vmem:[%s0 + $0x118] sm:$0xff]
  %v58 = vld [vmem:[%s0 + $0x120] sm:$0xff]
  %v59 = vld [vmem:[%s0 + $0x128] sm:$0xf]
  %v60 = vld [vmem:[%s0 + $0x12c] sm:$0xff]
  %v61 = vld [vmem:[%s0 + $0x134] sm:$0xff]
  %v62 = vld [vmem:[%s0 + $0x13c] sm:$0xf]
  %v63 = vld [vmem:[%s1] sm:$0xf]
  %v64 = vld [vmem:[%s1 + $0x4] sm:$0xf]
  %v65 = vld [vmem:[%s1 + $0x8] sm:$0xf]
  %v66 = vld [vmem:[%s1 + $0xc] sm:$0xf]
  %v67 = vld [vmem:[%s1 + $0x10] sm:$0xf]
  %v68 = vld [vmem:[%s1 + $0x14] sm:$0xf]
  %v69 = vld [vmem:[%s1 + $0x18] sm:$0xf]
  %v70 = vld [vmem:[%s1 + $0x1c] sm:$0xf]
  %v71 = vld [vmem:[%s1 + $0x20] sm:$0xf]
  %v72 = vld [vmem:[%s1 + $0x24] sm:$0xf]
  %v73 = vld [vmem:[%s1 + $0x28] sm:$0xf]
  %v74 = vld [vmem:[%s1 + $0x2c] sm:$0xf]
  %v75 = vld [vmem:[%s1 + $0x30] sm:$0xf]
  %v76 = vld [vmem:[%s1 + $0x34] sm:$0xf]
  %v77 = vld [vmem:[%s1 + $0x38] sm:$0xf]
  %v78 = vld [vmem:[%s1 + $0x3c] sm:$0xf]
  %v79 = vld [vmem:[%s1 + $0x40] sm:$0xf]
  %v80 = vld [vmem:[%s1 + $0x44] sm:$0xf]
  %v81 = vld [vmem:[%s1 + $0x48] sm:$0xf]
  %v82 = vld [vmem:[%s1 + $0x4c] sm:$0xf]
  %v83 = vld [vmem:[%s1 + $0x50] sm:$0xf]
  %v84 = vld [vmem:[%s1 + $0x54] sm:$0xf]
  %v85 = vld [vmem:[%s1 + $0x58] sm:$0xf]
  %v86 = vld [vmem:[%s1 + $0x5c] sm:$0xf]
  %v87 = vld [vmem:[%s1 + $0x60] sm:$0xf]
  %v88 = vld [vmem:[%s1 + $0x64] sm:$0xf]
  %v89 = vld [vmem:[%s1 + $0x68] sm:$0xf]
  %v90 = vld [vmem:[%s1 + $0x6c] sm:$0xf]
  %v91 = vld [vmem:[%s1 + $0x70] sm:$0xf]
  %v92 = vld [vmem:[%s1 + $0x74] sm:$0xf]
  %v93 = vld [vmem:[%s1 + $0x78] sm:$0xf]
  %v94 = vld [vmem:[%s1 + $0x7c] sm:$0xf]
  %v95 = vld [vmem:[%s1 + $0x80] sm:$0xf]
  %v96 = vld [vmem:[%s1 + $0x84] sm:$0xf]
  %v97 = vld [vmem:[%s1 + $0x88] sm:$0xf]
  %v98 = vld [vmem:[%s1 + $0x8c] sm:$0xf]
  %v99 = vld [vmem:[%s1 + $0x90] sm:$0xf]
  %v100 = vld [vmem:[%s1 + $0x94] sm:$0xf]
  %v101 = vld [vmem:[%s1 + $0x98] sm:$0xf]
  %v102 = vld [vmem:[%s1 + $0x9c] sm:$0xf]
  %v103 = vld [vmem:[%s1 + $0xa0] sm:$0xf]
  %v104 = vld [vmem:[%s1 + $0xa4] sm:$0xf]
  %v105 = vld [vmem:[%s1 + $0xa8] sm:$0xf]
  %v106 = vld [vmem:[%s1 + $0xac] sm:$0xf]
  %v107 = vld [vmem:[%s1 + $0xb0] sm:$0xf]
  %v108 = vld [vmem:[%s1 + $0xb4] sm:$0xf]
  %v109 = vld [vmem:[%s1 + $0xb8] sm:$0xf]
  %v110 = vld [vmem:[%s1 + $0xbc] sm:$0xf]
  %v111 = vld [vmem:[%s1 + $0xc0] sm:$0xf]
  %v112 = vld [vmem:[%s1 + $0xc4] sm:$0xf]
  %v113 = vld [vmem:[%s1 + $0xc8] sm:$0xf]
  %v114 = vld [vmem:[%s1 + $0xcc] sm:$0xf]
  %v115 = vld [vmem:[%s1 + $0xd0] sm:$0xf]
  %v116 = vld [vmem:[%s1 + $0xd4] sm:$0xf]
  %v117 = vld [vmem:[%s1 + $0xd8] sm:$0xf]
  %v118 = vld [vmem:[%s1 + $0xdc] sm:$0xf]
  %v119 = vld [vmem:[%s1 + $0xe0] sm:$0xf]
  %v120 = vld [vmem:[%s1 + $0xe4] sm:$0xf]
  %v121 = vld [vmem:[%s1 + $0xe8] sm:$0xf]
  %v122 = vld [vmem:[%s1 + $0xec] sm:$0xf]
  %v123 = vld [vmem:[%s1 + $0xf0] sm:$0xf]
  %v124 = vld [vmem:[%s1 + $0xf4] sm:$0xf]
  %v125 = vld [vmem:[%s1 + $0xf8] sm:$0xf]
  %v126 = vld [vmem:[%s1 + $0xfc] sm:$0xf]
  %v127 = vld [vmem:[%s1 + $0x100] sm:$0xf]
  %v128 = vld [vmem:[%s1 + $0x104] sm:$0xf]
  %v129 = vld [vmem:[%s1 + $0x108] sm:$0xf]
  %v130 = vld [vmem:[%s1 + $0x10c] sm:$0xf]
  %v131 = vld [vmem:[%s1 + $0x110] sm:$0xf]
  %v132 = vld [vmem:[%s1 + $0x114] sm:$0xf]
  %v133 = vld [vmem:[%s1 + $0x118] sm:$0xf]
  %v134 = vld [vmem:[%s1 + $0x11c] sm:$0xf]
  %v183 = vunpack.c.l.b16 %v15
  %v184 = vunpack.c.h.b16 %v15
  %v185 = vunpack.c.l.b16 %v16
  %v186 = vunpack.c.h.b16 %v16
  %v187 = vunpack.c.l.b16 %v17
  %v188 = vunpack.c.l.b16 %v18
  %v189 = vunpack.c.h.b16 %v18
  %v190 = vunpack.c.l.b16 %v19
  %v191 = vunpack.c.h.b16 %v19
  %v192 = vunpack.c.l.b16 %v20
  %v193 = vunpack.c.l.b16 %v21
  %v194 = vunpack.c.h.b16 %v21
  %v195 = vunpack.c.l.b16 %v22
  %v196 = vunpack.c.h.b16 %v22
  %v197 = vunpack.c.l.b16 %v23
  %v198 = vunpack.c.l.b16 %v24
  %v199 = vunpack.c.h.b16 %v24
  %v200 = vunpack.c.l.b16 %v25
  %v201 = vunpack.c.h.b16 %v25
  %v202 = vunpack.c.l.b16 %v26
  %v203 = vunpack.c.l.b16 %v27
  %v204 = vunpack.c.h.b16 %v27
  %v205 = vunpack.c.l.b16 %v28
  %v206 = vunpack.c.h.b16 %v28
  %v207 = vunpack.c.l.b16 %v29
  %v208 = vunpack.c.l.b16 %v30
  %v209 = vunpack.c.h.b16 %v30
  %v210 = vunpack.c.l.b16 %v31
  %v211 = vunpack.c.h.b16 %v31
  %v212 = vunpack.c.l.b16 %v32
  %v213 = vunpack.c.l.b16 %v33
  %v214 = vunpack.c.h.b16 %v33
  %v215 = vunpack.c.l.b16 %v34
  %v216 = vunpack.c.h.b16 %v34
  %v217 = vunpack.c.l.b16 %v35
  %v218 = vunpack.c.l.b16 %v36
  %v219 = vunpack.c.h.b16 %v36
  %v220 = vunpack.c.l.b16 %v37
  %v221 = vunpack.c.h.b16 %v37
  %v222 = vunpack.c.l.b16 %v38
  %v223 = vunpack.c.l.b16 %v39
  %v224 = vunpack.c.h.b16 %v39
  %v225 = vunpack.c.l.b16 %v40
  %v226 = vunpack.c.h.b16 %v40
  %v227 = vunpack.c.l.b16 %v41
  %v228 = vunpack.c.l.b16 %v42
  %v229 = vunpack.c.h.b16 %v42
  %v230 = vunpack.c.l.b16 %v43
  %v231 = vunpack.c.h.b16 %v43
  %v232 = vunpack.c.l.b16 %v44
  %v233 = vunpack.c.l.b16 %v45
  %v234 = vunpack.c.h.b16 %v45
  %v235 = vunpack.c.l.b16 %v46
  %v236 = vunpack.c.h.b16 %v46
  %v237 = vunpack.c.l.b16 %v47
  %v238 = vunpack.c.l.b16 %v48
  %v239 = vunpack.c.h.b16 %v48
  %v240 = vunpack.c.l.b16 %v49
  %v241 = vunpack.c.h.b16 %v49
  %v242 = vunpack.c.l.b16 %v50
  %v243 = vunpack.c.l.b16 %v51
  %v244 = vunpack.c.h.b16 %v51
  %v245 = vunpack.c.l.b16 %v52
  %v246 = vunpack.c.h.b16 %v52
  %v247 = vunpack.c.l.b16 %v53
  %v248 = vunpack.c.l.b16 %v54
  %v249 = vunpack.c.h.b16 %v54
  %v250 = vunpack.c.l.b16 %v55
  %v251 = vunpack.c.h.b16 %v55
  %v252 = vunpack.c.l.b16 %v56
  %v253 = vunpack.c.l.b16 %v57
  %v254 = vunpack.c.h.b16 %v57
  %v255 = vunpack.c.l.b16 %v58
  %v256 = vunpack.c.h.b16 %v58
  %v257 = vunpack.c.l.b16 %v59
  %v258 = vunpack.c.l.b16 %v60
  %v259 = vunpack.c.h.b16 %v60
  %v260 = vunpack.c.l.b16 %v61
  %v261 = vunpack.c.h.b16 %v61
  %v262 = vunpack.c.l.b16 %v62
  %v263 = vpack.c.b16 %v188, %v183
  %v264 = vpack.c.b16 %v189, %v184
  %v265 = vpack.c.b16 %v190, %v185
  %v266 = vpack.c.b16 %v191, %v186
  %v267 = vpack.c.b16 %v192, %v187
  %v268 = vpack.c.b16 %v198, %v193
  %v269 = vpack.c.b16 %v199, %v194
  %v270 = vpack.c.b16 %v200, %v195
  %v271 = vpack.c.b16 %v201, %v196
  %v272 = vpack.c.b16 %v202, %v197
  %v273 = vpack.c.b16 %v208, %v203
  %v274 = vpack.c.b16 %v209, %v204
  %v275 = vpack.c.b16 %v210, %v205
  %v276 = vpack.c.b16 %v211, %v206
  %v277 = vpack.c.b16 %v212, %v207
  %v278 = vpack.c.b16 %v218, %v213
  %v279 = vpack.c.b16 %v219, %v214
  %v280 = vpack.c.b16 %v220, %v215
  %v281 = vpack.c.b16 %v221, %v216
  %v282 = vpack.c.b16 %v222, %v217
  %v283 = vpack.c.b16 %v228, %v223
  %v284 = vpack.c.b16 %v229, %v224
  %v285 = vpack.c.b16 %v230, %v225
  %v286 = vpack.c.b16 %v231, %v226
  %v287 = vpack.c.b16 %v232, %v227
  %v288 = vpack.c.b16 %v238, %v233
  %v289 = vpack.c.b16 %v239, %v234
  %v290 = vpack.c.b16 %v240, %v235
  %v291 = vpack.c.b16 %v241, %v236
  %v292 = vpack.c.b16 %v242, %v237
  %v293 = vpack.c.b16 %v248, %v243
  %v294 = vpack.c.b16 %v249, %v244
  %v295 = vpack.c.b16 %v250, %v245
  %v296 = vpack.c.b16 %v251, %v246
  %v297 = vpack.c.b16 %v252, %v247
  %v298 = vpack.c.b16 %v258, %v253
  %v299 = vpack.c.b16 %v259, %v254
  %v300 = vpack.c.b16 %v260, %v255
  %v301 = vpack.c.b16 %v261, %v256
  %v302 = vpack.c.b16 %v262, %v257
  %v407 = vunpack.c.l.b16 %v63
  %v408 = vunpack.c.l.b16 %v64
  %v409 = vunpack.c.l.b16 %v65
  %v410 = vunpack.c.l.b16 %v66
  %v411 = vunpack.c.l.b16 %v67
  %v412 = vunpack.c.l.b16 %v68
  %v413 = vunpack.c.l.b16 %v69
  %v414 = vunpack.c.l.b16 %v70
  %v415 = vunpack.c.l.b16 %v71
  %v416 = vunpack.c.l.b16 %v72
  %v417 = vunpack.c.l.b16 %v73
  %v418 = vunpack.c.l.b16 %v74
  %v419 = vunpack.c.l.b16 %v75
  %v420 = vunpack.c.l.b16 %v76
  %v421 = vunpack.c.l.b16 %v77
  %v422 = vunpack.c.l.b16 %v78
  %v423 = vunpack.c.l.b16 %v79
  %v424 = vunpack.c.l.b16 %v80
  %v425 = vunpack.c.l.b16 %v81
  %v426 = vunpack.c.l.b16 %v82
  %v427 = vunpack.c.l.b16 %v83
  %v428 = vunpack.c.l.b16 %v84
  %v429 = vunpack.c.l.b16 %v85
  %v430 = vunpack.c.l.b16 %v86
  %v431 = vunpack.c.l.b16 %v87
  %v432 = vunpack.c.l.b16 %v88
  %v433 = vunpack.c.l.b16 %v89
  %v434 = vunpack.c.l.b16 %v90
  %v435 = vunpack.c.l.b16 %v91
  %v436 = vunpack.c.l.b16 %v92
  %v437 = vunpack.c.l.b16 %v93
  %v438 = vunpack.c.l.b16 %v94
  %v439 = vunpack.c.l.b16 %v95
  %v440 = vunpack.c.l.b16 %v96
  %v441 = vunpack.c.l.b16 %v97
  %v442 = vunpack.c.l.b16 %v98
  %v443 = vunpack.c.l.b16 %v99
  %v444 = vunpack.c.l.b16 %v100
  %v445 = vunpack.c.l.b16 %v101
  %v446 = vunpack.c.l.b16 %v102
  %v447 = vunpack.c.l.b16 %v103
  %v448 = vunpack.c.l.b16 %v104
  %v449 = vunpack.c.l.b16 %v105
  %v450 = vunpack.c.l.b16 %v106
  %v451 = vunpack.c.l.b16 %v107
  %v452 = vunpack.c.l.b16 %v108
  %v453 = vunpack.c.l.b16 %v109
  %v454 = vunpack.c.l.b16 %v110
  %v455 = vunpack.c.l.b16 %v111
  %v456 = vunpack.c.l.b16 %v112
  %v457 = vunpack.c.l.b16 %v113
  %v458 = vunpack.c.l.b16 %v114
  %v459 = vunpack.c.l.b16 %v115
  %v460 = vunpack.c.l.b16 %v116
  %v461 = vunpack.c.l.b16 %v117
  %v462 = vunpack.c.l.b16 %v118
  %v463 = vunpack.c.l.b16 %v119
  %v464 = vunpack.c.l.b16 %v120
  %v465 = vunpack.c.l.b16 %v121
  %v466 = vunpack.c.l.b16 %v122
  %v467 = vunpack.c.l.b16 %v123
  %v468 = vunpack.c.l.b16 %v124
  %v469 = vunpack.c.l.b16 %v125
  %v470 = vunpack.c.l.b16 %v126
  %v471 = vunpack.c.l.b16 %v127
  %v472 = vunpack.c.l.b16 %v128
  %v473 = vunpack.c.l.b16 %v129
  %v474 = vunpack.c.l.b16 %v130
  %v475 = vunpack.c.l.b16 %v131
  %v476 = vunpack.c.l.b16 %v132
  %v477 = vunpack.c.l.b16 %v133
  %v478 = vunpack.c.l.b16 %v134
  %v479 = vpack.c.b16 %v408, %v407
  %v480 = vpack.c.b16 %v410, %v409
  %v481 = vpack.c.b16 %v412, %v411
  %v482 = vpack.c.b16 %v414, %v413
  %v483 = vpack.c.b16 %v416, %v415
  %v484 = vpack.c.b16 %v418, %v417
  %v485 = vpack.c.b16 %v420, %v419
  %v486 = vpack.c.b16 %v422, %v421
  %v487 = vpack.c.b16 %v424, %v423
  %v488 = vpack.c.b16 %v426, %v425
  %v489 = vpack.c.b16 %v428, %v427
  %v490 = vpack.c.b16 %v430, %v429
  %v491 = vpack.c.b16 %v432, %v431
  %v492 = vpack.c.b16 %v434, %v433
  %v493 = vpack.c.b16 %v436, %v435
  %v494 = vpack.c.b16 %v438, %v437
  %v495 = vpack.c.b16 %v440, %v439
  %v496 = vpack.c.b16 %v442, %v441
  %v497 = vpack.c.b16 %v444, %v443
  %v498 = vpack.c.b16 %v446, %v445
  %v499 = vpack.c.b16 %v448, %v447
  %v500 = vpack.c.b16 %v450, %v449
  %v501 = vpack.c.b16 %v452, %v451
  %v502 = vpack.c.b16 %v454, %v453
  %v503 = vpack.c.b16 %v456, %v455
  %v504 = vpack.c.b16 %v458, %v457
  %v505 = vpack.c.b16 %v460, %v459
  %v506 = vpack.c.b16 %v462, %v461
  %v507 = vpack.c.b16 %v464, %v463
  %v508 = vpack.c.b16 %v466, %v465
  %v509 = vpack.c.b16 %v468, %v467
  %v510 = vpack.c.b16 %v470, %v469
  %v511 = vpack.c.b16 %v472, %v471
  %v512 = vpack.c.b16 %v474, %v473
  %v513 = vpack.c.b16 %v476, %v475
  %v514 = vpack.c.b16 %v478, %v477
  %vm551 = vcmask 523264
  %v553 = vsel %vm551, %v267, 0
  %v556 = vsel %vm551, %v272, 0
  %v559 = vsel %vm551, %v277, 0
  %v562 = vsel %vm551, %v282, 0
  %v565 = vsel %vm551, %v287, 0
  %v568 = vsel %vm551, %v292, 0
  %v571 = vsel %vm551, %v297, 0
  %v574 = vsel %vm551, %v302, 0
  %576 = vmatprep.subr.bf16.mxu0 0
  %577 = vmatpush1.bf16.msra.mxu0 %v479
  %578 = vmatprep.subr.bf16.mxu0 0
  %579 = vmatpush1.bf16.msra.mxu0 %v480
  %580 = vmatprep.subr.bf16.mxu0 0
  %581 = vmatpush1.bf16.msra.mxu0 %v481
  %582 = vmatprep.subr.bf16.mxu0 0
  %583 = vmatpush1.bf16.msra.mxu0 %v482
  %584 = vmatprep.subr.bf16.mxu0 0
  %585 = vmatpush1.bf16.msra.mxu0 %v483
  %586 = vmatprep.subr.bf16.mxu0 0
  %587 = vmatpush1.bf16.msra.mxu0 %v484
  %588 = vmatprep.subr.bf16.mxu0 0
  %589 = vmatpush1.bf16.msra.mxu0 %v485
  %590 = vmatprep.subr.bf16.mxu0 0
  %591 = vmatpush1.bf16.msra.mxu0 %v486
  %592 = vmatprep.subr.bf16.mxu0 0
  %593 = vmatpush1.bf16.msra.mxu0 %v487
  %594 = vmatprep.subr.bf16.mxu0 0
  %595 = vmatpush1.bf16.msra.mxu0 %v488
  %596 = vmatprep.subr.bf16.mxu0 0
  %597 = vmatpush1.bf16.msra.mxu0 %v489
  %598 = vmatprep.subr.bf16.mxu0 0
  %599 = vmatpush1.bf16.msra.mxu0 %v490
  %600 = vmatprep.subr.bf16.mxu0 0
  %601 = vmatpush1.bf16.msra.mxu0 %v491
  %602 = vmatprep.subr.bf16.mxu0 0
  %603 = vmatpush1.bf16.msra.mxu0 %v492
  %604 = vmatprep.subr.bf16.mxu0 0
  %605 = vmatpush1.bf16.msra.mxu0 %v493
  %606 = vmatprep.subr.bf16.mxu0 0
  %607 = vmatpush1.bf16.msra.mxu0 %v494
  %608 = vmatprep.mubr.bf16.mxu0 %v264
  %609 = vmatmul.mubr.bf16.gmra.mrb[0].mxu0 %v263
  %v610 = vpop.f32.mrb[0].mxu0
  %v611 = vadd.f32 0.0, %v610
  %v612 = vpop.f32.mrb[0].mxu0
  %v613 = vpop.f32.mrb[0].mxu0
  %v614 = vadd.f32 0.0, %v613
  %v615 = vpop.f32.mrb[0].mxu0
  %616 = vmatprep.mubr.bf16.mxu0 %v269
  %617 = vmatmul.mubr.bf16.gmra.mrb[0].mxu0 %v268
  %v618 = vpop.f32.mrb[0].mxu0
  %v619 = vadd.f32 0.0, %v618
  %v620 = vpop.f32.mrb[0].mxu0
  %v621 = vpop.f32.mrb[0].mxu0
  %v622 = vadd.f32 0.0, %v621
  %v623 = vpop.f32.mrb[0].mxu0
  %624 = vmatprep.mubr.bf16.mxu0 %v274
  %625 = vmatmul.mubr.bf16.gmra.mrb[0].mxu0 %v273
  %v626 = vpop.f32.mrb[0].mxu0
  %v627 = vadd.f32 0.0, %v626
  %v628 = vpop.f32.mrb[0].mxu0
  %v629 = vpop.f32.mrb[0].mxu0
  %v630 = vadd.f32 0.0, %v629
  %v631 = vpop.f32.mrb[0].mxu0
  %632 = vmatprep.mubr.bf16.mxu0 %v279
  %633 = vmatmul.mubr.bf16.gmra.mrb[0].mxu0 %v278
  %v634 = vpop.f32.mrb[0].mxu0
  %v635 = vadd.f32 0.0, %v634
  %v636 = vpop.f32.mrb[0].mxu0
  %v637 = vpop.f32.mrb[0].mxu0
  %v638 = vadd.f32 0.0, %v637
  %v639 = vpop.f32.mrb[0].mxu0
  %640 = vmatprep.mubr.bf16.mxu0 %v284
  %641 = vmatmul.mubr.bf16.gmra.mrb[0].mxu0 %v283
  %v642 = vpop.f32.mrb[0].mxu0
  %v643 = vadd.f32 0.0, %v642
  %v644 = vpop.f32.mrb[0].mxu0
  %v645 = vpop.f32.mrb[0].mxu0
  %v646 = vadd.f32 0.0, %v645
  %v647 = vpop.f32.mrb[0].mxu0
  %648 = vmatprep.mubr.bf16.mxu0 %v289
  %649 = vmatmul.mubr.bf16.gmra.mrb[0].mxu0 %v288
  %v650 = vpop.f32.mrb[0].mxu0
  %v651 = vadd.f32 0.0, %v650
  %v652 = vpop.f32.mrb[0].mxu0
  %v653 = vpop.f32.mrb[0].mxu0
  %v654 = vadd.f32 0.0, %v653
  %v655 = vpop.f32.mrb[0].mxu0
  %656 = vmatprep.mubr.bf16.mxu0 %v294
  %657 = vmatmul.mubr.bf16.gmra.mrb[0].mxu0 %v293
  %v658 = vpop.f32.mrb[0].mxu0
  %v659 = vadd.f32 0.0, %v658
  %v660 = vpop.f32.mrb[0].mxu0
  %v661 = vpop.f32.mrb[0].mxu0
  %v662 = vadd.f32 0.0, %v661
  %v663 = vpop.f32.mrb[0].mxu0
  %664 = vmatprep.mubr.bf16.mxu0 %v299
  %665 = vmatmul.mubr.bf16.gmra.mrb[0].mxu0 %v298
  %v666 = vpop.f32.mrb[0].mxu0
  %v667 = vadd.f32 0.0, %v666
  %v668 = vpop.f32.mrb[0].mxu0
  %v669 = vpop.f32.mrb[0].mxu0
  %v670 = vadd.f32 0.0, %v669
  %v671 = vpop.f32.mrb[0].mxu0
  %672 = vdwg.mxu0
  %673 = vmatprep.subr.bf16.mxu0 0
  %674 = vmatpush1.bf16.msra.mxu0 %v495
  %675 = vmatprep.subr.bf16.mxu0 0
  %676 = vmatpush1.bf16.msra.mxu0 %v496
  %677 = vmatprep.subr.bf16.mxu0 0
  %678 = vmatpush1.bf16.msra.mxu0 %v497
  %679 = vmatprep.subr.bf16.mxu0 0
  %680 = vmatpush1.bf16.msra.mxu0 %v498
  %681 = vmatprep.subr.bf16.mxu0 0
  %682 = vmatpush1.bf16.msra.mxu0 %v499
  %683 = vmatprep.subr.bf16.mxu0 0
  %684 = vmatpush1.bf16.msra.mxu0 %v500
  %685 = vmatprep.subr.bf16.mxu0 0
  %686 = vmatpush1.bf16.msra.mxu0 %v501
  %687 = vmatprep.subr.bf16.mxu0 0
  %688 = vmatpush1.bf16.msra.mxu0 %v502
  %689 = vmatprep.subr.bf16.mxu0 0
  %690 = vmatpush1.bf16.msra.mxu0 %v503
  %691 = vmatprep.subr.bf16.mxu0 0
  %692 = vmatpush1.bf16.msra.mxu0 %v504
  %693 = vmatprep.subr.bf16.mxu0 0
  %694 = vmatpush1.bf16.msra.mxu0 %v505
  %695 = vmatprep.subr.bf16.mxu0 0
  %696 = vmatpush1.bf16.msra.mxu0 %v506
  %697 = vmatprep.subr.bf16.mxu0 0
  %698 = vmatpush1.bf16.msra.mxu0 %v507
  %699 = vmatprep.subr.bf16.mxu0 0
  %700 = vmatpush1.bf16.msra.mxu0 %v508
  %701 = vmatprep.subr.bf16.mxu0 0
  %702 = vmatpush1.bf16.msra.mxu0 %v509
  %703 = vmatprep.subr.bf16.mxu0 0
  %704 = vmatpush1.bf16.msra.mxu0 %v510
  %705 = vmatprep.mubr.bf16.mxu0 %v266
  %706 = vmatmul.mubr.bf16.gmra.mrb[0].mxu0 %v265
  %v707 = vpop.f32.mrb[0].mxu0
  %v708 = vadd.f32 %v611, %v707
  %v709 = vpop.f32.mrb[0].mxu0
  %v710 = vpop.f32.mrb[0].mxu0
  %v711 = vadd.f32 %v614, %v710
  %v712 = vpop.f32.mrb[0].mxu0
  %713 = vmatprep.mubr.bf16.mxu0 %v271
  %714 = vmatmul.mubr.bf16.gmra.mrb[0].mxu0 %v270
  %v715 = vpop.f32.mrb[0].mxu0
  %v716 = vadd.f32 %v619, %v715
  %v717 = vpop.f32.mrb[0].mxu0
  %v718 = vpop.f32.mrb[0].mxu0
  %v719 = vadd.f32 %v622, %v718
  %v720 = vpop.f32.mrb[0].mxu0
  %721 = vmatprep.mubr.bf16.mxu0 %v276
  %722 = vmatmul.mubr.bf16.gmra.mrb[0].mxu0 %v275
  %v723 = vpop.f32.mrb[0].mxu0
  %v724 = vadd.f32 %v627, %v723
  %v725 = vpop.f32.mrb[0].mxu0
  %v726 = vpop.f32.mrb[0].mxu0
  %v727 = vadd.f32 %v630, %v726
  %v728 = vpop.f32.mrb[0].mxu0
  %729 = vmatprep.mubr.bf16.mxu0 %v281
  %730 = vmatmul.mubr.bf16.gmra.mrb[0].mxu0 %v280
  %v731 = vpop.f32.mrb[0].mxu0
  %v732 = vadd.f32 %v635, %v731
  %v733 = vpop.f32.mrb[0].mxu0
  %v734 = vpop.f32.mrb[0].mxu0
  %v735 = vadd.f32 %v638, %v734
  %v736 = vpop.f32.mrb[0].mxu0
  %737 = vmatprep.mubr.bf16.mxu0 %v286
  %738 = vmatmul.mubr.bf16.gmra.mrb[0].mxu0 %v285
  %v739 = vpop.f32.mrb[0].mxu0
  %v740 = vadd.f32 %v643, %v739
  %v741 = vpop.f32.mrb[0].mxu0
  %v742 = vpop.f32.mrb[0].mxu0
  %v743 = vadd.f32 %v646, %v742
  %v744 = vpop.f32.mrb[0].mxu0
  %745 = vmatprep.mubr.bf16.mxu0 %v291
  %746 = vmatmul.mubr.bf16.gmra.mrb[0].mxu0 %v290
  %v747 = vpop.f32.mrb[0].mxu0
  %v748 = vadd.f32 %v651, %v747
  %v749 = vpop.f32.mrb[0].mxu0
  %v750 = vpop.f32.mrb[0].mxu0
  %v751 = vadd.f32 %v654, %v750
  %v752 = vpop.f32.mrb[0].mxu0
  %753 = vmatprep.mubr.bf16.mxu0 %v296
  %754 = vmatmul.mubr.bf16.gmra.mrb[0].mxu0 %v295
  %v755 = vpop.f32.mrb[0].mxu0
  %v756 = vadd.f32 %v659, %v755
  %v757 = vpop.f32.mrb[0].mxu0
  %v758 = vpop.f32.mrb[0].mxu0
  %v759 = vadd.f32 %v662, %v758
  %v760 = vpop.f32.mrb[0].mxu0
  %761 = vmatprep.mubr.bf16.mxu0 %v301
  %762 = vmatmul.mubr.bf16.gmra.mrb[0].mxu0 %v300
  %v763 = vpop.f32.mrb[0].mxu0
  %v764 = vadd.f32 %v667, %v763
  %v765 = vpop.f32.mrb[0].mxu0
  %v766 = vpop.f32.mrb[0].mxu0
  %v767 = vadd.f32 %v670, %v766
  %v768 = vpop.f32.mrb[0].mxu0
  %769 = vdwg.mxu0
  %770 = vmatprep.subr.bf16.mxu0 0
  %771 = vmatpush1.bf16.msra.mxu0 %v511
  %772 = vmatprep.subr.bf16.mxu0 0
  %773 = vmatpush1.bf16.msra.mxu0 %v512
  %774 = vmatprep.subr.bf16.mxu0 0
  %775 = vmatpush1.bf16.msra.mxu0 %v513
  %776 = vmatprep.subr.bf16.mxu0 0
  %777 = vmatpush1.bf16.msra.mxu0 %v514
  %778 = vmatprep.subr.bf16.mxu0 0
  %779 = vmatpush1.bf16.msra.mxu0 0
  %780 = vmatprep.subr.bf16.mxu0 0
  %781 = vmatpush1.bf16.msra.mxu0 0
  %782 = vmatprep.subr.bf16.mxu0 0
  %783 = vmatpush1.bf16.msra.mxu0 0
  %784 = vmatprep.subr.bf16.mxu0 0
  %785 = vmatpush1.bf16.msra.mxu0 0
  %786 = vmatprep.subr.bf16.mxu0 0
  %787 = vmatpush1.bf16.msra.mxu0 0
  %788 = vmatprep.subr.bf16.mxu0 0
  %789 = vmatpush1.bf16.msra.mxu0 0
  %790 = vmatprep.subr.bf16.mxu0 0
  %791 = vmatpush1.bf16.msra.mxu0 0
  %792 = vmatprep.subr.bf16.mxu0 0
  %793 = vmatpush1.bf16.msra.mxu0 0
  %794 = vmatprep.subr.bf16.mxu0 0
  %795 = vmatpush1.bf16.msra.mxu0 0
  %796 = vmatprep.subr.bf16.mxu0 0
  %797 = vmatpush1.bf16.msra.mxu0 0
  %798 = vmatprep.subr.bf16.mxu0 0
  %799 = vmatpush1.bf16.msra.mxu0 0
  %800 = vmatprep.subr.bf16.mxu0 0
  %801 = vmatpush1.bf16.msra.mxu0 0
  %802 = vmatprep.mubr.bf16.mxu0 0
  %803 = vmatmul.mubr.bf16.gmra.mrb[0].mxu0 %v553
  %v804 = vpop.f32.mrb[0].mxu0
  %v805 = vadd.f32 %v708, %v804
  %v806 = vpop.f32.mrb[0].mxu0
  %v807 = vpop.f32.mrb[0].mxu0
  %v808 = vadd.f32 %v711, %v807
  %v809 = vpop.f32.mrb[0].mxu0
  %810 = vmatprep.mubr.bf16.mxu0 0
  %811 = vmatmul.mubr.bf16.gmra.mrb[0].mxu0 %v556
  %v812 = vpop.f32.mrb[0].mxu0
  %v813 = vadd.f32 %v716, %v812
  %v814 = vpop.f32.mrb[0].mxu0
  %v815 = vpop.f32.mrb[0].mxu0
  %v816 = vadd.f32 %v719, %v815
  %v817 = vpop.f32.mrb[0].mxu0
  %818 = vmatprep.mubr.bf16.mxu0 0
  %819 = vmatmul.mubr.bf16.gmra.mrb[0].mxu0 %v559
  %v820 = vpop.f32.mrb[0].mxu0
  %v821 = vadd.f32 %v724, %v820
  %v822 = vpop.f32.mrb[0].mxu0
  %v823 = vpop.f32.mrb[0].mxu0
  %v824 = vadd.f32 %v727, %v823
  %v825 = vpop.f32.mrb[0].mxu0
  %826 = vmatprep.mubr.bf16.mxu0 0
  %827 = vmatmul.mubr.bf16.gmra.mrb[0].mxu0 %v562
  %v828 = vpop.f32.mrb[0].mxu0
  %v829 = vadd.f32 %v732, %v828
  %v830 = vpop.f32.mrb[0].mxu0
  %v831 = vpop.f32.mrb[0].mxu0
  %v832 = vadd.f32 %v735, %v831
  %v833 = vpop.f32.mrb[0].mxu0
  %834 = vmatprep.mubr.bf16.mxu0 0
  %835 = vmatmul.mubr.bf16.gmra.mrb[0].mxu0 %v565
  %v836 = vpop.f32.mrb[0].mxu0
  %v837 = vadd.f32 %v740, %v836
  %v838 = vpop.f32.mrb[0].mxu0
  %v839 = vpop.f32.mrb[0].mxu0
  %v840 = vadd.f32 %v743, %v839
  %v841 = vpop.f32.mrb[0].mxu0
  %842 = vmatprep.mubr.bf16.mxu0 0
  %843 = vmatmul.mubr.bf16.gmra.mrb[0].mxu0 %v568
  %v844 = vpop.f32.mrb[0].mxu0
  %v845 = vadd.f32 %v748, %v844
  %v846 = vpop.f32.mrb[0].mxu0
  %v847 = vpop.f32.mrb[0].mxu0
  %v848 = vadd.f32 %v751, %v847
  %v849 = vpop.f32.mrb[0].mxu0
  %850 = vmatprep.mubr.bf16.mxu0 0
  %851 = vmatmul.mubr.bf16.gmra.mrb[0].mxu0 %v571
  %v852 = vpop.f32.mrb[0].mxu0
  %v853 = vadd.f32 %v756, %v852
  %v854 = vpop.f32.mrb[0].mxu0
  %v855 = vpop.f32.mrb[0].mxu0
  %v856 = vadd.f32 %v759, %v855
  %v857 = vpop.f32.mrb[0].mxu0
  %858 = vmatprep.mubr.bf16.mxu0 0
  %859 = vmatmul.mubr.bf16.gmra.mrb[0].mxu0 %v574
  %v860 = vpop.f32.mrb[0].mxu0
  %v861 = vadd.f32 %v764, %v860
  %v862 = vpop.f32.mrb[0].mxu0
  %v863 = vpop.f32.mrb[0].mxu0
  %v864 = vadd.f32 %v767, %v863
  %v865 = vpop.f32.mrb[0].mxu0
  %866 = vdwg.mxu0
  %s867 = scalar_lea.vmem %s0, 320
  %v868 = vld [vmem:[%s867] sm:$0xff]
  %v869 = vld [vmem:[%s867 + $0x8] sm:$0xff]
  %v870 = vld [vmem:[%s867 + $0x10] sm:$0xf]
  %v871 = vld [vmem:[%s867 + $0x14] sm:$0xff]
  %v872 = vld [vmem:[%s867 + $0x1c] sm:$0xff]
  %v873 = vld [vmem:[%s867 + $0x24] sm:$0xf]
  %v874 = vld [vmem:[%s867 + $0x28] sm:$0xff]
  %v875 = vld [vmem:[%s867 + $0x30] sm:$0xff]
  %v876 = vld [vmem:[%s867 + $0x38] sm:$0xf]
  %v877 = vld [vmem:[%s867 + $0x3c] sm:$0xff]
  %v878 = vld [vmem:[%s867 + $0x44] sm:$0xff]
  %v879 = vld [vmem:[%s867 + $0x4c] sm:$0xf]
  %v880 = vld [vmem:[%s867 + $0x50] sm:$0xff]
  %v881 = vld [vmem:[%s867 + $0x58] sm:$0xff]
  %v882 = vld [vmem:[%s867 + $0x60] sm:$0xf]
  %v883 = vld [vmem:[%s867 + $0x64] sm:$0xff]
  %v884 = vld [vmem:[%s867 + $0x6c] sm:$0xff]
  %v885 = vld [vmem:[%s867 + $0x74] sm:$0xf]
  %v886 = vld [vmem:[%s867 + $0x78] sm:$0xff]
  %v887 = vld [vmem:[%s867 + $0x80] sm:$0xff]
  %v888 = vld [vmem:[%s867 + $0x88] sm:$0xf]
  %v889 = vld [vmem:[%s867 + $0x8c] sm:$0xff]
  %v890 = vld [vmem:[%s867 + $0x94] sm:$0xff]
  %v891 = vld [vmem:[%s867 + $0x9c] sm:$0xf]
  %v892 = vld [vmem:[%s867 + $0xa0] sm:$0xff]
  %v893 = vld [vmem:[%s867 + $0xa8] sm:$0xff]
  %v894 = vld [vmem:[%s867 + $0xb0] sm:$0xf]
  %v895 = vld [vmem:[%s867 + $0xb4] sm:$0xff]
  %v896 = vld [vmem:[%s867 + $0xbc] sm:$0xff]
  %v897 = vld [vmem:[%s867 + $0xc4] sm:$0xf]
  %v898 = vld [vmem:[%s867 + $0xc8] sm:$0xff]
  %v899 = vld [vmem:[%s867 + $0xd0] sm:$0xff]
  %v900 = vld [vmem:[%s867 + $0xd8] sm:$0xf]
  %v901 = vld [vmem:[%s867 + $0xdc] sm:$0xff]
  %v902 = vld [vmem:[%s867 + $0xe4] sm:$0xff]
  %v903 = vld [vmem:[%s867 + $0xec] sm:$0xf]
  %v904 = vld [vmem:[%s867 + $0xf0] sm:$0xff]
  %v905 = vld [vmem:[%s867 + $0xf8] sm:$0xff]
  %v906 = vld [vmem:[%s867 + $0x100] sm:$0xf]
  %v907 = vld [vmem:[%s867 + $0x104] sm:$0xff]
  %v908 = vld [vmem:[%s867 + $0x10c] sm:$0xff]
  %v909 = vld [vmem:[%s867 + $0x114] sm:$0xf]
  %v910 = vld [vmem:[%s867 + $0x118] sm:$0xff]
  %v911 = vld [vmem:[%s867 + $0x120] sm:$0xff]
  %v912 = vld [vmem:[%s867 + $0x128] sm:$0xf]
  %v913 = vld [vmem:[%s867 + $0x12c] sm:$0xff]
  %v914 = vld [vmem:[%s867 + $0x134] sm:$0xff]
  %v915 = vld [vmem:[%s867 + $0x13c] sm:$0xf]
  %v964 = vunpack.c.l.b16 %v868
  %v965 = vunpack.c.h.b16 %v868
  %v966 = vunpack.c.l.b16 %v869
  %v967 = vunpack.c.h.b16 %v869
  %v968 = vunpack.c.l.b16 %v870
  %v969 = vunpack.c.l.b16 %v871
  %v970 = vunpack.c.h.b16 %v871
  %v971 = vunpack.c.l.b16 %v872
  %v972 = vunpack.c.h.b16 %v872
  %v973 = vunpack.c.l.b16 %v873
  %v974 = vunpack.c.l.b16 %v874
  %v975 = vunpack.c.h.b16 %v874
  %v976 = vunpack.c.l.b16 %v875
  %v977 = vunpack.c.h.b16 %v875
  %v978 = vunpack.c.l.b16 %v876
  %v979 = vunpack.c.l.b16 %v877
  %v980 = vunpack.c.h.b16 %v877
  %v981 = vunpack.c.l.b16 %v878
  %v982 = vunpack.c.h.b16 %v878
  %v983 = vunpack.c.l.b16 %v879
  %v984 = vunpack.c.l.b16 %v880
  %v985 = vunpack.c.h.b16 %v880
  %v986 = vunpack.c.l.b16 %v881
  %v987 = vunpack.c.h.b16 %v881
  %v988 = vunpack.c.l.b16 %v882
  %v989 = vunpack.c.l.b16 %v883
  %v990 = vunpack.c.h.b16 %v883
  %v991 = vunpack.c.l.b16 %v884
  %v992 = vunpack.c.h.b16 %v884
  %v993 = vunpack.c.l.b16 %v885
  %v994 = vunpack.c.l.b16 %v886
  %v995 = vunpack.c.h.b16 %v886
  %v996 = vunpack.c.l.b16 %v887
  %v997 = vunpack.c.h.b16 %v887
  %v998 = vunpack.c.l.b16 %v888
  %v999 = vunpack.c.l.b16 %v889
  %v1000 = vunpack.c.h.b16 %v889
  %v1001 = vunpack.c.l.b16 %v890
  %v1002 = vunpack.c.h.b16 %v890
  %v1003 = vunpack.c.l.b16 %v891
  %v1004 = vunpack.c.l.b16 %v892
  %v1005 = vunpack.c.h.b16 %v892
  %v1006 = vunpack.c.l.b16 %v893
  %v1007 = vunpack.c.h.b16 %v893
  %v1008 = vunpack.c.l.b16 %v894
  %v1009 = vunpack.c.l.b16 %v895
  %v1010 = vunpack.c.h.b16 %v895
  %v1011 = vunpack.c.l.b16 %v896
  %v1012 = vunpack.c.h.b16 %v896
  %v1013 = vunpack.c.l.b16 %v897
  %v1014 = vunpack.c.l.b16 %v898
  %v1015 = vunpack.c.h.b16 %v898
  %v1016 = vunpack.c.l.b16 %v899
  %v1017 = vunpack.c.h.b16 %v899
  %v1018 = vunpack.c.l.b16 %v900
  %v1019 = vunpack.c.l.b16 %v901
  %v1020 = vunpack.c.h.b16 %v901
  %v1021 = vunpack.c.l.b16 %v902
  %v1022 = vunpack.c.h.b16 %v902
  %v1023 = vunpack.c.l.b16 %v903
  %v1024 = vunpack.c.l.b16 %v904
  %v1025 = vunpack.c.h.b16 %v904
  %v1026 = vunpack.c.l.b16 %v905
  %v1027 = vunpack.c.h.b16 %v905
  %v1028 = vunpack.c.l.b16 %v906
  %v1029 = vunpack.c.l.b16 %v907
  %v1030 = vunpack.c.h.b16 %v907
  %v1031 = vunpack.c.l.b16 %v908
  %v1032 = vunpack.c.h.b16 %v908
  %v1033 = vunpack.c.l.b16 %v909
  %v1034 = vunpack.c.l.b16 %v910
  %v1035 = vunpack.c.h.b16 %v910
  %v1036 = vunpack.c.l.b16 %v911
  %v1037 = vunpack.c.h.b16 %v911
  %v1038 = vunpack.c.l.b16 %v912
  %v1039 = vunpack.c.l.b16 %v913
  %v1040 = vunpack.c.h.b16 %v913
  %v1041 = vunpack.c.l.b16 %v914
  %v1042 = vunpack.c.h.b16 %v914
  %v1043 = vunpack.c.l.b16 %v915
  %v1044 = vpack.c.b16 %v969, %v964
  %v1045 = vpack.c.b16 %v970, %v965
  %v1046 = vpack.c.b16 %v971, %v966
  %v1047 = vpack.c.b16 %v972, %v967
  %v1048 = vpack.c.b16 %v973, %v968
  %v1049 = vpack.c.b16 %v979, %v974
  %v1050 = vpack.c.b16 %v980, %v975
  %v1051 = vpack.c.b16 %v981, %v976
  %v1052 = vpack.c.b16 %v982, %v977
  %v1053 = vpack.c.b16 %v983, %v978
  %v1054 = vpack.c.b16 %v989, %v984
  %v1055 = vpack.c.b16 %v990, %v985
  %v1056 = vpack.c.b16 %v991, %v986
  %v1057 = vpack.c.b16 %v992, %v987
  %v1058 = vpack.c.b16 %v993, %v988
  %v1059 = vpack.c.b16 %v999, %v994
  %v1060 = vpack.c.b16 %v1000, %v995
  %v1061 = vpack.c.b16 %v1001, %v996
  %v1062 = vpack.c.b16 %v1002, %v997
  %v1063 = vpack.c.b16 %v1003, %v998
  %v1064 = vpack.c.b16 %v1009, %v1004
  %v1065 = vpack.c.b16 %v1010, %v1005
  %v1066 = vpack.c.b16 %v1011, %v1006
  %v1067 = vpack.c.b16 %v1012, %v1007
  %v1068 = vpack.c.b16 %v1013, %v1008
  %v1069 = vpack.c.b16 %v1019, %v1014
  %v1070 = vpack.c.b16 %v1020, %v1015
  %v1071 = vpack.c.b16 %v1021, %v1016
  %v1072 = vpack.c.b16 %v1022, %v1017
  %v1073 = vpack.c.b16 %v1023, %v1018
  %v1074 = vpack.c.b16 %v1029, %v1024
  %v1075 = vpack.c.b16 %v1030, %v1025
  %v1076 = vpack.c.b16 %v1031, %v1026
  %v1077 = vpack.c.b16 %v1032, %v1027
  %v1078 = vpack.c.b16 %v1033, %v1028
  %v1079 = vpack.c.b16 %v1039, %v1034
  %v1080 = vpack.c.b16 %v1040, %v1035
  %v1081 = vpack.c.b16 %v1041, %v1036
  %v1082 = vpack.c.b16 %v1042, %v1037
  %v1083 = vpack.c.b16 %v1043, %v1038
  %v1117 = vsel %vm551, %v1048, 0
  %v1120 = vsel %vm551, %v1053, 0
  %v1123 = vsel %vm551, %v1058, 0
  %v1126 = vsel %vm551, %v1063, 0
  %v1129 = vsel %vm551, %v1068, 0
  %v1132 = vsel %vm551, %v1073, 0
  %v1135 = vsel %vm551, %v1078, 0
  %v1138 = vsel %vm551, %v1083, 0
  %1140 = vmatprep.subr.bf16.mxu0 0
  %1141 = vmatpush1.bf16.msra.mxu0 %v479
  %1142 = vmatprep.subr.bf16.mxu0 0
  %1143 = vmatpush1.bf16.msra.mxu0 %v480
  %1144 = vmatprep.subr.bf16.mxu0 0
  %1145 = vmatpush1.bf16.msra.mxu0 %v481
  %1146 = vmatprep.subr.bf16.mxu0 0
  %1147 = vmatpush1.bf16.msra.mxu0 %v482
  %1148 = vmatprep.subr.bf16.mxu0 0
  %1149 = vmatpush1.bf16.msra.mxu0 %v483
  %1150 = vmatprep.subr.bf16.mxu0 0
  %1151 = vmatpush1.bf16.msra.mxu0 %v484
  %1152 = vmatprep.subr.bf16.mxu0 0
  %1153 = vmatpush1.bf16.msra.mxu0 %v485
  %1154 = vmatprep.subr.bf16.mxu0 0
  %1155 = vmatpush1.bf16.msra.mxu0 %v486
  %1156 = vmatprep.subr.bf16.mxu0 0
  %1157 = vmatpush1.bf16.msra.mxu0 %v487
  %1158 = vmatprep.subr.bf16.mxu0 0
  %1159 = vmatpush1.bf16.msra.mxu0 %v488
  %1160 = vmatprep.subr.bf16.mxu0 0
  %1161 = vmatpush1.bf16.msra.mxu0 %v489
  %1162 = vmatprep.subr.bf16.mxu0 0
  %1163 = vmatpush1.bf16.msra.mxu0 %v490
  %1164 = vmatprep.subr.bf16.mxu0 0
  %1165 = vmatpush1.bf16.msra.mxu0 %v491
  %1166 = vmatprep.subr.bf16.mxu0 0
  %1167 = vmatpush1.bf16.msra.mxu0 %v492
  %1168 = vmatprep.subr.bf16.mxu0 0
  %1169 = vmatpush1.bf16.msra.mxu0 %v493
  %1170 = vmatprep.subr.bf16.mxu0 0
  %1171 = vmatpush1.bf16.msra.mxu0 %v494
  %1172 = vmatprep.mubr.bf16.mxu0 %v1045
  %1173 = vmatmul.mubr.bf16.gmra.mrb[0].mxu0 %v1044
  %v1174 = vpop.f32.mrb[0].mxu0
  %v1175 = vadd.f32 0.0, %v1174
  %v1176 = vpop.f32.mrb[0].mxu0
  %v1177 = vpop.f32.mrb[0].mxu0
  %v1178 = vadd.f32 0.0, %v1177
  %v1179 = vpop.f32.mrb[0].mxu0
  %1180 = vmatprep.mubr.bf16.mxu0 %v1050
  %1181 = vmatmul.mubr.bf16.gmra.mrb[0].mxu0 %v1049
  %v1182 = vpop.f32.mrb[0].mxu0
  %v1183 = vadd.f32 0.0, %v1182
  %v1184 = vpop.f32.mrb[0].mxu0
  %v1185 = vpop.f32.mrb[0].mxu0
  %v1186 = vadd.f32 0.0, %v1185
  %v1187 = vpop.f32.mrb[0].mxu0
  %1188 = vmatprep.mubr.bf16.mxu0 %v1055
  %1189 = vmatmul.mubr.bf16.gmra.mrb[0].mxu0 %v1054
  %v1190 = vpop.f32.mrb[0].mxu0
  %v1191 = vadd.f32 0.0, %v1190
  %v1192 = vpop.f32.mrb[0].mxu0
  %v1193 = vpop.f32.mrb[0].mxu0
  %v1194 = vadd.f32 0.0, %v1193
  %v1195 = vpop.f32.mrb[0].mxu0
  %1196 = vmatprep.mubr.bf16.mxu0 %v1060
  %1197 = vmatmul.mubr.bf16.gmra.mrb[0].mxu0 %v1059
  %v1198 = vpop.f32.mrb[0].mxu0
  %v1199 = vadd.f32 0.0, %v1198
  %v1200 = vpop.f32.mrb[0].mxu0
  %v1201 = vpop.f32.mrb[0].mxu0
  %v1202 = vadd.f32 0.0, %v1201
  %v1203 = vpop.f32.mrb[0].mxu0
  %1204 = vmatprep.mubr.bf16.mxu0 %v1065
  %1205 = vmatmul.mubr.bf16.gmra.mrb[0].mxu0 %v1064
  %v1206 = vpop.f32.mrb[0].mxu0
  %v1207 = vadd.f32 0.0, %v1206
  %v1208 = vpop.f32.mrb[0].mxu0
  %v1209 = vpop.f32.mrb[0].mxu0
  %v1210 = vadd.f32 0.0, %v1209
  %v1211 = vpop.f32.mrb[0].mxu0
  %1212 = vmatprep.mubr.bf16.mxu0 %v1070
  %1213 = vmatmul.mubr.bf16.gmra.mrb[0].mxu0 %v1069
  %v1214 = vpop.f32.mrb[0].mxu0
  %v1215 = vadd.f32 0.0, %v1214
  %v1216 = vpop.f32.mrb[0].mxu0
  %v1217 = vpop.f32.mrb[0].mxu0
  %v1218 = vadd.f32 0.0, %v1217
  %v1219 = vpop.f32.mrb[0].mxu0
  %1220 = vmatprep.mubr.bf16.mxu0 %v1075
  %1221 = vmatmul.mubr.bf16.gmra.mrb[0].mxu0 %v1074
  %v1222 = vpop.f32.mrb[0].mxu0
  %v1223 = vadd.f32 0.0, %v1222
  %v1224 = vpop.f32.mrb[0].mxu0
  %v1225 = vpop.f32.mrb[0].mxu0
  %v1226 = vadd.f32 0.0, %v1225
  %v1227 = vpop.f32.mrb[0].mxu0
  %1228 = vmatprep.mubr.bf16.mxu0 %v1080
  %1229 = vmatmul.mubr.bf16.gmra.mrb[0].mxu0 %v1079
  %v1230 = vpop.f32.mrb[0].mxu0
  %v1231 = vadd.f32 0.0, %v1230
  %v1232 = vpop.f32.mrb[0].mxu0
  %v1233 = vpop.f32.mrb[0].mxu0
  %v1234 = vadd.f32 0.0, %v1233
  %v1235 = vpop.f32.mrb[0].mxu0
  %1236 = vdwg.mxu0
  %1237 = vmatprep.subr.bf16.mxu0 0
  %1238 = vmatpush1.bf16.msra.mxu0 %v495
  %1239 = vmatprep.subr.bf16.mxu0 0
  %1240 = vmatpush1.bf16.msra.mxu0 %v496
  %1241 = vmatprep.subr.bf16.mxu0 0
  %1242 = vmatpush1.bf16.msra.mxu0 %v497
  %1243 = vmatprep.subr.bf16.mxu0 0
  %1244 = vmatpush1.bf16.msra.mxu0 %v498
  %1245 = vmatprep.subr.bf16.mxu0 0
  %1246 = vmatpush1.bf16.msra.mxu0 %v499
  %1247 = vmatprep.subr.bf16.mxu0 0
  %1248 = vmatpush1.bf16.msra.mxu0 %v500
  %1249 = vmatprep.subr.bf16.mxu0 0
  %1250 = vmatpush1.bf16.msra.mxu0 %v501
  %1251 = vmatprep.subr.bf16.mxu0 0
  %1252 = vmatpush1.bf16.msra.mxu0 %v502
  %1253 = vmatprep.subr.bf16.mxu0 0
  %1254 = vmatpush1.bf16.msra.mxu0 %v503
  %1255 = vmatprep.subr.bf16.mxu0 0
  %1256 = vmatpush1.bf16.msra.mxu0 %v504
  %1257 = vmatprep.subr.bf16.mxu0 0
  %1258 = vmatpush1.bf16.msra.mxu0 %v505
  %1259 = vmatprep.subr.bf16.mxu0 0
  %1260 = vmatpush1.bf16.msra.mxu0 %v506
  %1261 = vmatprep.subr.bf16.mxu0 0
  %1262 = vmatpush1.bf16.msra.mxu0 %v507
  %1263 = vmatprep.subr.bf16.mxu0 0
  %1264 = vmatpush1.bf16.msra.mxu0 %v508
  %1265 = vmatprep.subr.bf16.mxu0 0
  %1266 = vmatpush1.bf16.msra.mxu0 %v509
  %1267 = vmatprep.subr.bf16.mxu0 0
  %1268 = vmatpush1.bf16.msra.mxu0 %v510
  %1269 = vmatprep.mubr.bf16.mxu0 %v1047
  %1270 = vmatmul.mubr.bf16.gmra.mrb[0].mxu0 %v1046
  %v1271 = vpop.f32.mrb[0].mxu0
  %v1272 = vadd.f32 %v1175, %v1271
  %v1273 = vpop.f32.mrb[0].mxu0
  %v1274 = vpop.f32.mrb[0].mxu0
  %v1275 = vadd.f32 %v1178, %v1274
  %v1276 = vpop.f32.mrb[0].mxu0
  %1277 = vmatprep.mubr.bf16.mxu0 %v1052
  %1278 = vmatmul.mubr.bf16.gmra.mrb[0].mxu0 %v1051
  %v1279 = vpop.f32.mrb[0].mxu0
  %v1280 = vadd.f32 %v1183, %v1279
  %v1281 = vpop.f32.mrb[0].mxu0
  %v1282 = vpop.f32.mrb[0].mxu0
  %v1283 = vadd.f32 %v1186, %v1282
  %v1284 = vpop.f32.mrb[0].mxu0
  %1285 = vmatprep.mubr.bf16.mxu0 %v1057
  %1286 = vmatmul.mubr.bf16.gmra.mrb[0].mxu0 %v1056
  %v1287 = vpop.f32.mrb[0].mxu0
  %v1288 = vadd.f32 %v1191, %v1287
  %v1289 = vpop.f32.mrb[0].mxu0
  %v1290 = vpop.f32.mrb[0].mxu0
  %v1291 = vadd.f32 %v1194, %v1290
  %v1292 = vpop.f32.mrb[0].mxu0
  %1293 = vmatprep.mubr.bf16.mxu0 %v1062
  %1294 = vmatmul.mubr.bf16.gmra.mrb[0].mxu0 %v1061
  %v1295 = vpop.f32.mrb[0].mxu0
  %v1296 = vadd.f32 %v1199, %v1295
  %v1297 = vpop.f32.mrb[0].mxu0
  %v1298 = vpop.f32.mrb[0].mxu0
  %v1299 = vadd.f32 %v1202, %v1298
  %v1300 = vpop.f32.mrb[0].mxu0
  %1301 = vmatprep.mubr.bf16.mxu0 %v1067
  %1302 = vmatmul.mubr.bf16.gmra.mrb[0].mxu0 %v1066
  %v1303 = vpop.f32.mrb[0].mxu0
  %v1304 = vadd.f32 %v1207, %v1303
  %v1305 = vpop.f32.mrb[0].mxu0
  %v1306 = vpop.f32.mrb[0].mxu0
  %v1307 = vadd.f32 %v1210, %v1306
  %v1308 = vpop.f32.mrb[0].mxu0
  %1309 = vmatprep.mubr.bf16.mxu0 %v1072
  %1310 = vmatmul.mubr.bf16.gmra.mrb[0].mxu0 %v1071
  %v1311 = vpop.f32.mrb[0].mxu0
  %v1312 = vadd.f32 %v1215, %v1311
  %v1313 = vpop.f32.mrb[0].mxu0
  %v1314 = vpop.f32.mrb[0].mxu0
  %v1315 = vadd.f32 %v1218, %v1314
  %v1316 = vpop.f32.mrb[0].mxu0
  %1317 = vmatprep.mubr.bf16.mxu0 %v1077
  %1318 = vmatmul.mubr.bf16.gmra.mrb[0].mxu0 %v1076
  %v1319 = vpop.f32.mrb[0].mxu0
  %v1320 = vadd.f32 %v1223, %v1319
  %v1321 = vpop.f32.mrb[0].mxu0
  %v1322 = vpop.f32.mrb[0].mxu0
  %v1323 = vadd.f32 %v1226, %v1322
  %v1324 = vpop.f32.mrb[0].mxu0
  %1325 = vmatprep.mubr.bf16.mxu0 %v1082
  %1326 = vmatmul.mubr.bf16.gmra.mrb[0].mxu0 %v1081
  %v1327 = vpop.f32.mrb[0].mxu0
  %v1328 = vadd.f32 %v1231, %v1327
  %v1329 = vpop.f32.mrb[0].mxu0
  %v1330 = vpop.f32.mrb[0].mxu0
  %v1331 = vadd.f32 %v1234, %v1330
  %v1332 = vpop.f32.mrb[0].mxu0
  %1333 = vdwg.mxu0
  %1334 = vmatprep.subr.bf16.mxu0 0
  %1335 = vmatpush1.bf16.msra.mxu0 %v511
  %1336 = vmatprep.subr.bf16.mxu0 0
  %1337 = vmatpush1.bf16.msra.mxu0 %v512
  %1338 = vmatprep.subr.bf16.mxu0 0
  %1339 = vmatpush1.bf16.msra.mxu0 %v513
  %1340 = vmatprep.subr.bf16.mxu0 0
  %1341 = vmatpush1.bf16.msra.mxu0 %v514
  %1342 = vmatprep.subr.bf16.mxu0 0
  %1343 = vmatpush1.bf16.msra.mxu0 0
  %1344 = vmatprep.subr.bf16.mxu0 0
  %1345 = vmatpush1.bf16.msra.mxu0 0
  %1346 = vmatprep.subr.bf16.mxu0 0
  %1347 = vmatpush1.bf16.msra.mxu0 0
  %1348 = vmatprep.subr.bf16.mxu0 0
  %1349 = vmatpush1.bf16.msra.mxu0 0
  %1350 = vmatprep.subr.bf16.mxu0 0
  %1351 = vmatpush1.bf16.msra.mxu0 0
  %1352 = vmatprep.subr.bf16.mxu0 0
  %1353 = vmatpush1.bf16.msra.mxu0 0
  %1354 = vmatprep.subr.bf16.mxu0 0
  %1355 = vmatpush1.bf16.msra.mxu0 0
  %1356 = vmatprep.subr.bf16.mxu0 0
  %1357 = vmatpush1.bf16.msra.mxu0 0
  %1358 = vmatprep.subr.bf16.mxu0 0
  %1359 = vmatpush1.bf16.msra.mxu0 0
  %1360 = vmatprep.subr.bf16.mxu0 0
  %1361 = vmatpush1.bf16.msra.mxu0 0
  %1362 = vmatprep.subr.bf16.mxu0 0
  %1363 = vmatpush1.bf16.msra.mxu0 0
  %1364 = vmatprep.subr.bf16.mxu0 0
  %1365 = vmatpush1.bf16.msra.mxu0 0
  %1366 = vmatprep.mubr.bf16.mxu0 0
  %1367 = vmatmul.mubr.bf16.gmra.mrb[0].mxu0 %v1117
  %v1368 = vpop.f32.mrb[0].mxu0
  %v1369 = vadd.f32 %v1272, %v1368
  %v1370 = vpop.f32.mrb[0].mxu0
  %v1371 = vpop.f32.mrb[0].mxu0
  %v1372 = vadd.f32 %v1275, %v1371
  %v1373 = vpop.f32.mrb[0].mxu0
  %1374 = vmatprep.mubr.bf16.mxu0 0
  %1375 = vmatmul.mubr.bf16.gmra.mrb[0].mxu0 %v1120
  %v1376 = vpop.f32.mrb[0].mxu0
  %v1377 = vadd.f32 %v1280, %v1376
  %v1378 = vpop.f32.mrb[0].mxu0
  %v1379 = vpop.f32.mrb[0].mxu0
  %v1380 = vadd.f32 %v1283, %v1379
  %v1381 = vpop.f32.mrb[0].mxu0
  %1382 = vmatprep.mubr.bf16.mxu0 0
  %1383 = vmatmul.mubr.bf16.gmra.mrb[0].mxu0 %v1123
  %v1384 = vpop.f32.mrb[0].mxu0
  %v1385 = vadd.f32 %v1288, %v1384
  %v1386 = vpop.f32.mrb[0].mxu0
  %v1387 = vpop.f32.mrb[0].mxu0
  %v1388 = vadd.f32 %v1291, %v1387
  %v1389 = vpop.f32.mrb[0].mxu0
  %1390 = vmatprep.mubr.bf16.mxu0 0
  %1391 = vmatmul.mubr.bf16.gmra.mrb[0].mxu0 %v1126
  %v1392 = vpop.f32.mrb[0].mxu0
  %v1393 = vadd.f32 %v1296, %v1392
  %v1394 = vpop.f32.mrb[0].mxu0
  %v1395 = vpop.f32.mrb[0].mxu0
  %v1396 = vadd.f32 %v1299, %v1395
  %v1397 = vpop.f32.mrb[0].mxu0
  %1398 = vmatprep.mubr.bf16.mxu0 0
  %1399 = vmatmul.mubr.bf16.gmra.mrb[0].mxu0 %v1129
  %v1400 = vpop.f32.mrb[0].mxu0
  %v1401 = vadd.f32 %v1304, %v1400
  %v1402 = vpop.f32.mrb[0].mxu0
  %v1403 = vpop.f32.mrb[0].mxu0
  %v1404 = vadd.f32 %v1307, %v1403
  %v1405 = vpop.f32.mrb[0].mxu0
  %1406 = vmatprep.mubr.bf16.mxu0 0
  %1407 = vmatmul.mubr.bf16.gmra.mrb[0].mxu0 %v1132
  %v1408 = vpop.f32.mrb[0].mxu0
  %v1409 = vadd.f32 %v1312, %v1408
  %v1410 = vpop.f32.mrb[0].mxu0
  %v1411 = vpop.f32.mrb[0].mxu0
  %v1412 = vadd.f32 %v1315, %v1411
  %v1413 = vpop.f32.mrb[0].mxu0
  %1414 = vmatprep.mubr.bf16.mxu0 0
  %1415 = vmatmul.mubr.bf16.gmra.mrb[0].mxu0 %v1135
  %v1416 = vpop.f32.mrb[0].mxu0
  %v1417 = vadd.f32 %v1320, %v1416
  %v1418 = vpop.f32.mrb[0].mxu0
  %v1419 = vpop.f32.mrb[0].mxu0
  %v1420 = vadd.f32 %v1323, %v1419
  %v1421 = vpop.f32.mrb[0].mxu0
  %1422 = vmatprep.mubr.bf16.mxu0 0
  %1423 = vmatmul.mubr.bf16.gmra.mrb[0].mxu0 %v1138
  %v1424 = vpop.f32.mrb[0].mxu0
  %v1425 = vadd.f32 %v1328, %v1424
  %v1426 = vpop.f32.mrb[0].mxu0
  %v1427 = vpop.f32.mrb[0].mxu0
  %v1428 = vadd.f32 %v1331, %v1427
  %v1429 = vpop.f32.mrb[0].mxu0
  %1430 = vdwg.mxu0
  %v1431 = vmax.f32 %v805, %v1369
  %v1432 = vmax.f32 %v808, %v1372
  %v1433 = vmax.f32 %v813, %v1377
  %v1434 = vmax.f32 %v816, %v1380
  %v1435 = vmax.f32 %v821, %v1385
  %v1436 = vmax.f32 %v824, %v1388
  %v1437 = vmax.f32 %v829, %v1393
  %v1438 = vmax.f32 %v832, %v1396
  %v1439 = vmax.f32 %v837, %v1401
  %v1440 = vmax.f32 %v840, %v1404
  %v1441 = vmax.f32 %v845, %v1409
  %v1442 = vmax.f32 %v848, %v1412
  %v1443 = vmax.f32 %v853, %v1417
  %v1444 = vmax.f32 %v856, %v1420
  %v1445 = vmax.f32 %v861, %v1425
  %v1446 = vmax.f32 %v864, %v1428
  %s1447 = scalar_lea.vmem %s0, 640
  %v1448 = vld [vmem:[%s1447] sm:$0xff]
  %v1449 = vld [vmem:[%s1447 + $0x8] sm:$0xff]
  %v1450 = vld [vmem:[%s1447 + $0x10] sm:$0xf]
  %v1451 = vld [vmem:[%s1447 + $0x14] sm:$0xff]
  %v1452 = vld [vmem:[%s1447 + $0x1c] sm:$0xff]
  %v1453 = vld [vmem:[%s1447 + $0x24] sm:$0xf]
  %v1454 = vld [vmem:[%s1447 + $0x28] sm:$0xff]
  %v1455 = vld [vmem:[%s1447 + $0x30] sm:$0xff]
  %v1456 = vld [vmem:[%s1447 + $0x38] sm:$0xf]
  %v1457 = vld [vmem:[%s1447 + $0x3c] sm:$0xff]
  %v1458 = vld [vmem:[%s1447 + $0x44] sm:$0xff]
  %v1459 = vld [vmem:[%s1447 + $0x4c] sm:$0xf]
  %v1460 = vld [vmem:[%s1447 + $0x50] sm:$0xff]
  %v1461 = vld [vmem:[%s1447 + $0x58] sm:$0xff]
  %v1462 = vld [vmem:[%s1447 + $0x60] sm:$0xf]
  %v1463 = vld [vmem:[%s1447 + $0x64] sm:$0xff]
  %v1464 = vld [vmem:[%s1447 + $0x6c] sm:$0xff]
  %v1465 = vld [vmem:[%s1447 + $0x74] sm:$0xf]
  %v1466 = vld [vmem:[%s1447 + $0x78] sm:$0xff]
  %v1467 = vld [vmem:[%s1447 + $0x80] sm:$0xff]
  %v1468 = vld [vmem:[%s1447 + $0x88] sm:$0xf]
  %v1469 = vld [vmem:[%s1447 + $0x8c] sm:$0xff]
  %v1470 = vld [vmem:[%s1447 + $0x94] sm:$0xff]
  %v1471 = vld [vmem:[%s1447 + $0x9c] sm:$0xf]
  %v1472 = vld [vmem:[%s1447 + $0xa0] sm:$0xff]
  %v1473 = vld [vmem:[%s1447 + $0xa8] sm:$0xff]
  %v1474 = vld [vmem:[%s1447 + $0xb0] sm:$0xf]
  %v1475 = vld [vmem:[%s1447 + $0xb4] sm:$0xff]
  %v1476 = vld [vmem:[%s1447 + $0xbc] sm:$0xff]
  %v1477 = vld [vmem:[%s1447 + $0xc4] sm:$0xf]
  %v1478 = vld [vmem:[%s1447 + $0xc8] sm:$0xff]
  %v1479 = vld [vmem:[%s1447 + $0xd0] sm:$0xff]
  %v1480 = vld [vmem:[%s1447 + $0xd8] sm:$0xf]
  %v1481 = vld [vmem:[%s1447 + $0xdc] sm:$0xff]
  %v1482 = vld [vmem:[%s1447 + $0xe4] sm:$0xff]
  %v1483 = vld [vmem:[%s1447 + $0xec] sm:$0xf]
  %v1484 = vld [vmem:[%s1447 + $0xf0] sm:$0xff]
  %v1485 = vld [vmem:[%s1447 + $0xf8] sm:$0xff]
  %v1486 = vld [vmem:[%s1447 + $0x100] sm:$0xf]
  %v1487 = vld [vmem:[%s1447 + $0x104] sm:$0xff]
  %v1488 = vld [vmem:[%s1447 + $0x10c] sm:$0xff]
  %v1489 = vld [vmem:[%s1447 + $0x114] sm:$0xf]
  %v1490 = vld [vmem:[%s1447 + $0x118] sm:$0xff]
  %v1491 = vld [vmem:[%s1447 + $0x120] sm:$0xff]
  %v1492 = vld [vmem:[%s1447 + $0x128] sm:$0xf]
  %v1493 = vld [vmem:[%s1447 + $0x12c] sm:$0xff]
  %v1494 = vld [vmem:[%s1447 + $0x134] sm:$0xff]
  %v1495 = vld [vmem:[%s1447 + $0x13c] sm:$0xf]
  %v1544 = vunpack.c.l.b16 %v1448
  %v1545 = vunpack.c.h.b16 %v1448
  %v1546 = vunpack.c.l.b16 %v1449
  %v1547 = vunpack.c.h.b16 %v1449
  %v1548 = vunpack.c.l.b16 %v1450
  %v1549 = vunpack.c.l.b16 %v1451
  %v1550 = vunpack.c.h.b16 %v1451
  %v1551 = vunpack.c.l.b16 %v1452
  %v1552 = vunpack.c.h.b16 %v1452
  %v1553 = vunpack.c.l.b16 %v1453
  %v1554 = vunpack.c.l.b16 %v1454
  %v1555 = vunpack.c.h.b16 %v1454
  %v1556 = vunpack.c.l.b16 %v1455
  %v1557 = vunpack.c.h.b16 %v1455
  %v1558 = vunpack.c.l.b16 %v1456
  %v1559 = vunpack.c.l.b16 %v1457
  %v1560 = vunpack.c.h.b16 %v1457
  %v1561 = vunpack.c.l.b16 %v1458
  %v1562 = vunpack.c.h.b16 %v1458
  %v1563 = vunpack.c.l.b16 %v1459
  %v1564 = vunpack.c.l.b16 %v1460
  %v1565 = vunpack.c.h.b16 %v1460
  %v1566 = vunpack.c.l.b16 %v1461
  %v1567 = vunpack.c.h.b16 %v1461
  %v1568 = vunpack.c.l.b16 %v1462
  %v1569 = vunpack.c.l.b16 %v1463
  %v1570 = vunpack.c.h.b16 %v1463
  %v1571 = vunpack.c.l.b16 %v1464
  %v1572 = vunpack.c.h.b16 %v1464
  %v1573 = vunpack.c.l.b16 %v1465
  %v1574 = vunpack.c.l.b16 %v1466
  %v1575 = vunpack.c.h.b16 %v1466
  %v1576 = vunpack.c.l.b16 %v1467
  %v1577 = vunpack.c.h.b16 %v1467
  %v1578 = vunpack.c.l.b16 %v1468
  %v1579 = vunpack.c.l.b16 %v1469
  %v1580 = vunpack.c.h.b16 %v1469
  %v1581 = vunpack.c.l.b16 %v1470
  %v1582 = vunpack.c.h.b16 %v1470
  %v1583 = vunpack.c.l.b16 %v1471
  %v1584 = vunpack.c.l.b16 %v1472
  %v1585 = vunpack.c.h.b16 %v1472
  %v1586 = vunpack.c.l.b16 %v1473
  %v1587 = vunpack.c.h.b16 %v1473
  %v1588 = vunpack.c.l.b16 %v1474
  %v1589 = vunpack.c.l.b16 %v1475
  %v1590 = vunpack.c.h.b16 %v1475
  %v1591 = vunpack.c.l.b16 %v1476
  %v1592 = vunpack.c.h.b16 %v1476
  %v1593 = vunpack.c.l.b16 %v1477
  %v1594 = vunpack.c.l.b16 %v1478
  %v1595 = vunpack.c.h.b16 %v1478
  %v1596 = vunpack.c.l.b16 %v1479
  %v1597 = vunpack.c.h.b16 %v1479
  %v1598 = vunpack.c.l.b16 %v1480
  %v1599 = vunpack.c.l.b16 %v1481
  %v1600 = vunpack.c.h.b16 %v1481
  %v1601 = vunpack.c.l.b16 %v1482
  %v1602 = vunpack.c.h.b16 %v1482
  %v1603 = vunpack.c.l.b16 %v1483
  %v1604 = vunpack.c.l.b16 %v1484
  %v1605 = vunpack.c.h.b16 %v1484
  %v1606 = vunpack.c.l.b16 %v1485
  %v1607 = vunpack.c.h.b16 %v1485
  %v1608 = vunpack.c.l.b16 %v1486
  %v1609 = vunpack.c.l.b16 %v1487
  %v1610 = vunpack.c.h.b16 %v1487
  %v1611 = vunpack.c.l.b16 %v1488
  %v1612 = vunpack.c.h.b16 %v1488
  %v1613 = vunpack.c.l.b16 %v1489
  %v1614 = vunpack.c.l.b16 %v1490
  %v1615 = vunpack.c.h.b16 %v1490
  %v1616 = vunpack.c.l.b16 %v1491
  %v1617 = vunpack.c.h.b16 %v1491
  %v1618 = vunpack.c.l.b16 %v1492
  %v1619 = vunpack.c.l.b16 %v1493
  %v1620 = vunpack.c.h.b16 %v1493
  %v1621 = vunpack.c.l.b16 %v1494
  %v1622 = vunpack.c.h.b16 %v1494
  %v1623 = vunpack.c.l.b16 %v1495
  %v1624 = vpack.c.b16 %v1549, %v1544
  %v1625 = vpack.c.b16 %v1550, %v1545
  %v1626 = vpack.c.b16 %v1551, %v1546
  %v1627 = vpack.c.b16 %v1552, %v1547
  %v1628 = vpack.c.b16 %v1553, %v1548
  %v1629 = vpack.c.b16 %v1559, %v1554
  %v1630 = vpack.c.b16 %v1560, %v1555
  %v1631 = vpack.c.b16 %v1561, %v1556
  %v1632 = vpack.c.b16 %v1562, %v1557
  %v1633 = vpack.c.b16 %v1563, %v1558
  %v1634 = vpack.c.b16 %v1569, %v1564
  %v1635 = vpack.c.b16 %v1570, %v1565
  %v1636 = vpack.c.b16 %v1571, %v1566
  %v1637 = vpack.c.b16 %v1572, %v1567
  %v1638 = vpack.c.b16 %v1573, %v1568
  %v1639 = vpack.c.b16 %v1579, %v1574
  %v1640 = vpack.c.b16 %v1580, %v1575
  %v1641 = vpack.c.b16 %v1581, %v1576
  %v1642 = vpack.c.b16 %v1582, %v1577
  %v1643 = vpack.c.b16 %v1583, %v1578
  %v1644 = vpack.c.b16 %v1589, %v1584
  %v1645 = vpack.c.b16 %v1590, %v1585
  %v1646 = vpack.c.b16 %v1591, %v1586
  %v1647 = vpack.c.b16 %v1592, %v1587
  %v1648 = vpack.c.b16 %v1593, %v1588
  %v1649 = vpack.c.b16 %v1599, %v1594
  %v1650 = vpack.c.b16 %v1600, %v1595
  %v1651 = vpack.c.b16 %v1601, %v1596
  %v1652 = vpack.c.b16 %v1602, %v1597
  %v1653 = vpack.c.b16 %v1603, %v1598
  %v1654 = vpack.c.b16 %v1609, %v1604
  %v1655 = vpack.c.b16 %v1610, %v1605
  %v1656 = vpack.c.b16 %v1611, %v1606
  %v1657 = vpack.c.b16 %v1612, %v1607
  %v1658 = vpack.c.b16 %v1613, %v1608
  %v1659 = vpack.c.b16 %v1619, %v1614
  %v1660 = vpack.c.b16 %v1620, %v1615
  %v1661 = vpack.c.b16 %v1621, %v1616
  %v1662 = vpack.c.b16 %v1622, %v1617
  %v1663 = vpack.c.b16 %v1623, %v1618
  %v1697 = vsel %vm551, %v1628, 0
  %v1700 = vsel %vm551, %v1633, 0
  %v1703 = vsel %vm551, %v1638, 0
  %v1706 = vsel %vm551, %v1643, 0
  %v1709 = vsel %vm551, %v1648, 0
  %v1712 = vsel %vm551, %v1653, 0
  %v1715 = vsel %vm551, %v1658, 0
  %v1718 = vsel %vm551, %v1663, 0
  %1720 = vmatprep.subr.bf16.mxu0 0
  %1721 = vmatpush1.bf16.msra.mxu0 %v479
  %1722 = vmatprep.subr.bf16.mxu0 0
  %1723 = vmatpush1.bf16.msra.mxu0 %v480
  %1724 = vmatprep.subr.bf16.mxu0 0
  %1725 = vmatpush1.bf16.msra.mxu0 %v481
  %1726 = vmatprep.subr.bf16.mxu0 0
  %1727 = vmatpush1.bf16.msra.mxu0 %v482
  %1728 = vmatprep.subr.bf16.mxu0 0
  %1729 = vmatpush1.bf16.msra.mxu0 %v483
  %1730 = vmatprep.subr.bf16.mxu0 0
  %1731 = vmatpush1.bf16.msra.mxu0 %v484
  %1732 = vmatprep.subr.bf16.mxu0 0
  %1733 = vmatpush1.bf16.msra.mxu0 %v485
  %1734 = vmatprep.subr.bf16.mxu0 0
  %1735 = vmatpush1.bf16.msra.mxu0 %v486
  %1736 = vmatprep.subr.bf16.mxu0 0
  %1737 = vmatpush1.bf16.msra.mxu0 %v487
  %1738 = vmatprep.subr.bf16.mxu0 0
  %1739 = vmatpush1.bf16.msra.mxu0 %v488
  %1740 = vmatprep.subr.bf16.mxu0 0
  %1741 = vmatpush1.bf16.msra.mxu0 %v489
  %1742 = vmatprep.subr.bf16.mxu0 0
  %1743 = vmatpush1.bf16.msra.mxu0 %v490
  %1744 = vmatprep.subr.bf16.mxu0 0
  %1745 = vmatpush1.bf16.msra.mxu0 %v491
  %1746 = vmatprep.subr.bf16.mxu0 0
  %1747 = vmatpush1.bf16.msra.mxu0 %v492
  %1748 = vmatprep.subr.bf16.mxu0 0
  %1749 = vmatpush1.bf16.msra.mxu0 %v493
  %1750 = vmatprep.subr.bf16.mxu0 0
  %1751 = vmatpush1.bf16.msra.mxu0 %v494
  %1752 = vmatprep.mubr.bf16.mxu0 %v1625
  %1753 = vmatmul.mubr.bf16.gmra.mrb[0].mxu0 %v1624
  %v1754 = vpop.f32.mrb[0].mxu0
  %v1755 = vadd.f32 0.0, %v1754
  %v1756 = vpop.f32.mrb[0].mxu0
  %v1757 = vpop.f32.mrb[0].mxu0
  %v1758 = vadd.f32 0.0, %v1757
  %v1759 = vpop.f32.mrb[0].mxu0
  %1760 = vmatprep.mubr.bf16.mxu0 %v1630
  %1761 = vmatmul.mubr.bf16.gmra.mrb[0].mxu0 %v1629
  %v1762 = vpop.f32.mrb[0].mxu0
  %v1763 = vadd.f32 0.0, %v1762
  %v1764 = vpop.f32.mrb[0].mxu0
  %v1765 = vpop.f32.mrb[0].mxu0
  %v1766 = vadd.f32 0.0, %v1765
  %v1767 = vpop.f32.mrb[0].mxu0
  %1768 = vmatprep.mubr.bf16.mxu0 %v1635
  %1769 = vmatmul.mubr.bf16.gmra.mrb[0].mxu0 %v1634
  %v1770 = vpop.f32.mrb[0].mxu0
  %v1771 = vadd.f32 0.0, %v1770
  %v1772 = vpop.f32.mrb[0].mxu0
  %v1773 = vpop.f32.mrb[0].mxu0
  %v1774 = vadd.f32 0.0, %v1773
  %v1775 = vpop.f32.mrb[0].mxu0
  %1776 = vmatprep.mubr.bf16.mxu0 %v1640
  %1777 = vmatmul.mubr.bf16.gmra.mrb[0].mxu0 %v1639
  %v1778 = vpop.f32.mrb[0].mxu0
  %v1779 = vadd.f32 0.0, %v1778
  %v1780 = vpop.f32.mrb[0].mxu0
  %v1781 = vpop.f32.mrb[0].mxu0
  %v1782 = vadd.f32 0.0, %v1781
  %v1783 = vpop.f32.mrb[0].mxu0
  %1784 = vmatprep.mubr.bf16.mxu0 %v1645
  %1785 = vmatmul.mubr.bf16.gmra.mrb[0].mxu0 %v1644
  %v1786 = vpop.f32.mrb[0].mxu0
  %v1787 = vadd.f32 0.0, %v1786
  %v1788 = vpop.f32.mrb[0].mxu0
  %v1789 = vpop.f32.mrb[0].mxu0
  %v1790 = vadd.f32 0.0, %v1789
  %v1791 = vpop.f32.mrb[0].mxu0
  %1792 = vmatprep.mubr.bf16.mxu0 %v1650
  %1793 = vmatmul.mubr.bf16.gmra.mrb[0].mxu0 %v1649
  %v1794 = vpop.f32.mrb[0].mxu0
  %v1795 = vadd.f32 0.0, %v1794
  %v1796 = vpop.f32.mrb[0].mxu0
  %v1797 = vpop.f32.mrb[0].mxu0
  %v1798 = vadd.f32 0.0, %v1797
  %v1799 = vpop.f32.mrb[0].mxu0
  %1800 = vmatprep.mubr.bf16.mxu0 %v1655
  %1801 = vmatmul.mubr.bf16.gmra.mrb[0].mxu0 %v1654
  %v1802 = vpop.f32.mrb[0].mxu0
  %v1803 = vadd.f32 0.0, %v1802
  %v1804 = vpop.f32.mrb[0].mxu0
  %v1805 = vpop.f32.mrb[0].mxu0
  %v1806 = vadd.f32 0.0, %v1805
  %v1807 = vpop.f32.mrb[0].mxu0
  %1808 = vmatprep.mubr.bf16.mxu0 %v1660
  %1809 = vmatmul.mubr.bf16.gmra.mrb[0].mxu0 %v1659
  %v1810 = vpop.f32.mrb[0].mxu0
  %v1811 = vadd.f32 0.0, %v1810
  %v1812 = vpop.f32.mrb[0].mxu0
  %v1813 = vpop.f32.mrb[0].mxu0
  %v1814 = vadd.f32 0.0, %v1813
  %v1815 = vpop.f32.mrb[0].mxu0
  %1816 = vdwg.mxu0
  %1817 = vmatprep.subr.bf16.mxu0 0
  %1818 = vmatpush1.bf16.msra.mxu0 %v495
  %1819 = vmatprep.subr.bf16.mxu0 0
  %1820 = vmatpush1.bf16.msra.mxu0 %v496
  %1821 = vmatprep.subr.bf16.mxu0 0
  %1822 = vmatpush1.bf16.msra.mxu0 %v497
  %1823 = vmatprep.subr.bf16.mxu0 0
  %1824 = vmatpush1.bf16.msra.mxu0 %v498
  %1825 = vmatprep.subr.bf16.mxu0 0
  %1826 = vmatpush1.bf16.msra.mxu0 %v499
  %1827 = vmatprep.subr.bf16.mxu0 0
  %1828 = vmatpush1.bf16.msra.mxu0 %v500
  %1829 = vmatprep.subr.bf16.mxu0 0
  %1830 = vmatpush1.bf16.msra.mxu0 %v501
  %1831 = vmatprep.subr.bf16.mxu0 0
  %1832 = vmatpush1.bf16.msra.mxu0 %v502
  %1833 = vmatprep.subr.bf16.mxu0 0
  %1834 = vmatpush1.bf16.msra.mxu0 %v503
  %1835 = vmatprep.subr.bf16.mxu0 0
  %1836 = vmatpush1.bf16.msra.mxu0 %v504
  %1837 = vmatprep.subr.bf16.mxu0 0
  %1838 = vmatpush1.bf16.msra.mxu0 %v505
  %1839 = vmatprep.subr.bf16.mxu0 0
  %1840 = vmatpush1.bf16.msra.mxu0 %v506
  %1841 = vmatprep.subr.bf16.mxu0 0
  %1842 = vmatpush1.bf16.msra.mxu0 %v507
  %1843 = vmatprep.subr.bf16.mxu0 0
  %1844 = vmatpush1.bf16.msra.mxu0 %v508
  %1845 = vmatprep.subr.bf16.mxu0 0
  %1846 = vmatpush1.bf16.msra.mxu0 %v509
  %1847 = vmatprep.subr.bf16.mxu0 0
  %1848 = vmatpush1.bf16.msra.mxu0 %v510
  %1849 = vmatprep.mubr.bf16.mxu0 %v1627
  %1850 = vmatmul.mubr.bf16.gmra.mrb[0].mxu0 %v1626
  %v1851 = vpop.f32.mrb[0].mxu0
  %v1852 = vadd.f32 %v1755, %v1851
  %v1853 = vpop.f32.mrb[0].mxu0
  %v1854 = vpop.f32.mrb[0].mxu0
  %v1855 = vadd.f32 %v1758, %v1854
  %v1856 = vpop.f32.mrb[0].mxu0
  %1857 = vmatprep.mubr.bf16.mxu0 %v1632
  %1858 = vmatmul.mubr.bf16.gmra.mrb[0].mxu0 %v1631
  %v1859 = vpop.f32.mrb[0].mxu0
  %v1860 = vadd.f32 %v1763, %v1859
  %v1861 = vpop.f32.mrb[0].mxu0
  %v1862 = vpop.f32.mrb[0].mxu0
  %v1863 = vadd.f32 %v1766, %v1862
  %v1864 = vpop.f32.mrb[0].mxu0
  %1865 = vmatprep.mubr.bf16.mxu0 %v1637
  %1866 = vmatmul.mubr.bf16.gmra.mrb[0].mxu0 %v1636
  %v1867 = vpop.f32.mrb[0].mxu0
  %v1868 = vadd.f32 %v1771, %v1867
  %v1869 = vpop.f32.mrb[0].mxu0
  %v1870 = vpop.f32.mrb[0].mxu0
  %v1871 = vadd.f32 %v1774, %v1870
  %v1872 = vpop.f32.mrb[0].mxu0
  %1873 = vmatprep.mubr.bf16.mxu0 %v1642
  %1874 = vmatmul.mubr.bf16.gmra.mrb[0].mxu0 %v1641
  %v1875 = vpop.f32.mrb[0].mxu0
  %v1876 = vadd.f32 %v1779, %v1875
  %v1877 = vpop.f32.mrb[0].mxu0
  %v1878 = vpop.f32.mrb[0].mxu0
  %v1879 = vadd.f32 %v1782, %v1878
  %v1880 = vpop.f32.mrb[0].mxu0
  %1881 = vmatprep.mubr.bf16.mxu0 %v1647
  %1882 = vmatmul.mubr.bf16.gmra.mrb[0].mxu0 %v1646
  %v1883 = vpop.f32.mrb[0].mxu0
  %v1884 = vadd.f32 %v1787, %v1883
  %v1885 = vpop.f32.mrb[0].mxu0
  %v1886 = vpop.f32.mrb[0].mxu0
  %v1887 = vadd.f32 %v1790, %v1886
  %v1888 = vpop.f32.mrb[0].mxu0
  %1889 = vmatprep.mubr.bf16.mxu0 %v1652
  %1890 = vmatmul.mubr.bf16.gmra.mrb[0].mxu0 %v1651
  %v1891 = vpop.f32.mrb[0].mxu0
  %v1892 = vadd.f32 %v1795, %v1891
  %v1893 = vpop.f32.mrb[0].mxu0
  %v1894 = vpop.f32.mrb[0].mxu0
  %v1895 = vadd.f32 %v1798, %v1894
  %v1896 = vpop.f32.mrb[0].mxu0
  %1897 = vmatprep.mubr.bf16.mxu0 %v1657
  %1898 = vmatmul.mubr.bf16.gmra.mrb[0].mxu0 %v1656
  %v1899 = vpop.f32.mrb[0].mxu0
  %v1900 = vadd.f32 %v1803, %v1899
  %v1901 = vpop.f32.mrb[0].mxu0
  %v1902 = vpop.f32.mrb[0].mxu0
  %v1903 = vadd.f32 %v1806, %v1902
  %v1904 = vpop.f32.mrb[0].mxu0
  %1905 = vmatprep.mubr.bf16.mxu0 %v1662
  %1906 = vmatmul.mubr.bf16.gmra.mrb[0].mxu0 %v1661
  %v1907 = vpop.f32.mrb[0].mxu0
  %v1908 = vadd.f32 %v1811, %v1907
  %v1909 = vpop.f32.mrb[0].mxu0
  %v1910 = vpop.f32.mrb[0].mxu0
  %v1911 = vadd.f32 %v1814, %v1910
  %v1912 = vpop.f32.mrb[0].mxu0
  %1913 = vdwg.mxu0
  %1914 = vmatprep.subr.bf16.mxu0 0
  %1915 = vmatpush1.bf16.msra.mxu0 %v511
  %1916 = vmatprep.subr.bf16.mxu0 0
  %1917 = vmatpush1.bf16.msra.mxu0 %v512
  %1918 = vmatprep.subr.bf16.mxu0 0
  %1919 = vmatpush1.bf16.msra.mxu0 %v513
  %1920 = vmatprep.subr.bf16.mxu0 0
  %1921 = vmatpush1.bf16.msra.mxu0 %v514
  %1922 = vmatprep.subr.bf16.mxu0 0
  %1923 = vmatpush1.bf16.msra.mxu0 0
  %1924 = vmatprep.subr.bf16.mxu0 0
  %1925 = vmatpush1.bf16.msra.mxu0 0
  %1926 = vmatprep.subr.bf16.mxu0 0
  %1927 = vmatpush1.bf16.msra.mxu0 0
  %1928 = vmatprep.subr.bf16.mxu0 0
  %1929 = vmatpush1.bf16.msra.mxu0 0
  %1930 = vmatprep.subr.bf16.mxu0 0
  %1931 = vmatpush1.bf16.msra.mxu0 0
  %1932 = vmatprep.subr.bf16.mxu0 0
  %1933 = vmatpush1.bf16.msra.mxu0 0
  %1934 = vmatprep.subr.bf16.mxu0 0
  %1935 = vmatpush1.bf16.msra.mxu0 0
  %1936 = vmatprep.subr.bf16.mxu0 0
  %1937 = vmatpush1.bf16.msra.mxu0 0
  %1938 = vmatprep.subr.bf16.mxu0 0
  %1939 = vmatpush1.bf16.msra.mxu0 0
  %1940 = vmatprep.subr.bf16.mxu0 0
  %1941 = vmatpush1.bf16.msra.mxu0 0
  %1942 = vmatprep.subr.bf16.mxu0 0
  %1943 = vmatpush1.bf16.msra.mxu0 0
  %1944 = vmatprep.subr.bf16.mxu0 0
  %1945 = vmatpush1.bf16.msra.mxu0 0
  %1946 = vmatprep.mubr.bf16.mxu0 0
  %1947 = vmatmul.mubr.bf16.gmra.mrb[0].mxu0 %v1697
  %v1948 = vpop.f32.mrb[0].mxu0
  %v1949 = vadd.f32 %v1852, %v1948
  %v1950 = vpop.f32.mrb[0].mxu0
  %v1951 = vpop.f32.mrb[0].mxu0
  %v1952 = vadd.f32 %v1855, %v1951
  %v1953 = vpop.f32.mrb[0].mxu0
  %1954 = vmatprep.mubr.bf16.mxu0 0
  %1955 = vmatmul.mubr.bf16.gmra.mrb[0].mxu0 %v1700
  %v1956 = vpop.f32.mrb[0].mxu0
  %v1957 = vadd.f32 %v1860, %v1956
  %v1958 = vpop.f32.mrb[0].mxu0
  %v1959 = vpop.f32.mrb[0].mxu0
  %v1960 = vadd.f32 %v1863, %v1959
  %v1961 = vpop.f32.mrb[0].mxu0
  %1962 = vmatprep.mubr.bf16.mxu0 0
  %1963 = vmatmul.mubr.bf16.gmra.mrb[0].mxu0 %v1703
  %v1964 = vpop.f32.mrb[0].mxu0
  %v1965 = vadd.f32 %v1868, %v1964
  %v1966 = vpop.f32.mrb[0].mxu0
  %v1967 = vpop.f32.mrb[0].mxu0
  %v1968 = vadd.f32 %v1871, %v1967
  %v1969 = vpop.f32.mrb[0].mxu0
  %1970 = vmatprep.mubr.bf16.mxu0 0
  %1971 = vmatmul.mubr.bf16.gmra.mrb[0].mxu0 %v1706
  %v1972 = vpop.f32.mrb[0].mxu0
  %v1973 = vadd.f32 %v1876, %v1972
  %v1974 = vpop.f32.mrb[0].mxu0
  %v1975 = vpop.f32.mrb[0].mxu0
  %v1976 = vadd.f32 %v1879, %v1975
  %v1977 = vpop.f32.mrb[0].mxu0
  %1978 = vmatprep.mubr.bf16.mxu0 0
  %1979 = vmatmul.mubr.bf16.gmra.mrb[0].mxu0 %v1709
  %v1980 = vpop.f32.mrb[0].mxu0
  %v1981 = vadd.f32 %v1884, %v1980
  %v1982 = vpop.f32.mrb[0].mxu0
  %v1983 = vpop.f32.mrb[0].mxu0
  %v1984 = vadd.f32 %v1887, %v1983
  %v1985 = vpop.f32.mrb[0].mxu0
  %1986 = vmatprep.mubr.bf16.mxu0 0
  %1987 = vmatmul.mubr.bf16.gmra.mrb[0].mxu0 %v1712
  %v1988 = vpop.f32.mrb[0].mxu0
  %v1989 = vadd.f32 %v1892, %v1988
  %v1990 = vpop.f32.mrb[0].mxu0
  %v1991 = vpop.f32.mrb[0].mxu0
  %v1992 = vadd.f32 %v1895, %v1991
  %v1993 = vpop.f32.mrb[0].mxu0
  %1994 = vmatprep.mubr.bf16.mxu0 0
  %1995 = vmatmul.mubr.bf16.gmra.mrb[0].mxu0 %v1715
  %v1996 = vpop.f32.mrb[0].mxu0
  %v1997 = vadd.f32 %v1900, %v1996
  %v1998 = vpop.f32.mrb[0].mxu0
  %v1999 = vpop.f32.mrb[0].mxu0
  %v2000 = vadd.f32 %v1903, %v1999
  %v2001 = vpop.f32.mrb[0].mxu0
  %2002 = vmatprep.mubr.bf16.mxu0 0
  %2003 = vmatmul.mubr.bf16.gmra.mrb[0].mxu0 %v1718
  %v2004 = vpop.f32.mrb[0].mxu0
  %v2005 = vadd.f32 %v1908, %v2004
  %v2006 = vpop.f32.mrb[0].mxu0
  %v2007 = vpop.f32.mrb[0].mxu0
  %v2008 = vadd.f32 %v1911, %v2007
  %v2009 = vpop.f32.mrb[0].mxu0
  %2010 = vdwg.mxu0
  %v2011 = vmax.f32 %v1431, %v1949
  %v2012 = vmax.f32 %v1432, %v1952
  %v2013 = vmax.f32 %v1433, %v1957
  %v2014 = vmax.f32 %v1434, %v1960
  %v2015 = vmax.f32 %v1435, %v1965
  %v2016 = vmax.f32 %v1436, %v1968
  %v2017 = vmax.f32 %v1437, %v1973
  %v2018 = vmax.f32 %v1438, %v1976
  %v2019 = vmax.f32 %v1439, %v1981
  %v2020 = vmax.f32 %v1440, %v1984
  %v2021 = vmax.f32 %v1441, %v1989
  %v2022 = vmax.f32 %v1442, %v1992
  %v2023 = vmax.f32 %v1443, %v1997
  %v2024 = vmax.f32 %v1444, %v2000
  %v2025 = vmax.f32 %v1445, %v2005
  %v2026 = vmax.f32 %v1446, %v2008
  %s2027 = scalar_lea.vmem %s0, 960
  %v2028 = vld [vmem:[%s2027] sm:$0xff]
  %v2029 = vld [vmem:[%s2027 + $0x8] sm:$0xff]
  %v2030 = vld [vmem:[%s2027 + $0x10] sm:$0xf]
  %v2031 = vld [vmem:[%s2027 + $0x14] sm:$0xff]
  %v2032 = vld [vmem:[%s2027 + $0x1c] sm:$0xff]
  %v2033 = vld [vmem:[%s2027 + $0x24] sm:$0xf]
  %v2034 = vld [vmem:[%s2027 + $0x28] sm:$0xff]
  %v2035 = vld [vmem:[%s2027 + $0x30] sm:$0xff]
  %v2036 = vld [vmem:[%s2027 + $0x38] sm:$0xf]
  %v2037 = vld [vmem:[%s2027 + $0x3c] sm:$0xff]
  %v2038 = vld [vmem:[%s2027 + $0x44] sm:$0xff]
  %v2039 = vld [vmem:[%s2027 + $0x4c] sm:$0xf]
  %v2040 = vld [vmem:[%s2027 + $0x50] sm:$0xff]
  %v2041 = vld [vmem:[%s2027 + $0x58] sm:$0xff]
  %v2042 = vld [vmem:[%s2027 + $0x60] sm:$0xf]
  %v2043 = vld [vmem:[%s2027 + $0x64] sm:$0xff]
  %v2044 = vld [vmem:[%s2027 + $0x6c] sm:$0xff]
  %v2045 = vld [vmem:[%s2027 + $0x74] sm:$0xf]
  %v2046 = vld [vmem:[%s2027 + $0x78] sm:$0xff]
  %v2047 = vld [vmem:[%s2027 + $0x80] sm:$0xff]
  %v2048 = vld [vmem:[%s2027 + $0x88] sm:$0xf]
  %v2049 = vld [vmem:[%s2027 + $0x8c] sm:$0xff]
  %v2050 = vld [vmem:[%s2027 + $0x94] sm:$0xff]
  %v2051 = vld [vmem:[%s2027 + $0x9c] sm:$0xf]
  %v2052 = vld [vmem:[%s2027 + $0xa0] sm:$0xff]
  %v2053 = vld [vmem:[%s2027 + $0xa8] sm:$0xff]
  %v2054 = vld [vmem:[%s2027 + $0xb0] sm:$0xf]
  %v2055 = vld [vmem:[%s2027 + $0xb4] sm:$0xff]
  %v2056 = vld [vmem:[%s2027 + $0xbc] sm:$0xff]
  %v2057 = vld [vmem:[%s2027 + $0xc4] sm:$0xf]
  %v2058 = vld [vmem:[%s2027 + $0xc8] sm:$0xff]
  %v2059 = vld [vmem:[%s2027 + $0xd0] sm:$0xff]
  %v2060 = vld [vmem:[%s2027 + $0xd8] sm:$0xf]
  %v2061 = vld [vmem:[%s2027 + $0xdc] sm:$0xff]
  %v2062 = vld [vmem:[%s2027 + $0xe4] sm:$0xff]
  %v2063 = vld [vmem:[%s2027 + $0xec] sm:$0xf]
  %v2064 = vld [vmem:[%s2027 + $0xf0] sm:$0xff]
  %v2065 = vld [vmem:[%s2027 + $0xf8] sm:$0xff]
  %v2066 = vld [vmem:[%s2027 + $0x100] sm:$0xf]
  %v2067 = vld [vmem:[%s2027 + $0x104] sm:$0xff]
  %v2068 = vld [vmem:[%s2027 + $0x10c] sm:$0xff]
  %v2069 = vld [vmem:[%s2027 + $0x114] sm:$0xf]
  %v2070 = vld [vmem:[%s2027 + $0x118] sm:$0xff]
  %v2071 = vld [vmem:[%s2027 + $0x120] sm:$0xff]
  %v2072 = vld [vmem:[%s2027 + $0x128] sm:$0xf]
  %v2073 = vld [vmem:[%s2027 + $0x12c] sm:$0xff]
  %v2074 = vld [vmem:[%s2027 + $0x134] sm:$0xff]
  %v2075 = vld [vmem:[%s2027 + $0x13c] sm:$0xf]
  %v2124 = vunpack.c.l.b16 %v2028
  %v2125 = vunpack.c.h.b16 %v2028
  %v2126 = vunpack.c.l.b16 %v2029
  %v2127 = vunpack.c.h.b16 %v2029
  %v2128 = vunpack.c.l.b16 %v2030
  %v2129 = vunpack.c.l.b16 %v2031
  %v2130 = vunpack.c.h.b16 %v2031
  %v2131 = vunpack.c.l.b16 %v2032
  %v2132 = vunpack.c.h.b16 %v2032
  %v2133 = vunpack.c.l.b16 %v2033
  %v2134 = vunpack.c.l.b16 %v2034
  %v2135 = vunpack.c.h.b16 %v2034
  %v2136 = vunpack.c.l.b16 %v2035
  %v2137 = vunpack.c.h.b16 %v2035
  %v2138 = vunpack.c.l.b16 %v2036
  %v2139 = vunpack.c.l.b16 %v2037
  %v2140 = vunpack.c.h.b16 %v2037
  %v2141 = vunpack.c.l.b16 %v2038
  %v2142 = vunpack.c.h.b16 %v2038
  %v2143 = vunpack.c.l.b16 %v2039
  %v2144 = vunpack.c.l.b16 %v2040
  %v2145 = vunpack.c.h.b16 %v2040
  %v2146 = vunpack.c.l.b16 %v2041
  %v2147 = vunpack.c.h.b16 %v2041
  %v2148 = vunpack.c.l.b16 %v2042
  %v2149 = vunpack.c.l.b16 %v2043
  %v2150 = vunpack.c.h.b16 %v2043
  %v2151 = vunpack.c.l.b16 %v2044
  %v2152 = vunpack.c.h.b16 %v2044
  %v2153 = vunpack.c.l.b16 %v2045
  %v2154 = vunpack.c.l.b16 %v2046
  %v2155 = vunpack.c.h.b16 %v2046
  %v2156 = vunpack.c.l.b16 %v2047
  %v2157 = vunpack.c.h.b16 %v2047
  %v2158 = vunpack.c.l.b16 %v2048
  %v2159 = vunpack.c.l.b16 %v2049
  %v2160 = vunpack.c.h.b16 %v2049
  %v2161 = vunpack.c.l.b16 %v2050
  %v2162 = vunpack.c.h.b16 %v2050
  %v2163 = vunpack.c.l.b16 %v2051
  %v2164 = vunpack.c.l.b16 %v2052
  %v2165 = vunpack.c.h.b16 %v2052
  %v2166 = vunpack.c.l.b16 %v2053
  %v2167 = vunpack.c.h.b16 %v2053
  %v2168 = vunpack.c.l.b16 %v2054
  %v2169 = vunpack.c.l.b16 %v2055
  %v2170 = vunpack.c.h.b16 %v2055
  %v2171 = vunpack.c.l.b16 %v2056
  %v2172 = vunpack.c.h.b16 %v2056
  %v2173 = vunpack.c.l.b16 %v2057
  %v2174 = vunpack.c.l.b16 %v2058
  %v2175 = vunpack.c.h.b16 %v2058
  %v2176 = vunpack.c.l.b16 %v2059
  %v2177 = vunpack.c.h.b16 %v2059
  %v2178 = vunpack.c.l.b16 %v2060
  %v2179 = vunpack.c.l.b16 %v2061
  %v2180 = vunpack.c.h.b16 %v2061
  %v2181 = vunpack.c.l.b16 %v2062
  %v2182 = vunpack.c.h.b16 %v2062
  %v2183 = vunpack.c.l.b16 %v2063
  %v2184 = vunpack.c.l.b16 %v2064
  %v2185 = vunpack.c.h.b16 %v2064
  %v2186 = vunpack.c.l.b16 %v2065
  %v2187 = vunpack.c.h.b16 %v2065
  %v2188 = vunpack.c.l.b16 %v2066
  %v2189 = vunpack.c.l.b16 %v2067
  %v2190 = vunpack.c.h.b16 %v2067
  %v2191 = vunpack.c.l.b16 %v2068
  %v2192 = vunpack.c.h.b16 %v2068
  %v2193 = vunpack.c.l.b16 %v2069
  %v2194 = vunpack.c.l.b16 %v2070
  %v2195 = vunpack.c.h.b16 %v2070
  %v2196 = vunpack.c.l.b16 %v2071
  %v2197 = vunpack.c.h.b16 %v2071
  %v2198 = vunpack.c.l.b16 %v2072
  %v2199 = vunpack.c.l.b16 %v2073
  %v2200 = vunpack.c.h.b16 %v2073
  %v2201 = vunpack.c.l.b16 %v2074
  %v2202 = vunpack.c.h.b16 %v2074
  %v2203 = vunpack.c.l.b16 %v2075
  %v2204 = vpack.c.b16 %v2129, %v2124
  %v2205 = vpack.c.b16 %v2130, %v2125
  %v2206 = vpack.c.b16 %v2131, %v2126
  %v2207 = vpack.c.b16 %v2132, %v2127
  %v2208 = vpack.c.b16 %v2133, %v2128
  %v2209 = vpack.c.b16 %v2139, %v2134
  %v2210 = vpack.c.b16 %v2140, %v2135
  %v2211 = vpack.c.b16 %v2141, %v2136
  %v2212 = vpack.c.b16 %v2142, %v2137
  %v2213 = vpack.c.b16 %v2143, %v2138
  %v2214 = vpack.c.b16 %v2149, %v2144
  %v2215 = vpack.c.b16 %v2150, %v2145
  %v2216 = vpack.c.b16 %v2151, %v2146
  %v2217 = vpack.c.b16 %v2152, %v2147
  %v2218 = vpack.c.b16 %v2153, %v2148
  %v2219 = vpack.c.b16 %v2159, %v2154
  %v2220 = vpack.c.b16 %v2160, %v2155
  %v2221 = vpack.c.b16 %v2161, %v2156
  %v2222 = vpack.c.b16 %v2162, %v2157
  %v2223 = vpack.c.b16 %v2163, %v2158
  %v2224 = vpack.c.b16 %v2169, %v2164
  %v2225 = vpack.c.b16 %v2170, %v2165
  %v2226 = vpack.c.b16 %v2171, %v2166
  %v2227 = vpack.c.b16 %v2172, %v2167
  %v2228 = vpack.c.b16 %v2173, %v2168
  %v2229 = vpack.c.b16 %v2179, %v2174
  %v2230 = vpack.c.b16 %v2180, %v2175
  %v2231 = vpack.c.b16 %v2181, %v2176
  %v2232 = vpack.c.b16 %v2182, %v2177
  %v2233 = vpack.c.b16 %v2183, %v2178
  %v2234 = vpack.c.b16 %v2189, %v2184
  %v2235 = vpack.c.b16 %v2190, %v2185
  %v2236 = vpack.c.b16 %v2191, %v2186
  %v2237 = vpack.c.b16 %v2192, %v2187
  %v2238 = vpack.c.b16 %v2193, %v2188
  %v2239 = vpack.c.b16 %v2199, %v2194
  %v2240 = vpack.c.b16 %v2200, %v2195
  %v2241 = vpack.c.b16 %v2201, %v2196
  %v2242 = vpack.c.b16 %v2202, %v2197
  %v2243 = vpack.c.b16 %v2203, %v2198
  %v2277 = vsel %vm551, %v2208, 0
  %v2280 = vsel %vm551, %v2213, 0
  %v2283 = vsel %vm551, %v2218, 0
  %v2286 = vsel %vm551, %v2223, 0
  %v2289 = vsel %vm551, %v2228, 0
  %v2292 = vsel %vm551, %v2233, 0
  %v2295 = vsel %vm551, %v2238, 0
  %v2298 = vsel %vm551, %v2243, 0
  %2300 = vmatprep.subr.bf16.mxu0 0
  %2301 = vmatpush1.bf16.msra.mxu0 %v479
  %2302 = vmatprep.subr.bf16.mxu0 0
  %2303 = vmatpush1.bf16.msra.mxu0 %v480
  %2304 = vmatprep.subr.bf16.mxu0 0
  %2305 = vmatpush1.bf16.msra.mxu0 %v481
  %2306 = vmatprep.subr.bf16.mxu0 0
  %2307 = vmatpush1.bf16.msra.mxu0 %v482
  %2308 = vmatprep.subr.bf16.mxu0 0
  %2309 = vmatpush1.bf16.msra.mxu0 %v483
  %2310 = vmatprep.subr.bf16.mxu0 0
  %2311 = vmatpush1.bf16.msra.mxu0 %v484
  %2312 = vmatprep.subr.bf16.mxu0 0
  %2313 = vmatpush1.bf16.msra.mxu0 %v485
  %2314 = vmatprep.subr.bf16.mxu0 0
  %2315 = vmatpush1.bf16.msra.mxu0 %v486
  %2316 = vmatprep.subr.bf16.mxu0 0
  %2317 = vmatpush1.bf16.msra.mxu0 %v487
  %2318 = vmatprep.subr.bf16.mxu0 0
  %2319 = vmatpush1.bf16.msra.mxu0 %v488
  %2320 = vmatprep.subr.bf16.mxu0 0
  %2321 = vmatpush1.bf16.msra.mxu0 %v489
  %2322 = vmatprep.subr.bf16.mxu0 0
  %2323 = vmatpush1.bf16.msra.mxu0 %v490
  %2324 = vmatprep.subr.bf16.mxu0 0
  %2325 = vmatpush1.bf16.msra.mxu0 %v491
  %2326 = vmatprep.subr.bf16.mxu0 0
  %2327 = vmatpush1.bf16.msra.mxu0 %v492
  %2328 = vmatprep.subr.bf16.mxu0 0
  %2329 = vmatpush1.bf16.msra.mxu0 %v493
  %2330 = vmatprep.subr.bf16.mxu0 0
  %2331 = vmatpush1.bf16.msra.mxu0 %v494
  %2332 = vmatprep.mubr.bf16.mxu0 %v2205
  %2333 = vmatmul.mubr.bf16.gmra.mrb[0].mxu0 %v2204
  %v2334 = vpop.f32.mrb[0].mxu0
  %v2335 = vadd.f32 0.0, %v2334
  %v2336 = vpop.f32.mrb[0].mxu0
  %v2337 = vpop.f32.mrb[0].mxu0
  %v2338 = vadd.f32 0.0, %v2337
  %v2339 = vpop.f32.mrb[0].mxu0
  %2340 = vmatprep.mubr.bf16.mxu0 %v2210
  %2341 = vmatmul.mubr.bf16.gmra.mrb[0].mxu0 %v2209
  %v2342 = vpop.f32.mrb[0].mxu0
  %v2343 = vadd.f32 0.0, %v2342
  %v2344 = vpop.f32.mrb[0].mxu0
  %v2345 = vpop.f32.mrb[0].mxu0
  %v2346 = vadd.f32 0.0, %v2345
  %v2347 = vpop.f32.mrb[0].mxu0
  %2348 = vmatprep.mubr.bf16.mxu0 %v2215
  %2349 = vmatmul.mubr.bf16.gmra.mrb[0].mxu0 %v2214
  %v2350 = vpop.f32.mrb[0].mxu0
  %v2351 = vadd.f32 0.0, %v2350
  %v2352 = vpop.f32.mrb[0].mxu0
  %v2353 = vpop.f32.mrb[0].mxu0
  %v2354 = vadd.f32 0.0, %v2353
  %v2355 = vpop.f32.mrb[0].mxu0
  %2356 = vmatprep.mubr.bf16.mxu0 %v2220
  %2357 = vmatmul.mubr.bf16.gmra.mrb[0].mxu0 %v2219
  %v2358 = vpop.f32.mrb[0].mxu0
  %v2359 = vadd.f32 0.0, %v2358
  %v2360 = vpop.f32.mrb[0].mxu0
  %v2361 = vpop.f32.mrb[0].mxu0
  %v2362 = vadd.f32 0.0, %v2361
  %v2363 = vpop.f32.mrb[0].mxu0
  %2364 = vmatprep.mubr.bf16.mxu0 %v2225
  %2365 = vmatmul.mubr.bf16.gmra.mrb[0].mxu0 %v2224
  %v2366 = vpop.f32.mrb[0].mxu0
  %v2367 = vadd.f32 0.0, %v2366
  %v2368 = vpop.f32.mrb[0].mxu0
  %v2369 = vpop.f32.mrb[0].mxu0
  %v2370 = vadd.f32 0.0, %v2369
  %v2371 = vpop.f32.mrb[0].mxu0
  %2372 = vmatprep.mubr.bf16.mxu0 %v2230
  %2373 = vmatmul.mubr.bf16.gmra.mrb[0].mxu0 %v2229
  %v2374 = vpop.f32.mrb[0].mxu0
  %v2375 = vadd.f32 0.0, %v2374
  %v2376 = vpop.f32.mrb[0].mxu0
  %v2377 = vpop.f32.mrb[0].mxu0
  %v2378 = vadd.f32 0.0, %v2377
  %v2379 = vpop.f32.mrb[0].mxu0
  %2380 = vmatprep.mubr.bf16.mxu0 %v2235
  %2381 = vmatmul.mubr.bf16.gmra.mrb[0].mxu0 %v2234
  %v2382 = vpop.f32.mrb[0].mxu0
  %v2383 = vadd.f32 0.0, %v2382
  %v2384 = vpop.f32.mrb[0].mxu0
  %v2385 = vpop.f32.mrb[0].mxu0
  %v2386 = vadd.f32 0.0, %v2385
  %v2387 = vpop.f32.mrb[0].mxu0
  %2388 = vmatprep.mubr.bf16.mxu0 %v2240
  %2389 = vmatmul.mubr.bf16.gmra.mrb[0].mxu0 %v2239
  %v2390 = vpop.f32.mrb[0].mxu0
  %v2391 = vadd.f32 0.0, %v2390
  %v2392 = vpop.f32.mrb[0].mxu0
  %v2393 = vpop.f32.mrb[0].mxu0
  %v2394 = vadd.f32 0.0, %v2393
  %v2395 = vpop.f32.mrb[0].mxu0
  %2396 = vdwg.mxu0
  %2397 = vmatprep.subr.bf16.mxu0 0
  %2398 = vmatpush1.bf16.msra.mxu0 %v495
  %2399 = vmatprep.subr.bf16.mxu0 0
  %2400 = vmatpush1.bf16.msra.mxu0 %v496
  %2401 = vmatprep.subr.bf16.mxu0 0
  %2402 = vmatpush1.bf16.msra.mxu0 %v497
  %2403 = vmatprep.subr.bf16.mxu0 0
  %2404 = vmatpush1.bf16.msra.mxu0 %v498
  %2405 = vmatprep.subr.bf16.mxu0 0
  %2406 = vmatpush1.bf16.msra.mxu0 %v499
  %2407 = vmatprep.subr.bf16.mxu0 0
  %2408 = vmatpush1.bf16.msra.mxu0 %v500
  %2409 = vmatprep.subr.bf16.mxu0 0
  %2410 = vmatpush1.bf16.msra.mxu0 %v501
  %2411 = vmatprep.subr.bf16.mxu0 0
  %2412 = vmatpush1.bf16.msra.mxu0 %v502
  %2413 = vmatprep.subr.bf16.mxu0 0
  %2414 = vmatpush1.bf16.msra.mxu0 %v503
  %2415 = vmatprep.subr.bf16.mxu0 0
  %2416 = vmatpush1.bf16.msra.mxu0 %v504
  %2417 = vmatprep.subr.bf16.mxu0 0
  %2418 = vmatpush1.bf16.msra.mxu0 %v505
  %2419 = vmatprep.subr.bf16.mxu0 0
  %2420 = vmatpush1.bf16.msra.mxu0 %v506
  %2421 = vmatprep.subr.bf16.mxu0 0
  %2422 = vmatpush1.bf16.msra.mxu0 %v507
  %2423 = vmatprep.subr.bf16.mxu0 0
  %2424 = vmatpush1.bf16.msra.mxu0 %v508
  %2425 = vmatprep.subr.bf16.mxu0 0
  %2426 = vmatpush1.bf16.msra.mxu0 %v509
  %2427 = vmatprep.subr.bf16.mxu0 0
  %2428 = vmatpush1.bf16.msra.mxu0 %v510
  %2429 = vmatprep.mubr.bf16.mxu0 %v2207
  %2430 = vmatmul.mubr.bf16.gmra.mrb[0].mxu0 %v2206
  %v2431 = vpop.f32.mrb[0].mxu0
  %v2432 = vadd.f32 %v2335, %v2431
  %v2433 = vpop.f32.mrb[0].mxu0
  %v2434 = vpop.f32.mrb[0].mxu0
  %v2435 = vadd.f32 %v2338, %v2434
  %v2436 = vpop.f32.mrb[0].mxu0
  %2437 = vmatprep.mubr.bf16.mxu0 %v2212
  %2438 = vmatmul.mubr.bf16.gmra.mrb[0].mxu0 %v2211
  %v2439 = vpop.f32.mrb[0].mxu0
  %v2440 = vadd.f32 %v2343, %v2439
  %v2441 = vpop.f32.mrb[0].mxu0
  %v2442 = vpop.f32.mrb[0].mxu0
  %v2443 = vadd.f32 %v2346, %v2442
  %v2444 = vpop.f32.mrb[0].mxu0
  %2445 = vmatprep.mubr.bf16.mxu0 %v2217
  %2446 = vmatmul.mubr.bf16.gmra.mrb[0].mxu0 %v2216
  %v2447 = vpop.f32.mrb[0].mxu0
  %v2448 = vadd.f32 %v2351, %v2447
  %v2449 = vpop.f32.mrb[0].mxu0
  %v2450 = vpop.f32.mrb[0].mxu0
  %v2451 = vadd.f32 %v2354, %v2450
  %v2452 = vpop.f32.mrb[0].mxu0
  %2453 = vmatprep.mubr.bf16.mxu0 %v2222
  %2454 = vmatmul.mubr.bf16.gmra.mrb[0].mxu0 %v2221
  %v2455 = vpop.f32.mrb[0].mxu0
  %v2456 = vadd.f32 %v2359, %v2455
  %v2457 = vpop.f32.mrb[0].mxu0
  %v2458 = vpop.f32.mrb[0].mxu0
  %v2459 = vadd.f32 %v2362, %v2458
  %v2460 = vpop.f32.mrb[0].mxu0
  %2461 = vmatprep.mubr.bf16.mxu0 %v2227
  %2462 = vmatmul.mubr.bf16.gmra.mrb[0].mxu0 %v2226
  %v2463 = vpop.f32.mrb[0].mxu0
  %v2464 = vadd.f32 %v2367, %v2463
  %v2465 = vpop.f32.mrb[0].mxu0
  %v2466 = vpop.f32.mrb[0].mxu0
  %v2467 = vadd.f32 %v2370, %v2466
  %v2468 = vpop.f32.mrb[0].mxu0
  %2469 = vmatprep.mubr.bf16.mxu0 %v2232
  %2470 = vmatmul.mubr.bf16.gmra.mrb[0].mxu0 %v2231
  %v2471 = vpop.f32.mrb[0].mxu0
  %v2472 = vadd.f32 %v2375, %v2471
  %v2473 = vpop.f32.mrb[0].mxu0
  %v2474 = vpop.f32.mrb[0].mxu0
  %v2475 = vadd.f32 %v2378, %v2474
  %v2476 = vpop.f32.mrb[0].mxu0
  %2477 = vmatprep.mubr.bf16.mxu0 %v2237
  %2478 = vmatmul.mubr.bf16.gmra.mrb[0].mxu0 %v2236
  %v2479 = vpop.f32.mrb[0].mxu0
  %v2480 = vadd.f32 %v2383, %v2479
  %v2481 = vpop.f32.mrb[0].mxu0
  %v2482 = vpop.f32.mrb[0].mxu0
  %v2483 = vadd.f32 %v2386, %v2482
  %v2484 = vpop.f32.mrb[0].mxu0
  %2485 = vmatprep.mubr.bf16.mxu0 %v2242
  %2486 = vmatmul.mubr.bf16.gmra.mrb[0].mxu0 %v2241
  %v2487 = vpop.f32.mrb[0].mxu0
  %v2488 = vadd.f32 %v2391, %v2487
  %v2489 = vpop.f32.mrb[0].mxu0
  %v2490 = vpop.f32.mrb[0].mxu0
  %v2491 = vadd.f32 %v2394, %v2490
  %v2492 = vpop.f32.mrb[0].mxu0
  %2493 = vdwg.mxu0
  %2494 = vmatprep.subr.bf16.mxu0 0
  %2495 = vmatpush1.bf16.msra.mxu0 %v511
  %2496 = vmatprep.subr.bf16.mxu0 0
  %2497 = vmatpush1.bf16.msra.mxu0 %v512
  %2498 = vmatprep.subr.bf16.mxu0 0
  %2499 = vmatpush1.bf16.msra.mxu0 %v513
  %2500 = vmatprep.subr.bf16.mxu0 0
  %2501 = vmatpush1.bf16.msra.mxu0 %v514
  %2502 = vmatprep.subr.bf16.mxu0 0
  %2503 = vmatpush1.bf16.msra.mxu0 0
  %2504 = vmatprep.subr.bf16.mxu0 0
  %2505 = vmatpush1.bf16.msra.mxu0 0
  %2506 = vmatprep.subr.bf16.mxu0 0
  %2507 = vmatpush1.bf16.msra.mxu0 0
  %2508 = vmatprep.subr.bf16.mxu0 0
  %2509 = vmatpush1.bf16.msra.mxu0 0
  %2510 = vmatprep.subr.bf16.mxu0 0
  %2511 = vmatpush1.bf16.msra.mxu0 0
  %2512 = vmatprep.subr.bf16.mxu0 0
  %2513 = vmatpush1.bf16.msra.mxu0 0
  %2514 = vmatprep.subr.bf16.mxu0 0
  %2515 = vmatpush1.bf16.msra.mxu0 0
  %2516 = vmatprep.subr.bf16.mxu0 0
  %2517 = vmatpush1.bf16.msra.mxu0 0
  %2518 = vmatprep.subr.bf16.mxu0 0
  %2519 = vmatpush1.bf16.msra.mxu0 0
  %2520 = vmatprep.subr.bf16.mxu0 0
  %2521 = vmatpush1.bf16.msra.mxu0 0
  %2522 = vmatprep.subr.bf16.mxu0 0
  %2523 = vmatpush1.bf16.msra.mxu0 0
  %2524 = vmatprep.subr.bf16.mxu0 0
  %2525 = vmatpush1.bf16.msra.mxu0 0
  %2526 = vmatprep.mubr.bf16.mxu0 0
  %2527 = vmatmul.mubr.bf16.gmra.mrb[0].mxu0 %v2277
  %v2528 = vpop.f32.mrb[0].mxu0
  %v2529 = vadd.f32 %v2432, %v2528
  %v2530 = vpop.f32.mrb[0].mxu0
  %v2531 = vpop.f32.mrb[0].mxu0
  %v2532 = vadd.f32 %v2435, %v2531
  %v2533 = vpop.f32.mrb[0].mxu0
  %2534 = vmatprep.mubr.bf16.mxu0 0
  %2535 = vmatmul.mubr.bf16.gmra.mrb[0].mxu0 %v2280
  %v2536 = vpop.f32.mrb[0].mxu0
  %v2537 = vadd.f32 %v2440, %v2536
  %v2538 = vpop.f32.mrb[0].mxu0
  %v2539 = vpop.f32.mrb[0].mxu0
  %v2540 = vadd.f32 %v2443, %v2539
  %v2541 = vpop.f32.mrb[0].mxu0
  %2542 = vmatprep.mubr.bf16.mxu0 0
  %2543 = vmatmul.mubr.bf16.gmra.mrb[0].mxu0 %v2283
  %v2544 = vpop.f32.mrb[0].mxu0
  %v2545 = vadd.f32 %v2448, %v2544
  %v2546 = vpop.f32.mrb[0].mxu0
  %v2547 = vpop.f32.mrb[0].mxu0
  %v2548 = vadd.f32 %v2451, %v2547
  %v2549 = vpop.f32.mrb[0].mxu0
  %2550 = vmatprep.mubr.bf16.mxu0 0
  %2551 = vmatmul.mubr.bf16.gmra.mrb[0].mxu0 %v2286
  %v2552 = vpop.f32.mrb[0].mxu0
  %v2553 = vadd.f32 %v2456, %v2552
  %v2554 = vpop.f32.mrb[0].mxu0
  %v2555 = vpop.f32.mrb[0].mxu0
  %v2556 = vadd.f32 %v2459, %v2555
  %v2557 = vpop.f32.mrb[0].mxu0
  %2558 = vmatprep.mubr.bf16.mxu0 0
  %2559 = vmatmul.mubr.bf16.gmra.mrb[0].mxu0 %v2289
  %v2560 = vpop.f32.mrb[0].mxu0
  %v2561 = vadd.f32 %v2464, %v2560
  %v2562 = vpop.f32.mrb[0].mxu0
  %v2563 = vpop.f32.mrb[0].mxu0
  %v2564 = vadd.f32 %v2467, %v2563
  %v2565 = vpop.f32.mrb[0].mxu0
  %2566 = vmatprep.mubr.bf16.mxu0 0
  %2567 = vmatmul.mubr.bf16.gmra.mrb[0].mxu0 %v2292
  %v2568 = vpop.f32.mrb[0].mxu0
  %v2569 = vadd.f32 %v2472, %v2568
  %v2570 = vpop.f32.mrb[0].mxu0
  %v2571 = vpop.f32.mrb[0].mxu0
  %v2572 = vadd.f32 %v2475, %v2571
  %v2573 = vpop.f32.mrb[0].mxu0
  %2574 = vmatprep.mubr.bf16.mxu0 0
  %2575 = vmatmul.mubr.bf16.gmra.mrb[0].mxu0 %v2295
  %v2576 = vpop.f32.mrb[0].mxu0
  %v2577 = vadd.f32 %v2480, %v2576
  %v2578 = vpop.f32.mrb[0].mxu0
  %v2579 = vpop.f32.mrb[0].mxu0
  %v2580 = vadd.f32 %v2483, %v2579
  %v2581 = vpop.f32.mrb[0].mxu0
  %2582 = vmatprep.mubr.bf16.mxu0 0
  %2583 = vmatmul.mubr.bf16.gmra.mrb[0].mxu0 %v2298
  %v2584 = vpop.f32.mrb[0].mxu0
  %v2585 = vadd.f32 %v2488, %v2584
  %v2586 = vpop.f32.mrb[0].mxu0
  %v2587 = vpop.f32.mrb[0].mxu0
  %v2588 = vadd.f32 %v2491, %v2587
  %v2589 = vpop.f32.mrb[0].mxu0
  %2590 = vdwg.mxu0
  %v2591 = vmax.f32 %v2011, %v2529
  %v2592 = vmax.f32 %v2012, %v2532
  %v2593 = vmax.f32 %v2013, %v2537
  %v2594 = vmax.f32 %v2014, %v2540
  %v2595 = vmax.f32 %v2015, %v2545
  %v2596 = vmax.f32 %v2016, %v2548
  %v2597 = vmax.f32 %v2017, %v2553
  %v2598 = vmax.f32 %v2018, %v2556
  %v2599 = vmax.f32 %v2019, %v2561
  %v2600 = vmax.f32 %v2020, %v2564
  %v2601 = vmax.f32 %v2021, %v2569
  %v2602 = vmax.f32 %v2022, %v2572
  %v2603 = vmax.f32 %v2023, %v2577
  %v2604 = vmax.f32 %v2024, %v2580
  %v2605 = vmax.f32 %v2025, %v2585
  %v2606 = vmax.f32 %v2026, %v2588
  %v2607 = vld [vmem:[%s2] sm:$0x1]
  %v2609 = vlaneseq
  %v2610 = vshrl.u32 %v2609, 7
  %v2611 = vsub.s32 0, %v2610
  %v2612 = vrot.slane %v2607, %v2611
  %v2614 = vadd.f32 %v2591, %v2612
  %v2615 = vadd.f32 %v2592, %v2612
  %v2616 = vadd.f32 %v2593, %v2612
  %v2617 = vadd.f32 %v2594, %v2612
  %v2618 = vadd.f32 %v2595, %v2612
  %v2619 = vadd.f32 %v2596, %v2612
  %v2620 = vadd.f32 %v2597, %v2612
  %v2621 = vadd.f32 %v2598, %v2612
  %v2622 = vadd.f32 %v2599, %v2612
  %v2623 = vadd.f32 %v2600, %v2612
  %v2624 = vadd.f32 %v2601, %v2612
  %v2625 = vadd.f32 %v2602, %v2612
  %v2626 = vadd.f32 %v2603, %v2612
  %v2627 = vadd.f32 %v2604, %v2612
  %v2628 = vadd.f32 %v2605, %v2612
  %v2629 = vadd.f32 %v2606, %v2612
  %v2630 = vmax.f32 %v2614, 0.0
  %v2631 = vmax.f32 %v2615, 0.0
  %v2632 = vmax.f32 %v2616, 0.0
  %v2633 = vmax.f32 %v2617, 0.0
  %v2634 = vmax.f32 %v2618, 0.0
  %v2635 = vmax.f32 %v2619, 0.0
  %v2636 = vmax.f32 %v2620, 0.0
  %v2637 = vmax.f32 %v2621, 0.0
  %v2638 = vmax.f32 %v2622, 0.0
  %v2639 = vmax.f32 %v2623, 0.0
  %v2640 = vmax.f32 %v2624, 0.0
  %v2641 = vmax.f32 %v2625, 0.0
  %v2642 = vmax.f32 %v2626, 0.0
  %v2643 = vmax.f32 %v2627, 0.0
  %v2644 = vmax.f32 %v2628, 0.0
  %v2645 = vmax.f32 %v2629, 0.0
  %v2646 = vpack.c.bf16 %v2631, %v2630
  %v2647 = vpack.c.bf16 %v2633, %v2632
  %v2648 = vpack.c.bf16 %v2635, %v2634
  %v2649 = vpack.c.bf16 %v2637, %v2636
  %v2650 = vpack.c.bf16 %v2639, %v2638
  %v2651 = vpack.c.bf16 %v2641, %v2640
  %v2652 = vpack.c.bf16 %v2643, %v2642
  %v2653 = vpack.c.bf16 %v2645, %v2644
  %v2662 = vunpack.c.l.b16 %v2646
  %v2663 = vunpack.c.h.b16 %v2646
  %v2664 = vunpack.c.l.b16 %v2647
  %v2665 = vunpack.c.h.b16 %v2647
  %v2666 = vunpack.c.l.b16 %v2648
  %v2667 = vunpack.c.h.b16 %v2648
  %v2668 = vunpack.c.l.b16 %v2649
  %v2669 = vunpack.c.h.b16 %v2649
  %v2670 = vunpack.c.l.b16 %v2650
  %v2671 = vunpack.c.h.b16 %v2650
  %v2672 = vunpack.c.l.b16 %v2651
  %v2673 = vunpack.c.h.b16 %v2651
  %v2674 = vunpack.c.l.b16 %v2652
  %v2675 = vunpack.c.h.b16 %v2652
  %v2676 = vunpack.c.l.b16 %v2653
  %v2677 = vunpack.c.h.b16 %v2653
  %v2678 = vpack.c.b16 %v2662, %v2662
  %v2679 = vpack.c.b16 %v2663, %v2663
  %v2680 = vpack.c.b16 %v2664, %v2664
  %v2681 = vpack.c.b16 %v2665, %v2665
  %v2682 = vpack.c.b16 %v2666, %v2666
  %v2683 = vpack.c.b16 %v2667, %v2667
  %v2684 = vpack.c.b16 %v2668, %v2668
  %v2685 = vpack.c.b16 %v2669, %v2669
  %v2686 = vpack.c.b16 %v2670, %v2670
  %v2687 = vpack.c.b16 %v2671, %v2671
  %v2688 = vpack.c.b16 %v2672, %v2672
  %v2689 = vpack.c.b16 %v2673, %v2673
  %v2690 = vpack.c.b16 %v2674, %v2674
  %v2691 = vpack.c.b16 %v2675, %v2675
  %v2692 = vpack.c.b16 %v2676, %v2676
  %v2693 = vpack.c.b16 %v2677, %v2677
  %vm2710 = vcmask 519168
  %2711 = vst.msk [vmem:[%s3] sm:$0xf] %vm2710, %v2678
  %2712 = vst.msk [vmem:[%s3 + $0x4] sm:$0xf] %vm2710, %v2679
  %2713 = vst.msk [vmem:[%s3 + $0x8] sm:$0xf] %vm2710, %v2680
  %2714 = vst.msk [vmem:[%s3 + $0xc] sm:$0xf] %vm2710, %v2681
  %2715 = vst.msk [vmem:[%s3 + $0x10] sm:$0xf] %vm2710, %v2682
  %2716 = vst.msk [vmem:[%s3 + $0x14] sm:$0xf] %vm2710, %v2683
  %2717 = vst.msk [vmem:[%s3 + $0x18] sm:$0xf] %vm2710, %v2684
  %2718 = vst.msk [vmem:[%s3 + $0x1c] sm:$0xf] %vm2710, %v2685
  %2719 = vst.msk [vmem:[%s3 + $0x20] sm:$0xf] %vm2710, %v2686
  %2720 = vst.msk [vmem:[%s3 + $0x24] sm:$0xf] %vm2710, %v2687
  %2721 = vst.msk [vmem:[%s3 + $0x28] sm:$0xf] %vm2710, %v2688
  %2722 = vst.msk [vmem:[%s3 + $0x2c] sm:$0xf] %vm2710, %v2689
  %2723 = vst.msk [vmem:[%s3 + $0x30] sm:$0xf] %vm2710, %v2690
  %2724 = vst.msk [vmem:[%s3 + $0x34] sm:$0xf] %vm2710, %v2691
  %2725 = vst.msk [vmem:[%s3 + $0x38] sm:$0xf] %vm2710, %v2692
  %2726 = vst.msk [vmem:[%s3 + $0x3c] sm:$0xf] %vm2710, %v2693
  // Predicated region
  $region14: #{cnn_regression_forward.4} parent=0 // pred_check
    _
  $region15: #{cnn_regression_forward.4} parent=0 // pred_check_branch
    %2728 = sbr.rel (0) target = $region17
  $region16: #{cnn_regression_forward.4} parent=0 // pred_region
    _
  $region17: #{cnn_regression_forward.4} parent=0 // pred_fallthru
    _
  // Predicated region
  $region18: #{cnn_regression_forward.4} parent=0 // pred_check
    _
  $region19: #{cnn_regression_forward.4} parent=0 // pred_check_branch
    %2730 = sbr.rel (0) target = $region21
  $region20: #{cnn_regression_forward.4} parent=0 // pred_region
    _
  $region21: #{cnn_regression_forward.4} parent=0 // pred_fallthru
    _

// kernel: cnn_regression_forward.5
$region0: #{cnn_regression_forward.5}
  #allocation0 [shape = 'u32[]', space=smem, size = 0x4, offset = 0x4, fixed_abs, tag = 'smem constant byte address 0x4 - core index']
  #allocation1 [shape = 'u32[144,128]{1,0:T(1,128)}', space=vmem, size = 0x12000, scoped, tag = 'internal scratch']
  %s0 = inlined_call_operand.vmem [shape: bf16[16,3136], index: 0, kind: input, shape index: {}]
  %s1 = inlined_call_operand.vmem [shape: bf16[3136,128], index: 1, kind: input, shape index: {}]
  %s2 = inlined_call_operand.vmem [shape: f32[1,128], index: 2, kind: input, shape index: {}]
  %s3 = inlined_call_operand.vmem [shape: bf16[128,48], index: 3, kind: input, shape index: {}]
  %s4 = inlined_call_operand.vmem [shape: f32[1,48], index: 4, kind: input, shape index: {}]
  %s5 = inlined_call_operand.vmem [shape: f32[16,48], index: 5, kind: output, shape index: {}]
  %s6 = sld [smem:[#allocation0]]
  $region30: #{cnn_regression_forward.5} parent=0
    _
  %s8 = ssub.s32 1, %s6
  %s9 = scalar_select 0, %s8, %s6
  // Predicated region
  $region2: #{cnn_regression_forward.5} parent=0 // pred_check
    _
  $region3: #{cnn_regression_forward.5} parent=0 // pred_check_branch
    %11 = sbr.rel (0) target = $region5
  $region4: #{cnn_regression_forward.5} parent=0 // pred_region
    _
  $region5: #{cnn_regression_forward.5} parent=0 // pred_fallthru
    _
  // Predicated region
  $region6: #{cnn_regression_forward.5} parent=0 // pred_check
    _
  $region7: #{cnn_regression_forward.5} parent=0 // pred_check_branch
    %13 = sbr.rel (0) target = $region9
  $region8: #{cnn_regression_forward.5} parent=0 // pred_region
    _
  $region9: #{cnn_regression_forward.5} parent=0 // pred_fallthru
    _
  // Predicated region
  $region10: #{cnn_regression_forward.5} parent=0 // pred_check
    _
  $region11: #{cnn_regression_forward.5} parent=0 // pred_check_branch
    %15 = sbr.rel (0) target = $region13
  $region12: #{cnn_regression_forward.5} parent=0 // pred_region
    _
  $region13: #{cnn_regression_forward.5} parent=0 // pred_fallthru
    _
  // Predicated region
  $region14: #{cnn_regression_forward.5} parent=0 // pred_check
    _
  $region15: #{cnn_regression_forward.5} parent=0 // pred_check_branch
    %17 = sbr.rel (0) target = $region17
  $region16: #{cnn_regression_forward.5} parent=0 // pred_region
    _
  $region17: #{cnn_regression_forward.5} parent=0 // pred_fallthru
    _
  // Predicated region
  $region18: #{cnn_regression_forward.5} parent=0 // pred_check
    _
  $region19: #{cnn_regression_forward.5} parent=0 // pred_check_branch
    %19 = sbr.rel (0) target = $region21
  $region20: #{cnn_regression_forward.5} parent=0 // pred_region
    _
  $region21: #{cnn_regression_forward.5} parent=0 // pred_fallthru
    _
  %v21 = vld [vmem:[%s0] sm:$0xff]
  %v22 = vld [vmem:[%s0 + $0x8] sm:$0xff]
  %v23 = vld [vmem:[%s0 + $0x10] sm:$0xff]
  %v24 = vld [vmem:[%s0 + $0x18] sm:$0xff]
  %v25 = vld [vmem:[%s0 + $0x20] sm:$0xff]
  %v26 = vld [vmem:[%s0 + $0x28] sm:$0xff]
  %v27 = vld [vmem:[%s0 + $0x30] sm:$0xff]
  %v28 = vld [vmem:[%s0 + $0x38] sm:$0xff]
  %v29 = vld [vmem:[%s0 + $0x40] sm:$0xff]
  %v30 = vld [vmem:[%s0 + $0x48] sm:$0xff]
  %v31 = vld [vmem:[%s0 + $0x50] sm:$0xff]
  %v32 = vld [vmem:[%s0 + $0x58] sm:$0xff]
  %v33 = vld [vmem:[%s0 + $0x60] sm:$0xf]
  %v34 = vld [vmem:[%s0 + $0x64] sm:$0xff]
  %v35 = vld [vmem:[%s0 + $0x6c] sm:$0xff]
  %v36 = vld [vmem:[%s0 + $0x74] sm:$0xff]
  %v37 = vld [vmem:[%s0 + $0x7c] sm:$0xff]
  %v38 = vld [vmem:[%s0 + $0x84] sm:$0xff]
  %v39 = vld [vmem:[%s0 + $0x8c] sm:$0xff]
  %v40 = vld [vmem:[%s0 + $0x94] sm:$0xff]
  %v41 = vld [vmem:[%s0 + $0x9c] sm:$0xff]
  %v42 = vld [vmem:[%s0 + $0xa4] sm:$0xff]
  %v43 = vld [vmem:[%s0 + $0xac] sm:$0xff]
  %v44 = vld [vmem:[%s0 + $0xb4] sm:$0xff]
  %v45 = vld [vmem:[%s0 + $0xbc] sm:$0xff]
  %v46 = vld [vmem:[%s0 + $0xc4] sm:$0xf]
  %v47 = vld [vmem:[%s1] sm:$0xf]
  %v48 = vld [vmem:[%s1 + $0x4] sm:$0xf]
  %v49 = vld [vmem:[%s1 + $0x8] sm:$0xf]
  %v50 = vld [vmem:[%s1 + $0xc] sm:$0xf]
  %v51 = vld [vmem:[%s1 + $0x10] sm:$0xf]
  %v52 = vld [vmem:[%s1 + $0x14] sm:$0xf]
  %v53 = vld [vmem:[%s1 + $0x18] sm:$0xf]
  %v54 = vld [vmem:[%s1 + $0x1c] sm:$0xf]
  %v55 = vld [vmem:[%s1 + $0x20] sm:$0xf]
  %v56 = vld [vmem:[%s1 + $0x24] sm:$0xf]
  %v57 = vld [vmem:[%s1 + $0x28] sm:$0xf]
  %v58 = vld [vmem:[%s1 + $0x2c] sm:$0xf]
  %v59 = vld [vmem:[%s1 + $0x30] sm:$0xf]
  %v60 = vld [vmem:[%s1 + $0x34] sm:$0xf]
  %v61 = vld [vmem:[%s1 + $0x38] sm:$0xf]
  %v62 = vld [vmem:[%s1 + $0x3c] sm:$0xf]
  %v63 = vld [vmem:[%s1 + $0x40] sm:$0xf]
  %v64 = vld [vmem:[%s1 + $0x44] sm:$0xf]
  %v65 = vld [vmem:[%s1 + $0x48] sm:$0xf]
  %v66 = vld [vmem:[%s1 + $0x4c] sm:$0xf]
  %v67 = vld [vmem:[%s1 + $0x50] sm:$0xf]
  %v68 = vld [vmem:[%s1 + $0x54] sm:$0xf]
  %v69 = vld [vmem:[%s1 + $0x58] sm:$0xf]
  %v70 = vld [vmem:[%s1 + $0x5c] sm:$0xf]
  %v71 = vld [vmem:[%s1 + $0x60] sm:$0xf]
  %v72 = vld [vmem:[%s1 + $0x64] sm:$0xf]
  %v73 = vld [vmem:[%s1 + $0x68] sm:$0xf]
  %v74 = vld [vmem:[%s1 + $0x6c] sm:$0xf]
  %v75 = vld [vmem:[%s1 + $0x70] sm:$0xf]
  %v76 = vld [vmem:[%s1 + $0x74] sm:$0xf]
  %v77 = vld [vmem:[%s1 + $0x78] sm:$0xf]
  %v78 = vld [vmem:[%s1 + $0x7c] sm:$0xf]
  %v79 = vld [vmem:[%s1 + $0x80] sm:$0xf]
  %v80 = vld [vmem:[%s1 + $0x84] sm:$0xf]
  %v81 = vld [vmem:[%s1 + $0x88] sm:$0xf]
  %v82 = vld [vmem:[%s1 + $0x8c] sm:$0xf]
  %v83 = vld [vmem:[%s1 + $0x90] sm:$0xf]
  %v84 = vld [vmem:[%s1 + $0x94] sm:$0xf]
  %v85 = vld [vmem:[%s1 + $0x98] sm:$0xf]
  %v86 = vld [vmem:[%s1 + $0x9c] sm:$0xf]
  %v87 = vld [vmem:[%s1 + $0xa0] sm:$0xf]
  %v88 = vld [vmem:[%s1 + $0xa4] sm:$0xf]
  %v89 = vld [vmem:[%s1 + $0xa8] sm:$0xf]
  %v90 = vld [vmem:[%s1 + $0xac] sm:$0xf]
  %v91 = vld [vmem:[%s1 + $0xb0] sm:$0xf]
  %v92 = vld [vmem:[%s1 + $0xb4] sm:$0xf]
  %v93 = vld [vmem:[%s1 + $0xb8] sm:$0xf]
  %v94 = vld [vmem:[%s1 + $0xbc] sm:$0xf]
  %v95 = vld [vmem:[%s1 + $0xc0] sm:$0xf]
  %v96 = vld [vmem:[%s1 + $0xc4] sm:$0xf]
  %v97 = vld [vmem:[%s1 + $0xc8] sm:$0xf]
  %v98 = vld [vmem:[%s1 + $0xcc] sm:$0xf]
  %v99 = vld [vmem:[%s1 + $0xd0] sm:$0xf]
  %v100 = vld [vmem:[%s1 + $0xd4] sm:$0xf]
  %v101 = vld [vmem:[%s1 + $0xd8] sm:$0xf]
  %v102 = vld [vmem:[%s1 + $0xdc] sm:$0xf]
  %v103 = vld [vmem:[%s1 + $0xe0] sm:$0xf]
  %v104 = vld [vmem:[%s1 + $0xe4] sm:$0xf]
  %v105 = vld [vmem:[%s1 + $0xe8] sm:$0xf]
  %v106 = vld [vmem:[%s1 + $0xec] sm:$0xf]
  %v107 = vld [vmem:[%s1 + $0xf0] sm:$0xf]
  %v108 = vld [vmem:[%s1 + $0xf4] sm:$0xf]
  %v109 = vld [vmem:[%s1 + $0xf8] sm:$0xf]
  %v110 = vld [vmem:[%s1 + $0xfc] sm:$0xf]
  %v111 = vld [vmem:[%s1 + $0x100] sm:$0xf]
  %v112 = vld [vmem:[%s1 + $0x104] sm:$0xf]
  %v113 = vld [vmem:[%s1 + $0x108] sm:$0xf]
  %v114 = vld [vmem:[%s1 + $0x10c] sm:$0xf]
  %v115 = vld [vmem:[%s1 + $0x110] sm:$0xf]
  %v116 = vld [vmem:[%s1 + $0x114] sm:$0xf]
  %v117 = vld [vmem:[%s1 + $0x118] sm:$0xf]
  %v118 = vld [vmem:[%s1 + $0x11c] sm:$0xf]
  %v119 = vld [vmem:[%s1 + $0x120] sm:$0xf]
  %v120 = vld [vmem:[%s1 + $0x124] sm:$0xf]
  %v121 = vld [vmem:[%s1 + $0x128] sm:$0xf]
  %v122 = vld [vmem:[%s1 + $0x12c] sm:$0xf]
  %v123 = vld [vmem:[%s1 + $0x130] sm:$0xf]
  %v124 = vld [vmem:[%s1 + $0x134] sm:$0xf]
  %v125 = vld [vmem:[%s1 + $0x138] sm:$0xf]
  %v126 = vld [vmem:[%s1 + $0x13c] sm:$0xf]
  %v127 = vld [vmem:[%s1 + $0x140] sm:$0xf]
  %v128 = vld [vmem:[%s1 + $0x144] sm:$0xf]
  %v129 = vld [vmem:[%s1 + $0x148] sm:$0xf]
  %v130 = vld [vmem:[%s1 + $0x14c] sm:$0xf]
  %v131 = vld [vmem:[%s1 + $0x150] sm:$0xf]
  %v132 = vld [vmem:[%s1 + $0x154] sm:$0xf]
  %v133 = vld [vmem:[%s1 + $0x158] sm:$0xf]
  %v134 = vld [vmem:[%s1 + $0x15c] sm:$0xf]
  %v135 = vld [vmem:[%s1 + $0x160] sm:$0xf]
  %v136 = vld [vmem:[%s1 + $0x164] sm:$0xf]
  %v137 = vld [vmem:[%s1 + $0x168] sm:$0xf]
  %v138 = vld [vmem:[%s1 + $0x16c] sm:$0xf]
  %v139 = vld [vmem:[%s1 + $0x170] sm:$0xf]
  %v140 = vld [vmem:[%s1 + $0x174] sm:$0xf]
  %v141 = vld [vmem:[%s1 + $0x178] sm:$0xf]
  %v142 = vld [vmem:[%s1 + $0x17c] sm:$0xf]
  %v143 = vld [vmem:[%s1 + $0x180] sm:$0xf]
  %v144 = vld [vmem:[%s1 + $0x184] sm:$0xf]
  %v145 = vld [vmem:[%s1 + $0x188] sm:$0xf]
  %v146 = vld [vmem:[%s1 + $0x18c] sm:$0xf]
  %v147 = vld [vmem:[%s1 + $0x190] sm:$0xf]
  %v148 = vld [vmem:[%s1 + $0x194] sm:$0xf]
  %v149 = vld [vmem:[%s1 + $0x198] sm:$0xf]
  %v150 = vld [vmem:[%s1 + $0x19c] sm:$0xf]
  %v151 = vld [vmem:[%s1 + $0x1a0] sm:$0xf]
  %v152 = vld [vmem:[%s1 + $0x1a4] sm:$0xf]
  %v153 = vld [vmem:[%s1 + $0x1a8] sm:$0xf]
  %v154 = vld [vmem:[%s1 + $0x1ac] sm:$0xf]
  %v155 = vld [vmem:[%s1 + $0x1b0] sm:$0xf]
  %v156 = vld [vmem:[%s1 + $0x1b4] sm:$0xf]
  %v157 = vld [vmem:[%s1 + $0x1b8] sm:$0xf]
  %v158 = vld [vmem:[%s1 + $0x1bc] sm:$0xf]
  %v159 = vld [vmem:[%s1 + $0x1c0] sm:$0xf]
  %v160 = vld [vmem:[%s1 + $0x1c4] sm:$0xf]
  %v161 = vld [vmem:[%s1 + $0x1c8] sm:$0xf]
  %v162 = vld [vmem:[%s1 + $0x1cc] sm:$0xf]
  %v163 = vld [vmem:[%s1 + $0x1d0] sm:$0xf]
  %v164 = vld [vmem:[%s1 + $0x1d4] sm:$0xf]
  %v165 = vld [vmem:[%s1 + $0x1d8] sm:$0xf]
  %v166 = vld [vmem:[%s1 + $0x1dc] sm:$0xf]
  %v167 = vld [vmem:[%s1 + $0x1e0] sm:$0xf]
  %v168 = vld [vmem:[%s1 + $0x1e4] sm:$0xf]
  %v169 = vld [vmem:[%s1 + $0x1e8] sm:$0xf]
  %v170 = vld [vmem:[%s1 + $0x1ec] sm:$0xf]
  %v171 = vld [vmem:[%s1 + $0x1f0] sm:$0xf]
  %v172 = vld [vmem:[%s1 + $0x1f4] sm:$0xf]
  %v173 = vld [vmem:[%s1 + $0x1f8] sm:$0xf]
  %v174 = vld [vmem:[%s1 + $0x1fc] sm:$0xf]
  %v175 = vld [vmem:[%s1 + $0x200] sm:$0xf]
  %v176 = vld [vmem:[%s1 + $0x204] sm:$0xf]
  %v177 = vld [vmem:[%s1 + $0x208] sm:$0xf]
  %v178 = vld [vmem:[%s1 + $0x20c] sm:$0xf]
  %v179 = vld [vmem:[%s1 + $0x210] sm:$0xf]
  %v180 = vld [vmem:[%s1 + $0x214] sm:$0xf]
  %v181 = vld [vmem:[%s1 + $0x218] sm:$0xf]
  %v182 = vld [vmem:[%s1 + $0x21c] sm:$0xf]
  %v183 = vld [vmem:[%s1 + $0x220] sm:$0xf]
  %v184 = vld [vmem:[%s1 + $0x224] sm:$0xf]
  %v185 = vld [vmem:[%s1 + $0x228] sm:$0xf]
  %v186 = vld [vmem:[%s1 + $0x22c] sm:$0xf]
  %v187 = vld [vmem:[%s1 + $0x230] sm:$0xf]
  %v188 = vld [vmem:[%s1 + $0x234] sm:$0xf]
  %v189 = vld [vmem:[%s1 + $0x238] sm:$0xf]
  %v190 = vld [vmem:[%s1 + $0x23c] sm:$0xf]
  %v191 = vld [vmem:[%s1 + $0x240] sm:$0xf]
  %v192 = vld [vmem:[%s1 + $0x244] sm:$0xf]
  %v193 = vld [vmem:[%s1 + $0x248] sm:$0xf]
  %v194 = vld [vmem:[%s1 + $0x24c] sm:$0xf]
  %v195 = vld [vmem:[%s1 + $0x250] sm:$0xf]
  %v196 = vld [vmem:[%s1 + $0x254] sm:$0xf]
  %v197 = vld [vmem:[%s1 + $0x258] sm:$0xf]
  %v198 = vld [vmem:[%s1 + $0x25c] sm:$0xf]
  %v199 = vld [vmem:[%s1 + $0x260] sm:$0xf]
  %v200 = vld [vmem:[%s1 + $0x264] sm:$0xf]
  %v201 = vld [vmem:[%s1 + $0x268] sm:$0xf]
  %v202 = vld [vmem:[%s1 + $0x26c] sm:$0xf]
  %v203 = vld [vmem:[%s1 + $0x270] sm:$0xf]
  %v204 = vld [vmem:[%s1 + $0x274] sm:$0xf]
  %v205 = vld [vmem:[%s1 + $0x278] sm:$0xf]
  %v206 = vld [vmem:[%s1 + $0x27c] sm:$0xf]
  %v207 = vld [vmem:[%s1 + $0x280] sm:$0xf]
  %v208 = vld [vmem:[%s1 + $0x284] sm:$0xf]
  %v209 = vld [vmem:[%s1 + $0x288] sm:$0xf]
  %v210 = vld [vmem:[%s1 + $0x28c] sm:$0xf]
  %v211 = vld [vmem:[%s1 + $0x290] sm:$0xf]
  %v212 = vld [vmem:[%s1 + $0x294] sm:$0xf]
  %v213 = vld [vmem:[%s1 + $0x298] sm:$0xf]
  %v214 = vld [vmem:[%s1 + $0x29c] sm:$0xf]
  %v215 = vld [vmem:[%s1 + $0x2a0] sm:$0xf]
  %v216 = vld [vmem:[%s1 + $0x2a4] sm:$0xf]
  %v217 = vld [vmem:[%s1 + $0x2a8] sm:$0xf]
  %v218 = vld [vmem:[%s1 + $0x2ac] sm:$0xf]
  %v219 = vld [vmem:[%s1 + $0x2b0] sm:$0xf]
  %v220 = vld [vmem:[%s1 + $0x2b4] sm:$0xf]
  %v221 = vld [vmem:[%s1 + $0x2b8] sm:$0xf]
  %v222 = vld [vmem:[%s1 + $0x2bc] sm:$0xf]
  %v223 = vld [vmem:[%s1 + $0x2c0] sm:$0xf]
  %v224 = vld [vmem:[%s1 + $0x2c4] sm:$0xf]
  %v225 = vld [vmem:[%s1 + $0x2c8] sm:$0xf]
  %v226 = vld [vmem:[%s1 + $0x2cc] sm:$0xf]
  %v227 = vld [vmem:[%s1 + $0x2d0] sm:$0xf]
  %v228 = vld [vmem:[%s1 + $0x2d4] sm:$0xf]
  %v229 = vld [vmem:[%s1 + $0x2d8] sm:$0xf]
  %v230 = vld [vmem:[%s1 + $0x2dc] sm:$0xf]
  %v231 = vld [vmem:[%s1 + $0x2e0] sm:$0xf]
  %v232 = vld [vmem:[%s1 + $0x2e4] sm:$0xf]
  %v233 = vld [vmem:[%s1 + $0x2e8] sm:$0xf]
  %v234 = vld [vmem:[%s1 + $0x2ec] sm:$0xf]
  %v235 = vld [vmem:[%s1 + $0x2f0] sm:$0xf]
  %v236 = vld [vmem:[%s1 + $0x2f4] sm:$0xf]
  %v237 = vld [vmem:[%s1 + $0x2f8] sm:$0xf]
  %v238 = vld [vmem:[%s1 + $0x2fc] sm:$0xf]
  %v239 = vld [vmem:[%s1 + $0x300] sm:$0xf]
  %v240 = vld [vmem:[%s1 + $0x304] sm:$0xf]
  %v241 = vld [vmem:[%s1 + $0x308] sm:$0xf]
  %v242 = vld [vmem:[%s1 + $0x30c] sm:$0xf]
  %v243 = vld [vmem:[%s1 + $0x310] sm:$0xf]
  %v244 = vld [vmem:[%s1 + $0x314] sm:$0xf]
  %v245 = vld [vmem:[%s1 + $0x318] sm:$0xf]
  %v246 = vld [vmem:[%s1 + $0x31c] sm:$0xf]
  %v247 = vld [vmem:[%s1 + $0x320] sm:$0xf]
  %v248 = vld [vmem:[%s1 + $0x324] sm:$0xf]
  %v249 = vld [vmem:[%s1 + $0x328] sm:$0xf]
  %v250 = vld [vmem:[%s1 + $0x32c] sm:$0xf]
  %v251 = vld [vmem:[%s1 + $0x330] sm:$0xf]
  %v252 = vld [vmem:[%s1 + $0x334] sm:$0xf]
  %v253 = vld [vmem:[%s1 + $0x338] sm:$0xf]
  %v254 = vld [vmem:[%s1 + $0x33c] sm:$0xf]
  %v255 = vld [vmem:[%s1 + $0x340] sm:$0xf]
  %v256 = vld [vmem:[%s1 + $0x344] sm:$0xf]
  %v257 = vld [vmem:[%s1 + $0x348] sm:$0xf]
  %v258 = vld [vmem:[%s1 + $0x34c] sm:$0xf]
  %v259 = vld [vmem:[%s1 + $0x350] sm:$0xf]
  %v260 = vld [vmem:[%s1 + $0x354] sm:$0xf]
  %v261 = vld [vmem:[%s1 + $0x358] sm:$0xf]
  %v262 = vld [vmem:[%s1 + $0x35c] sm:$0xf]
  %v263 = vld [vmem:[%s1 + $0x360] sm:$0xf]
  %v264 = vld [vmem:[%s1 + $0x364] sm:$0xf]
  %v265 = vld [vmem:[%s1 + $0x368] sm:$0xf]
  %v266 = vld [vmem:[%s1 + $0x36c] sm:$0xf]
  %v267 = vld [vmem:[%s1 + $0x370] sm:$0xf]
  %v268 = vld [vmem:[%s1 + $0x374] sm:$0xf]
  %v269 = vld [vmem:[%s1 + $0x378] sm:$0xf]
  %v270 = vld [vmem:[%s1 + $0x37c] sm:$0xf]
  %v271 = vld [vmem:[%s1 + $0x380] sm:$0xf]
  %v272 = vld [vmem:[%s1 + $0x384] sm:$0xf]
  %v273 = vld [vmem:[%s1 + $0x388] sm:$0xf]
  %v274 = vld [vmem:[%s1 + $0x38c] sm:$0xf]
  %v275 = vld [vmem:[%s1 + $0x390] sm:$0xf]
  %v276 = vld [vmem:[%s1 + $0x394] sm:$0xf]
  %v277 = vld [vmem:[%s1 + $0x398] sm:$0xf]
  %v278 = vld [vmem:[%s1 + $0x39c] sm:$0xf]
  %v279 = vld [vmem:[%s1 + $0x3a0] sm:$0xf]
  %v280 = vld [vmem:[%s1 + $0x3a4] sm:$0xf]
  %v281 = vld [vmem:[%s1 + $0x3a8] sm:$0xf]
  %v282 = vld [vmem:[%s1 + $0x3ac] sm:$0xf]
  %v283 = vld [vmem:[%s1 + $0x3b0] sm:$0xf]
  %v284 = vld [vmem:[%s1 + $0x3b4] sm:$0xf]
  %v285 = vld [vmem:[%s1 + $0x3b8] sm:$0xf]
  %v286 = vld [vmem:[%s1 + $0x3bc] sm:$0xf]
  %v287 = vld [vmem:[%s1 + $0x3c0] sm:$0xf]
  %v288 = vld [vmem:[%s1 + $0x3c4] sm:$0xf]
  %v289 = vld [vmem:[%s1 + $0x3c8] sm:$0xf]
  %v290 = vld [vmem:[%s1 + $0x3cc] sm:$0xf]
  %v291 = vld [vmem:[%s1 + $0x3d0] sm:$0xf]
  %v292 = vld [vmem:[%s1 + $0x3d4] sm:$0xf]
  %v293 = vld [vmem:[%s1 + $0x3d8] sm:$0xf]
  %v294 = vld [vmem:[%s1 + $0x3dc] sm:$0xf]
  %v295 = vld [vmem:[%s1 + $0x3e0] sm:$0xf]
  %v296 = vld [vmem:[%s1 + $0x3e4] sm:$0xf]
  %v297 = vld [vmem:[%s1 + $0x3e8] sm:$0xf]
  %v298 = vld [vmem:[%s1 + $0x3ec] sm:$0xf]
  %v299 = vld [vmem:[%s1 + $0x3f0] sm:$0xf]
  %v300 = vld [vmem:[%s1 + $0x3f4] sm:$0xf]
  %v301 = vld [vmem:[%s1 + $0x3f8] sm:$0xf]
  %v302 = vld [vmem:[%s1 + $0x3fc] sm:$0xf]
  %v303 = vld [vmem:[%s1 + $0x400] sm:$0xf]
  %v304 = vld [vmem:[%s1 + $0x404] sm:$0xf]
  %v305 = vld [vmem:[%s1 + $0x408] sm:$0xf]
  %v306 = vld [vmem:[%s1 + $0x40c] sm:$0xf]
  %v307 = vld [vmem:[%s1 + $0x410] sm:$0xf]
  %v308 = vld [vmem:[%s1 + $0x414] sm:$0xf]
  %v309 = vld [vmem:[%s1 + $0x418] sm:$0xf]
  %v310 = vld [vmem:[%s1 + $0x41c] sm:$0xf]
  %v311 = vld [vmem:[%s1 + $0x420] sm:$0xf]
  %v312 = vld [vmem:[%s1 + $0x424] sm:$0xf]
  %v313 = vld [vmem:[%s1 + $0x428] sm:$0xf]
  %v314 = vld [vmem:[%s1 + $0x42c] sm:$0xf]
  %v315 = vld [vmem:[%s1 + $0x430] sm:$0xf]
  %v316 = vld [vmem:[%s1 + $0x434] sm:$0xf]
  %v317 = vld [vmem:[%s1 + $0x438] sm:$0xf]
  %v318 = vld [vmem:[%s1 + $0x43c] sm:$0xf]
  %v319 = vld [vmem:[%s1 + $0x440] sm:$0xf]
  %v320 = vld [vmem:[%s1 + $0x444] sm:$0xf]
  %v321 = vld [vmem:[%s1 + $0x448] sm:$0xf]
  %v322 = vld [vmem:[%s1 + $0x44c] sm:$0xf]
  %v323 = vld [vmem:[%s1 + $0x450] sm:$0xf]
  %v324 = vld [vmem:[%s1 + $0x454] sm:$0xf]
  %v325 = vld [vmem:[%s1 + $0x458] sm:$0xf]
  %v326 = vld [vmem:[%s1 + $0x45c] sm:$0xf]
  %v327 = vld [vmem:[%s1 + $0x460] sm:$0xf]
  %v328 = vld [vmem:[%s1 + $0x464] sm:$0xf]
  %v329 = vld [vmem:[%s1 + $0x468] sm:$0xf]
  %v330 = vld [vmem:[%s1 + $0x46c] sm:$0xf]
  %v331 = vld [vmem:[%s1 + $0x470] sm:$0xf]
  %v332 = vld [vmem:[%s1 + $0x474] sm:$0xf]
  %v333 = vld [vmem:[%s1 + $0x478] sm:$0xf]
  %v334 = vld [vmem:[%s1 + $0x47c] sm:$0xf]
  %v335 = vld [vmem:[%s1 + $0x480] sm:$0xf]
  %v336 = vld [vmem:[%s1 + $0x484] sm:$0xf]
  %v337 = vld [vmem:[%s1 + $0x488] sm:$0xf]
  %v338 = vld [vmem:[%s1 + $0x48c] sm:$0xf]
  %v339 = vld [vmem:[%s1 + $0x490] sm:$0xf]
  %v340 = vld [vmem:[%s1 + $0x494] sm:$0xf]
  %v341 = vld [vmem:[%s1 + $0x498] sm:$0xf]
  %v342 = vld [vmem:[%s1 + $0x49c] sm:$0xf]
  %v343 = vld [vmem:[%s1 + $0x4a0] sm:$0xf]
  %v344 = vld [vmem:[%s1 + $0x4a4] sm:$0xf]
  %v345 = vld [vmem:[%s1 + $0x4a8] sm:$0xf]
  %v346 = vld [vmem:[%s1 + $0x4ac] sm:$0xf]
  %v347 = vld [vmem:[%s1 + $0x4b0] sm:$0xf]
  %v348 = vld [vmem:[%s1 + $0x4b4] sm:$0xf]
  %v349 = vld [vmem:[%s1 + $0x4b8] sm:$0xf]
  %v350 = vld [vmem:[%s1 + $0x4bc] sm:$0xf]
  %v351 = vld [vmem:[%s1 + $0x4c0] sm:$0xf]
  %v352 = vld [vmem:[%s1 + $0x4c4] sm:$0xf]
  %v353 = vld [vmem:[%s1 + $0x4c8] sm:$0xf]
  %v354 = vld [vmem:[%s1 + $0x4cc] sm:$0xf]
  %v355 = vld [vmem:[%s1 + $0x4d0] sm:$0xf]
  %v356 = vld [vmem:[%s1 + $0x4d4] sm:$0xf]
  %v357 = vld [vmem:[%s1 + $0x4d8] sm:$0xf]
  %v358 = vld [vmem:[%s1 + $0x4dc] sm:$0xf]
  %v359 = vld [vmem:[%s1 + $0x4e0] sm:$0xf]
  %v360 = vld [vmem:[%s1 + $0x4e4] sm:$0xf]
  %v361 = vld [vmem:[%s1 + $0x4e8] sm:$0xf]
  %v362 = vld [vmem:[%s1 + $0x4ec] sm:$0xf]
  %v363 = vld [vmem:[%s1 + $0x4f0] sm:$0xf]
  %v364 = vld [vmem:[%s1 + $0x4f4] sm:$0xf]
  %v365 = vld [vmem:[%s1 + $0x4f8] sm:$0xf]
  %v366 = vld [vmem:[%s1 + $0x4fc] sm:$0xf]
  %v367 = vld [vmem:[%s1 + $0x500] sm:$0xf]
  %v368 = vld [vmem:[%s1 + $0x504] sm:$0xf]
  %v369 = vld [vmem:[%s1 + $0x508] sm:$0xf]
  %v370 = vld [vmem:[%s1 + $0x50c] sm:$0xf]
  %v371 = vld [vmem:[%s1 + $0x510] sm:$0xf]
  %v372 = vld [vmem:[%s1 + $0x514] sm:$0xf]
  %v373 = vld [vmem:[%s1 + $0x518] sm:$0xf]
  %v374 = vld [vmem:[%s1 + $0x51c] sm:$0xf]
  %v375 = vld [vmem:[%s1 + $0x520] sm:$0xf]
  %v376 = vld [vmem:[%s1 + $0x524] sm:$0xf]
  %v377 = vld [vmem:[%s1 + $0x528] sm:$0xf]
  %v378 = vld [vmem:[%s1 + $0x52c] sm:$0xf]
  %v379 = vld [vmem:[%s1 + $0x530] sm:$0xf]
  %v380 = vld [vmem:[%s1 + $0x534] sm:$0xf]
  %v381 = vld [vmem:[%s1 + $0x538] sm:$0xf]
  %v382 = vld [vmem:[%s1 + $0x53c] sm:$0xf]
  %v383 = vld [vmem:[%s1 + $0x540] sm:$0xf]
  %v384 = vld [vmem:[%s1 + $0x544] sm:$0xf]
  %v385 = vld [vmem:[%s1 + $0x548] sm:$0xf]
  %v386 = vld [vmem:[%s1 + $0x54c] sm:$0xf]
  %v387 = vld [vmem:[%s1 + $0x550] sm:$0xf]
  %v388 = vld [vmem:[%s1 + $0x554] sm:$0xf]
  %v389 = vld [vmem:[%s1 + $0x558] sm:$0xf]
  %v390 = vld [vmem:[%s1 + $0x55c] sm:$0xf]
  %v391 = vld [vmem:[%s1 + $0x560] sm:$0xf]
  %v392 = vld [vmem:[%s1 + $0x564] sm:$0xf]
  %v393 = vld [vmem:[%s1 + $0x568] sm:$0xf]
  %v394 = vld [vmem:[%s1 + $0x56c] sm:$0xf]
  %v395 = vld [vmem:[%s1 + $0x570] sm:$0xf]
  %v396 = vld [vmem:[%s1 + $0x574] sm:$0xf]
  %v397 = vld [vmem:[%s1 + $0x578] sm:$0xf]
  %v398 = vld [vmem:[%s1 + $0x57c] sm:$0xf]
  %v399 = vld [vmem:[%s1 + $0x580] sm:$0xf]
  %v400 = vld [vmem:[%s1 + $0x584] sm:$0xf]
  %v401 = vld [vmem:[%s1 + $0x588] sm:$0xf]
  %v402 = vld [vmem:[%s1 + $0x58c] sm:$0xf]
  %v403 = vld [vmem:[%s1 + $0x590] sm:$0xf]
  %v404 = vld [vmem:[%s1 + $0x594] sm:$0xf]
  %v405 = vld [vmem:[%s1 + $0x598] sm:$0xf]
  %v406 = vld [vmem:[%s1 + $0x59c] sm:$0xf]
  %v407 = vld [vmem:[%s1 + $0x5a0] sm:$0xf]
  %v408 = vld [vmem:[%s1 + $0x5a4] sm:$0xf]
  %v409 = vld [vmem:[%s1 + $0x5a8] sm:$0xf]
  %v410 = vld [vmem:[%s1 + $0x5ac] sm:$0xf]
  %v411 = vld [vmem:[%s1 + $0x5b0] sm:$0xf]
  %v412 = vld [vmem:[%s1 + $0x5b4] sm:$0xf]
  %v413 = vld [vmem:[%s1 + $0x5b8] sm:$0xf]
  %v414 = vld [vmem:[%s1 + $0x5bc] sm:$0xf]
  %v415 = vld [vmem:[%s1 + $0x5c0] sm:$0xf]
  %v416 = vld [vmem:[%s1 + $0x5c4] sm:$0xf]
  %v417 = vld [vmem:[%s1 + $0x5c8] sm:$0xf]
  %v418 = vld [vmem:[%s1 + $0x5cc] sm:$0xf]
  %v419 = vld [vmem:[%s1 + $0x5d0] sm:$0xf]
  %v420 = vld [vmem:[%s1 + $0x5d4] sm:$0xf]
  %v421 = vld [vmem:[%s1 + $0x5d8] sm:$0xf]
  %v422 = vld [vmem:[%s1 + $0x5dc] sm:$0xf]
  %v423 = vld [vmem:[%s1 + $0x5e0] sm:$0xf]
  %v424 = vld [vmem:[%s1 + $0x5e4] sm:$0xf]
  %v425 = vld [vmem:[%s1 + $0x5e8] sm:$0xf]
  %v426 = vld [vmem:[%s1 + $0x5ec] sm:$0xf]
  %v427 = vld [vmem:[%s1 + $0x5f0] sm:$0xf]
  %v428 = vld [vmem:[%s1 + $0x5f4] sm:$0xf]
  %v429 = vld [vmem:[%s1 + $0x5f8] sm:$0xf]
  %v430 = vld [vmem:[%s1 + $0x5fc] sm:$0xf]
  %v431 = vld [vmem:[%s1 + $0x600] sm:$0xf]
  %v432 = vld [vmem:[%s1 + $0x604] sm:$0xf]
  %v433 = vld [vmem:[%s1 + $0x608] sm:$0xf]
  %v434 = vld [vmem:[%s1 + $0x60c] sm:$0xf]
  %v435 = vld [vmem:[%s1 + $0x610] sm:$0xf]
  %v436 = vld [vmem:[%s1 + $0x614] sm:$0xf]
  %v437 = vld [vmem:[%s1 + $0x618] sm:$0xf]
  %v438 = vld [vmem:[%s1 + $0x61c] sm:$0xf]
  %v439 = vld [vmem:[%s2] sm:$0x1]
  %v441 = vlaneseq
  %v442 = vshrl.u32 %v441, 7
  %v443 = vsub.s32 0, %v442
  %v444 = vrot.slane %v439, %v443
  %v472 = vunpack.c.l.b16 %v21
  %v473 = vunpack.c.h.b16 %v21
  %v474 = vunpack.c.l.b16 %v22
  %v475 = vunpack.c.h.b16 %v22
  %v476 = vunpack.c.l.b16 %v23
  %v477 = vunpack.c.h.b16 %v23
  %v478 = vunpack.c.l.b16 %v24
  %v479 = vunpack.c.h.b16 %v24
  %v480 = vunpack.c.l.b16 %v25
  %v481 = vunpack.c.h.b16 %v25
  %v482 = vunpack.c.l.b16 %v26
  %v483 = vunpack.c.h.b16 %v26
  %v484 = vunpack.c.l.b16 %v27
  %v485 = vunpack.c.h.b16 %v27
  %v486 = vunpack.c.l.b16 %v28
  %v487 = vunpack.c.h.b16 %v28
  %v488 = vunpack.c.l.b16 %v29
  %v489 = vunpack.c.h.b16 %v29
  %v490 = vunpack.c.l.b16 %v30
  %v491 = vunpack.c.h.b16 %v30
  %v492 = vunpack.c.l.b16 %v31
  %v493 = vunpack.c.h.b16 %v31
  %v494 = vunpack.c.l.b16 %v32
  %v495 = vunpack.c.h.b16 %v32
  %v496 = vunpack.c.l.b16 %v33
  %v497 = vunpack.c.l.b16 %v34
  %v498 = vunpack.c.h.b16 %v34
  %v499 = vunpack.c.l.b16 %v35
  %v500 = vunpack.c.h.b16 %v35
  %v501 = vunpack.c.l.b16 %v36
  %v502 = vunpack.c.h.b16 %v36
  %v503 = vunpack.c.l.b16 %v37
  %v504 = vunpack.c.h.b16 %v37
  %v505 = vunpack.c.l.b16 %v38
  %v506 = vunpack.c.h.b16 %v38
  %v507 = vunpack.c.l.b16 %v39
  %v508 = vunpack.c.h.b16 %v39
  %v509 = vunpack.c.l.b16 %v40
  %v510 = vunpack.c.h.b16 %v40
  %v511 = vunpack.c.l.b16 %v41
  %v512 = vunpack.c.h.b16 %v41
  %v513 = vunpack.c.l.b16 %v42
  %v514 = vunpack.c.h.b16 %v42
  %v515 = vunpack.c.l.b16 %v43
  %v516 = vunpack.c.h.b16 %v43
  %v517 = vunpack.c.l.b16 %v44
  %v518 = vunpack.c.h.b16 %v44
  %v519 = vunpack.c.l.b16 %v45
  %v520 = vunpack.c.h.b16 %v45
  %v521 = vunpack.c.l.b16 %v46
  %v522 = vpack.c.b16 %v497, %v472
  %v523 = vpack.c.b16 %v498, %v473
  %v524 = vpack.c.b16 %v499, %v474
  %v525 = vpack.c.b16 %v500, %v475
  %v526 = vpack.c.b16 %v501, %v476
  %v527 = vpack.c.b16 %v502, %v477
  %v528 = vpack.c.b16 %v503, %v478
  %v529 = vpack.c.b16 %v504, %v479
  %v530 = vpack.c.b16 %v505, %v480
  %v531 = vpack.c.b16 %v506, %v481
  %v532 = vpack.c.b16 %v507, %v482
  %v533 = vpack.c.b16 %v508, %v483
  %v534 = vpack.c.b16 %v509, %v484
  %v535 = vpack.c.b16 %v510, %v485
  %v536 = vpack.c.b16 %v511, %v486
  %v537 = vpack.c.b16 %v512, %v487
  %v538 = vpack.c.b16 %v513, %v488
  %v539 = vpack.c.b16 %v514, %v489
  %v540 = vpack.c.b16 %v515, %v490
  %v541 = vpack.c.b16 %v516, %v491
  %v542 = vpack.c.b16 %v517, %v492
  %v543 = vpack.c.b16 %v518, %v493
  %v544 = vpack.c.b16 %v519, %v494
  %v545 = vpack.c.b16 %v520, %v495
  %v546 = vpack.c.b16 %v521, %v496
  %v963 = vunpack.c.l.b16 %v47
  %v964 = vunpack.c.l.b16 %v48
  %v965 = vunpack.c.l.b16 %v49
  %v966 = vunpack.c.l.b16 %v50
  %v967 = vunpack.c.l.b16 %v51
  %v968 = vunpack.c.l.b16 %v52
  %v969 = vunpack.c.l.b16 %v53
  %v970 = vunpack.c.l.b16 %v54
  %v971 = vunpack.c.l.b16 %v55
  %v972 = vunpack.c.l.b16 %v56
  %v973 = vunpack.c.l.b16 %v57
  %v974 = vunpack.c.l.b16 %v58
  %v975 = vunpack.c.l.b16 %v59
  %v976 = vunpack.c.l.b16 %v60
  %v977 = vunpack.c.l.b16 %v61
  %v978 = vunpack.c.l.b16 %v62
  %v979 = vunpack.c.l.b16 %v63
  %v980 = vunpack.c.l.b16 %v64
  %v981 = vunpack.c.l.b16 %v65
  %v982 = vunpack.c.l.b16 %v66
  %v983 = vunpack.c.l.b16 %v67
  %v984 = vunpack.c.l.b16 %v68
  %v985 = vunpack.c.l.b16 %v69
  %v986 = vunpack.c.l.b16 %v70
  %v987 = vunpack.c.l.b16 %v71
  %v988 = vunpack.c.l.b16 %v72
  %v989 = vunpack.c.l.b16 %v73
  %v990 = vunpack.c.l.b16 %v74
  %v991 = vunpack.c.l.b16 %v75
  %v992 = vunpack.c.l.b16 %v76
  %v993 = vunpack.c.l.b16 %v77
  %v994 = vunpack.c.l.b16 %v78
  %v995 = vunpack.c.l.b16 %v79
  %v996 = vunpack.c.l.b16 %v80
  %v997 = vunpack.c.l.b16 %v81
  %v998 = vunpack.c.l.b16 %v82
  %v999 = vunpack.c.l.b16 %v83
  %v1000 = vunpack.c.l.b16 %v84
  %v1001 = vunpack.c.l.b16 %v85
  %v1002 = vunpack.c.l.b16 %v86
  %v1003 = vunpack.c.l.b16 %v87
  %v1004 = vunpack.c.l.b16 %v88
  %v1005 = vunpack.c.l.b16 %v89
  %v1006 = vunpack.c.l.b16 %v90
  %v1007 = vunpack.c.l.b16 %v91
  %v1008 = vunpack.c.l.b16 %v92
  %v1009 = vunpack.c.l.b16 %v93
  %v1010 = vunpack.c.l.b16 %v94
  %v1011 = vunpack.c.l.b16 %v95
  %v1012 = vunpack.c.l.b16 %v96
  %v1013 = vunpack.c.l.b16 %v97
  %v1014 = vunpack.c.l.b16 %v98
  %v1015 = vunpack.c.l.b16 %v99
  %v1016 = vunpack.c.l.b16 %v100
  %v1017 = vunpack.c.l.b16 %v101
  %v1018 = vunpack.c.l.b16 %v102
  %v1019 = vunpack.c.l.b16 %v103
  %v1020 = vunpack.c.l.b16 %v104
  %v1021 = vunpack.c.l.b16 %v105
  %v1022 = vunpack.c.l.b16 %v106
  %v1023 = vunpack.c.l.b16 %v107
  %v1024 = vunpack.c.l.b16 %v108
  %v1025 = vunpack.c.l.b16 %v109
  %v1026 = vunpack.c.l.b16 %v110
  %v1027 = vunpack.c.l.b16 %v111
  %v1028 = vunpack.c.l.b16 %v112
  %v1029 = vunpack.c.l.b16 %v113
  %v1030 = vunpack.c.l.b16 %v114
  %v1031 = vunpack.c.l.b16 %v115
  %v1032 = vunpack.c.l.b16 %v116
  %v1033 = vunpack.c.l.b16 %v117
  %v1034 = vunpack.c.l.b16 %v118
  %v1035 = vunpack.c.l.b16 %v119
  %v1036 = vunpack.c.l.b16 %v120
  %v1037 = vunpack.c.l.b16 %v121
  %v1038 = vunpack.c.l.b16 %v122
  %v1039 = vunpack.c.l.b16 %v123
  %v1040 = vunpack.c.l.b16 %v124
  %v1041 = vunpack.c.l.b16 %v125
  %v1042 = vunpack.c.l.b16 %v126
  %v1043 = vunpack.c.l.b16 %v127
  %v1044 = vunpack.c.l.b16 %v128
  %v1045 = vunpack.c.l.b16 %v129
  %v1046 = vunpack.c.l.b16 %v130
  %v1047 = vunpack.c.l.b16 %v131
  %v1048 = vunpack.c.l.b16 %v132
  %v1049 = vunpack.c.l.b16 %v133
  %v1050 = vunpack.c.l.b16 %v134
  %v1051 = vunpack.c.l.b16 %v135
  %v1052 = vunpack.c.l.b16 %v136
  %v1053 = vunpack.c.l.b16 %v137
  %v1054 = vunpack.c.l.b16 %v138
  %v1055 = vunpack.c.l.b16 %v139
  %v1056 = vunpack.c.l.b16 %v140
  %v1057 = vunpack.c.l.b16 %v141
  %v1058 = vunpack.c.l.b16 %v142
  %v1059 = vunpack.c.l.b16 %v143
  %v1060 = vunpack.c.l.b16 %v144
  %v1061 = vunpack.c.l.b16 %v145
  %v1062 = vunpack.c.l.b16 %v146
  %v1063 = vunpack.c.l.b16 %v147
  %v1064 = vunpack.c.l.b16 %v148
  %v1065 = vunpack.c.l.b16 %v149
  %v1066 = vunpack.c.l.b16 %v150
  %v1067 = vunpack.c.l.b16 %v151
  %v1068 = vunpack.c.l.b16 %v152
  %v1069 = vunpack.c.l.b16 %v153
  %v1070 = vunpack.c.l.b16 %v154
  %v1071 = vunpack.c.l.b16 %v155
  %v1072 = vunpack.c.l.b16 %v156
  %v1073 = vunpack.c.l.b16 %v157
  %v1074 = vunpack.c.l.b16 %v158
  %v1075 = vunpack.c.l.b16 %v159
  %v1076 = vunpack.c.l.b16 %v160
  %v1077 = vunpack.c.l.b16 %v161
  %v1078 = vunpack.c.l.b16 %v162
  %v1079 = vunpack.c.l.b16 %v163
  %v1080 = vunpack.c.l.b16 %v164
  %v1081 = vunpack.c.l.b16 %v165
  %v1082 = vunpack.c.l.b16 %v166
  %v1083 = vunpack.c.l.b16 %v167
  %v1084 = vunpack.c.l.b16 %v168
  %v1085 = vunpack.c.l.b16 %v169
  %v1086 = vunpack.c.l.b16 %v170
  %v1087 = vunpack.c.l.b16 %v171
  %v1088 = vunpack.c.l.b16 %v172
  %v1089 = vunpack.c.l.b16 %v173
  %v1090 = vunpack.c.l.b16 %v174
  %v1091 = vunpack.c.l.b16 %v175
  %v1092 = vunpack.c.l.b16 %v176
  %v1093 = vunpack.c.l.b16 %v177
  %v1094 = vunpack.c.l.b16 %v178
  %v1095 = vunpack.c.l.b16 %v179
  %v1096 = vunpack.c.l.b16 %v180
  %v1097 = vunpack.c.l.b16 %v181
  %v1098 = vunpack.c.l.b16 %v182
  %v1099 = vunpack.c.l.b16 %v183
  %v1100 = vunpack.c.l.b16 %v184
  %v1101 = vunpack.c.l.b16 %v185
  %v1102 = vunpack.c.l.b16 %v186
  %v1103 = vunpack.c.l.b16 %v187
  %v1104 = vunpack.c.l.b16 %v188
  %v1105 = vunpack.c.l.b16 %v189
  %v1106 = vunpack.c.l.b16 %v190
  %v1107 = vunpack.c.l.b16 %v191
  %v1108 = vunpack.c.l.b16 %v192
  %v1109 = vunpack.c.l.b16 %v193
  %v1110 = vunpack.c.l.b16 %v194
  %v1111 = vunpack.c.l.b16 %v195
  %v1112 = vunpack.c.l.b16 %v196
  %v1113 = vunpack.c.l.b16 %v197
  %v1114 = vunpack.c.l.b16 %v198
  %v1115 = vunpack.c.l.b16 %v199
  %v1116 = vunpack.c.l.b16 %v200
  %v1117 = vunpack.c.l.b16 %v201
  %v1118 = vunpack.c.l.b16 %v202
  %v1119 = vunpack.c.l.b16 %v203
  %v1120 = vunpack.c.l.b16 %v204
  %v1121 = vunpack.c.l.b16 %v205
  %v1122 = vunpack.c.l.b16 %v206
  %v1123 = vunpack.c.l.b16 %v207
  %v1124 = vunpack.c.l.b16 %v208
  %v1125 = vunpack.c.l.b16 %v209
  %v1126 = vunpack.c.l.b16 %v210
  %v1127 = vunpack.c.l.b16 %v211
  %v1128 = vunpack.c.l.b16 %v212
  %v1129 = vunpack.c.l.b16 %v213
  %v1130 = vunpack.c.l.b16 %v214
  %v1131 = vunpack.c.l.b16 %v215
  %v1132 = vunpack.c.l.b16 %v216
  %v1133 = vunpack.c.l.b16 %v217
  %v1134 = vunpack.c.l.b16 %v218
  %v1135 = vunpack.c.l.b16 %v219
  %v1136 = vunpack.c.l.b16 %v220
  %v1137 = vunpack.c.l.b16 %v221
  %v1138 = vunpack.c.l.b16 %v222
  %v1139 = vunpack.c.l.b16 %v223
  %v1140 = vunpack.c.l.b16 %v224
  %v1141 = vunpack.c.l.b16 %v225
  %v1142 = vunpack.c.l.b16 %v226
  %v1143 = vunpack.c.l.b16 %v227
  %v1144 = vunpack.c.l.b16 %v228
  %v1145 = vunpack.c.l.b16 %v229
  %v1146 = vunpack.c.l.b16 %v230
  %v1147 = vunpack.c.l.b16 %v231
  %v1148 = vunpack.c.l.b16 %v232
  %v1149 = vunpack.c.l.b16 %v233
  %v1150 = vunpack.c.l.b16 %v234
  %v1151 = vunpack.c.l.b16 %v235
  %v1152 = vunpack.c.l.b16 %v236
  %v1153 = vunpack.c.l.b16 %v237
  %v1154 = vunpack.c.l.b16 %v238
  %v1155 = vunpack.c.l.b16 %v239
  %v1156 = vunpack.c.l.b16 %v240
  %v1157 = vunpack.c.l.b16 %v241
  %v1158 = vunpack.c.l.b16 %v242
  %v1159 = vunpack.c.l.b16 %v243
  %v1160 = vunpack.c.l.b16 %v244
  %v1161 = vunpack.c.l.b16 %v245
  %v1162 = vunpack.c.l.b16 %v246
  %v1163 = vunpack.c.l.b16 %v247
  %v1164 = vunpack.c.l.b16 %v248
  %v1165 = vunpack.c.l.b16 %v249
  %v1166 = vunpack.c.l.b16 %v250
  %v1167 = vunpack.c.l.b16 %v251
  %v1168 = vunpack.c.l.b16 %v252
  %v1169 = vunpack.c.l.b16 %v253
  %v1170 = vunpack.c.l.b16 %v254
  %v1171 = vunpack.c.l.b16 %v255
  %v1172 = vunpack.c.l.b16 %v256
  %v1173 = vunpack.c.l.b16 %v257
  %v1174 = vunpack.c.l.b16 %v258
  %v1175 = vunpack.c.l.b16 %v259
  %v1176 = vunpack.c.l.b16 %v260
  %v1177 = vunpack.c.l.b16 %v261
  %v1178 = vunpack.c.l.b16 %v262
  %v1179 = vunpack.c.l.b16 %v263
  %v1180 = vunpack.c.l.b16 %v264
  %v1181 = vunpack.c.l.b16 %v265
  %v1182 = vunpack.c.l.b16 %v266
  %v1183 = vunpack.c.l.b16 %v267
  %v1184 = vunpack.c.l.b16 %v268
  %v1185 = vunpack.c.l.b16 %v269
  %v1186 = vunpack.c.l.b16 %v270
  %v1187 = vunpack.c.l.b16 %v271
  %v1188 = vunpack.c.l.b16 %v272
  %v1189 = vunpack.c.l.b16 %v273
  %v1190 = vunpack.c.l.b16 %v274
  %v1191 = vunpack.c.l.b16 %v275
  %v1192 = vunpack.c.l.b16 %v276
  %v1193 = vunpack.c.l.b16 %v277
  %v1194 = vunpack.c.l.b16 %v278
  %v1195 = vunpack.c.l.b16 %v279
  %v1196 = vunpack.c.l.b16 %v280
  %v1197 = vunpack.c.l.b16 %v281
  %v1198 = vunpack.c.l.b16 %v282
  %v1199 = vunpack.c.l.b16 %v283
  %v1200 = vunpack.c.l.b16 %v284
  %v1201 = vunpack.c.l.b16 %v285
  %v1202 = vunpack.c.l.b16 %v286
  %v1203 = vunpack.c.l.b16 %v287
  %v1204 = vunpack.c.l.b16 %v288
  %v1205 = vunpack.c.l.b16 %v289
  %v1206 = vunpack.c.l.b16 %v290
  %v1207 = vunpack.c.l.b16 %v291
  %v1208 = vunpack.c.l.b16 %v292
  %v1209 = vunpack.c.l.b16 %v293
  %v1210 = vunpack.c.l.b16 %v294
  %v1211 = vunpack.c.l.b16 %v295
  %v1212 = vunpack.c.l.b16 %v296
  %v1213 = vunpack.c.l.b16 %v297
  %v1214 = vunpack.c.l.b16 %v298
  %v1215 = vunpack.c.l.b16 %v299
  %v1216 = vunpack.c.l.b16 %v300
  %v1217 = vunpack.c.l.b16 %v301
  %v1218 = vunpack.c.l.b16 %v302
  %v1219 = vunpack.c.l.b16 %v303
  %v1220 = vunpack.c.l.b16 %v304
  %v1221 = vunpack.c.l.b16 %v305
  %v1222 = vunpack.c.l.b16 %v306
  %v1223 = vunpack.c.l.b16 %v307
  %v1224 = vunpack.c.l.b16 %v308
  %v1225 = vunpack.c.l.b16 %v309
  %v1226 = vunpack.c.l.b16 %v310
  %v1227 = vunpack.c.l.b16 %v311
  %v1228 = vunpack.c.l.b16 %v312
  %v1229 = vunpack.c.l.b16 %v313
  %v1230 = vunpack.c.l.b16 %v314
  %v1231 = vunpack.c.l.b16 %v315
  %v1232 = vunpack.c.l.b16 %v316
  %v1233 = vunpack.c.l.b16 %v317
  %v1234 = vunpack.c.l.b16 %v318
  %v1235 = vunpack.c.l.b16 %v319
  %v1236 = vunpack.c.l.b16 %v320
  %v1237 = vunpack.c.l.b16 %v321
  %v1238 = vunpack.c.l.b16 %v322
  %v1239 = vunpack.c.l.b16 %v323
  %v1240 = vunpack.c.l.b16 %v324
  %v1241 = vunpack.c.l.b16 %v325
  %v1242 = vunpack.c.l.b16 %v326
  %v1243 = vunpack.c.l.b16 %v327
  %v1244 = vunpack.c.l.b16 %v328
  %v1245 = vunpack.c.l.b16 %v329
  %v1246 = vunpack.c.l.b16 %v330
  %v1247 = vunpack.c.l.b16 %v331
  %v1248 = vunpack.c.l.b16 %v332
  %v1249 = vunpack.c.l.b16 %v333
  %v1250 = vunpack.c.l.b16 %v334
  %v1251 = vunpack.c.l.b16 %v335
  %v1252 = vunpack.c.l.b16 %v336
  %v1253 = vunpack.c.l.b16 %v337
  %v1254 = vunpack.c.l.b16 %v338
  %v1255 = vunpack.c.l.b16 %v339
  %v1256 = vunpack.c.l.b16 %v340
  %v1257 = vunpack.c.l.b16 %v341
  %v1258 = vunpack.c.l.b16 %v342
  %v1259 = vunpack.c.l.b16 %v343
  %v1260 = vunpack.c.l.b16 %v344
  %v1261 = vunpack.c.l.b16 %v345
  %v1262 = vunpack.c.l.b16 %v346
  %v1263 = vunpack.c.l.b16 %v347
  %v1264 = vunpack.c.l.b16 %v348
  %v1265 = vunpack.c.l.b16 %v349
  %v1266 = vunpack.c.l.b16 %v350
  %v1267 = vunpack.c.l.b16 %v351
  %v1268 = vunpack.c.l.b16 %v352
  %v1269 = vunpack.c.l.b16 %v353
  %v1270 = vunpack.c.l.b16 %v354
  %v1271 = vunpack.c.l.b16 %v355
  %v1272 = vunpack.c.l.b16 %v356
  %v1273 = vunpack.c.l.b16 %v357
  %v1274 = vunpack.c.l.b16 %v358
  %v1275 = vunpack.c.l.b16 %v359
  %v1276 = vunpack.c.l.b16 %v360
  %v1277 = vunpack.c.l.b16 %v361
  %v1278 = vunpack.c.l.b16 %v362
  %v1279 = vunpack.c.l.b16 %v363
  %v1280 = vunpack.c.l.b16 %v364
  %v1281 = vunpack.c.l.b16 %v365
  %v1282 = vunpack.c.l.b16 %v366
  %v1283 = vunpack.c.l.b16 %v367
  %v1284 = vunpack.c.l.b16 %v368
  %v1285 = vunpack.c.l.b16 %v369
  %v1286 = vunpack.c.l.b16 %v370
  %v1287 = vunpack.c.l.b16 %v371
  %v1288 = vunpack.c.l.b16 %v372
  %v1289 = vunpack.c.l.b16 %v373
  %v1290 = vunpack.c.l.b16 %v374
  %v1291 = vunpack.c.l.b16 %v375
  %v1292 = vunpack.c.l.b16 %v376
  %v1293 = vunpack.c.l.b16 %v377
  %v1294 = vunpack.c.l.b16 %v378
  %v1295 = vunpack.c.l.b16 %v379
  %v1296 = vunpack.c.l.b16 %v380
  %v1297 = vunpack.c.l.b16 %v381
  %v1298 = vunpack.c.l.b16 %v382
  %v1299 = vunpack.c.l.b16 %v383
  %v1300 = vunpack.c.l.b16 %v384
  %v1301 = vunpack.c.l.b16 %v385
  %v1302 = vunpack.c.l.b16 %v386
  %v1303 = vunpack.c.l.b16 %v387
  %v1304 = vunpack.c.l.b16 %v388
  %v1305 = vunpack.c.l.b16 %v389
  %v1306 = vunpack.c.l.b16 %v390
  %v1307 = vunpack.c.l.b16 %v391
  %v1308 = vunpack.c.l.b16 %v392
  %v1309 = vunpack.c.l.b16 %v393
  %v1310 = vunpack.c.l.b16 %v394
  %v1311 = vunpack.c.l.b16 %v395
  %v1312 = vunpack.c.l.b16 %v396
  %v1313 = vunpack.c.l.b16 %v397
  %v1314 = vunpack.c.l.b16 %v398
  %v1315 = vunpack.c.l.b16 %v399
  %v1316 = vunpack.c.l.b16 %v400
  %v1317 = vunpack.c.l.b16 %v401
  %v1318 = vunpack.c.l.b16 %v402
  %v1319 = vunpack.c.l.b16 %v403
  %v1320 = vunpack.c.l.b16 %v404
  %v1321 = vunpack.c.l.b16 %v405
  %v1322 = vunpack.c.l.b16 %v406
  %v1323 = vunpack.c.l.b16 %v407
  %v1324 = vunpack.c.l.b16 %v408
  %v1325 = vunpack.c.l.b16 %v409
  %v1326 = vunpack.c.l.b16 %v410
  %v1327 = vunpack.c.l.b16 %v411
  %v1328 = vunpack.c.l.b16 %v412
  %v1329 = vunpack.c.l.b16 %v413
  %v1330 = vunpack.c.l.b16 %v414
  %v1331 = vunpack.c.l.b16 %v415
  %v1332 = vunpack.c.l.b16 %v416
  %v1333 = vunpack.c.l.b16 %v417
  %v1334 = vunpack.c.l.b16 %v418
  %v1335 = vunpack.c.l.b16 %v419
  %v1336 = vunpack.c.l.b16 %v420
  %v1337 = vunpack.c.l.b16 %v421
  %v1338 = vunpack.c.l.b16 %v422
  %v1339 = vunpack.c.l.b16 %v423
  %v1340 = vunpack.c.l.b16 %v424
  %v1341 = vunpack.c.l.b16 %v425
  %v1342 = vunpack.c.l.b16 %v426
  %v1343 = vunpack.c.l.b16 %v427
  %v1344 = vunpack.c.l.b16 %v428
  %v1345 = vunpack.c.l.b16 %v429
  %v1346 = vunpack.c.l.b16 %v430
  %v1347 = vunpack.c.l.b16 %v431
  %v1348 = vunpack.c.l.b16 %v432
  %v1349 = vunpack.c.l.b16 %v433
  %v1350 = vunpack.c.l.b16 %v434
  %v1351 = vunpack.c.l.b16 %v435
  %v1352 = vunpack.c.l.b16 %v436
  %v1353 = vunpack.c.l.b16 %v437
  %v1354 = vunpack.c.l.b16 %v438
  %v1355 = vpack.c.b16 %v964, %v963
  %v1356 = vpack.c.b16 %v966, %v965
  %v1357 = vpack.c.b16 %v968, %v967
  %v1358 = vpack.c.b16 %v970, %v969
  %v1359 = vpack.c.b16 %v972, %v971
  %v1360 = vpack.c.b16 %v974, %v973
  %v1361 = vpack.c.b16 %v976, %v975
  %v1362 = vpack.c.b16 %v978, %v977
  %v1363 = vpack.c.b16 %v980, %v979
  %v1364 = vpack.c.b16 %v982, %v981
  %v1365 = vpack.c.b16 %v984, %v983
  %v1366 = vpack.c.b16 %v986, %v985
  %v1367 = vpack.c.b16 %v988, %v987
  %v1368 = vpack.c.b16 %v990, %v989
  %v1369 = vpack.c.b16 %v992, %v991
  %v1370 = vpack.c.b16 %v994, %v993
  %v1371 = vpack.c.b16 %v996, %v995
  %v1372 = vpack.c.b16 %v998, %v997
  %v1373 = vpack.c.b16 %v1000, %v999
  %v1374 = vpack.c.b16 %v1002, %v1001
  %v1375 = vpack.c.b16 %v1004, %v1003
  %v1376 = vpack.c.b16 %v1006, %v1005
  %v1377 = vpack.c.b16 %v1008, %v1007
  %v1378 = vpack.c.b16 %v1010, %v1009
  %v1379 = vpack.c.b16 %v1012, %v1011
  %v1380 = vpack.c.b16 %v1014, %v1013
  %v1381 = vpack.c.b16 %v1016, %v1015
  %v1382 = vpack.c.b16 %v1018, %v1017
  %v1383 = vpack.c.b16 %v1020, %v1019
  %v1384 = vpack.c.b16 %v1022, %v1021
  %v1385 = vpack.c.b16 %v1024, %v1023
  %v1386 = vpack.c.b16 %v1026, %v1025
  %v1387 = vpack.c.b16 %v1028, %v1027
  %v1388 = vpack.c.b16 %v1030, %v1029
  %v1389 = vpack.c.b16 %v1032, %v1031
  %v1390 = vpack.c.b16 %v1034, %v1033
  %v1391 = vpack.c.b16 %v1036, %v1035
  %v1392 = vpack.c.b16 %v1038, %v1037
  %v1393 = vpack.c.b16 %v1040, %v1039
  %v1394 = vpack.c.b16 %v1042, %v1041
  %v1395 = vpack.c.b16 %v1044, %v1043
  %v1396 = vpack.c.b16 %v1046, %v1045
  %v1397 = vpack.c.b16 %v1048, %v1047
  %v1398 = vpack.c.b16 %v1050, %v1049
  %v1399 = vpack.c.b16 %v1052, %v1051
  %v1400 = vpack.c.b16 %v1054, %v1053
  %v1401 = vpack.c.b16 %v1056, %v1055
  %v1402 = vpack.c.b16 %v1058, %v1057
  %v1403 = vpack.c.b16 %v1060, %v1059
  %v1404 = vpack.c.b16 %v1062, %v1061
  %v1405 = vpack.c.b16 %v1064, %v1063
  %v1406 = vpack.c.b16 %v1066, %v1065
  %v1407 = vpack.c.b16 %v1068, %v1067
  %v1408 = vpack.c.b16 %v1070, %v1069
  %v1409 = vpack.c.b16 %v1072, %v1071
  %v1410 = vpack.c.b16 %v1074, %v1073
  %v1411 = vpack.c.b16 %v1076, %v1075
  %v1412 = vpack.c.b16 %v1078, %v1077
  %v1413 = vpack.c.b16 %v1080, %v1079
  %v1414 = vpack.c.b16 %v1082, %v1081
  %v1415 = vpack.c.b16 %v1084, %v1083
  %v1416 = vpack.c.b16 %v1086, %v1085
  %v1417 = vpack.c.b16 %v1088, %v1087
  %v1418 = vpack.c.b16 %v1090, %v1089
  %v1419 = vpack.c.b16 %v1092, %v1091
  %v1420 = vpack.c.b16 %v1094, %v1093
  %v1421 = vpack.c.b16 %v1096, %v1095
  %v1422 = vpack.c.b16 %v1098, %v1097
  %v1423 = vpack.c.b16 %v1100, %v1099
  %v1424 = vpack.c.b16 %v1102, %v1101
  %v1425 = vpack.c.b16 %v1104, %v1103
  %v1426 = vpack.c.b16 %v1106, %v1105
  %v1427 = vpack.c.b16 %v1108, %v1107
  %v1428 = vpack.c.b16 %v1110, %v1109
  %v1429 = vpack.c.b16 %v1112, %v1111
  %v1430 = vpack.c.b16 %v1114, %v1113
  %v1431 = vpack.c.b16 %v1116, %v1115
  %v1432 = vpack.c.b16 %v1118, %v1117
  %v1433 = vpack.c.b16 %v1120, %v1119
  %v1434 = vpack.c.b16 %v1122, %v1121
  %v1435 = vpack.c.b16 %v1124, %v1123
  %v1436 = vpack.c.b16 %v1126, %v1125
  %v1437 = vpack.c.b16 %v1128, %v1127
  %v1438 = vpack.c.b16 %v1130, %v1129
  %v1439 = vpack.c.b16 %v1132, %v1131
  %v1440 = vpack.c.b16 %v1134, %v1133
  %v1441 = vpack.c.b16 %v1136, %v1135
  %v1442 = vpack.c.b16 %v1138, %v1137
  %v1443 = vpack.c.b16 %v1140, %v1139
  %v1444 = vpack.c.b16 %v1142, %v1141
  %v1445 = vpack.c.b16 %v1144, %v1143
  %v1446 = vpack.c.b16 %v1146, %v1145
  %v1447 = vpack.c.b16 %v1148, %v1147
  %v1448 = vpack.c.b16 %v1150, %v1149
  %v1449 = vpack.c.b16 %v1152, %v1151
  %v1450 = vpack.c.b16 %v1154, %v1153
  %v1451 = vpack.c.b16 %v1156, %v1155
  %v1452 = vpack.c.b16 %v1158, %v1157
  %v1453 = vpack.c.b16 %v1160, %v1159
  %v1454 = vpack.c.b16 %v1162, %v1161
  %v1455 = vpack.c.b16 %v1164, %v1163
  %v1456 = vpack.c.b16 %v1166, %v1165
  %v1457 = vpack.c.b16 %v1168, %v1167
  %v1458 = vpack.c.b16 %v1170, %v1169
  %v1459 = vpack.c.b16 %v1172, %v1171
  %v1460 = vpack.c.b16 %v1174, %v1173
  %v1461 = vpack.c.b16 %v1176, %v1175
  %v1462 = vpack.c.b16 %v1178, %v1177
  %v1463 = vpack.c.b16 %v1180, %v1179
  %v1464 = vpack.c.b16 %v1182, %v1181
  %v1465 = vpack.c.b16 %v1184, %v1183
  %v1466 = vpack.c.b16 %v1186, %v1185
  %v1467 = vpack.c.b16 %v1188, %v1187
  %v1468 = vpack.c.b16 %v1190, %v1189
  %v1469 = vpack.c.b16 %v1192, %v1191
  %v1470 = vpack.c.b16 %v1194, %v1193
  %v1471 = vpack.c.b16 %v1196, %v1195
  %v1472 = vpack.c.b16 %v1198, %v1197
  %v1473 = vpack.c.b16 %v1200, %v1199
  %v1474 = vpack.c.b16 %v1202, %v1201
  %v1475 = vpack.c.b16 %v1204, %v1203
  %v1476 = vpack.c.b16 %v1206, %v1205
  %v1477 = vpack.c.b16 %v1208, %v1207
  %v1478 = vpack.c.b16 %v1210, %v1209
  %v1479 = vpack.c.b16 %v1212, %v1211
  %v1480 = vpack.c.b16 %v1214, %v1213
  %v1481 = vpack.c.b16 %v1216, %v1215
  %v1482 = vpack.c.b16 %v1218, %v1217
  %v1483 = vpack.c.b16 %v1220, %v1219
  %v1484 = vpack.c.b16 %v1222, %v1221
  %v1485 = vpack.c.b16 %v1224, %v1223
  %v1486 = vpack.c.b16 %v1226, %v1225
  %v1487 = vpack.c.b16 %v1228, %v1227
  %v1488 = vpack.c.b16 %v1230, %v1229
  %v1489 = vpack.c.b16 %v1232, %v1231
  %v1490 = vpack.c.b16 %v1234, %v1233
  %v1491 = vpack.c.b16 %v1236, %v1235
  %v1492 = vpack.c.b16 %v1238, %v1237
  %v1493 = vpack.c.b16 %v1240, %v1239
  %v1494 = vpack.c.b16 %v1242, %v1241
  %v1495 = vpack.c.b16 %v1244, %v1243
  %v1496 = vpack.c.b16 %v1246, %v1245
  %v1497 = vpack.c.b16 %v1248, %v1247
  %v1498 = vpack.c.b16 %v1250, %v1249
  %v1499 = vpack.c.b16 %v1252, %v1251
  %v1500 = vpack.c.b16 %v1254, %v1253
  %v1501 = vpack.c.b16 %v1256, %v1255
  %v1502 = vpack.c.b16 %v1258, %v1257
  %v1503 = vpack.c.b16 %v1260, %v1259
  %v1504 = vpack.c.b16 %v1262, %v1261
  %v1505 = vpack.c.b16 %v1264, %v1263
  %v1506 = vpack.c.b16 %v1266, %v1265
  %v1507 = vpack.c.b16 %v1268, %v1267
  %v1508 = vpack.c.b16 %v1270, %v1269
  %v1509 = vpack.c.b16 %v1272, %v1271
  %v1510 = vpack.c.b16 %v1274, %v1273
  %v1511 = vpack.c.b16 %v1276, %v1275
  %v1512 = vpack.c.b16 %v1278, %v1277
  %v1513 = vpack.c.b16 %v1280, %v1279
  %v1514 = vpack.c.b16 %v1282, %v1281
  %v1515 = vpack.c.b16 %v1284, %v1283
  %v1516 = vpack.c.b16 %v1286, %v1285
  %v1517 = vpack.c.b16 %v1288, %v1287
  %v1518 = vpack.c.b16 %v1290, %v1289
  %v1519 = vpack.c.b16 %v1292, %v1291
  %v1520 = vpack.c.b16 %v1294, %v1293
  %v1521 = vpack.c.b16 %v1296, %v1295
  %v1522 = vpack.c.b16 %v1298, %v1297
  %v1523 = vpack.c.b16 %v1300, %v1299
  %v1524 = vpack.c.b16 %v1302, %v1301
  %v1525 = vpack.c.b16 %v1304, %v1303
  %v1526 = vpack.c.b16 %v1306, %v1305
  %v1527 = vpack.c.b16 %v1308, %v1307
  %v1528 = vpack.c.b16 %v1310, %v1309
  %v1529 = vpack.c.b16 %v1312, %v1311
  %v1530 = vpack.c.b16 %v1314, %v1313
  %v1531 = vpack.c.b16 %v1316, %v1315
  %v1532 = vpack.c.b16 %v1318, %v1317
  %v1533 = vpack.c.b16 %v1320, %v1319
  %v1534 = vpack.c.b16 %v1322, %v1321
  %v1535 = vpack.c.b16 %v1324, %v1323
  %v1536 = vpack.c.b16 %v1326, %v1325
  %v1537 = vpack.c.b16 %v1328, %v1327
  %v1538 = vpack.c.b16 %v1330, %v1329
  %v1539 = vpack.c.b16 %v1332, %v1331
  %v1540 = vpack.c.b16 %v1334, %v1333
  %v1541 = vpack.c.b16 %v1336, %v1335
  %v1542 = vpack.c.b16 %v1338, %v1337
  %v1543 = vpack.c.b16 %v1340, %v1339
  %v1544 = vpack.c.b16 %v1342, %v1341
  %v1545 = vpack.c.b16 %v1344, %v1343
  %v1546 = vpack.c.b16 %v1346, %v1345
  %v1547 = vpack.c.b16 %v1348, %v1347
  %v1548 = vpack.c.b16 %v1350, %v1349
  %v1549 = vpack.c.b16 %v1352, %v1351
  %v1550 = vpack.c.b16 %v1354, %v1353
  %vm1747 = vcmask 523264
  %v1749 = vsel %vm1747, %v546, 0
  %1751 = vmatprep.subr.bf16.mxu0 0
  %1752 = vmatpush1.bf16.msra.mxu0 %v1355
  %1753 = vmatprep.subr.bf16.mxu0 0
  %1754 = vmatpush1.bf16.msra.mxu0 %v1356
  %1755 = vmatprep.subr.bf16.mxu0 0
  %1756 = vmatpush1.bf16.msra.mxu0 %v1357
  %1757 = vmatprep.subr.bf16.mxu0 0
  %1758 = vmatpush1.bf16.msra.mxu0 %v1358
  %1759 = vmatprep.subr.bf16.mxu0 0
  %1760 = vmatpush1.bf16.msra.mxu0 %v1359
  %1761 = vmatprep.subr.bf16.mxu0 0
  %1762 = vmatpush1.bf16.msra.mxu0 %v1360
  %1763 = vmatprep.subr.bf16.mxu0 0
  %1764 = vmatpush1.bf16.msra.mxu0 %v1361
  %1765 = vmatprep.subr.bf16.mxu0 0
  %1766 = vmatpush1.bf16.msra.mxu0 %v1362
  %1767 = vmatprep.subr.bf16.mxu0 0
  %1768 = vmatpush1.bf16.msra.mxu0 %v1363
  %1769 = vmatprep.subr.bf16.mxu0 0
  %1770 = vmatpush1.bf16.msra.mxu0 %v1364
  %1771 = vmatprep.subr.bf16.mxu0 0
  %1772 = vmatpush1.bf16.msra.mxu0 %v1365
  %1773 = vmatprep.subr.bf16.mxu0 0
  %1774 = vmatpush1.bf16.msra.mxu0 %v1366
  %1775 = vmatprep.subr.bf16.mxu0 0
  %1776 = vmatpush1.bf16.msra.mxu0 %v1367
  %1777 = vmatprep.subr.bf16.mxu0 0
  %1778 = vmatpush1.bf16.msra.mxu0 %v1368
  %1779 = vmatprep.subr.bf16.mxu0 0
  %1780 = vmatpush1.bf16.msra.mxu0 %v1369
  %1781 = vmatprep.subr.bf16.mxu0 0
  %1782 = vmatpush1.bf16.msra.mxu0 %v1370
  %1783 = vmatprep.mubr.bf16.mxu0 %v523
  %1784 = vmatmul.mubr.bf16.gmra.mrb[0].mxu0 %v522
  %v1785 = vpop.f32.mrb[0].mxu0
  %v1786 = vadd.f32 %v444, %v1785
  %v1787 = vpop.f32.mrb[0].mxu0
  %v1788 = vpop.f32.mrb[0].mxu0
  %v1789 = vadd.f32 %v444, %v1788
  %v1790 = vpop.f32.mrb[0].mxu0
  %1791 = vdwg.mxu0
  %1792 = vmatprep.subr.bf16.mxu0 0
  %1793 = vmatpush1.bf16.msra.mxu0 %v1371
  %1794 = vmatprep.subr.bf16.mxu0 0
  %1795 = vmatpush1.bf16.msra.mxu0 %v1372
  %1796 = vmatprep.subr.bf16.mxu0 0
  %1797 = vmatpush1.bf16.msra.mxu0 %v1373
  %1798 = vmatprep.subr.bf16.mxu0 0
  %1799 = vmatpush1.bf16.msra.mxu0 %v1374
  %1800 = vmatprep.subr.bf16.mxu0 0
  %1801 = vmatpush1.bf16.msra.mxu0 %v1375
  %1802 = vmatprep.subr.bf16.mxu0 0
  %1803 = vmatpush1.bf16.msra.mxu0 %v1376
  %1804 = vmatprep.subr.bf16.mxu0 0
  %1805 = vmatpush1.bf16.msra.mxu0 %v1377
  %1806 = vmatprep.subr.bf16.mxu0 0
  %1807 = vmatpush1.bf16.msra.mxu0 %v1378
  %1808 = vmatprep.subr.bf16.mxu0 0
  %1809 = vmatpush1.bf16.msra.mxu0 %v1379
  %1810 = vmatprep.subr.bf16.mxu0 0
  %1811 = vmatpush1.bf16.msra.mxu0 %v1380
  %1812 = vmatprep.subr.bf16.mxu0 0
  %1813 = vmatpush1.bf16.msra.mxu0 %v1381
  %1814 = vmatprep.subr.bf16.mxu0 0
  %1815 = vmatpush1.bf16.msra.mxu0 %v1382
  %1816 = vmatprep.subr.bf16.mxu0 0
  %1817 = vmatpush1.bf16.msra.mxu0 %v1383
  %1818 = vmatprep.subr.bf16.mxu0 0
  %1819 = vmatpush1.bf16.msra.mxu0 %v1384
  %1820 = vmatprep.subr.bf16.mxu0 0
  %1821 = vmatpush1.bf16.msra.mxu0 %v1385
  %1822 = vmatprep.subr.bf16.mxu0 0
  %1823 = vmatpush1.bf16.msra.mxu0 %v1386
  %1824 = vmatprep.mubr.bf16.mxu0 %v525
  %1825 = vmatmul.mubr.bf16.gmra.mrb[0].mxu0 %v524
  %v1826 = vpop.f32.mrb[0].mxu0
  %v1827 = vadd.f32 %v1786, %v1826
  %v1828 = vpop.f32.mrb[0].mxu0
  %v1829 = vpop.f32.mrb[0].mxu0
  %v1830 = vadd.f32 %v1789, %v1829
  %v1831 = vpop.f32.mrb[0].mxu0
  %1832 = vdwg.mxu0
  %1833 = vmatprep.subr.bf16.mxu0 0
  %1834 = vmatpush1.bf16.msra.mxu0 %v1387
  %1835 = vmatprep.subr.bf16.mxu0 0
  %1836 = vmatpush1.bf16.msra.mxu0 %v1388
  %1837 = vmatprep.subr.bf16.mxu0 0
  %1838 = vmatpush1.bf16.msra.mxu0 %v1389
  %1839 = vmatprep.subr.bf16.mxu0 0
  %1840 = vmatpush1.bf16.msra.mxu0 %v1390
  %1841 = vmatprep.subr.bf16.mxu0 0
  %1842 = vmatpush1.bf16.msra.mxu0 %v1391
  %1843 = vmatprep.subr.bf16.mxu0 0
  %1844 = vmatpush1.bf16.msra.mxu0 %v1392
  %1845 = vmatprep.subr.bf16.mxu0 0
  %1846 = vmatpush1.bf16.msra.mxu0 %v1393
  %1847 = vmatprep.subr.bf16.mxu0 0
  %1848 = vmatpush1.bf16.msra.mxu0 %v1394
  %1849 = vmatprep.subr.bf16.mxu0 0
  %1850 = vmatpush1.bf16.msra.mxu0 %v1395
  %1851 = vmatprep.subr.bf16.mxu0 0
  %1852 = vmatpush1.bf16.msra.mxu0 %v1396
  %1853 = vmatprep.subr.bf16.mxu0 0
  %1854 = vmatpush1.bf16.msra.mxu0 %v1397
  %1855 = vmatprep.subr.bf16.mxu0 0
  %1856 = vmatpush1.bf16.msra.mxu0 %v1398
  %1857 = vmatprep.subr.bf16.mxu0 0
  %1858 = vmatpush1.bf16.msra.mxu0 %v1399
  %1859 = vmatprep.subr.bf16.mxu0 0
  %1860 = vmatpush1.bf16.msra.mxu0 %v1400
  %1861 = vmatprep.subr.bf16.mxu0 0
  %1862 = vmatpush1.bf16.msra.mxu0 %v1401
  %1863 = vmatprep.subr.bf16.mxu0 0
  %1864 = vmatpush1.bf16.msra.mxu0 %v1402
  %1865 = vmatprep.mubr.bf16.mxu0 %v527
  %1866 = vmatmul.mubr.bf16.gmra.mrb[0].mxu0 %v526
  %v1867 = vpop.f32.mrb[0].mxu0
  %v1868 = vadd.f32 %v1827, %v1867
  %v1869 = vpop.f32.mrb[0].mxu0
  %v1870 = vpop.f32.mrb[0].mxu0
  %v1871 = vadd.f32 %v1830, %v1870
  %v1872 = vpop.f32.mrb[0].mxu0
  %1873 = vdwg.mxu0
  %1874 = vmatprep.subr.bf16.mxu0 0
  %1875 = vmatpush1.bf16.msra.mxu0 %v1403
  %1876 = vmatprep.subr.bf16.mxu0 0
  %1877 = vmatpush1.bf16.msra.mxu0 %v1404
  %1878 = vmatprep.subr.bf16.mxu0 0
  %1879 = vmatpush1.bf16.msra.mxu0 %v1405
  %1880 = vmatprep.subr.bf16.mxu0 0
  %1881 = vmatpush1.bf16.msra.mxu0 %v1406
  %1882 = vmatprep.subr.bf16.mxu0 0
  %1883 = vmatpush1.bf16.msra.mxu0 %v1407
  %1884 = vmatprep.subr.bf16.mxu0 0
  %1885 = vmatpush1.bf16.msra.mxu0 %v1408
  %1886 = vmatprep.subr.bf16.mxu0 0
  %1887 = vmatpush1.bf16.msra.mxu0 %v1409
  %1888 = vmatprep.subr.bf16.mxu0 0
  %1889 = vmatpush1.bf16.msra.mxu0 %v1410
  %1890 = vmatprep.subr.bf16.mxu0 0
  %1891 = vmatpush1.bf16.msra.mxu0 %v1411
  %1892 = vmatprep.subr.bf16.mxu0 0
  %1893 = vmatpush1.bf16.msra.mxu0 %v1412
  %1894 = vmatprep.subr.bf16.mxu0 0
  %1895 = vmatpush1.bf16.msra.mxu0 %v1413
  %1896 = vmatprep.subr.bf16.mxu0 0
  %1897 = vmatpush1.bf16.msra.mxu0 %v1414
  %1898 = vmatprep.subr.bf16.mxu0 0
  %1899 = vmatpush1.bf16.msra.mxu0 %v1415
  %1900 = vmatprep.subr.bf16.mxu0 0
  %1901 = vmatpush1.bf16.msra.mxu0 %v1416
  %1902 = vmatprep.subr.bf16.mxu0 0
  %1903 = vmatpush1.bf16.msra.mxu0 %v1417
  %1904 = vmatprep.subr.bf16.mxu0 0
  %1905 = vmatpush1.bf16.msra.mxu0 %v1418
  %1906 = vmatprep.mubr.bf16.mxu0 %v529
  %1907 = vmatmul.mubr.bf16.gmra.mrb[0].mxu0 %v528
  %v1908 = vpop.f32.mrb[0].mxu0
  %v1909 = vadd.f32 %v1868, %v1908
  %v1910 = vpop.f32.mrb[0].mxu0
  %v1911 = vpop.f32.mrb[0].mxu0
  %v1912 = vadd.f32 %v1871, %v1911
  %v1913 = vpop.f32.mrb[0].mxu0
  %1914 = vdwg.mxu0
  %1915 = vmatprep.subr.bf16.mxu0 0
  %1916 = vmatpush1.bf16.msra.mxu0 %v1419
  %1917 = vmatprep.subr.bf16.mxu0 0
  %1918 = vmatpush1.bf16.msra.mxu0 %v1420
  %1919 = vmatprep.subr.bf16.mxu0 0
  %1920 = vmatpush1.bf16.msra.mxu0 %v1421
  %1921 = vmatprep.subr.bf16.mxu0 0
  %1922 = vmatpush1.bf16.msra.mxu0 %v1422
  %1923 = vmatprep.subr.bf16.mxu0 0
  %1924 = vmatpush1.bf16.msra.mxu0 %v1423
  %1925 = vmatprep.subr.bf16.mxu0 0
  %1926 = vmatpush1.bf16.msra.mxu0 %v1424
  %1927 = vmatprep.subr.bf16.mxu0 0
  %1928 = vmatpush1.bf16.msra.mxu0 %v1425
  %1929 = vmatprep.subr.bf16.mxu0 0
  %1930 = vmatpush1.bf16.msra.mxu0 %v1426
  %1931 = vmatprep.subr.bf16.mxu0 0
  %1932 = vmatpush1.bf16.msra.mxu0 %v1427
  %1933 = vmatprep.subr.bf16.mxu0 0
  %1934 = vmatpush1.bf16.msra.mxu0 %v1428
  %1935 = vmatprep.subr.bf16.mxu0 0
  %1936 = vmatpush1.bf16.msra.mxu0 %v1429
  %1937 = vmatprep.subr.bf16.mxu0 0
  %1938 = vmatpush1.bf16.msra.mxu0 %v1430
  %1939 = vmatprep.subr.bf16.mxu0 0
  %1940 = vmatpush1.bf16.msra.mxu0 %v1431
  %1941 = vmatprep.subr.bf16.mxu0 0
  %1942 = vmatpush1.bf16.msra.mxu0 %v1432
  %1943 = vmatprep.subr.bf16.mxu0 0
  %1944 = vmatpush1.bf16.msra.mxu0 %v1433
  %1945 = vmatprep.subr.bf16.mxu0 0
  %1946 = vmatpush1.bf16.msra.mxu0 %v1434
  %1947 = vmatprep.mubr.bf16.mxu0 %v531
  %1948 = vmatmul.mubr.bf16.gmra.mrb[0].mxu0 %v530
  %v1949 = vpop.f32.mrb[0].mxu0
  %v1950 = vadd.f32 %v1909, %v1949
  %v1951 = vpop.f32.mrb[0].mxu0
  %v1952 = vpop.f32.mrb[0].mxu0
  %v1953 = vadd.f32 %v1912, %v1952
  %v1954 = vpop.f32.mrb[0].mxu0
  %1955 = vdwg.mxu0
  %1956 = vmatprep.subr.bf16.mxu0 0
  %1957 = vmatpush1.bf16.msra.mxu0 %v1435
  %1958 = vmatprep.subr.bf16.mxu0 0
  %1959 = vmatpush1.bf16.msra.mxu0 %v1436
  %1960 = vmatprep.subr.bf16.mxu0 0
  %1961 = vmatpush1.bf16.msra.mxu0 %v1437
  %1962 = vmatprep.subr.bf16.mxu0 0
  %1963 = vmatpush1.bf16.msra.mxu0 %v1438
  %1964 = vmatprep.subr.bf16.mxu0 0
  %1965 = vmatpush1.bf16.msra.mxu0 %v1439
  %1966 = vmatprep.subr.bf16.mxu0 0
  %1967 = vmatpush1.bf16.msra.mxu0 %v1440
  %1968 = vmatprep.subr.bf16.mxu0 0
  %1969 = vmatpush1.bf16.msra.mxu0 %v1441
  %1970 = vmatprep.subr.bf16.mxu0 0
  %1971 = vmatpush1.bf16.msra.mxu0 %v1442
  %1972 = vmatprep.subr.bf16.mxu0 0
  %1973 = vmatpush1.bf16.msra.mxu0 %v1443
  %1974 = vmatprep.subr.bf16.mxu0 0
  %1975 = vmatpush1.bf16.msra.mxu0 %v1444
  %1976 = vmatprep.subr.bf16.mxu0 0
  %1977 = vmatpush1.bf16.msra.mxu0 %v1445
  %1978 = vmatprep.subr.bf16.mxu0 0
  %1979 = vmatpush1.bf16.msra.mxu0 %v1446
  %1980 = vmatprep.subr.bf16.mxu0 0
  %1981 = vmatpush1.bf16.msra.mxu0 %v1447
  %1982 = vmatprep.subr.bf16.mxu0 0
  %1983 = vmatpush1.bf16.msra.mxu0 %v1448
  %1984 = vmatprep.subr.bf16.mxu0 0
  %1985 = vmatpush1.bf16.msra.mxu0 %v1449
  %1986 = vmatprep.subr.bf16.mxu0 0
  %1987 = vmatpush1.bf16.msra.mxu0 %v1450
  %1988 = vmatprep.mubr.bf16.mxu0 %v533
  %1989 = vmatmul.mubr.bf16.gmra.mrb[0].mxu0 %v532
  %v1990 = vpop.f32.mrb[0].mxu0
  %v1991 = vadd.f32 %v1950, %v1990
  %v1992 = vpop.f32.mrb[0].mxu0
  %v1993 = vpop.f32.mrb[0].mxu0
  %v1994 = vadd.f32 %v1953, %v1993
  %v1995 = vpop.f32.mrb[0].mxu0
  %1996 = vdwg.mxu0
  %1997 = vmatprep.subr.bf16.mxu0 0
  %1998 = vmatpush1.bf16.msra.mxu0 %v1451
  %1999 = vmatprep.subr.bf16.mxu0 0
  %2000 = vmatpush1.bf16.msra.mxu0 %v1452
  %2001 = vmatprep.subr.bf16.mxu0 0
  %2002 = vmatpush1.bf16.msra.mxu0 %v1453
  %2003 = vmatprep.subr.bf16.mxu0 0
  %2004 = vmatpush1.bf16.msra.mxu0 %v1454
  %2005 = vmatprep.subr.bf16.mxu0 0
  %2006 = vmatpush1.bf16.msra.mxu0 %v1455
  %2007 = vmatprep.subr.bf16.mxu0 0
  %2008 = vmatpush1.bf16.msra.mxu0 %v1456
  %2009 = vmatprep.subr.bf16.mxu0 0
  %2010 = vmatpush1.bf16.msra.mxu0 %v1457
  %2011 = vmatprep.subr.bf16.mxu0 0
  %2012 = vmatpush1.bf16.msra.mxu0 %v1458
  %2013 = vmatprep.subr.bf16.mxu0 0
  %2014 = vmatpush1.bf16.msra.mxu0 %v1459
  %2015 = vmatprep.subr.bf16.mxu0 0
  %2016 = vmatpush1.bf16.msra.mxu0 %v1460
  %2017 = vmatprep.subr.bf16.mxu0 0
  %2018 = vmatpush1.bf16.msra.mxu0 %v1461
  %2019 = vmatprep.subr.bf16.mxu0 0
  %2020 = vmatpush1.bf16.msra.mxu0 %v1462
  %2021 = vmatprep.subr.bf16.mxu0 0
  %2022 = vmatpush1.bf16.msra.mxu0 %v1463
  %2023 = vmatprep.subr.bf16.mxu0 0
  %2024 = vmatpush1.bf16.msra.mxu0 %v1464
  %2025 = vmatprep.subr.bf16.mxu0 0
  %2026 = vmatpush1.bf16.msra.mxu0 %v1465
  %2027 = vmatprep.subr.bf16.mxu0 0
  %2028 = vmatpush1.bf16.msra.mxu0 %v1466
  %2029 = vmatprep.mubr.bf16.mxu0 %v535
  %2030 = vmatmul.mubr.bf16.gmra.mrb[0].mxu0 %v534
  %v2031 = vpop.f32.mrb[0].mxu0
  %v2032 = vadd.f32 %v1991, %v2031
  %v2033 = vpop.f32.mrb[0].mxu0
  %v2034 = vpop.f32.mrb[0].mxu0
  %v2035 = vadd.f32 %v1994, %v2034
  %v2036 = vpop.f32.mrb[0].mxu0
  %2037 = vdwg.mxu0
  %2038 = vmatprep.subr.bf16.mxu0 0
  %2039 = vmatpush1.bf16.msra.mxu0 %v1467
  %2040 = vmatprep.subr.bf16.mxu0 0
  %2041 = vmatpush1.bf16.msra.mxu0 %v1468
  %2042 = vmatprep.subr.bf16.mxu0 0
  %2043 = vmatpush1.bf16.msra.mxu0 %v1469
  %2044 = vmatprep.subr.bf16.mxu0 0
  %2045 = vmatpush1.bf16.msra.mxu0 %v1470
  %2046 = vmatprep.subr.bf16.mxu0 0
  %2047 = vmatpush1.bf16.msra.mxu0 %v1471
  %2048 = vmatprep.subr.bf16.mxu0 0
  %2049 = vmatpush1.bf16.msra.mxu0 %v1472
  %2050 = vmatprep.subr.bf16.mxu0 0
  %2051 = vmatpush1.bf16.msra.mxu0 %v1473
  %2052 = vmatprep.subr.bf16.mxu0 0
  %2053 = vmatpush1.bf16.msra.mxu0 %v1474
  %2054 = vmatprep.subr.bf16.mxu0 0
  %2055 = vmatpush1.bf16.msra.mxu0 %v1475
  %2056 = vmatprep.subr.bf16.mxu0 0
  %2057 = vmatpush1.bf16.msra.mxu0 %v1476
  %2058 = vmatprep.subr.bf16.mxu0 0
  %2059 = vmatpush1.bf16.msra.mxu0 %v1477
  %2060 = vmatprep.subr.bf16.mxu0 0
  %2061 = vmatpush1.bf16.msra.mxu0 %v1478
  %2062 = vmatprep.subr.bf16.mxu0 0
  %2063 = vmatpush1.bf16.msra.mxu0 %v1479
  %2064 = vmatprep.subr.bf16.mxu0 0
  %2065 = vmatpush1.bf16.msra.mxu0 %v1480
  %2066 = vmatprep.subr.bf16.mxu0 0
  %2067 = vmatpush1.bf16.msra.mxu0 %v1481
  %2068 = vmatprep.subr.bf16.mxu0 0
  %2069 = vmatpush1.bf16.msra.mxu0 %v1482
  %2070 = vmatprep.mubr.bf16.mxu0 %v537
  %2071 = vmatmul.mubr.bf16.gmra.mrb[0].mxu0 %v536
  %v2072 = vpop.f32.mrb[0].mxu0
  %v2073 = vadd.f32 %v2032, %v2072
  %v2074 = vpop.f32.mrb[0].mxu0
  %v2075 = vpop.f32.mrb[0].mxu0
  %v2076 = vadd.f32 %v2035, %v2075
  %v2077 = vpop.f32.mrb[0].mxu0
  %2078 = vdwg.mxu0
  %2079 = vmatprep.subr.bf16.mxu0 0
  %2080 = vmatpush1.bf16.msra.mxu0 %v1483
  %2081 = vmatprep.subr.bf16.mxu0 0
  %2082 = vmatpush1.bf16.msra.mxu0 %v1484
  %2083 = vmatprep.subr.bf16.mxu0 0
  %2084 = vmatpush1.bf16.msra.mxu0 %v1485
  %2085 = vmatprep.subr.bf16.mxu0 0
  %2086 = vmatpush1.bf16.msra.mxu0 %v1486
  %2087 = vmatprep.subr.bf16.mxu0 0
  %2088 = vmatpush1.bf16.msra.mxu0 %v1487
  %2089 = vmatprep.subr.bf16.mxu0 0
  %2090 = vmatpush1.bf16.msra.mxu0 %v1488
  %2091 = vmatprep.subr.bf16.mxu0 0
  %2092 = vmatpush1.bf16.msra.mxu0 %v1489
  %2093 = vmatprep.subr.bf16.mxu0 0
  %2094 = vmatpush1.bf16.msra.mxu0 %v1490
  %2095 = vmatprep.subr.bf16.mxu0 0
  %2096 = vmatpush1.bf16.msra.mxu0 %v1491
  %2097 = vmatprep.subr.bf16.mxu0 0
  %2098 = vmatpush1.bf16.msra.mxu0 %v1492
  %2099 = vmatprep.subr.bf16.mxu0 0
  %2100 = vmatpush1.bf16.msra.mxu0 %v1493
  %2101 = vmatprep.subr.bf16.mxu0 0
  %2102 = vmatpush1.bf16.msra.mxu0 %v1494
  %2103 = vmatprep.subr.bf16.mxu0 0
  %2104 = vmatpush1.bf16.msra.mxu0 %v1495
  %2105 = vmatprep.subr.bf16.mxu0 0
  %2106 = vmatpush1.bf16.msra.mxu0 %v1496
  %2107 = vmatprep.subr.bf16.mxu0 0
  %2108 = vmatpush1.bf16.msra.mxu0 %v1497
  %2109 = vmatprep.subr.bf16.mxu0 0
  %2110 = vmatpush1.bf16.msra.mxu0 %v1498
  %2111 = vmatprep.mubr.bf16.mxu0 %v539
  %2112 = vmatmul.mubr.bf16.gmra.mrb[0].mxu0 %v538
  %v2113 = vpop.f32.mrb[0].mxu0
  %v2114 = vadd.f32 %v2073, %v2113
  %v2115 = vpop.f32.mrb[0].mxu0
  %v2116 = vpop.f32.mrb[0].mxu0
  %v2117 = vadd.f32 %v2076, %v2116
  %v2118 = vpop.f32.mrb[0].mxu0
  %2119 = vdwg.mxu0
  %2120 = vmatprep.subr.bf16.mxu0 0
  %2121 = vmatpush1.bf16.msra.mxu0 %v1499
  %2122 = vmatprep.subr.bf16.mxu0 0
  %2123 = vmatpush1.bf16.msra.mxu0 %v1500
  %2124 = vmatprep.subr.bf16.mxu0 0
  %2125 = vmatpush1.bf16.msra.mxu0 %v1501
  %2126 = vmatprep.subr.bf16.mxu0 0
  %2127 = vmatpush1.bf16.msra.mxu0 %v1502
  %2128 = vmatprep.subr.bf16.mxu0 0
  %2129 = vmatpush1.bf16.msra.mxu0 %v1503
  %2130 = vmatprep.subr.bf16.mxu0 0
  %2131 = vmatpush1.bf16.msra.mxu0 %v1504
  %2132 = vmatprep.subr.bf16.mxu0 0
  %2133 = vmatpush1.bf16.msra.mxu0 %v1505
  %2134 = vmatprep.subr.bf16.mxu0 0
  %2135 = vmatpush1.bf16.msra.mxu0 %v1506
  %2136 = vmatprep.subr.bf16.mxu0 0
  %2137 = vmatpush1.bf16.msra.mxu0 %v1507
  %2138 = vmatprep.subr.bf16.mxu0 0
  %2139 = vmatpush1.bf16.msra.mxu0 %v1508
  %2140 = vmatprep.subr.bf16.mxu0 0
  %2141 = vmatpush1.bf16.msra.mxu0 %v1509
  %2142 = vmatprep.subr.bf16.mxu0 0
  %2143 = vmatpush1.bf16.msra.mxu0 %v1510
  %2144 = vmatprep.subr.bf16.mxu0 0
  %2145 = vmatpush1.bf16.msra.mxu0 %v1511
  %2146 = vmatprep.subr.bf16.mxu0 0
  %2147 = vmatpush1.bf16.msra.mxu0 %v1512
  %2148 = vmatprep.subr.bf16.mxu0 0
  %2149 = vmatpush1.bf16.msra.mxu0 %v1513
  %2150 = vmatprep.subr.bf16.mxu0 0
  %2151 = vmatpush1.bf16.msra.mxu0 %v1514
  %2152 = vmatprep.mubr.bf16.mxu0 %v541
  %2153 = vmatmul.mubr.bf16.gmra.mrb[0].mxu0 %v540
  %v2154 = vpop.f32.mrb[0].mxu0
  %v2155 = vadd.f32 %v2114, %v2154
  %v2156 = vpop.f32.mrb[0].mxu0
  %v2157 = vpop.f32.mrb[0].mxu0
  %v2158 = vadd.f32 %v2117, %v2157
  %v2159 = vpop.f32.mrb[0].mxu0
  %2160 = vdwg.mxu0
  %2161 = vmatprep.subr.bf16.mxu0 0
  %2162 = vmatpush1.bf16.msra.mxu0 %v1515
  %2163 = vmatprep.subr.bf16.mxu0 0
  %2164 = vmatpush1.bf16.msra.mxu0 %v1516
  %2165 = vmatprep.subr.bf16.mxu0 0
  %2166 = vmatpush1.bf16.msra.mxu0 %v1517
  %2167 = vmatprep.subr.bf16.mxu0 0
  %2168 = vmatpush1.bf16.msra.mxu0 %v1518
  %2169 = vmatprep.subr.bf16.mxu0 0
  %2170 = vmatpush1.bf16.msra.mxu0 %v1519
  %2171 = vmatprep.subr.bf16.mxu0 0
  %2172 = vmatpush1.bf16.msra.mxu0 %v1520
  %2173 = vmatprep.subr.bf16.mxu0 0
  %2174 = vmatpush1.bf16.msra.mxu0 %v1521
  %2175 = vmatprep.subr.bf16.mxu0 0
  %2176 = vmatpush1.bf16.msra.mxu0 %v1522
  %2177 = vmatprep.subr.bf16.mxu0 0
  %2178 = vmatpush1.bf16.msra.mxu0 %v1523
  %2179 = vmatprep.subr.bf16.mxu0 0
  %2180 = vmatpush1.bf16.msra.mxu0 %v1524
  %2181 = vmatprep.subr.bf16.mxu0 0
  %2182 = vmatpush1.bf16.msra.mxu0 %v1525
  %2183 = vmatprep.subr.bf16.mxu0 0
  %2184 = vmatpush1.bf16.msra.mxu0 %v1526
  %2185 = vmatprep.subr.bf16.mxu0 0
  %2186 = vmatpush1.bf16.msra.mxu0 %v1527
  %2187 = vmatprep.subr.bf16.mxu0 0
  %2188 = vmatpush1.bf16.msra.mxu0 %v1528
  %2189 = vmatprep.subr.bf16.mxu0 0
  %2190 = vmatpush1.bf16.msra.mxu0 %v1529
  %2191 = vmatprep.subr.bf16.mxu0 0
  %2192 = vmatpush1.bf16.msra.mxu0 %v1530
  %2193 = vmatprep.mubr.bf16.mxu0 %v543
  %2194 = vmatmul.mubr.bf16.gmra.mrb[0].mxu0 %v542
  %v2195 = vpop.f32.mrb[0].mxu0
  %v2196 = vadd.f32 %v2155, %v2195
  %v2197 = vpop.f32.mrb[0].mxu0
  %v2198 = vpop.f32.mrb[0].mxu0
  %v2199 = vadd.f32 %v2158, %v2198
  %v2200 = vpop.f32.mrb[0].mxu0
  %2201 = vdwg.mxu0
  %2202 = vmatprep.subr.bf16.mxu0 0
  %2203 = vmatpush1.bf16.msra.mxu0 %v1531
  %2204 = vmatprep.subr.bf16.mxu0 0
  %2205 = vmatpush1.bf16.msra.mxu0 %v1532
  %2206 = vmatprep.subr.bf16.mxu0 0
  %2207 = vmatpush1.bf16.msra.mxu0 %v1533
  %2208 = vmatprep.subr.bf16.mxu0 0
  %2209 = vmatpush1.bf16.msra.mxu0 %v1534
  %2210 = vmatprep.subr.bf16.mxu0 0
  %2211 = vmatpush1.bf16.msra.mxu0 %v1535
  %2212 = vmatprep.subr.bf16.mxu0 0
  %2213 = vmatpush1.bf16.msra.mxu0 %v1536
  %2214 = vmatprep.subr.bf16.mxu0 0
  %2215 = vmatpush1.bf16.msra.mxu0 %v1537
  %2216 = vmatprep.subr.bf16.mxu0 0
  %2217 = vmatpush1.bf16.msra.mxu0 %v1538
  %2218 = vmatprep.subr.bf16.mxu0 0
  %2219 = vmatpush1.bf16.msra.mxu0 %v1539
  %2220 = vmatprep.subr.bf16.mxu0 0
  %2221 = vmatpush1.bf16.msra.mxu0 %v1540
  %2222 = vmatprep.subr.bf16.mxu0 0
  %2223 = vmatpush1.bf16.msra.mxu0 %v1541
  %2224 = vmatprep.subr.bf16.mxu0 0
  %2225 = vmatpush1.bf16.msra.mxu0 %v1542
  %2226 = vmatprep.subr.bf16.mxu0 0
  %2227 = vmatpush1.bf16.msra.mxu0 %v1543
  %2228 = vmatprep.subr.bf16.mxu0 0
  %2229 = vmatpush1.bf16.msra.mxu0 %v1544
  %2230 = vmatprep.subr.bf16.mxu0 0
  %2231 = vmatpush1.bf16.msra.mxu0 %v1545
  %2232 = vmatprep.subr.bf16.mxu0 0
  %2233 = vmatpush1.bf16.msra.mxu0 %v1546
  %2234 = vmatprep.mubr.bf16.mxu0 %v545
  %2235 = vmatmul.mubr.bf16.gmra.mrb[0].mxu0 %v544
  %v2236 = vpop.f32.mrb[0].mxu0
  %v2237 = vadd.f32 %v2196, %v2236
  %v2238 = vpop.f32.mrb[0].mxu0
  %v2239 = vpop.f32.mrb[0].mxu0
  %v2240 = vadd.f32 %v2199, %v2239
  %v2241 = vpop.f32.mrb[0].mxu0
  %2242 = vdwg.mxu0
  %2243 = vmatprep.subr.bf16.mxu0 0
  %2244 = vmatpush1.bf16.msra.mxu0 %v1547
  %2245 = vmatprep.subr.bf16.mxu0 0
  %2246 = vmatpush1.bf16.msra.mxu0 %v1548
  %2247 = vmatprep.subr.bf16.mxu0 0
  %2248 = vmatpush1.bf16.msra.mxu0 %v1549
  %2249 = vmatprep.subr.bf16.mxu0 0
  %2250 = vmatpush1.bf16.msra.mxu0 %v1550
  %2251 = vmatprep.subr.bf16.mxu0 0
  %2252 = vmatpush1.bf16.msra.mxu0 0
  %2253 = vmatprep.subr.bf16.mxu0 0
  %2254 = vmatpush1.bf16.msra.mxu0 0
  %2255 = vmatprep.subr.bf16.mxu0 0
  %2256 = vmatpush1.bf16.msra.mxu0 0
  %2257 = vmatprep.subr.bf16.mxu0 0
  %2258 = vmatpush1.bf16.msra.mxu0 0
  %2259 = vmatprep.subr.bf16.mxu0 0
  %2260 = vmatpush1.bf16.msra.mxu0 0
  %2261 = vmatprep.subr.bf16.mxu0 0
  %2262 = vmatpush1.bf16.msra.mxu0 0
  %2263 = vmatprep.subr.bf16.mxu0 0
  %2264 = vmatpush1.bf16.msra.mxu0 0
  %2265 = vmatprep.subr.bf16.mxu0 0
  %2266 = vmatpush1.bf16.msra.mxu0 0
  %2267 = vmatprep.subr.bf16.mxu0 0
  %2268 = vmatpush1.bf16.msra.mxu0 0
  %2269 = vmatprep.subr.bf16.mxu0 0
  %2270 = vmatpush1.bf16.msra.mxu0 0
  %2271 = vmatprep.subr.bf16.mxu0 0
  %2272 = vmatpush1.bf16.msra.mxu0 0
  %2273 = vmatprep.subr.bf16.mxu0 0
  %2274 = vmatpush1.bf16.msra.mxu0 0
  %2275 = vmatprep.mubr.bf16.mxu0 0
  %2276 = vmatmul.mubr.bf16.gmra.mrb[0].mxu0 %v1749
  %v2277 = vpop.f32.mrb[0].mxu0
  %v2278 = vadd.f32 %v2237, %v2277
  %v2279 = vpop.f32.mrb[0].mxu0
  %v2280 = vpop.f32.mrb[0].mxu0
  %v2281 = vadd.f32 %v2240, %v2280
  %v2282 = vpop.f32.mrb[0].mxu0
  %2283 = vdwg.mxu0
  %v2284 = vmax.f32 %v2278, 0.0
  %v2285 = vmax.f32 %v2281, 0.0
  %v2286 = vpack.c.bf16 %v2285, %v2284
  %v2287 = vld [vmem:[%s3] sm:$0xf]
  %v2288 = vld [vmem:[%s3 + $0x4] sm:$0xf]
  %v2289 = vld [vmem:[%s3 + $0x8] sm:$0xf]
  %v2290 = vld [vmem:[%s3 + $0xc] sm:$0xf]
  %v2291 = vld [vmem:[%s3 + $0x10] sm:$0xf]
  %v2292 = vld [vmem:[%s3 + $0x14] sm:$0xf]
  %v2293 = vld [vmem:[%s3 + $0x18] sm:$0xf]
  %v2294 = vld [vmem:[%s3 + $0x1c] sm:$0xf]
  %v2295 = vld [vmem:[%s3 + $0x20] sm:$0xf]
  %v2296 = vld [vmem:[%s3 + $0x24] sm:$0xf]
  %v2297 = vld [vmem:[%s3 + $0x28] sm:$0xf]
  %v2298 = vld [vmem:[%s3 + $0x2c] sm:$0xf]
  %v2299 = vld [vmem:[%s3 + $0x30] sm:$0xf]
  %v2300 = vld [vmem:[%s3 + $0x34] sm:$0xf]
  %v2301 = vld [vmem:[%s3 + $0x38] sm:$0xf]
  %v2302 = vld [vmem:[%s3 + $0x3c] sm:$0xf]
  %v2303 = vld [vmem:[%s4] sm:$0x1]
  %v2305 = vlaneseq
  %v2306 = vshrl.u32 %v2305, 7
  %v2307 = vsub.s32 0, %v2306
  %v2308 = vrot.slane %v2303, %v2307
  %v2326 = vunpack.c.l.b16 %v2287
  %v2327 = vunpack.c.l.b16 %v2288
  %v2328 = vunpack.c.l.b16 %v2289
  %v2329 = vunpack.c.l.b16 %v2290
  %v2330 = vunpack.c.l.b16 %v2291
  %v2331 = vunpack.c.l.b16 %v2292
  %v2332 = vunpack.c.l.b16 %v2293
  %v2333 = vunpack.c.l.b16 %v2294
  %v2334 = vunpack.c.l.b16 %v2295
  %v2335 = vunpack.c.l.b16 %v2296
  %v2336 = vunpack.c.l.b16 %v2297
  %v2337 = vunpack.c.l.b16 %v2298
  %v2338 = vunpack.c.l.b16 %v2299
  %v2339 = vunpack.c.l.b16 %v2300
  %v2340 = vunpack.c.l.b16 %v2301
  %v2341 = vunpack.c.l.b16 %v2302
  %v2342 = vpack.c.b16 %v2327, %v2326
  %v2343 = vpack.c.b16 %v2329, %v2328
  %v2344 = vpack.c.b16 %v2331, %v2330
  %v2345 = vpack.c.b16 %v2333, %v2332
  %v2346 = vpack.c.b16 %v2335, %v2334
  %v2347 = vpack.c.b16 %v2337, %v2336
  %v2348 = vpack.c.b16 %v2339, %v2338
  %v2349 = vpack.c.b16 %v2341, %v2340
  %2358 = vmatprep.subr.bf16.mxu0 0
  %2359 = vmatpush1.bf16.msra.mxu0 %v2342
  %2360 = vmatprep.subr.bf16.mxu0 0
  %2361 = vmatpush1.bf16.msra.mxu0 %v2343
  %2362 = vmatprep.subr.bf16.mxu0 0
  %2363 = vmatpush1.bf16.msra.mxu0 %v2344
  %2364 = vmatprep.subr.bf16.mxu0 0
  %2365 = vmatpush1.bf16.msra.mxu0 %v2345
  %2366 = vmatprep.subr.bf16.mxu0 0
  %2367 = vmatpush1.bf16.msra.mxu0 %v2346
  %2368 = vmatprep.subr.bf16.mxu0 0
  %2369 = vmatpush1.bf16.msra.mxu0 %v2347
  %2370 = vmatprep.subr.bf16.mxu0 0
  %2371 = vmatpush1.bf16.msra.mxu0 %v2348
  %2372 = vmatprep.subr.bf16.mxu0 0
  %2373 = vmatpush1.bf16.msra.mxu0 %v2349
  %2374 = vmatprep.subr.bf16.mxu0 0
  %2375 = vmatpush1.bf16.msra.mxu0 0
  %2376 = vmatprep.subr.bf16.mxu0 0
  %2377 = vmatpush1.bf16.msra.mxu0 0
  %2378 = vmatprep.subr.bf16.mxu0 0
  %2379 = vmatpush1.bf16.msra.mxu0 0
  %2380 = vmatprep.subr.bf16.mxu0 0
  %2381 = vmatpush1.bf16.msra.mxu0 0
  %2382 = vmatprep.subr.bf16.mxu0 0
  %2383 = vmatpush1.bf16.msra.mxu0 0
  %2384 = vmatprep.subr.bf16.mxu0 0
  %2385 = vmatpush1.bf16.msra.mxu0 0
  %2386 = vmatprep.subr.bf16.mxu0 0
  %2387 = vmatpush1.bf16.msra.mxu0 0
  %2388 = vmatprep.subr.bf16.mxu0 0
  %2389 = vmatpush1.bf16.msra.mxu0 0
  %2390 = vmatprep.mubr.bf16.mxu0 0
  %2391 = vmatmul.mubr.bf16.gmra.mrb[0].mxu0 %v2286
  %v2392 = vpop.f32.mrb[0].mxu0
  %v2393 = vadd.f32 %v2308, %v2392
  %v2394 = vpop.f32.mrb[0].mxu0
  %v2395 = vpop.f32.mrb[0].mxu0
  %v2396 = vadd.f32 %v2308, %v2395
  %v2397 = vpop.f32.mrb[0].mxu0
  %2398 = vdwg.mxu0
  %vm2399 = vcmask 392192
  %2400 = vst.msk [vmem:[%s5] sm:$0xff] %vm2399, %v2393
  %2401 = vst.msk [vmem:[%s5 + $0x8] sm:$0xff] %vm2399, %v2396
  // Predicated region
  $region22: #{cnn_regression_forward.5} parent=0 // pred_check
    _
  $region23: #{cnn_regression_forward.5} parent=0 // pred_check_branch
    %2403 = sbr.rel (0) target = $region25
  $region24: #{cnn_regression_forward.5} parent=0 // pred_region
    _
  $region25: #{cnn_regression_forward.5} parent=0 // pred_fallthru
    _
  // Predicated region
  $region26: #{cnn_regression_forward.5} parent=0 // pred_check
    _
  $region27: #{cnn_regression_forward.5} parent=0 // pred_check_branch
    %2405 = sbr.rel (0) target = $region29
  $region28: #{cnn_regression_forward.5} parent=0 // pred_region
    _
  $region29: #{cnn_regression_forward.5} parent=0 // pred_fallthru
    _

</llo_original>
